<compile_context>
chip_gen: v7x
topology: tpu7x:2x2x1
jax: 0.10.0
libtpu: 0.0.40
codegen_flags: <defaults>
</compile_context>

<pallas_src>
import functools
import math

import jax
import jax.numpy as jnp
from jax import lax
from jax.experimental import pallas as pl
from jax.experimental.pallas import tpu as pltpu


_LANES = 128
_W_OFF = 8                       # sublane-aligned interior start of the conv2 pad buffer
_VMEM_LIMIT = 32 * 1024 * 1024   # safe on v5e/v6e (128 MiB) and v7x (64 MiB/TC)


def _round_up(v, m):
    return (v + m - 1) // m * m


# ----------------------------- in-kernel helpers -----------------------------

def _window(xref, h0, w0, Ho, Wo, stride):
    """Load a (Ho, Wo, C) spatial window starting at (h0, w0) from a 3-D f32 ref view."""
    if stride == 1:
        return xref[h0:h0 + Ho, w0:w0 + Wo, :]
    # TODO(synk): strided window loads only validated for stride == 1.
    return xref[h0:h0 + (Ho - 1) * stride + 1:stride,
                w0:w0 + (Wo - 1) * stride + 1:stride, :]


def _conv3x3(xref, w_ref, Ho, Wo, stride, h_base, w_base):
    """3x3 conv as 9 shifted MXU matmuls.

    xref:  3-D f32 ref view (H_src, W_src, Cin), spatially padded so the window
           for tap (dh, dw) starts at (h_base + dh, w_base + dw).
    w_ref: (9, Cin, Cout) bf16 ref with t = dh*3 + dw.
    Returns a (Ho*Wo, Cout) f32 accumulator.
    """
    acc = None
    for t in range(9):
        dh, dw = t // 3, t % 3
        win = _window(xref, h_base + dh, w_base + dw, Ho, Wo, stride)
        lhs = win.reshape(Ho * Wo, win.shape[-1]).astype(jnp.bfloat16)
        part = jnp.dot(lhs, w_ref[t], preferred_element_type=jnp.float32)
        acc = part if acc is None else acc + part
    return acc


def _accum_stats(y, sum_ref, sq_ref):
    # Single pass: per-channel sum and sum-of-squares (var = E[y^2] - mu^2 later).
    sum_ref[...] += jnp.sum(y, axis=0, keepdims=True)
    sq_ref[...] += jnp.sum(y * y, axis=0, keepdims=True)


# --------------------------------- kernels -----------------------------------

def _conv1_proj_kernel(x_ref, w1_ref, b1_ref, ws_ref, bs_ref,
                       y1_ref, ysc_ref, s1_ref, q1_ref, ss_ref, qs_ref,
                       *, Ho, Wo, stride):
    """conv1 (3x3, stride, pad=1) + bias, and 1x1/stride projection shortcut.

    Emits pre-BN activations plus per-channel sum / sum-of-squares accumulated
    across the batch grid axis (global training-mode BatchNorm statistics).
    """
    n = pl.program_id(0)

    @pl.when(n == 0)
    def _():
        s1_ref[...] = jnp.zeros_like(s1_ref)
        q1_ref[...] = jnp.zeros_like(q1_ref)
        ss_ref[...] = jnp.zeros_like(ss_ref)
        qs_ref[...] = jnp.zeros_like(qs_ref)

    cpo = y1_ref.shape[-1]
    xv = x_ref.at[0]                                  # (Hp, Wp, Cpi) f32 view

    y1 = _conv3x3(xv, w1_ref, Ho, Wo, stride, 0, 0) + b1_ref[...]
    y1_ref[0] = y1.reshape(Ho, Wo, cpo)
    _accum_stats(y1, s1_ref, q1_ref)

    # 1x1 projection: reads x at (1 + ho*stride, 1 + wo*stride) in padded coords.
    xc = _window(xv, 1, 1, Ho, Wo, stride)
    ysc = jnp.dot(xc.reshape(Ho * Wo, xc.shape[-1]).astype(jnp.bfloat16),
                  ws_ref[...], preferred_element_type=jnp.float32) + bs_ref[...]
    ysc_ref[0] = ysc.reshape(Ho, Wo, cpo)
    _accum_stats(ysc, ss_ref, qs_ref)


def _conv1_kernel(x_ref, w1_ref, b1_ref, y1_ref, s1_ref, q1_ref,
                  *, Ho, Wo, stride):
    """conv1 only (identity-shortcut case, ch_in == ch_out)."""
    n = pl.program_id(0)

    @pl.when(n == 0)
    def _():
        s1_ref[...] = jnp.zeros_like(s1_ref)
        q1_ref[...] = jnp.zeros_like(q1_ref)

    cpo = y1_ref.shape[-1]
    y1 = _conv3x3(x_ref.at[0], w1_ref, Ho, Wo, stride, 0, 0) + b1_ref[...]
    y1_ref[0] = y1.reshape(Ho, Wo, cpo)
    _accum_stats(y1, s1_ref, q1_ref)


def _bn1_relu_conv2_kernel(y1_ref, sc1_ref, sh1_ref, w2_ref, b2_ref,
                           y2_ref, s2_ref, q2_ref, xpad_ref, *, Ho, Wo):
    """Fused BN1 (hoisted scale/shift FMA) + ReLU + conv2 (3x3, s=1) + BN2 stats."""
    n = pl.program_id(0)

    @pl.when(n == 0)
    def _():
        s2_ref[...] = jnp.zeros_like(s2_ref)
        q2_ref[...] = jnp.zeros_like(q2_ref)
        xpad_ref[...] = jnp.zeros_like(xpad_ref)   # zero halo once; reused after

    cpo = y2_ref.shape[-1]
    # BN1 as a single FMA + ReLU; store into the padded buffer at a
    # sublane-aligned column offset so the VMEM store is unmasked.
    out1 = jnp.maximum(y1_ref[0] * sc1_ref[...] + sh1_ref[...], 0.0)
    xpad_ref[1:1 + Ho, _W_OFF:_W_OFF + Wo, :] = out1

    y2 = _conv3x3(xpad_ref, w2_ref, Ho, Wo, 1, 0, _W_OFF - 1) + b2_ref[...]
    y2_ref[0] = y2.reshape(Ho, Wo, cpo)
    _accum_stats(y2, s2_ref, q2_ref)


def _bn2_add_relu_kernel(y2_ref, r_ref, sc2_ref, sh2_ref, scs_ref, shs_ref, o_ref):
    """out = relu(bn2(y2) + bn_s(residual)); each BN is a single FMA."""
    out = jnp.maximum(y2_ref[0] * sc2_ref[...] + sh2_ref[...]
                      + r_ref[0] * scs_ref[...] + shs_ref[...], 0.0)
    o_ref[0] = out.astype(o_ref.dtype)


# ------------------------------ JAX-side glue --------------------------------

def _prep_w3x3(w_oihw, cpi, cpo):
    # (Cout, Cin, 3, 3) -> (3, 3, Cin, Cout) -> pad channels -> (9, cpi, cpo) bf16.
    w = jnp.transpose(w_oihw, (2, 3, 1, 0))
    w = jnp.pad(w, ((0, 0), (0, 0),
                    (0, cpi - w.shape[2]), (0, cpo - w.shape[3])))
    return w.reshape(9, cpi, cpo).astype(jnp.bfloat16)


def _prep_w1x1(w_oihw, cpi, cpo):
    w = jnp.transpose(w_oihw[:, :, 0, 0], (1, 0))      # (Cin, Cout)
    w = jnp.pad(w, ((0, cpi - w.shape[0]), (0, cpo - w.shape[1])))
    return w.astype(jnp.bfloat16)


def _prep_vec(v, cpo):
    v = v.astype(jnp.float32).reshape(1, -1)
    return jnp.pad(v, ((0, 0), (0, cpo - v.shape[1])))


def _bn_scale_shift(s, q, count, gamma, beta, cpo, eps):
    """Fold training-mode BN into y*scale + shift (biased variance)."""
    mu = s / count
    var = jnp.maximum(q / count - mu * mu, 0.0)        # E[y^2] - mu^2
    scale = _prep_vec(gamma, cpo) * lax.rsqrt(var + eps)
    shift = _prep_vec(beta, cpo) - mu * scale
    return scale, shift


def res_block(x_nchw, params, *, stride=1, eps=1e-5):
    """Pallas ResBlock forward (training-mode BatchNorm). x_nchw: (N,Cin,H,W) f32."""
    N, Cin, H, W = x_nchw.shape
    Cout = params["w1"].shape[0]
    Ho = (H - 1) // stride + 1
    Wo = (W - 1) // stride + 1
    Cpi = _round_up(Cin, _LANES)
    Cpo = _round_up(Cout, _LANES)
    proj = Cin != Cout
    count = N * Ho * Wo

    x = jnp.transpose(x_nchw, (0, 2, 3, 1)).astype(jnp.float32)            # NHWC
    x_pad = jnp.pad(x, ((0, 0), (1, 1), (1, 1), (0, Cpi - Cin)))           # f32

    w1 = _prep_w3x3(params["w1"], Cpi, Cpo)
    b1 = _prep_vec(params["b1"], Cpo)
    w2 = _prep_w3x3(params["w2"], Cpo, Cpo)
    b2 = _prep_vec(params["b2"], Cpo)

    img_blk = lambda: pl.BlockSpec((1, Ho, Wo, Cpo), lambda n: (n, 0, 0, 0))
    vec_blk = lambda: pl.BlockSpec((1, Cpo), lambda n: (0, 0))
    w3_spec = lambda ci: pl.BlockSpec((9, ci, Cpo), lambda n: (0, 0, 0))
    xin_spec = pl.BlockSpec((1, H + 2, W + 2, Cpi), lambda n: (n, 0, 0, 0))

    img_out = jax.ShapeDtypeStruct((N, Ho, Wo, Cpo), jnp.float32)
    vec_out = jax.ShapeDtypeStruct((1, Cpo), jnp.float32)

    arb = pltpu.CompilerParams(dimension_semantics=("arbitrary",),
                               vmem_limit_bytes=_VMEM_LIMIT)
    par = pltpu.CompilerParams(dimension_semantics=("parallel",),
                               vmem_limit_bytes=_VMEM_LIMIT)

    # ---- conv1 (+ projection shortcut) + global BN1/BN_s statistics ---------
    if proj:
        ws = _prep_w1x1(params["ws"], Cpi, Cpo)
        bs = _prep_vec(params["bs"], Cpo)
        cost1 = pl.CostEstimate(
            flops=int(2 * count * Cpi * Cpo * 10), transcendentals=0,
            bytes_accessed=int(x_pad.size * 4 + w1.size * 2 + ws.size * 2
                               + 2 * count * Cpo * 4))
        y1, ysc, s1, q1, ss, qs = pl.pallas_call(
            functools.partial(_conv1_proj_kernel, Ho=Ho, Wo=Wo, stride=stride),
            grid=(N,),
            in_specs=[xin_spec, w3_spec(Cpi), vec_blk(),
                      pl.BlockSpec((Cpi, Cpo), lambda n: (0, 0)), vec_blk()],
            out_specs=[img_blk(), img_blk(),
                       vec_blk(), vec_blk(), vec_blk(), vec_blk()],
            out_shape=[img_out, img_out, vec_out, vec_out, vec_out, vec_out],
            compiler_params=arb,
            cost_estimate=cost1,
        )(x_pad, w1, b1, ws, bs)
    else:
        cost1 = pl.CostEstimate(
            flops=int(2 * count * Cpi * Cpo * 9), transcendentals=0,
            bytes_accessed=int(x_pad.size * 4 + w1.size * 2 + count * Cpo * 4))
        y1, s1, q1 = pl.pallas_call(
            functools.partial(_conv1_kernel, Ho=Ho, Wo=Wo, stride=stride),
            grid=(N,),
            in_specs=[xin_spec, w3_spec(Cpi), vec_blk()],
            out_specs=[img_blk(), vec_blk(), vec_blk()],
            out_shape=[img_out, vec_out, vec_out],
            compiler_params=arb,
            cost_estimate=cost1,
        )(x_pad, w1, b1)

    # ---- BN1 + ReLU fused into conv2; global BN2 statistics ------------------
    sc1, sh1 = _bn_scale_shift(s1, q1, count, params["g1"], params["beta1"], Cpo, eps)
    cost2 = pl.CostEstimate(
        flops=int(2 * count * Cpo * Cpo * 9), transcendentals=0,
        bytes_accessed=int(w2.size * 2 + 2 * count * Cpo * 4))
    y2, s2, q2 = pl.pallas_call(
        functools.partial(_bn1_relu_conv2_kernel, Ho=Ho, Wo=Wo),
        grid=(N,),
        in_specs=[img_blk(), vec_blk(), vec_blk(), w3_spec(Cpo), vec_blk()],
        out_specs=[img_blk(), vec_blk(), vec_blk()],
        out_shape=[img_out, vec_out, vec_out],
        scratch_shapes=[pltpu.VMEM((Ho + 2, Wo + _W_OFF + 1, Cpo), jnp.float32)],
        compiler_params=arb,
        cost_estimate=cost2,
    )(y1, sc1, sh1, w2, b2)

    # ---- BN2 + shortcut-BN + residual add + ReLU (elementwise epilogue) ------
    sc2, sh2 = _bn_scale_shift(s2, q2, count, params["g2"], params["beta2"], Cpo, eps)
    if proj:
        scs, shs = _bn_scale_shift(ss, qs, count, params["gs"], params["betas"], Cpo, eps)
        residual = ysc
    else:
        # identity shortcut: strided subsample of x, channel-padded, no BN.
        x_sub = x[:, ::stride, ::stride, :][:, :Ho, :Wo, :]
        residual = jnp.pad(x_sub, ((0, 0), (0, 0), (0, 0), (0, Cpo - Cin)))
        scs = jnp.ones((1, Cpo), jnp.float32)
        shs = jnp.zeros((1, Cpo), jnp.float32)

    out_p = pl.pallas_call(
        _bn2_add_relu_kernel,
        grid=(N,),
        in_specs=[img_blk(), img_blk(),
                  vec_blk(), vec_blk(), vec_blk(), vec_blk()],
        out_specs=img_blk(),
        out_shape=img_out,
        compiler_params=par,
    )(y2, residual, sc2, sh2, scs, shs)

    return jnp.transpose(out_p[..., :Cout], (0, 3, 1, 2))                  # NCHW


# ----------------------- pure-JAX reference (sanity) -------------------------

def _ref_res_block(x, params, *, stride=1, eps=1e-5):
    """Reference with bf16 conv operands + f32 accumulation (mirrors the kernel)."""
    def conv(x, w, b, s, pad):
        y = lax.conv_general_dilated(
            x.astype(jnp.bfloat16), w.astype(jnp.bfloat16), (s, s),
            [(pad, pad), (pad, pad)],
            dimension_numbers=("NCHW", "OIHW", "NCHW"),
            preferred_element_type=jnp.float32)
        return y + b[None, :, None, None]

    def bn(y, g, bt):
        mu = y.mean(axis=(0, 2, 3), keepdims=True)
        var = ((y - mu) ** 2).mean(axis=(0, 2, 3), keepdims=True)
        return (y - mu) * lax.rsqrt(var + eps) * g[None, :, None, None] \
            + bt[None, :, None, None]

    ch_in, ch_out = x.shape[1], params["w1"].shape[0]
    out = jax.nn.relu(bn(conv(x, params["w1"], params["b1"], stride, 1),
                         params["g1"], params["beta1"]))
    out = bn(conv(out, params["w2"], params["b2"], 1, 1),
             params["g2"], params["beta2"])
    if ch_in != ch_out:
        sc = bn(conv(x, params["ws"], params["bs"], stride, 0),
                params["gs"], params["betas"])
    else:
        sc = x[:, :, ::stride, ::stride]
    return jax.nn.relu(sc + out)


# ----------------------------------- main ------------------------------------

if __name__ == "__main__":
    N, Cin, H, W = 2, 4, 16, 16
    Cout, stride = 8, 1

    key = jax.random.PRNGKey(0)
    keys = jax.random.split(key, 8)

    def uinit(k, shape, fan_in):
        bound = 1.0 / math.sqrt(fan_in)
        return jax.random.uniform(k, shape, jnp.float32, -bound, bound)

    params = {
        "w1": uinit(keys[1], (Cout, Cin, 3, 3), Cin * 9),
        "b1": uinit(keys[2], (Cout,), Cin * 9),
        "g1": jnp.ones((Cout,), jnp.float32),
        "beta1": jnp.zeros((Cout,), jnp.float32),
        "w2": uinit(keys[3], (Cout, Cout, 3, 3), Cout * 9),
        "b2": uinit(keys[4], (Cout,), Cout * 9),
        "g2": jnp.ones((Cout,), jnp.float32),
        "beta2": jnp.zeros((Cout,), jnp.float32),
        "ws": uinit(keys[5], (Cout, Cin, 1, 1), Cin),
        "bs": uinit(keys[6], (Cout,), Cin),
        "gs": jnp.ones((Cout,), jnp.float32),
        "betas": jnp.zeros((Cout,), jnp.float32),
    }

    x = jax.random.normal(keys[0], (N, Cin, H, W), jnp.float32)

    fwd = jax.jit(functools.partial(res_block, stride=stride))
    out = jax.block_until_ready(fwd(x, params))
    ref = jax.block_until_ready(_ref_res_block(x, params, stride=stride))

    assert out.shape == (N, Cout, H // stride, W // stride), out.shape
    err = float(jnp.max(jnp.abs(out - ref)))
    assert jnp.allclose(out, ref, rtol=2e-2, atol=2e-2), err
    print("KERNEL_OK")
</pallas_src>

<mosaic_0001>
module attributes {stable_mosaic.version = 11 : i64} {
  func.func @_conv1_proj_kernel(%arg0: i32, %arg1: memref<1x18x18x128xf32, #tpu.memory_space<vmem>>, %arg2: memref<9x128x128xbf16, #tpu.memory_space<vmem>>, %arg3: memref<1x128xf32, #tpu.memory_space<vmem>>, %arg4: memref<128x128xbf16, #tpu.memory_space<vmem>>, %arg5: memref<1x128xf32, #tpu.memory_space<vmem>>, %arg6: memref<1x16x16x128xf32, #tpu.memory_space<vmem>>, %arg7: memref<1x16x16x128xf32, #tpu.memory_space<vmem>>, %arg8: memref<1x128xf32, #tpu.memory_space<vmem>>, %arg9: memref<1x128xf32, #tpu.memory_space<vmem>>, %arg10: memref<1x128xf32, #tpu.memory_space<vmem>>, %arg11: memref<1x128xf32, #tpu.memory_space<vmem>>) attributes {dimension_semantics = [#tpu.dimension_semantics<arbitrary>], iteration_bounds = array<i64: 2>, scalar_prefetch = 0 : i64, scratch_operands = 0 : i64, tpu.core_type = #tpu.core_type<tc>, window_params = [{transform_indices = @transform_0, window_bounds = array<i64: 1, 18, 18, 128>}, {pipeline_mode = #tpu.pipeline_mode<synchronous>, transform_indices = @transform_1, window_bounds = array<i64: 9, 128, 128>}, {pipeline_mode = #tpu.pipeline_mode<synchronous>, transform_indices = @transform_2, window_bounds = array<i64: 1, 128>}, {pipeline_mode = #tpu.pipeline_mode<synchronous>, transform_indices = @transform_3, window_bounds = array<i64: 128, 128>}, {pipeline_mode = #tpu.pipeline_mode<synchronous>, transform_indices = @transform_4, window_bounds = array<i64: 1, 128>}, {transform_indices = @transform_5, window_bounds = array<i64: 1, 16, 16, 128>}, {transform_indices = @transform_6, window_bounds = array<i64: 1, 16, 16, 128>}, {pipeline_mode = #tpu.pipeline_mode<synchronous>, transform_indices = @transform_7, window_bounds = array<i64: 1, 128>}, {pipeline_mode = #tpu.pipeline_mode<synchronous>, transform_indices = @transform_8, window_bounds = array<i64: 1, 128>}, {pipeline_mode = #tpu.pipeline_mode<synchronous>, transform_indices = @transform_9, window_bounds = array<i64: 1, 128>}, {pipeline_mode = #tpu.pipeline_mode<synchronous>, transform_indices = @transform_10, window_bounds = array<i64: 1, 128>}]} {
    %c0_i32 = arith.constant 0 : i32
    %0 = arith.cmpi eq, %arg0, %c0_i32 : i32
    %1 = arith.extui %0 : i1 to i32
    %c0_i32_0 = arith.constant 0 : i32
    %2 = arith.cmpi ne, %1, %c0_i32_0 : i32
    scf.if %2 {
      %cst_132 = arith.constant 0.000000e+00 : f32
      %126 = vector.broadcast %cst_132 : f32 to vector<1x128xf32>
      %c0_133 = arith.constant 0 : index
      %c0_134 = arith.constant 0 : index
      %127 = vector.load %arg8[%c0_133, %c0_134] : memref<1x128xf32, #tpu.memory_space<vmem>>, vector<1x128xf32>
      tpu.vector_store %arg8[%c0_133, %c0_134], %126 {strides = array<i32>} : memref<1x128xf32, #tpu.memory_space<vmem>>, vector<1x128xf32>,
      %cst_135 = arith.constant 0.000000e+00 : f32
      %128 = vector.broadcast %cst_135 : f32 to vector<1x128xf32>
      %c0_136 = arith.constant 0 : index
      %c0_137 = arith.constant 0 : index
      %129 = vector.load %arg9[%c0_136, %c0_137] : memref<1x128xf32, #tpu.memory_space<vmem>>, vector<1x128xf32>
      tpu.vector_store %arg9[%c0_136, %c0_137], %128 {strides = array<i32>} : memref<1x128xf32, #tpu.memory_space<vmem>>, vector<1x128xf32>,
      %cst_138 = arith.constant 0.000000e+00 : f32
      %130 = vector.broadcast %cst_138 : f32 to vector<1x128xf32>
      %c0_139 = arith.constant 0 : index
      %c0_140 = arith.constant 0 : index
      %131 = vector.load %arg10[%c0_139, %c0_140] : memref<1x128xf32, #tpu.memory_space<vmem>>, vector<1x128xf32>
      tpu.vector_store %arg10[%c0_139, %c0_140], %130 {strides = array<i32>} : memref<1x128xf32, #tpu.memory_space<vmem>>, vector<1x128xf32>,
      %cst_141 = arith.constant 0.000000e+00 : f32
      %132 = vector.broadcast %cst_141 : f32 to vector<1x128xf32>
      %c0_142 = arith.constant 0 : index
      %c0_143 = arith.constant 0 : index
      %133 = vector.load %arg11[%c0_142, %c0_143] : memref<1x128xf32, #tpu.memory_space<vmem>>, vector<1x128xf32>
      tpu.vector_store %arg11[%c0_142, %c0_143], %132 {strides = array<i32>} : memref<1x128xf32, #tpu.memory_space<vmem>>, vector<1x128xf32>,
    } else {
    }
    %c0_i32_1 = arith.constant 0 : i32
    %c0_i32_2 = arith.constant 0 : i32
    %c0_i32_3 = arith.constant 0 : i32
    %c0_i32_4 = arith.constant 0 : i32
    %3 = tpu.memref_slice %arg1[%c0_i32_1, %c0_i32_2, %c0_i32_3, %c0_i32_4] : memref<1x18x18x128xf32, #tpu.memory_space<vmem>> -> memref<1x18x18x128xf32, #tpu.memory_space<vmem>>
    %4 = tpu.memref_squeeze %3 : memref<1x18x18x128xf32, #tpu.memory_space<vmem>> -> memref<18x18x128xf32, #tpu.memory_space<vmem>>
    %c0 = arith.constant 0 : index
    %c0_5 = arith.constant 0 : index
    %c0_6 = arith.constant 0 : index
    %5 = vector.load %4[%c0, %c0_5, %c0_6] : memref<18x18x128xf32, #tpu.memory_space<vmem>>, vector<16x16x128xf32>
    %6 = vector.shape_cast %5 : vector<16x16x128xf32> to vector<256x128xf32>
    %7 = arith.truncf %6 : vector<256x128xf32> to vector<256x128xbf16>
    %c0_7 = arith.constant 0 : index
    %c0_8 = arith.constant 0 : index
    %c0_9 = arith.constant 0 : index
    %8 = vector.load %arg2[%c0_7, %c0_8, %c0_9] : memref<9x128x128xbf16, #tpu.memory_space<vmem>>, vector<1x128x128xbf16>
    %9 = vector.shape_cast %8 : vector<1x128x128xbf16> to vector<128x128xbf16>
    %cst = arith.constant dense<0.000000e+00> : vector<256x128xf32>
    %10 = tpu.matmul %7, %9, %cst {dimension_numbers = #tpu.dot_dimension_numbers<[1], [0], [0], [1], [0, 0, 1, 1], [], []>} : vector<256x128xbf16>, vector<128x128xbf16>, vector<256x128xf32> -> vector<256x128xf32>
    %c0_i32_10 = arith.constant 0 : i32
    %c0_i32_11 = arith.constant 0 : i32
    %c0_i32_12 = arith.constant 0 : i32
    %c0_i32_13 = arith.constant 0 : i32
    %11 = tpu.memref_slice %arg1[%c0_i32_10, %c0_i32_11, %c0_i32_12, %c0_i32_13] : memref<1x18x18x128xf32, #tpu.memory_space<vmem>> -> memref<1x18x18x128xf32, #tpu.memory_space<vmem>>
    %12 = tpu.memref_squeeze %11 : memref<1x18x18x128xf32, #tpu.memory_space<vmem>> -> memref<18x18x128xf32, #tpu.memory_space<vmem>>
    %c0_14 = arith.constant 0 : index
    %c1 = arith.constant 1 : index
    %c0_15 = arith.constant 0 : index
    %13 = vector.load %12[%c0_14, %c1, %c0_15] : memref<18x18x128xf32, #tpu.memory_space<vmem>>, vector<16x16x128xf32>
    %14 = vector.shape_cast %13 : vector<16x16x128xf32> to vector<256x128xf32>
    %15 = arith.truncf %14 : vector<256x128xf32> to vector<256x128xbf16>
    %c1_16 = arith.constant 1 : index
    %c0_17 = arith.constant 0 : index
    %c0_18 = arith.constant 0 : index
    %16 = vector.load %arg2[%c1_16, %c0_17, %c0_18] : memref<9x128x128xbf16, #tpu.memory_space<vmem>>, vector<1x128x128xbf16>
    %17 = vector.shape_cast %16 : vector<1x128x128xbf16> to vector<128x128xbf16>
    %cst_19 = arith.constant dense<0.000000e+00> : vector<256x128xf32>
    %18 = tpu.matmul %15, %17, %cst_19 {dimension_numbers = #tpu.dot_dimension_numbers<[1], [0], [0], [1], [0, 0, 1, 1], [], []>} : vector<256x128xbf16>, vector<128x128xbf16>, vector<256x128xf32> -> vector<256x128xf32>
    %19 = arith.addf %10, %18 : vector<256x128xf32>
    %c0_i32_20 = arith.constant 0 : i32
    %c0_i32_21 = arith.constant 0 : i32
    %c0_i32_22 = arith.constant 0 : i32
    %c0_i32_23 = arith.constant 0 : i32
    %20 = tpu.memref_slice %arg1[%c0_i32_20, %c0_i32_21, %c0_i32_22, %c0_i32_23] : memref<1x18x18x128xf32, #tpu.memory_space<vmem>> -> memref<1x18x18x128xf32, #tpu.memory_space<vmem>>
    %21 = tpu.memref_squeeze %20 : memref<1x18x18x128xf32, #tpu.memory_space<vmem>> -> memref<18x18x128xf32, #tpu.memory_space<vmem>>
    %c0_24 = arith.constant 0 : index
    %c2 = arith.constant 2 : index
    %c0_25 = arith.constant 0 : index
    %22 = vector.load %21[%c0_24, %c2, %c0_25] : memref<18x18x128xf32, #tpu.memory_space<vmem>>, vector<16x16x128xf32>
    %23 = vector.shape_cast %22 : vector<16x16x128xf32> to vector<256x128xf32>
    %24 = arith.truncf %23 : vector<256x128xf32> to vector<256x128xbf16>
    %c2_26 = arith.constant 2 : index
    %c0_27 = arith.constant 0 : index
    %c0_28 = arith.constant 0 : index
    %25 = vector.load %arg2[%c2_26, %c0_27, %c0_28] : memref<9x128x128xbf16, #tpu.memory_space<vmem>>, vector<1x128x128xbf16>
    %26 = vector.shape_cast %25 : vector<1x128x128xbf16> to vector<128x128xbf16>
    %cst_29 = arith.constant dense<0.000000e+00> : vector<256x128xf32>
    %27 = tpu.matmul %24, %26, %cst_29 {dimension_numbers = #tpu.dot_dimension_numbers<[1], [0], [0], [1], [0, 0, 1, 1], [], []>} : vector<256x128xbf16>, vector<128x128xbf16>, vector<256x128xf32> -> vector<256x128xf32>
    %28 = arith.addf %19, %27 : vector<256x128xf32>
    %c0_i32_30 = arith.constant 0 : i32
    %c0_i32_31 = arith.constant 0 : i32
    %c0_i32_32 = arith.constant 0 : i32
    %c0_i32_33 = arith.constant 0 : i32
    %29 = tpu.memref_slice %arg1[%c0_i32_30, %c0_i32_31, %c0_i32_32, %c0_i32_33] : memref<1x18x18x128xf32, #tpu.memory_space<vmem>> -> memref<1x18x18x128xf32, #tpu.memory_space<vmem>>
    %30 = tpu.memref_squeeze %29 : memref<1x18x18x128xf32, #tpu.memory_space<vmem>> -> memref<18x18x128xf32, #tpu.memory_space<vmem>>
    %c1_34 = arith.constant 1 : index
    %c0_35 = arith.constant 0 : index
    %c0_36 = arith.constant 0 : index
    %31 = vector.load %30[%c1_34, %c0_35, %c0_36] : memref<18x18x128xf32, #tpu.memory_space<vmem>>, vector<16x16x128xf32>
    %32 = vector.shape_cast %31 : vector<16x16x128xf32> to vector<256x128xf32>
    %33 = arith.truncf %32 : vector<256x128xf32> to vector<256x128xbf16>
    %c3 = arith.constant 3 : index
    %c0_37 = arith.constant 0 : index
    %c0_38 = arith.constant 0 : index
    %34 = vector.load %arg2[%c3, %c0_37, %c0_38] : memref<9x128x128xbf16, #tpu.memory_space<vmem>>, vector<1x128x128xbf16>
    %35 = vector.shape_cast %34 : vector<1x128x128xbf16> to vector<128x128xbf16>
    %cst_39 = arith.constant dense<0.000000e+00> : vector<256x128xf32>
    %36 = tpu.matmul %33, %35, %cst_39 {dimension_numbers = #tpu.dot_dimension_numbers<[1], [0], [0], [1], [0, 0, 1, 1], [], []>} : vector<256x128xbf16>, vector<128x128xbf16>, vector<256x128xf32> -> vector<256x128xf32>
    %37 = arith.addf %28, %36 : vector<256x128xf32>
    %c0_i32_40 = arith.constant 0 : i32
    %c0_i32_41 = arith.constant 0 : i32
    %c0_i32_42 = arith.constant 0 : i32
    %c0_i32_43 = arith.constant 0 : i32
    %38 = tpu.memref_slice %arg1[%c0_i32_40, %c0_i32_41, %c0_i32_42, %c0_i32_43] : memref<1x18x18x128xf32, #tpu.memory_space<vmem>> -> memref<1x18x18x128xf32, #tpu.memory_space<vmem>>
    %39 = tpu.memref_squeeze %38 : memref<1x18x18x128xf32, #tpu.memory_space<vmem>> -> memref<18x18x128xf32, #tpu.memory_space<vmem>>
    %c1_44 = arith.constant 1 : index
    %c1_45 = arith.constant 1 : index
    %c0_46 = arith.constant 0 : index
    %40 = vector.load %39[%c1_44, %c1_45, %c0_46] : memref<18x18x128xf32, #tpu.memory_space<vmem>>, vector<16x16x128xf32>
    %41 = vector.shape_cast %40 : vector<16x16x128xf32> to vector<256x128xf32>
    %42 = arith.truncf %41 : vector<256x128xf32> to vector<256x128xbf16>
    %c4 = arith.constant 4 : index
    %c0_47 = arith.constant 0 : index
    %c0_48 = arith.constant 0 : index
    %43 = vector.load %arg2[%c4, %c0_47, %c0_48] : memref<9x128x128xbf16, #tpu.memory_space<vmem>>, vector<1x128x128xbf16>
    %44 = vector.shape_cast %43 : vector<1x128x128xbf16> to vector<128x128xbf16>
    %cst_49 = arith.constant dense<0.000000e+00> : vector<256x128xf32>
    %45 = tpu.matmul %42, %44, %cst_49 {dimension_numbers = #tpu.dot_dimension_numbers<[1], [0], [0], [1], [0, 0, 1, 1], [], []>} : vector<256x128xbf16>, vector<128x128xbf16>, vector<256x128xf32> -> vector<256x128xf32>
    %46 = arith.addf %37, %45 : vector<256x128xf32>
    %c0_i32_50 = arith.constant 0 : i32
    %c0_i32_51 = arith.constant 0 : i32
    %c0_i32_52 = arith.constant 0 : i32
    %c0_i32_53 = arith.constant 0 : i32
    %47 = tpu.memref_slice %arg1[%c0_i32_50, %c0_i32_51, %c0_i32_52, %c0_i32_53] : memref<1x18x18x128xf32, #tpu.memory_space<vmem>> -> memref<1x18x18x128xf32, #tpu.memory_space<vmem>>
    %48 = tpu.memref_squeeze %47 : memref<1x18x18x128xf32, #tpu.memory_space<vmem>> -> memref<18x18x128xf32, #tpu.memory_space<vmem>>
    %c1_54 = arith.constant 1 : index
    %c2_55 = arith.constant 2 : index
    %c0_56 = arith.constant 0 : index
    %49 = vector.load %48[%c1_54, %c2_55, %c0_56] : memref<18x18x128xf32, #tpu.memory_space<vmem>>, vector<16x16x128xf32>
    %50 = vector.shape_cast %49 : vector<16x16x128xf32> to vector<256x128xf32>
    %51 = arith.truncf %50 : vector<256x128xf32> to vector<256x128xbf16>
    %c5 = arith.constant 5 : index
    %c0_57 = arith.constant 0 : index
    %c0_58 = arith.constant 0 : index
    %52 = vector.load %arg2[%c5, %c0_57, %c0_58] : memref<9x128x128xbf16, #tpu.memory_space<vmem>>, vector<1x128x128xbf16>
    %53 = vector.shape_cast %52 : vector<1x128x128xbf16> to vector<128x128xbf16>
    %cst_59 = arith.constant dense<0.000000e+00> : vector<256x128xf32>
    %54 = tpu.matmul %51, %53, %cst_59 {dimension_numbers = #tpu.dot_dimension_numbers<[1], [0], [0], [1], [0, 0, 1, 1], [], []>} : vector<256x128xbf16>, vector<128x128xbf16>, vector<256x128xf32> -> vector<256x128xf32>
    %55 = arith.addf %46, %54 : vector<256x128xf32>
    %c0_i32_60 = arith.constant 0 : i32
    %c0_i32_61 = arith.constant 0 : i32
    %c0_i32_62 = arith.constant 0 : i32
    %c0_i32_63 = arith.constant 0 : i32
    %56 = tpu.memref_slice %arg1[%c0_i32_60, %c0_i32_61, %c0_i32_62, %c0_i32_63] : memref<1x18x18x128xf32, #tpu.memory_space<vmem>> -> memref<1x18x18x128xf32, #tpu.memory_space<vmem>>
    %57 = tpu.memref_squeeze %56 : memref<1x18x18x128xf32, #tpu.memory_space<vmem>> -> memref<18x18x128xf32, #tpu.memory_space<vmem>>
    %c2_64 = arith.constant 2 : index
    %c0_65 = arith.constant 0 : index
    %c0_66 = arith.constant 0 : index
    %58 = vector.load %57[%c2_64, %c0_65, %c0_66] : memref<18x18x128xf32, #tpu.memory_space<vmem>>, vector<16x16x128xf32>
    %59 = vector.shape_cast %58 : vector<16x16x128xf32> to vector<256x128xf32>
    %60 = arith.truncf %59 : vector<256x128xf32> to vector<256x128xbf16>
    %c6 = arith.constant 6 : index
    %c0_67 = arith.constant 0 : index
    %c0_68 = arith.constant 0 : index
    %61 = vector.load %arg2[%c6, %c0_67, %c0_68] : memref<9x128x128xbf16, #tpu.memory_space<vmem>>, vector<1x128x128xbf16>
    %62 = vector.shape_cast %61 : vector<1x128x128xbf16> to vector<128x128xbf16>
    %cst_69 = arith.constant dense<0.000000e+00> : vector<256x128xf32>
    %63 = tpu.matmul %60, %62, %cst_69 {dimension_numbers = #tpu.dot_dimension_numbers<[1], [0], [0], [1], [0, 0, 1, 1], [], []>} : vector<256x128xbf16>, vector<128x128xbf16>, vector<256x128xf32> -> vector<256x128xf32>
    %64 = arith.addf %55, %63 : vector<256x128xf32>
    %c0_i32_70 = arith.constant 0 : i32
    %c0_i32_71 = arith.constant 0 : i32
    %c0_i32_72 = arith.constant 0 : i32
    %c0_i32_73 = arith.constant 0 : i32
    %65 = tpu.memref_slice %arg1[%c0_i32_70, %c0_i32_71, %c0_i32_72, %c0_i32_73] : memref<1x18x18x128xf32, #tpu.memory_space<vmem>> -> memref<1x18x18x128xf32, #tpu.memory_space<vmem>>
    %66 = tpu.memref_squeeze %65 : memref<1x18x18x128xf32, #tpu.memory_space<vmem>> -> memref<18x18x128xf32, #tpu.memory_space<vmem>>
    %c2_74 = arith.constant 2 : index
    %c1_75 = arith.constant 1 : index
    %c0_76 = arith.constant 0 : index
    %67 = vector.load %66[%c2_74, %c1_75, %c0_76] : memref<18x18x128xf32, #tpu.memory_space<vmem>>, vector<16x16x128xf32>
    %68 = vector.shape_cast %67 : vector<16x16x128xf32> to vector<256x128xf32>
    %69 = arith.truncf %68 : vector<256x128xf32> to vector<256x128xbf16>
    %c7 = arith.constant 7 : index
    %c0_77 = arith.constant 0 : index
    %c0_78 = arith.constant 0 : index
    %70 = vector.load %arg2[%c7, %c0_77, %c0_78] : memref<9x128x128xbf16, #tpu.memory_space<vmem>>, vector<1x128x128xbf16>
    %71 = vector.shape_cast %70 : vector<1x128x128xbf16> to vector<128x128xbf16>
    %cst_79 = arith.constant dense<0.000000e+00> : vector<256x128xf32>
    %72 = tpu.matmul %69, %71, %cst_79 {dimension_numbers = #tpu.dot_dimension_numbers<[1], [0], [0], [1], [0, 0, 1, 1], [], []>} : vector<256x128xbf16>, vector<128x128xbf16>, vector<256x128xf32> -> vector<256x128xf32>
    %73 = arith.addf %64, %72 : vector<256x128xf32>
    %c0_i32_80 = arith.constant 0 : i32
    %c0_i32_81 = arith.constant 0 : i32
    %c0_i32_82 = arith.constant 0 : i32
    %c0_i32_83 = arith.constant 0 : i32
    %74 = tpu.memref_slice %arg1[%c0_i32_80, %c0_i32_81, %c0_i32_82, %c0_i32_83] : memref<1x18x18x128xf32, #tpu.memory_space<vmem>> -> memref<1x18x18x128xf32, #tpu.memory_space<vmem>>
    %75 = tpu.memref_squeeze %74 : memref<1x18x18x128xf32, #tpu.memory_space<vmem>> -> memref<18x18x128xf32, #tpu.memory_space<vmem>>
    %c2_84 = arith.constant 2 : index
    %c2_85 = arith.constant 2 : index
    %c0_86 = arith.constant 0 : index
    %76 = vector.load %75[%c2_84, %c2_85, %c0_86] : memref<18x18x128xf32, #tpu.memory_space<vmem>>, vector<16x16x128xf32>
    %77 = vector.shape_cast %76 : vector<16x16x128xf32> to vector<256x128xf32>
    %78 = arith.truncf %77 : vector<256x128xf32> to vector<256x128xbf16>
    %c8 = arith.constant 8 : index
    %c0_87 = arith.constant 0 : index
    %c0_88 = arith.constant 0 : index
    %79 = vector.load %arg2[%c8, %c0_87, %c0_88] : memref<9x128x128xbf16, #tpu.memory_space<vmem>>, vector<1x128x128xbf16>
    %80 = vector.shape_cast %79 : vector<1x128x128xbf16> to vector<128x128xbf16>
    %cst_89 = arith.constant dense<0.000000e+00> : vector<256x128xf32>
    %81 = tpu.matmul %78, %80, %cst_89 {dimension_numbers = #tpu.dot_dimension_numbers<[1], [0], [0], [1], [0, 0, 1, 1], [], []>} : vector<256x128xbf16>, vector<128x128xbf16>, vector<256x128xf32> -> vector<256x128xf32>
    %82 = arith.addf %73, %81 : vector<256x128xf32>
    %c0_90 = arith.constant 0 : index
    %c0_91 = arith.constant 0 : index
    %83 = vector.load %arg3[%c0_90, %c0_91] : memref<1x128xf32, #tpu.memory_space<vmem>>, vector<1x128xf32>
    %84 = vector.broadcast %83 : vector<1x128xf32> to vector<256x128xf32>
    %85 = arith.addf %82, %84 : vector<256x128xf32>
    %86 = vector.shape_cast %85 : vector<256x128xf32> to vector<16x16x128xf32>
    %c0_92 = arith.constant 0 : index
    %c0_93 = arith.constant 0 : index
    %c0_94 = arith.constant 0 : index
    %c0_95 = arith.constant 0 : index
    %87 = vector.load %arg6[%c0_92, %c0_93, %c0_94, %c0_95] : memref<1x16x16x128xf32, #tpu.memory_space<vmem>>, vector<1x16x16x128xf32>
    %88 = vector.shape_cast %87 : vector<1x16x16x128xf32> to vector<16x16x128xf32>
    %89 = vector.shape_cast %86 : vector<16x16x128xf32> to vector<1x16x16x128xf32>
    tpu.vector_store %arg6[%c0_92, %c0_93, %c0_94, %c0_95], %89 {strides = array<i32>} : memref<1x16x16x128xf32, #tpu.memory_space<vmem>>, vector<1x16x16x128xf32>,
    %c0_96 = arith.constant 0 : index
    %c0_97 = arith.constant 0 : index
    %90 = vector.load %arg8[%c0_96, %c0_97] : memref<1x128xf32, #tpu.memory_space<vmem>>, vector<1x128xf32>
    %cst_98 = arith.constant dense<0.000000e+00> : vector<128xf32>
    %91 = vector.multi_reduction <add>, %85, %cst_98 [0] : vector<256x128xf32> to vector<128xf32>
    %92 = vector.shape_cast %91 : vector<128xf32> to vector<1x128xf32>
    %93 = arith.addf %90, %92 : vector<1x128xf32>
    %c0_99 = arith.constant 0 : index
    %c0_100 = arith.constant 0 : index
    %94 = vector.load %arg8[%c0_99, %c0_100] : memref<1x128xf32, #tpu.memory_space<vmem>>, vector<1x128xf32>
    tpu.vector_store %arg8[%c0_99, %c0_100], %93 {strides = array<i32>} : memref<1x128xf32, #tpu.memory_space<vmem>>, vector<1x128xf32>,
    %c0_101 = arith.constant 0 : index
    %c0_102 = arith.constant 0 : index
    %95 = vector.load %arg9[%c0_101, %c0_102] : memref<1x128xf32, #tpu.memory_space<vmem>>, vector<1x128xf32>
    %96 = arith.mulf %85, %85 : vector<256x128xf32>
    %cst_103 = arith.constant dense<0.000000e+00> : vector<128xf32>
    %97 = vector.multi_reduction <add>, %96, %cst_103 [0] : vector<256x128xf32> to vector<128xf32>
    %98 = vector.shape_cast %97 : vector<128xf32> to vector<1x128xf32>
    %99 = arith.addf %95, %98 : vector<1x128xf32>
    %c0_104 = arith.constant 0 : index
    %c0_105 = arith.constant 0 : index
    %100 = vector.load %arg9[%c0_104, %c0_105] : memref<1x128xf32, #tpu.memory_space<vmem>>, vector<1x128xf32>
    tpu.vector_store %arg9[%c0_104, %c0_105], %99 {strides = array<i32>} : memref<1x128xf32, #tpu.memory_space<vmem>>, vector<1x128xf32>,
    %c0_i32_106 = arith.constant 0 : i32
    %c0_i32_107 = arith.constant 0 : i32
    %c0_i32_108 = arith.constant 0 : i32
    %c0_i32_109 = arith.constant 0 : i32
    %101 = tpu.memref_slice %arg1[%c0_i32_106, %c0_i32_107, %c0_i32_108, %c0_i32_109] : memref<1x18x18x128xf32, #tpu.memory_space<vmem>> -> memref<1x18x18x128xf32, #tpu.memory_space<vmem>>
    %102 = tpu.memref_squeeze %101 : memref<1x18x18x128xf32, #tpu.memory_space<vmem>> -> memref<18x18x128xf32, #tpu.memory_space<vmem>>
    %c1_110 = arith.constant 1 : index
    %c1_111 = arith.constant 1 : index
    %c0_112 = arith.constant 0 : index
    %103 = vector.load %102[%c1_110, %c1_111, %c0_112] : memref<18x18x128xf32, #tpu.memory_space<vmem>>, vector<16x16x128xf32>
    %104 = vector.shape_cast %103 : vector<16x16x128xf32> to vector<256x128xf32>
    %105 = arith.truncf %104 : vector<256x128xf32> to vector<256x128xbf16>
    %c0_113 = arith.constant 0 : index
    %c0_114 = arith.constant 0 : index
    %106 = vector.load %arg4[%c0_113, %c0_114] : memref<128x128xbf16, #tpu.memory_space<vmem>>, vector<128x128xbf16>
    %cst_115 = arith.constant dense<0.000000e+00> : vector<256x128xf32>
    %107 = tpu.matmul %105, %106, %cst_115 {dimension_numbers = #tpu.dot_dimension_numbers<[1], [0], [0], [1], [0, 0, 1, 1], [], []>} : vector<256x128xbf16>, vector<128x128xbf16>, vector<256x128xf32> -> vector<256x128xf32>
    %c0_116 = arith.constant 0 : index
    %c0_117 = arith.constant 0 : index
    %108 = vector.load %arg5[%c0_116, %c0_117] : memref<1x128xf32, #tpu.memory_space<vmem>>, vector<1x128xf32>
    %109 = vector.broadcast %108 : vector<1x128xf32> to vector<256x128xf32>
    %110 = arith.addf %107, %109 : vector<256x128xf32>
    %111 = vector.shape_cast %110 : vector<256x128xf32> to vector<16x16x128xf32>
    %c0_118 = arith.constant 0 : index
    %c0_119 = arith.constant 0 : index
    %c0_120 = arith.constant 0 : index
    %c0_121 = arith.constant 0 : index
    %112 = vector.load %arg7[%c0_118, %c0_119, %c0_120, %c0_121] : memref<1x16x16x128xf32, #tpu.memory_space<vmem>>, vector<1x16x16x128xf32>
    %113 = vector.shape_cast %112 : vector<1x16x16x128xf32> to vector<16x16x128xf32>
    %114 = vector.shape_cast %111 : vector<16x16x128xf32> to vector<1x16x16x128xf32>
    tpu.vector_store %arg7[%c0_118, %c0_119, %c0_120, %c0_121], %114 {strides = array<i32>} : memref<1x16x16x128xf32, #tpu.memory_space<vmem>>, vector<1x16x16x128xf32>,
    %c0_122 = arith.constant 0 : index
    %c0_123 = arith.constant 0 : index
    %115 = vector.load %arg10[%c0_122, %c0_123] : memref<1x128xf32, #tpu.memory_space<vmem>>, vector<1x128xf32>
    %cst_124 = arith.constant dense<0.000000e+00> : vector<128xf32>
    %116 = vector.multi_reduction <add>, %110, %cst_124 [0] : vector<256x128xf32> to vector<128xf32>
    %117 = vector.shape_cast %116 : vector<128xf32> to vector<1x128xf32>
    %118 = arith.addf %115, %117 : vector<1x128xf32>
    %c0_125 = arith.constant 0 : index
    %c0_126 = arith.constant 0 : index
    %119 = vector.load %arg10[%c0_125, %c0_126] : memref<1x128xf32, #tpu.memory_space<vmem>>, vector<1x128xf32>
    tpu.vector_store %arg10[%c0_125, %c0_126], %118 {strides = array<i32>} : memref<1x128xf32, #tpu.memory_space<vmem>>, vector<1x128xf32>,
    %c0_127 = arith.constant 0 : index
    %c0_128 = arith.constant 0 : index
    %120 = vector.load %arg11[%c0_127, %c0_128] : memref<1x128xf32, #tpu.memory_space<vmem>>, vector<1x128xf32>
    %121 = arith.mulf %110, %110 : vector<256x128xf32>
    %cst_129 = arith.constant dense<0.000000e+00> : vector<128xf32>
    %122 = vector.multi_reduction <add>, %121, %cst_129 [0] : vector<256x128xf32> to vector<128xf32>
    %123 = vector.shape_cast %122 : vector<128xf32> to vector<1x128xf32>
    %124 = arith.addf %120, %123 : vector<1x128xf32>
    %c0_130 = arith.constant 0 : index
    %c0_131 = arith.constant 0 : index
    %125 = vector.load %arg11[%c0_130, %c0_131] : memref<1x128xf32, #tpu.memory_space<vmem>>, vector<1x128xf32>
    tpu.vector_store %arg11[%c0_130, %c0_131], %124 {strides = array<i32>} : memref<1x128xf32, #tpu.memory_space<vmem>>, vector<1x128xf32>,
    return
  }
  func.func @transform_0(%arg0: i32) -> (i32, i32, i32, i32) {
    %c0_i32 = arith.constant 0 : i32
    %c0_i32_0 = arith.constant 0 : i32
    %c0_i32_1 = arith.constant 0 : i32
    %c0_i32_2 = arith.constant 0 : i32
    return %arg0, %c0_i32, %c0_i32_0, %c0_i32_1 : i32, i32, i32, i32
  }
  func.func @transform_1(%arg0: i32) -> (i32, i32, i32) {
    %c0_i32 = arith.constant 0 : i32
    %c0_i32_0 = arith.constant 0 : i32
    %c0_i32_1 = arith.constant 0 : i32
    %c0_i32_2 = arith.constant 0 : i32
    return %c0_i32, %c0_i32_0, %c0_i32_1 : i32, i32, i32
  }
  func.func @transform_2(%arg0: i32) -> (i32, i32) {
    %c0_i32 = arith.constant 0 : i32
    %c0_i32_0 = arith.constant 0 : i32
    %c0_i32_1 = arith.constant 0 : i32
    return %c0_i32, %c0_i32_0 : i32, i32
  }
  func.func @transform_3(%arg0: i32) -> (i32, i32) {
    %c0_i32 = arith.constant 0 : i32
    %c0_i32_0 = arith.constant 0 : i32
    %c0_i32_1 = arith.constant 0 : i32
    return %c0_i32, %c0_i32_0 : i32, i32
  }
  func.func @transform_4(%arg0: i32) -> (i32, i32) {
    %c0_i32 = arith.constant 0 : i32
    %c0_i32_0 = arith.constant 0 : i32
    %c0_i32_1 = arith.constant 0 : i32
    return %c0_i32, %c0_i32_0 : i32, i32
  }
  func.func @transform_5(%arg0: i32) -> (i32, i32, i32, i32) {
    %c0_i32 = arith.constant 0 : i32
    %c0_i32_0 = arith.constant 0 : i32
    %c0_i32_1 = arith.constant 0 : i32
    %c0_i32_2 = arith.constant 0 : i32
    return %arg0, %c0_i32, %c0_i32_0, %c0_i32_1 : i32, i32, i32, i32
  }
  func.func @transform_6(%arg0: i32) -> (i32, i32, i32, i32) {
    %c0_i32 = arith.constant 0 : i32
    %c0_i32_0 = arith.constant 0 : i32
    %c0_i32_1 = arith.constant 0 : i32
    %c0_i32_2 = arith.constant 0 : i32
    return %arg0, %c0_i32, %c0_i32_0, %c0_i32_1 : i32, i32, i32, i32
  }
  func.func @transform_7(%arg0: i32) -> (i32, i32) {
    %c0_i32 = arith.constant 0 : i32
    %c0_i32_0 = arith.constant 0 : i32
    %c0_i32_1 = arith.constant 0 : i32
    return %c0_i32, %c0_i32_0 : i32, i32
  }
  func.func @transform_8(%arg0: i32) -> (i32, i32) {
    %c0_i32 = arith.constant 0 : i32
    %c0_i32_0 = arith.constant 0 : i32
    %c0_i32_1 = arith.constant 0 : i32
    return %c0_i32, %c0_i32_0 : i32, i32
  }
  func.func @transform_9(%arg0: i32) -> (i32, i32) {
    %c0_i32 = arith.constant 0 : i32
    %c0_i32_0 = arith.constant 0 : i32
    %c0_i32_1 = arith.constant 0 : i32
    return %c0_i32, %c0_i32_0 : i32, i32
  }
  func.func @transform_10(%arg0: i32) -> (i32, i32) {
    %c0_i32 = arith.constant 0 : i32
    %c0_i32_0 = arith.constant 0 : i32
    %c0_i32_1 = arith.constant 0 : i32
    return %c0_i32, %c0_i32_0 : i32, i32
  }
}

module attributes {stable_mosaic.version = 11 : i64} {
  func.func @_bn1_relu_conv2_kernel(%arg0: i32, %arg1: memref<1x16x16x128xf32, #tpu.memory_space<vmem>>, %arg2: memref<1x128xf32, #tpu.memory_space<vmem>>, %arg3: memref<1x128xf32, #tpu.memory_space<vmem>>, %arg4: memref<9x128x128xbf16, #tpu.memory_space<vmem>>, %arg5: memref<1x128xf32, #tpu.memory_space<vmem>>, %arg6: memref<1x16x16x128xf32, #tpu.memory_space<vmem>>, %arg7: memref<1x128xf32, #tpu.memory_space<vmem>>, %arg8: memref<1x128xf32, #tpu.memory_space<vmem>>, %arg9: memref<18x25x128xf32, #tpu.memory_space<vmem>>) attributes {dimension_semantics = [#tpu.dimension_semantics<arbitrary>], iteration_bounds = array<i64: 2>, scalar_prefetch = 0 : i64, scratch_operands = 1 : i64, tpu.core_type = #tpu.core_type<tc>, window_params = [{transform_indices = @transform_0, window_bounds = array<i64: 1, 16, 16, 128>}, {pipeline_mode = #tpu.pipeline_mode<synchronous>, transform_indices = @transform_1, window_bounds = array<i64: 1, 128>}, {pipeline_mode = #tpu.pipeline_mode<synchronous>, transform_indices = @transform_2, window_bounds = array<i64: 1, 128>}, {pipeline_mode = #tpu.pipeline_mode<synchronous>, transform_indices = @transform_3, window_bounds = array<i64: 9, 128, 128>}, {pipeline_mode = #tpu.pipeline_mode<synchronous>, transform_indices = @transform_4, window_bounds = array<i64: 1, 128>}, {transform_indices = @transform_5, window_bounds = array<i64: 1, 16, 16, 128>}, {pipeline_mode = #tpu.pipeline_mode<synchronous>, transform_indices = @transform_6, window_bounds = array<i64: 1, 128>}, {pipeline_mode = #tpu.pipeline_mode<synchronous>, transform_indices = @transform_7, window_bounds = array<i64: 1, 128>}]} {
    %c0_i32 = arith.constant 0 : i32
    %0 = arith.cmpi eq, %arg0, %c0_i32 : i32
    %1 = arith.extui %0 : i1 to i32
    %c0_i32_0 = arith.constant 0 : i32
    %2 = arith.cmpi ne, %1, %c0_i32_0 : i32
    scf.if %2 {
      %cst_81 = arith.constant 0.000000e+00 : f32
      %96 = vector.broadcast %cst_81 : f32 to vector<1x128xf32>
      %c0_82 = arith.constant 0 : index
      %c0_83 = arith.constant 0 : index
      %97 = vector.load %arg7[%c0_82, %c0_83] : memref<1x128xf32, #tpu.memory_space<vmem>>, vector<1x128xf32>
      tpu.vector_store %arg7[%c0_82, %c0_83], %96 {strides = array<i32>} : memref<1x128xf32, #tpu.memory_space<vmem>>, vector<1x128xf32>,
      %cst_84 = arith.constant 0.000000e+00 : f32
      %98 = vector.broadcast %cst_84 : f32 to vector<1x128xf32>
      %c0_85 = arith.constant 0 : index
      %c0_86 = arith.constant 0 : index
      %99 = vector.load %arg8[%c0_85, %c0_86] : memref<1x128xf32, #tpu.memory_space<vmem>>, vector<1x128xf32>
      tpu.vector_store %arg8[%c0_85, %c0_86], %98 {strides = array<i32>} : memref<1x128xf32, #tpu.memory_space<vmem>>, vector<1x128xf32>,
      %cst_87 = arith.constant 0.000000e+00 : f32
      %100 = vector.broadcast %cst_87 : f32 to vector<18x25x128xf32>
      %c0_88 = arith.constant 0 : index
      %c0_89 = arith.constant 0 : index
      %c0_90 = arith.constant 0 : index
      %101 = vector.load %arg9[%c0_88, %c0_89, %c0_90] : memref<18x25x128xf32, #tpu.memory_space<vmem>>, vector<18x25x128xf32>
      tpu.vector_store %arg9[%c0_88, %c0_89, %c0_90], %100 {strides = array<i32>} : memref<18x25x128xf32, #tpu.memory_space<vmem>>, vector<18x25x128xf32>,
    } else {
    }
    %c0 = arith.constant 0 : index
    %c0_1 = arith.constant 0 : index
    %c0_2 = arith.constant 0 : index
    %c0_3 = arith.constant 0 : index
    %3 = vector.load %arg1[%c0, %c0_1, %c0_2, %c0_3] : memref<1x16x16x128xf32, #tpu.memory_space<vmem>>, vector<1x16x16x128xf32>
    %4 = vector.shape_cast %3 : vector<1x16x16x128xf32> to vector<16x16x128xf32>
    %c0_4 = arith.constant 0 : index
    %c0_5 = arith.constant 0 : index
    %5 = vector.load %arg2[%c0_4, %c0_5] : memref<1x128xf32, #tpu.memory_space<vmem>>, vector<1x128xf32>
    %6 = vector.shape_cast %5 : vector<1x128xf32> to vector<1x1x128xf32>
    %7 = vector.broadcast %6 : vector<1x1x128xf32> to vector<16x16x128xf32>
    %8 = arith.mulf %4, %7 : vector<16x16x128xf32>
    %c0_6 = arith.constant 0 : index
    %c0_7 = arith.constant 0 : index
    %9 = vector.load %arg3[%c0_6, %c0_7] : memref<1x128xf32, #tpu.memory_space<vmem>>, vector<1x128xf32>
    %10 = vector.shape_cast %9 : vector<1x128xf32> to vector<1x1x128xf32>
    %11 = vector.broadcast %10 : vector<1x1x128xf32> to vector<16x16x128xf32>
    %12 = arith.addf %8, %11 : vector<16x16x128xf32>
    %cst = arith.constant 0.000000e+00 : f32
    %13 = vector.broadcast %cst : f32 to vector<16x16x128xf32>
    %14 = arith.maximumf %12, %13 : vector<16x16x128xf32>
    %c1 = arith.constant 1 : index
    %c8 = arith.constant 8 : index
    %c0_8 = arith.constant 0 : index
    %15 = vector.load %arg9[%c1, %c8, %c0_8] : memref<18x25x128xf32, #tpu.memory_space<vmem>>, vector<16x16x128xf32>
    tpu.vector_store %arg9[%c1, %c8, %c0_8], %14 {strides = array<i32>} : memref<18x25x128xf32, #tpu.memory_space<vmem>>, vector<16x16x128xf32>,
    %c0_9 = arith.constant 0 : index
    %c7 = arith.constant 7 : index
    %c0_10 = arith.constant 0 : index
    %16 = vector.load %arg9[%c0_9, %c7, %c0_10] : memref<18x25x128xf32, #tpu.memory_space<vmem>>, vector<16x16x128xf32>
    %17 = vector.shape_cast %16 : vector<16x16x128xf32> to vector<256x128xf32>
    %18 = arith.truncf %17 : vector<256x128xf32> to vector<256x128xbf16>
    %c0_11 = arith.constant 0 : index
    %c0_12 = arith.constant 0 : index
    %c0_13 = arith.constant 0 : index
    %19 = vector.load %arg4[%c0_11, %c0_12, %c0_13] : memref<9x128x128xbf16, #tpu.memory_space<vmem>>, vector<1x128x128xbf16>
    %20 = vector.shape_cast %19 : vector<1x128x128xbf16> to vector<128x128xbf16>
    %cst_14 = arith.constant dense<0.000000e+00> : vector<256x128xf32>
    %21 = tpu.matmul %18, %20, %cst_14 {dimension_numbers = #tpu.dot_dimension_numbers<[1], [0], [0], [1], [0, 0, 1, 1], [], []>} : vector<256x128xbf16>, vector<128x128xbf16>, vector<256x128xf32> -> vector<256x128xf32>
    %c0_15 = arith.constant 0 : index
    %c8_16 = arith.constant 8 : index
    %c0_17 = arith.constant 0 : index
    %22 = vector.load %arg9[%c0_15, %c8_16, %c0_17] : memref<18x25x128xf32, #tpu.memory_space<vmem>>, vector<16x16x128xf32>
    %23 = vector.shape_cast %22 : vector<16x16x128xf32> to vector<256x128xf32>
    %24 = arith.truncf %23 : vector<256x128xf32> to vector<256x128xbf16>
    %c1_18 = arith.constant 1 : index
    %c0_19 = arith.constant 0 : index
    %c0_20 = arith.constant 0 : index
    %25 = vector.load %arg4[%c1_18, %c0_19, %c0_20] : memref<9x128x128xbf16, #tpu.memory_space<vmem>>, vector<1x128x128xbf16>
    %26 = vector.shape_cast %25 : vector<1x128x128xbf16> to vector<128x128xbf16>
    %cst_21 = arith.constant dense<0.000000e+00> : vector<256x128xf32>
    %27 = tpu.matmul %24, %26, %cst_21 {dimension_numbers = #tpu.dot_dimension_numbers<[1], [0], [0], [1], [0, 0, 1, 1], [], []>} : vector<256x128xbf16>, vector<128x128xbf16>, vector<256x128xf32> -> vector<256x128xf32>
    %28 = arith.addf %21, %27 : vector<256x128xf32>
    %c0_22 = arith.constant 0 : index
    %c9 = arith.constant 9 : index
    %c0_23 = arith.constant 0 : index
    %29 = vector.load %arg9[%c0_22, %c9, %c0_23] : memref<18x25x128xf32, #tpu.memory_space<vmem>>, vector<16x16x128xf32>
    %30 = vector.shape_cast %29 : vector<16x16x128xf32> to vector<256x128xf32>
    %31 = arith.truncf %30 : vector<256x128xf32> to vector<256x128xbf16>
    %c2 = arith.constant 2 : index
    %c0_24 = arith.constant 0 : index
    %c0_25 = arith.constant 0 : index
    %32 = vector.load %arg4[%c2, %c0_24, %c0_25] : memref<9x128x128xbf16, #tpu.memory_space<vmem>>, vector<1x128x128xbf16>
    %33 = vector.shape_cast %32 : vector<1x128x128xbf16> to vector<128x128xbf16>
    %cst_26 = arith.constant dense<0.000000e+00> : vector<256x128xf32>
    %34 = tpu.matmul %31, %33, %cst_26 {dimension_numbers = #tpu.dot_dimension_numbers<[1], [0], [0], [1], [0, 0, 1, 1], [], []>} : vector<256x128xbf16>, vector<128x128xbf16>, vector<256x128xf32> -> vector<256x128xf32>
    %35 = arith.addf %28, %34 : vector<256x128xf32>
    %c1_27 = arith.constant 1 : index
    %c7_28 = arith.constant 7 : index
    %c0_29 = arith.constant 0 : index
    %36 = vector.load %arg9[%c1_27, %c7_28, %c0_29] : memref<18x25x128xf32, #tpu.memory_space<vmem>>, vector<16x16x128xf32>
    %37 = vector.shape_cast %36 : vector<16x16x128xf32> to vector<256x128xf32>
    %38 = arith.truncf %37 : vector<256x128xf32> to vector<256x128xbf16>
    %c3 = arith.constant 3 : index
    %c0_30 = arith.constant 0 : index
    %c0_31 = arith.constant 0 : index
    %39 = vector.load %arg4[%c3, %c0_30, %c0_31] : memref<9x128x128xbf16, #tpu.memory_space<vmem>>, vector<1x128x128xbf16>
    %40 = vector.shape_cast %39 : vector<1x128x128xbf16> to vector<128x128xbf16>
    %cst_32 = arith.constant dense<0.000000e+00> : vector<256x128xf32>
    %41 = tpu.matmul %38, %40, %cst_32 {dimension_numbers = #tpu.dot_dimension_numbers<[1], [0], [0], [1], [0, 0, 1, 1], [], []>} : vector<256x128xbf16>, vector<128x128xbf16>, vector<256x128xf32> -> vector<256x128xf32>
    %42 = arith.addf %35, %41 : vector<256x128xf32>
    %c1_33 = arith.constant 1 : index
    %c8_34 = arith.constant 8 : index
    %c0_35 = arith.constant 0 : index
    %43 = vector.load %arg9[%c1_33, %c8_34, %c0_35] : memref<18x25x128xf32, #tpu.memory_space<vmem>>, vector<16x16x128xf32>
    %44 = vector.shape_cast %43 : vector<16x16x128xf32> to vector<256x128xf32>
    %45 = arith.truncf %44 : vector<256x128xf32> to vector<256x128xbf16>
    %c4 = arith.constant 4 : index
    %c0_36 = arith.constant 0 : index
    %c0_37 = arith.constant 0 : index
    %46 = vector.load %arg4[%c4, %c0_36, %c0_37] : memref<9x128x128xbf16, #tpu.memory_space<vmem>>, vector<1x128x128xbf16>
    %47 = vector.shape_cast %46 : vector<1x128x128xbf16> to vector<128x128xbf16>
    %cst_38 = arith.constant dense<0.000000e+00> : vector<256x128xf32>
    %48 = tpu.matmul %45, %47, %cst_38 {dimension_numbers = #tpu.dot_dimension_numbers<[1], [0], [0], [1], [0, 0, 1, 1], [], []>} : vector<256x128xbf16>, vector<128x128xbf16>, vector<256x128xf32> -> vector<256x128xf32>
    %49 = arith.addf %42, %48 : vector<256x128xf32>
    %c1_39 = arith.constant 1 : index
    %c9_40 = arith.constant 9 : index
    %c0_41 = arith.constant 0 : index
    %50 = vector.load %arg9[%c1_39, %c9_40, %c0_41] : memref<18x25x128xf32, #tpu.memory_space<vmem>>, vector<16x16x128xf32>
    %51 = vector.shape_cast %50 : vector<16x16x128xf32> to vector<256x128xf32>
    %52 = arith.truncf %51 : vector<256x128xf32> to vector<256x128xbf16>
    %c5 = arith.constant 5 : index
    %c0_42 = arith.constant 0 : index
    %c0_43 = arith.constant 0 : index
    %53 = vector.load %arg4[%c5, %c0_42, %c0_43] : memref<9x128x128xbf16, #tpu.memory_space<vmem>>, vector<1x128x128xbf16>
    %54 = vector.shape_cast %53 : vector<1x128x128xbf16> to vector<128x128xbf16>
    %cst_44 = arith.constant dense<0.000000e+00> : vector<256x128xf32>
    %55 = tpu.matmul %52, %54, %cst_44 {dimension_numbers = #tpu.dot_dimension_numbers<[1], [0], [0], [1], [0, 0, 1, 1], [], []>} : vector<256x128xbf16>, vector<128x128xbf16>, vector<256x128xf32> -> vector<256x128xf32>
    %56 = arith.addf %49, %55 : vector<256x128xf32>
    %c2_45 = arith.constant 2 : index
    %c7_46 = arith.constant 7 : index
    %c0_47 = arith.constant 0 : index
    %57 = vector.load %arg9[%c2_45, %c7_46, %c0_47] : memref<18x25x128xf32, #tpu.memory_space<vmem>>, vector<16x16x128xf32>
    %58 = vector.shape_cast %57 : vector<16x16x128xf32> to vector<256x128xf32>
    %59 = arith.truncf %58 : vector<256x128xf32> to vector<256x128xbf16>
    %c6 = arith.constant 6 : index
    %c0_48 = arith.constant 0 : index
    %c0_49 = arith.constant 0 : index
    %60 = vector.load %arg4[%c6, %c0_48, %c0_49] : memref<9x128x128xbf16, #tpu.memory_space<vmem>>, vector<1x128x128xbf16>
    %61 = vector.shape_cast %60 : vector<1x128x128xbf16> to vector<128x128xbf16>
    %cst_50 = arith.constant dense<0.000000e+00> : vector<256x128xf32>
    %62 = tpu.matmul %59, %61, %cst_50 {dimension_numbers = #tpu.dot_dimension_numbers<[1], [0], [0], [1], [0, 0, 1, 1], [], []>} : vector<256x128xbf16>, vector<128x128xbf16>, vector<256x128xf32> -> vector<256x128xf32>
    %63 = arith.addf %56, %62 : vector<256x128xf32>
    %c2_51 = arith.constant 2 : index
    %c8_52 = arith.constant 8 : index
    %c0_53 = arith.constant 0 : index
    %64 = vector.load %arg9[%c2_51, %c8_52, %c0_53] : memref<18x25x128xf32, #tpu.memory_space<vmem>>, vector<16x16x128xf32>
    %65 = vector.shape_cast %64 : vector<16x16x128xf32> to vector<256x128xf32>
    %66 = arith.truncf %65 : vector<256x128xf32> to vector<256x128xbf16>
    %c7_54 = arith.constant 7 : index
    %c0_55 = arith.constant 0 : index
    %c0_56 = arith.constant 0 : index
    %67 = vector.load %arg4[%c7_54, %c0_55, %c0_56] : memref<9x128x128xbf16, #tpu.memory_space<vmem>>, vector<1x128x128xbf16>
    %68 = vector.shape_cast %67 : vector<1x128x128xbf16> to vector<128x128xbf16>
    %cst_57 = arith.constant dense<0.000000e+00> : vector<256x128xf32>
    %69 = tpu.matmul %66, %68, %cst_57 {dimension_numbers = #tpu.dot_dimension_numbers<[1], [0], [0], [1], [0, 0, 1, 1], [], []>} : vector<256x128xbf16>, vector<128x128xbf16>, vector<256x128xf32> -> vector<256x128xf32>
    %70 = arith.addf %63, %69 : vector<256x128xf32>
    %c2_58 = arith.constant 2 : index
    %c9_59 = arith.constant 9 : index
    %c0_60 = arith.constant 0 : index
    %71 = vector.load %arg9[%c2_58, %c9_59, %c0_60] : memref<18x25x128xf32, #tpu.memory_space<vmem>>, vector<16x16x128xf32>
    %72 = vector.shape_cast %71 : vector<16x16x128xf32> to vector<256x128xf32>
    %73 = arith.truncf %72 : vector<256x128xf32> to vector<256x128xbf16>
    %c8_61 = arith.constant 8 : index
    %c0_62 = arith.constant 0 : index
    %c0_63 = arith.constant 0 : index
    %74 = vector.load %arg4[%c8_61, %c0_62, %c0_63] : memref<9x128x128xbf16, #tpu.memory_space<vmem>>, vector<1x128x128xbf16>
    %75 = vector.shape_cast %74 : vector<1x128x128xbf16> to vector<128x128xbf16>
    %cst_64 = arith.constant dense<0.000000e+00> : vector<256x128xf32>
    %76 = tpu.matmul %73, %75, %cst_64 {dimension_numbers = #tpu.dot_dimension_numbers<[1], [0], [0], [1], [0, 0, 1, 1], [], []>} : vector<256x128xbf16>, vector<128x128xbf16>, vector<256x128xf32> -> vector<256x128xf32>
    %77 = arith.addf %70, %76 : vector<256x128xf32>
    %c0_65 = arith.constant 0 : index
    %c0_66 = arith.constant 0 : index
    %78 = vector.load %arg5[%c0_65, %c0_66] : memref<1x128xf32, #tpu.memory_space<vmem>>, vector<1x128xf32>
    %79 = vector.broadcast %78 : vector<1x128xf32> to vector<256x128xf32>
    %80 = arith.addf %77, %79 : vector<256x128xf32>
    %81 = vector.shape_cast %80 : vector<256x128xf32> to vector<16x16x128xf32>
    %c0_67 = arith.constant 0 : index
    %c0_68 = arith.constant 0 : index
    %c0_69 = arith.constant 0 : index
    %c0_70 = arith.constant 0 : index
    %82 = vector.load %arg6[%c0_67, %c0_68, %c0_69, %c0_70] : memref<1x16x16x128xf32, #tpu.memory_space<vmem>>, vector<1x16x16x128xf32>
    %83 = vector.shape_cast %82 : vector<1x16x16x128xf32> to vector<16x16x128xf32>
    %84 = vector.shape_cast %81 : vector<16x16x128xf32> to vector<1x16x16x128xf32>
    tpu.vector_store %arg6[%c0_67, %c0_68, %c0_69, %c0_70], %84 {strides = array<i32>} : memref<1x16x16x128xf32, #tpu.memory_space<vmem>>, vector<1x16x16x128xf32>,
    %c0_71 = arith.constant 0 : index
    %c0_72 = arith.constant 0 : index
    %85 = vector.load %arg7[%c0_71, %c0_72] : memref<1x128xf32, #tpu.memory_space<vmem>>, vector<1x128xf32>
    %cst_73 = arith.constant dense<0.000000e+00> : vector<128xf32>
    %86 = vector.multi_reduction <add>, %80, %cst_73 [0] : vector<256x128xf32> to vector<128xf32>
    %87 = vector.shape_cast %86 : vector<128xf32> to vector<1x128xf32>
    %88 = arith.addf %85, %87 : vector<1x128xf32>
    %c0_74 = arith.constant 0 : index
    %c0_75 = arith.constant 0 : index
    %89 = vector.load %arg7[%c0_74, %c0_75] : memref<1x128xf32, #tpu.memory_space<vmem>>, vector<1x128xf32>
    tpu.vector_store %arg7[%c0_74, %c0_75], %88 {strides = array<i32>} : memref<1x128xf32, #tpu.memory_space<vmem>>, vector<1x128xf32>,
    %c0_76 = arith.constant 0 : index
    %c0_77 = arith.constant 0 : index
    %90 = vector.load %arg8[%c0_76, %c0_77] : memref<1x128xf32, #tpu.memory_space<vmem>>, vector<1x128xf32>
    %91 = arith.mulf %80, %80 : vector<256x128xf32>
    %cst_78 = arith.constant dense<0.000000e+00> : vector<128xf32>
    %92 = vector.multi_reduction <add>, %91, %cst_78 [0] : vector<256x128xf32> to vector<128xf32>
    %93 = vector.shape_cast %92 : vector<128xf32> to vector<1x128xf32>
    %94 = arith.addf %90, %93 : vector<1x128xf32>
    %c0_79 = arith.constant 0 : index
    %c0_80 = arith.constant 0 : index
    %95 = vector.load %arg8[%c0_79, %c0_80] : memref<1x128xf32, #tpu.memory_space<vmem>>, vector<1x128xf32>
    tpu.vector_store %arg8[%c0_79, %c0_80], %94 {strides = array<i32>} : memref<1x128xf32, #tpu.memory_space<vmem>>, vector<1x128xf32>,
    return
  }
  func.func @transform_0(%arg0: i32) -> (i32, i32, i32, i32) {
    %c0_i32 = arith.constant 0 : i32
    %c0_i32_0 = arith.constant 0 : i32
    %c0_i32_1 = arith.constant 0 : i32
    %c0_i32_2 = arith.constant 0 : i32
    return %arg0, %c0_i32, %c0_i32_0, %c0_i32_1 : i32, i32, i32, i32
  }
  func.func @transform_1(%arg0: i32) -> (i32, i32) {
    %c0_i32 = arith.constant 0 : i32
    %c0_i32_0 = arith.constant 0 : i32
    %c0_i32_1 = arith.constant 0 : i32
    return %c0_i32, %c0_i32_0 : i32, i32
  }
  func.func @transform_2(%arg0: i32) -> (i32, i32) {
    %c0_i32 = arith.constant 0 : i32
    %c0_i32_0 = arith.constant 0 : i32
    %c0_i32_1 = arith.constant 0 : i32
    return %c0_i32, %c0_i32_0 : i32, i32
  }
  func.func @transform_3(%arg0: i32) -> (i32, i32, i32) {
    %c0_i32 = arith.constant 0 : i32
    %c0_i32_0 = arith.constant 0 : i32
    %c0_i32_1 = arith.constant 0 : i32
    %c0_i32_2 = arith.constant 0 : i32
    return %c0_i32, %c0_i32_0, %c0_i32_1 : i32, i32, i32
  }
  func.func @transform_4(%arg0: i32) -> (i32, i32) {
    %c0_i32 = arith.constant 0 : i32
    %c0_i32_0 = arith.constant 0 : i32
    %c0_i32_1 = arith.constant 0 : i32
    return %c0_i32, %c0_i32_0 : i32, i32
  }
  func.func @transform_5(%arg0: i32) -> (i32, i32, i32, i32) {
    %c0_i32 = arith.constant 0 : i32
    %c0_i32_0 = arith.constant 0 : i32
    %c0_i32_1 = arith.constant 0 : i32
    %c0_i32_2 = arith.constant 0 : i32
    return %arg0, %c0_i32, %c0_i32_0, %c0_i32_1 : i32, i32, i32, i32
  }
  func.func @transform_6(%arg0: i32) -> (i32, i32) {
    %c0_i32 = arith.constant 0 : i32
    %c0_i32_0 = arith.constant 0 : i32
    %c0_i32_1 = arith.constant 0 : i32
    return %c0_i32, %c0_i32_0 : i32, i32
  }
  func.func @transform_7(%arg0: i32) -> (i32, i32) {
    %c0_i32 = arith.constant 0 : i32
    %c0_i32_0 = arith.constant 0 : i32
    %c0_i32_1 = arith.constant 0 : i32
    return %c0_i32, %c0_i32_0 : i32, i32
  }
}

module attributes {stable_mosaic.version = 11 : i64} {
  func.func @_bn2_add_relu_kernel(%arg0: i32, %arg1: memref<1x16x16x128xf32, #tpu.memory_space<vmem>>, %arg2: memref<1x16x16x128xf32, #tpu.memory_space<vmem>>, %arg3: memref<1x128xf32, #tpu.memory_space<vmem>>, %arg4: memref<1x128xf32, #tpu.memory_space<vmem>>, %arg5: memref<1x128xf32, #tpu.memory_space<vmem>>, %arg6: memref<1x128xf32, #tpu.memory_space<vmem>>, %arg7: memref<1x16x16x128xf32, #tpu.memory_space<vmem>>) attributes {dimension_semantics = [#tpu.dimension_semantics<parallel>], iteration_bounds = array<i64: 2>, scalar_prefetch = 0 : i64, scratch_operands = 0 : i64, tpu.core_type = #tpu.core_type<tc>, window_params = [{transform_indices = @transform_0, window_bounds = array<i64: 1, 16, 16, 128>}, {transform_indices = @transform_1, window_bounds = array<i64: 1, 16, 16, 128>}, {pipeline_mode = #tpu.pipeline_mode<synchronous>, transform_indices = @transform_2, window_bounds = array<i64: 1, 128>}, {pipeline_mode = #tpu.pipeline_mode<synchronous>, transform_indices = @transform_3, window_bounds = array<i64: 1, 128>}, {pipeline_mode = #tpu.pipeline_mode<synchronous>, transform_indices = @transform_4, window_bounds = array<i64: 1, 128>}, {pipeline_mode = #tpu.pipeline_mode<synchronous>, transform_indices = @transform_5, window_bounds = array<i64: 1, 128>}, {transform_indices = @transform_6, window_bounds = array<i64: 1, 16, 16, 128>}]} {
    %c0 = arith.constant 0 : index
    %c0_0 = arith.constant 0 : index
    %c0_1 = arith.constant 0 : index
    %c0_2 = arith.constant 0 : index
    %0 = vector.load %arg1[%c0, %c0_0, %c0_1, %c0_2] : memref<1x16x16x128xf32, #tpu.memory_space<vmem>>, vector<1x16x16x128xf32>
    %1 = vector.shape_cast %0 : vector<1x16x16x128xf32> to vector<16x16x128xf32>
    %c0_3 = arith.constant 0 : index
    %c0_4 = arith.constant 0 : index
    %2 = vector.load %arg3[%c0_3, %c0_4] : memref<1x128xf32, #tpu.memory_space<vmem>>, vector<1x128xf32>
    %3 = vector.shape_cast %2 : vector<1x128xf32> to vector<1x1x128xf32>
    %4 = vector.broadcast %3 : vector<1x1x128xf32> to vector<16x16x128xf32>
    %5 = arith.mulf %1, %4 : vector<16x16x128xf32>
    %c0_5 = arith.constant 0 : index
    %c0_6 = arith.constant 0 : index
    %6 = vector.load %arg4[%c0_5, %c0_6] : memref<1x128xf32, #tpu.memory_space<vmem>>, vector<1x128xf32>
    %7 = vector.shape_cast %6 : vector<1x128xf32> to vector<1x1x128xf32>
    %8 = vector.broadcast %7 : vector<1x1x128xf32> to vector<16x16x128xf32>
    %9 = arith.addf %5, %8 : vector<16x16x128xf32>
    %c0_7 = arith.constant 0 : index
    %c0_8 = arith.constant 0 : index
    %c0_9 = arith.constant 0 : index
    %c0_10 = arith.constant 0 : index
    %10 = vector.load %arg2[%c0_7, %c0_8, %c0_9, %c0_10] : memref<1x16x16x128xf32, #tpu.memory_space<vmem>>, vector<1x16x16x128xf32>
    %11 = vector.shape_cast %10 : vector<1x16x16x128xf32> to vector<16x16x128xf32>
    %c0_11 = arith.constant 0 : index
    %c0_12 = arith.constant 0 : index
    %12 = vector.load %arg5[%c0_11, %c0_12] : memref<1x128xf32, #tpu.memory_space<vmem>>, vector<1x128xf32>
    %13 = vector.shape_cast %12 : vector<1x128xf32> to vector<1x1x128xf32>
    %14 = vector.broadcast %13 : vector<1x1x128xf32> to vector<16x16x128xf32>
    %15 = arith.mulf %11, %14 : vector<16x16x128xf32>
    %16 = arith.addf %9, %15 : vector<16x16x128xf32>
    %c0_13 = arith.constant 0 : index
    %c0_14 = arith.constant 0 : index
    %17 = vector.load %arg6[%c0_13, %c0_14] : memref<1x128xf32, #tpu.memory_space<vmem>>, vector<1x128xf32>
    %18 = vector.shape_cast %17 : vector<1x128xf32> to vector<1x1x128xf32>
    %19 = vector.broadcast %18 : vector<1x1x128xf32> to vector<16x16x128xf32>
    %20 = arith.addf %16, %19 : vector<16x16x128xf32>
    %cst = arith.constant 0.000000e+00 : f32
    %21 = vector.broadcast %cst : f32 to vector<16x16x128xf32>
    %22 = arith.maximumf %20, %21 : vector<16x16x128xf32>
    %c0_15 = arith.constant 0 : index
    %c0_16 = arith.constant 0 : index
    %c0_17 = arith.constant 0 : index
    %c0_18 = arith.constant 0 : index
    %23 = vector.load %arg7[%c0_15, %c0_16, %c0_17, %c0_18] : memref<1x16x16x128xf32, #tpu.memory_space<vmem>>, vector<1x16x16x128xf32>
    %24 = vector.shape_cast %23 : vector<1x16x16x128xf32> to vector<16x16x128xf32>
    %25 = vector.shape_cast %22 : vector<16x16x128xf32> to vector<1x16x16x128xf32>
    tpu.vector_store %arg7[%c0_15, %c0_16, %c0_17, %c0_18], %25 {strides = array<i32>} : memref<1x16x16x128xf32, #tpu.memory_space<vmem>>, vector<1x16x16x128xf32>,
    return
  }
  func.func @transform_0(%arg0: i32) -> (i32, i32, i32, i32) {
    %c0_i32 = arith.constant 0 : i32
    %c0_i32_0 = arith.constant 0 : i32
    %c0_i32_1 = arith.constant 0 : i32
    %c0_i32_2 = arith.constant 0 : i32
    return %arg0, %c0_i32, %c0_i32_0, %c0_i32_1 : i32, i32, i32, i32
  }
  func.func @transform_1(%arg0: i32) -> (i32, i32, i32, i32) {
    %c0_i32 = arith.constant 0 : i32
    %c0_i32_0 = arith.constant 0 : i32
    %c0_i32_1 = arith.constant 0 : i32
    %c0_i32_2 = arith.constant 0 : i32
    return %arg0, %c0_i32, %c0_i32_0, %c0_i32_1 : i32, i32, i32, i32
  }
  func.func @transform_2(%arg0: i32) -> (i32, i32) {
    %c0_i32 = arith.constant 0 : i32
    %c0_i32_0 = arith.constant 0 : i32
    %c0_i32_1 = arith.constant 0 : i32
    return %c0_i32, %c0_i32_0 : i32, i32
  }
  func.func @transform_3(%arg0: i32) -> (i32, i32) {
    %c0_i32 = arith.constant 0 : i32
    %c0_i32_0 = arith.constant 0 : i32
    %c0_i32_1 = arith.constant 0 : i32
    return %c0_i32, %c0_i32_0 : i32, i32
  }
  func.func @transform_4(%arg0: i32) -> (i32, i32) {
    %c0_i32 = arith.constant 0 : i32
    %c0_i32_0 = arith.constant 0 : i32
    %c0_i32_1 = arith.constant 0 : i32
    return %c0_i32, %c0_i32_0 : i32, i32
  }
  func.func @transform_5(%arg0: i32) -> (i32, i32) {
    %c0_i32 = arith.constant 0 : i32
    %c0_i32_0 = arith.constant 0 : i32
    %c0_i32_1 = arith.constant 0 : i32
    return %c0_i32, %c0_i32_0 : i32, i32
  }
  func.func @transform_6(%arg0: i32) -> (i32, i32, i32, i32) {
    %c0_i32 = arith.constant 0 : i32
    %c0_i32_0 = arith.constant 0 : i32
    %c0_i32_1 = arith.constant 0 : i32
    %c0_i32_2 = arith.constant 0 : i32
    return %arg0, %c0_i32, %c0_i32_0, %c0_i32_1 : i32, i32, i32, i32
  }
}

</mosaic_0001>

<llo_original>
// kernel: res_block.5
$region0: #{res_block.5}
  #allocation0 [shape = 'u32[]', space=smem, size = 0x4, offset = 0x4, fixed_abs, tag = 'smem constant byte address 0x4 - core index']
  #allocation1 [shape = 'u32[144,128]{1,0:T(1,128)}', space=vmem, size = 0x12000, scoped, tag = 'internal scratch']
  %s0 = inlined_call_operand.vmem [shape: f32[2,16,16,128], index: 0, kind: input, shape index: {}]
  %s1 = inlined_call_operand.vmem [shape: f32[2,16,16,128], index: 1, kind: input, shape index: {}]
  %s2 = inlined_call_operand.vmem [shape: f32[1,128], index: 2, kind: input, shape index: {}]
  %s3 = inlined_call_operand.vmem [shape: f32[1,128], index: 3, kind: input, shape index: {}]
  %s4 = inlined_call_operand.vmem [shape: f32[1,128], index: 4, kind: input, shape index: {}]
  %s5 = inlined_call_operand.vmem [shape: f32[1,128], index: 5, kind: input, shape index: {}]
  %s6 = inlined_call_operand.vmem [shape: f32[2,16,16,128], index: 6, kind: output, shape index: {}]
  %s7 = sld [smem:[#allocation0]]
  $region57: #{res_block.5} parent=0
    _
  %s9 = ssub.s32 1, %s7
  %s10 = scalar_select 0, %s9, %s7
  loop: start=0, step=1, limit=4
  $region2: #{res_block.5} parent=0 // loop_pre_header
    _
  $region3: #{res_block.5} parent=0 // loop_header
    %s12 = sphi 0, %s16
    %p13 = scmp.ge.s32.totalorder %s12, 4
    %s22 = sphi 0, %s24
    %s25 = sphi 0, %s22
    %s26 = sphi 0, %s25
    %s42 = sphi 0, %s26
    %s48 = sphi 0, %s50
    %s51 = sphi 0, %s48
    %s52 = sphi 0, %s51
    %s68 = sphi 0, %s52
    %s72 = sphi 0, %s72
    %s74 = sphi 0, %s72
    %s75 = sphi 0, %s74
    %s89 = sphi 0, %s75
    %s93 = sphi 0, %s93
    %s95 = sphi 0, %s93
    %s96 = sphi 0, %s95
    %s110 = sphi 0, %s96
    %s114 = sphi 0, %s114
    %s116 = sphi 0, %s114
    %s117 = sphi 0, %s116
    %s131 = sphi 0, %s117
    %s135 = sphi 0, %s135
    %s137 = sphi 0, %s135
    %s138 = sphi 0, %s137
    %s152 = sphi 0, %s138
    %s158 = sphi 0, %s160
    %s161 = sphi 0, %s158
    %s162 = sphi 0, %s161
    %s178 = sphi 0, %s162
  $region4: #{res_block.5} parent=0 // loop_header_branch
    %15 = sbr.rel (%p13) target = $region8
  $region5: #{res_block.5} parent=0 // loop_body
    %s17 = ssub.s32 %s12, 1
    %s18 = ssub.s32 %s12, 2
    %s19 = sadd.s32 %s12, 1
    %s20 = ssub.s32 %s12, %s19
    %p21 = scmp.eq.s32.totalorder %s20, 0
    %s23 = sadd.s32 %s22, 1
    %s24 = scalar_select %p21, %s22, %s23
    %p27 = pneg %p21
    %p28 = scmp.eq.s32.totalorder %s12, 1
    %p29 = por %p27, %p28
    %p30 = scmp.ne.s32.totalorder %s22, %s25
    %p31 = scmp.eq.s32.totalorder %s12, 0
    %p32 = por %p30, %p31
    %p33 = scmp.ne.s32.totalorder %s22, %s25
    %p34 = scmp.eq.s32.totalorder %s17, 1
    %p35 = por %p33, %p34
    %p36 = scmp.ne.s32.totalorder %s25, %s26
    %p37 = scmp.eq.s32.totalorder %s17, 0
    %p38 = por %p36, %p37
    %p39 = scmp.ne.s32.totalorder %s25, %s26
    %p40 = scmp.eq.s32.totalorder %s18, 1
    %p41 = por %p39, %p40
    %p43 = scmp.ne.s32.totalorder %s26, %s42
    %p44 = scmp.eq.s32.totalorder %s18, 0
    %p45 = por %p43, %p44
    %s46 = ssub.s32 %s12, %s19
    %p47 = scmp.eq.s32.totalorder %s46, 0
    %s49 = sadd.s32 %s48, 1
    %s50 = scalar_select %p47, %s48, %s49
    %p53 = pneg %p47
    %p54 = scmp.eq.s32.totalorder %s12, 1
    %p55 = por %p53, %p54
    %p56 = scmp.ne.s32.totalorder %s48, %s51
    %p57 = scmp.eq.s32.totalorder %s12, 0
    %p58 = por %p56, %p57
    %p59 = scmp.ne.s32.totalorder %s48, %s51
    %p60 = scmp.eq.s32.totalorder %s17, 1
    %p61 = por %p59, %p60
    %p62 = scmp.ne.s32.totalorder %s51, %s52
    %p63 = scmp.eq.s32.totalorder %s17, 0
    %p64 = por %p62, %p63
    %p65 = scmp.ne.s32.totalorder %s51, %s52
    %p66 = scmp.eq.s32.totalorder %s18, 1
    %p67 = por %p65, %p66
    %p69 = scmp.ne.s32.totalorder %s52, %s68
    %p70 = scmp.eq.s32.totalorder %s18, 0
    %p71 = por %p69, %p70
    %s73 = sadd.s32 %s72, 1
    %p76 = scmp.eq.s32.totalorder %s12, 1
    %p77 = scmp.ne.s32.totalorder %s72, %s74
    %p78 = scmp.eq.s32.totalorder %s12, 0
    %p79 = por %p77, %p78
    %p80 = scmp.ne.s32.totalorder %s72, %s74
    %p81 = scmp.eq.s32.totalorder %s17, 1
    %p82 = por %p80, %p81
    %p83 = scmp.ne.s32.totalorder %s74, %s75
    %p84 = scmp.eq.s32.totalorder %s17, 0
    %p85 = por %p83, %p84
    %p86 = scmp.ne.s32.totalorder %s74, %s75
    %p87 = scmp.eq.s32.totalorder %s18, 1
    %p88 = por %p86, %p87
    %p90 = scmp.ne.s32.totalorder %s75, %s89
    %p91 = scmp.eq.s32.totalorder %s18, 0
    %p92 = por %p90, %p91
    %s94 = sadd.s32 %s93, 1
    %p97 = scmp.eq.s32.totalorder %s12, 1
    %p98 = scmp.ne.s32.totalorder %s93, %s95
    %p99 = scmp.eq.s32.totalorder %s12, 0
    %p100 = por %p98, %p99
    %p101 = scmp.ne.s32.totalorder %s93, %s95
    %p102 = scmp.eq.s32.totalorder %s17, 1
    %p103 = por %p101, %p102
    %p104 = scmp.ne.s32.totalorder %s95, %s96
    %p105 = scmp.eq.s32.totalorder %s17, 0
    %p106 = por %p104, %p105
    %p107 = scmp.ne.s32.totalorder %s95, %s96
    %p108 = scmp.eq.s32.totalorder %s18, 1
    %p109 = por %p107, %p108
    %p111 = scmp.ne.s32.totalorder %s96, %s110
    %p112 = scmp.eq.s32.totalorder %s18, 0
    %p113 = por %p111, %p112
    %s115 = sadd.s32 %s114, 1
    %p118 = scmp.eq.s32.totalorder %s12, 1
    %p119 = scmp.ne.s32.totalorder %s114, %s116
    %p120 = scmp.eq.s32.totalorder %s12, 0
    %p121 = por %p119, %p120
    %p122 = scmp.ne.s32.totalorder %s114, %s116
    %p123 = scmp.eq.s32.totalorder %s17, 1
    %p124 = por %p122, %p123
    %p125 = scmp.ne.s32.totalorder %s116, %s117
    %p126 = scmp.eq.s32.totalorder %s17, 0
    %p127 = por %p125, %p126
    %p128 = scmp.ne.s32.totalorder %s116, %s117
    %p129 = scmp.eq.s32.totalorder %s18, 1
    %p130 = por %p128, %p129
    %p132 = scmp.ne.s32.totalorder %s117, %s131
    %p133 = scmp.eq.s32.totalorder %s18, 0
    %p134 = por %p132, %p133
    %s136 = sadd.s32 %s135, 1
    %p139 = scmp.eq.s32.totalorder %s12, 1
    %p140 = scmp.ne.s32.totalorder %s135, %s137
    %p141 = scmp.eq.s32.totalorder %s12, 0
    %p142 = por %p140, %p141
    %p143 = scmp.ne.s32.totalorder %s135, %s137
    %p144 = scmp.eq.s32.totalorder %s17, 1
    %p145 = por %p143, %p144
    %p146 = scmp.ne.s32.totalorder %s137, %s138
    %p147 = scmp.eq.s32.totalorder %s17, 0
    %p148 = por %p146, %p147
    %p149 = scmp.ne.s32.totalorder %s137, %s138
    %p150 = scmp.eq.s32.totalorder %s18, 1
    %p151 = por %p149, %p150
    %p153 = scmp.ne.s32.totalorder %s138, %s152
    %p154 = scmp.eq.s32.totalorder %s18, 0
    %p155 = por %p153, %p154
    %s156 = ssub.s32 %s12, %s19
    %p157 = scmp.eq.s32.totalorder %s156, 0
    %s159 = sadd.s32 %s158, 1
    %s160 = scalar_select %p157, %s158, %s159
    %p163 = pneg %p157
    %p164 = scmp.eq.s32.totalorder %s12, 1
    %p165 = por %p163, %p164
    %p166 = scmp.ne.s32.totalorder %s158, %s161
    %p167 = scmp.eq.s32.totalorder %s12, 0
    %p168 = por %p166, %p167
    %p169 = scmp.ne.s32.totalorder %s158, %s161
    %p170 = scmp.eq.s32.totalorder %s17, 1
    %p171 = por %p169, %p170
    %p172 = scmp.ne.s32.totalorder %s161, %s162
    %p173 = scmp.eq.s32.totalorder %s17, 0
    %p174 = por %p172, %p173
    %p175 = scmp.ne.s32.totalorder %s161, %s162
    %p176 = scmp.eq.s32.totalorder %s18, 1
    %p177 = por %p175, %p176
    %p179 = scmp.ne.s32.totalorder %s162, %s178
    %p180 = scmp.eq.s32.totalorder %s18, 0
    %p181 = por %p179, %p180
    %p182 = scmp.le.s32.totalorder 1, %s12
    %p183 = scmp.lt.s32.totalorder %s12, 3
    %p184 = pnand %p182, %p183
    %p185 = pneg %p184
    // Predicated region
    $region9: #{res_block.5} parent=5 // pred_check
      _
    $region10: #{res_block.5} parent=5 // pred_check_branch
      %187 = sbr.rel (%p184) target = $region12
    $region11: #{res_block.5} parent=5 // pred_region
      %s188 = ssub.s32 %s12, 1
      // Predicated region
      $region13: #{res_block.5} parent=11 // pred_check
        %p189 = pneg %p85
      $region14: #{res_block.5} parent=11 // pred_check_branch
        %191 = sbr.rel (%p189) target = $region16
      $region15: #{res_block.5} parent=11 // pred_region
        _
      $region16: #{res_block.5} parent=11 // pred_fallthru
        _
      // Predicated region
      $region17: #{res_block.5} parent=11 // pred_check
        %p192 = pneg %p106
      $region18: #{res_block.5} parent=11 // pred_check_branch
        %194 = sbr.rel (%p192) target = $region20
      $region19: #{res_block.5} parent=11 // pred_region
        _
      $region20: #{res_block.5} parent=11 // pred_fallthru
        _
      // Predicated region
      $region21: #{res_block.5} parent=11 // pred_check
        %p195 = pneg %p127
      $region22: #{res_block.5} parent=11 // pred_check_branch
        %197 = sbr.rel (%p195) target = $region24
      $region23: #{res_block.5} parent=11 // pred_region
        _
      $region24: #{res_block.5} parent=11 // pred_fallthru
        _
      // Predicated region
      $region25: #{res_block.5} parent=11 // pred_check
        %p198 = pneg %p148
      $region26: #{res_block.5} parent=11 // pred_check_branch
        %200 = sbr.rel (%p198) target = $region28
      $region27: #{res_block.5} parent=11 // pred_region
        _
      $region28: #{res_block.5} parent=11 // pred_fallthru
        _
    $region12: #{res_block.5} parent=5 // pred_fallthru
      _
    %p201 = scmp.lt.s32.totalorder %s12, 2
    // Predicated region
    $region29: #{res_block.5} parent=5 // pred_check
      %p202 = pneg %p201
    $region30: #{res_block.5} parent=5 // pred_check_branch
      %204 = sbr.rel (%p202) target = $region32
    $region31: #{res_block.5} parent=5 // pred_region
      // Predicated region
      $region33: #{res_block.5} parent=31 // pred_check
        %p205 = pneg %p32
      $region34: #{res_block.5} parent=31 // pred_check_branch
        %207 = sbr.rel (%p205) target = $region36
      $region35: #{res_block.5} parent=31 // pred_region
        %p208 = scmp.lt.s32.totalorder %s12, 1
        %s209 = scalar_select %p208, %s12, 1
        %s210 = smul.addr %s209, 32
        %s211 = smul.addr %s210, 8
        %s212 = scalar_lea.vmem %s0, %s211
      $region36: #{res_block.5} parent=31 // pred_fallthru
        _
      // Predicated region
      $region37: #{res_block.5} parent=31 // pred_check
        %p213 = pneg %p58
      $region38: #{res_block.5} parent=31 // pred_check_branch
        %215 = sbr.rel (%p213) target = $region40
      $region39: #{res_block.5} parent=31 // pred_region
        %p216 = scmp.lt.s32.totalorder %s12, 1
        %s217 = scalar_select %p216, %s12, 1
        %s218 = smul.addr %s217, 32
        %s219 = smul.addr %s218, 8
        %s220 = scalar_lea.vmem %s1, %s219
      $region40: #{res_block.5} parent=31 // pred_fallthru
        _
    $region32: #{res_block.5} parent=5 // pred_fallthru
      _
    %p221 = scmp.le.s32.totalorder 1, %s12
    %p222 = scmp.lt.s32.totalorder %s12, 3
    %p223 = pnand %p221, %p222
    %p224 = pneg %p223
    // Predicated region
    $region41: #{res_block.5} parent=5 // pred_check
      _
    $region42: #{res_block.5} parent=5 // pred_check_branch
      %226 = sbr.rel (%p223) target = $region44
    $region43: #{res_block.5} parent=5 // pred_region
      %s227 = ssub.s32 %s12, 1
      %p228 = scmp.lt.s32.totalorder %s17, 1
      %s229 = scalar_select %p228, %s17, 1
      %s230 = smul.addr %s229, 32
      %s231 = smul.addr %s230, 8
      %s232 = scalar_lea.vmem %s0, %s231
      %p233 = pneg %p38
      %p234 = pneg %p35
      %p235 = scmp.lt.s32.totalorder %s17, 1
      %s236 = scalar_select %p235, %s17, 1
      %s237 = smul.addr %s236, 32
      %s238 = smul.addr %s237, 8
      %s239 = scalar_lea.vmem %s1, %s238
      %p240 = pneg %p64
      %p241 = pneg %p61
      %p242 = pneg %p85
      %p243 = pneg %p82
      %p244 = pneg %p106
      %p245 = pneg %p103
      %p246 = pneg %p127
      %p247 = pneg %p124
      %p248 = pneg %p148
      %p249 = pneg %p145
      %p250 = pneg %p174
      %p251 = pneg %p171
      %p252 = scmp.lt.s32.totalorder %s17, 1
      %s253 = scalar_select %p252, %s17, 1
      %s254 = smul.addr %s253, 32
      %s255 = smul.addr %s254, 8
      %s256 = scalar_lea.vmem %s6, %s255
      %p257 = scmp.lt.s32.totalorder %s17, 1
      %s258 = scalar_select %p257, %s17, 1
      %s259 = smul.addr %s258, 32
      %s260 = smul.addr %s259, 8
      %s261 = scalar_lea.vmem %s0, %s260
      %p262 = scmp.lt.s32.totalorder %s17, 1
      %s263 = scalar_select %p262, %s17, 1
      %s264 = smul.addr %s263, 32
      %s265 = smul.addr %s264, 8
      %s266 = scalar_lea.vmem %s1, %s265
      %p267 = scmp.lt.s32.totalorder %s17, 1
      %s268 = scalar_select %p267, %s17, 1
      %s269 = smul.addr %s268, 32
      %s270 = smul.addr %s269, 8
      %s271 = scalar_lea.vmem %s6, %s270
      %v272 = vld [vmem:[%s261] sm:$0xff]
      %v273 = vld [vmem:[%s261 + $0x8] sm:$0xff]
      %v274 = vld [vmem:[%s261 + $0x10] sm:$0xff]
      %v275 = vld [vmem:[%s261 + $0x18] sm:$0xff]
      %v276 = vld [vmem:[%s261 + $0x20] sm:$0xff]
      %v277 = vld [vmem:[%s261 + $0x28] sm:$0xff]
      %v278 = vld [vmem:[%s261 + $0x30] sm:$0xff]
      %v279 = vld [vmem:[%s261 + $0x38] sm:$0xff]
      %v280 = vld [vmem:[%s261 + $0x40] sm:$0xff]
      %v281 = vld [vmem:[%s261 + $0x48] sm:$0xff]
      %v282 = vld [vmem:[%s261 + $0x50] sm:$0xff]
      %v283 = vld [vmem:[%s261 + $0x58] sm:$0xff]
      %v284 = vld [vmem:[%s261 + $0x60] sm:$0xff]
      %v285 = vld [vmem:[%s261 + $0x68] sm:$0xff]
      %v286 = vld [vmem:[%s261 + $0x70] sm:$0xff]
      %v287 = vld [vmem:[%s261 + $0x78] sm:$0xff]
      %v288 = vld [vmem:[%s261 + $0x80] sm:$0xff]
      %v289 = vld [vmem:[%s261 + $0x88] sm:$0xff]
      %v290 = vld [vmem:[%s261 + $0x90] sm:$0xff]
      %v291 = vld [vmem:[%s261 + $0x98] sm:$0xff]
      %v292 = vld [vmem:[%s261 + $0xa0] sm:$0xff]
      %v293 = vld [vmem:[%s261 + $0xa8] sm:$0xff]
      %v294 = vld [vmem:[%s261 + $0xb0] sm:$0xff]
      %v295 = vld [vmem:[%s261 + $0xb8] sm:$0xff]
      %v296 = vld [vmem:[%s261 + $0xc0] sm:$0xff]
      %v297 = vld [vmem:[%s261 + $0xc8] sm:$0xff]
      %v298 = vld [vmem:[%s261 + $0xd0] sm:$0xff]
      %v299 = vld [vmem:[%s261 + $0xd8] sm:$0xff]
      %v300 = vld [vmem:[%s261 + $0xe0] sm:$0xff]
      %v301 = vld [vmem:[%s261 + $0xe8] sm:$0xff]
      %v302 = vld [vmem:[%s261 + $0xf0] sm:$0xff]
      %v303 = vld [vmem:[%s261 + $0xf8] sm:$0xff]
      %v304 = vld [vmem:[%s2] sm:$0x1]
      %v306 = vlaneseq
      %v307 = vshrl.u32 %v306, 7
      %v308 = vsub.s32 0, %v307
      %v309 = vrot.slane %v304, %v308
      %v311 = vmul.f32 %v272, %v309
      %v312 = vmul.f32 %v273, %v309
      %v313 = vmul.f32 %v274, %v309
      %v314 = vmul.f32 %v275, %v309
      %v315 = vmul.f32 %v276, %v309
      %v316 = vmul.f32 %v277, %v309
      %v317 = vmul.f32 %v278, %v309
      %v318 = vmul.f32 %v279, %v309
      %v319 = vmul.f32 %v280, %v309
      %v320 = vmul.f32 %v281, %v309
      %v321 = vmul.f32 %v282, %v309
      %v322 = vmul.f32 %v283, %v309
      %v323 = vmul.f32 %v284, %v309
      %v324 = vmul.f32 %v285, %v309
      %v325 = vmul.f32 %v286, %v309
      %v326 = vmul.f32 %v287, %v309
      %v327 = vmul.f32 %v288, %v309
      %v328 = vmul.f32 %v289, %v309
      %v329 = vmul.f32 %v290, %v309
      %v330 = vmul.f32 %v291, %v309
      %v331 = vmul.f32 %v292, %v309
      %v332 = vmul.f32 %v293, %v309
      %v333 = vmul.f32 %v294, %v309
      %v334 = vmul.f32 %v295, %v309
      %v335 = vmul.f32 %v296, %v309
      %v336 = vmul.f32 %v297, %v309
      %v337 = vmul.f32 %v298, %v309
      %v338 = vmul.f32 %v299, %v309
      %v339 = vmul.f32 %v300, %v309
      %v340 = vmul.f32 %v301, %v309
      %v341 = vmul.f32 %v302, %v309
      %v342 = vmul.f32 %v303, %v309
      %v343 = vld [vmem:[%s3] sm:$0x1]
      %v345 = vlaneseq
      %v346 = vshrl.u32 %v345, 7
      %v347 = vsub.s32 0, %v346
      %v348 = vrot.slane %v343, %v347
      %v350 = vadd.f32 %v311, %v348
      %v351 = vadd.f32 %v312, %v348
      %v352 = vadd.f32 %v313, %v348
      %v353 = vadd.f32 %v314, %v348
      %v354 = vadd.f32 %v315, %v348
      %v355 = vadd.f32 %v316, %v348
      %v356 = vadd.f32 %v317, %v348
      %v357 = vadd.f32 %v318, %v348
      %v358 = vadd.f32 %v319, %v348
      %v359 = vadd.f32 %v320, %v348
      %v360 = vadd.f32 %v321, %v348
      %v361 = vadd.f32 %v322, %v348
      %v362 = vadd.f32 %v323, %v348
      %v363 = vadd.f32 %v324, %v348
      %v364 = vadd.f32 %v325, %v348
      %v365 = vadd.f32 %v326, %v348
      %v366 = vadd.f32 %v327, %v348
      %v367 = vadd.f32 %v328, %v348
      %v368 = vadd.f32 %v329, %v348
      %v369 = vadd.f32 %v330, %v348
      %v370 = vadd.f32 %v331, %v348
      %v371 = vadd.f32 %v332, %v348
      %v372 = vadd.f32 %v333, %v348
      %v373 = vadd.f32 %v334, %v348
      %v374 = vadd.f32 %v335, %v348
      %v375 = vadd.f32 %v336, %v348
      %v376 = vadd.f32 %v337, %v348
      %v377 = vadd.f32 %v338, %v348
      %v378 = vadd.f32 %v339, %v348
      %v379 = vadd.f32 %v340, %v348
      %v380 = vadd.f32 %v341, %v348
      %v381 = vadd.f32 %v342, %v348
      %v382 = vld [vmem:[%s266] sm:$0xff]
      %v383 = vld [vmem:[%s266 + $0x8] sm:$0xff]
      %v384 = vld [vmem:[%s266 + $0x10] sm:$0xff]
      %v385 = vld [vmem:[%s266 + $0x18] sm:$0xff]
      %v386 = vld [vmem:[%s266 + $0x20] sm:$0xff]
      %v387 = vld [vmem:[%s266 + $0x28] sm:$0xff]
      %v388 = vld [vmem:[%s266 + $0x30] sm:$0xff]
      %v389 = vld [vmem:[%s266 + $0x38] sm:$0xff]
      %v390 = vld [vmem:[%s266 + $0x40] sm:$0xff]
      %v391 = vld [vmem:[%s266 + $0x48] sm:$0xff]
      %v392 = vld [vmem:[%s266 + $0x50] sm:$0xff]
      %v393 = vld [vmem:[%s266 + $0x58] sm:$0xff]
      %v394 = vld [vmem:[%s266 + $0x60] sm:$0xff]
      %v395 = vld [vmem:[%s266 + $0x68] sm:$0xff]
      %v396 = vld [vmem:[%s266 + $0x70] sm:$0xff]
      %v397 = vld [vmem:[%s266 + $0x78] sm:$0xff]
      %v398 = vld [vmem:[%s266 + $0x80] sm:$0xff]
      %v399 = vld [vmem:[%s266 + $0x88] sm:$0xff]
      %v400 = vld [vmem:[%s266 + $0x90] sm:$0xff]
      %v401 = vld [vmem:[%s266 + $0x98] sm:$0xff]
      %v402 = vld [vmem:[%s266 + $0xa0] sm:$0xff]
      %v403 = vld [vmem:[%s266 + $0xa8] sm:$0xff]
      %v404 = vld [vmem:[%s266 + $0xb0] sm:$0xff]
      %v405 = vld [vmem:[%s266 + $0xb8] sm:$0xff]
      %v406 = vld [vmem:[%s266 + $0xc0] sm:$0xff]
      %v407 = vld [vmem:[%s266 + $0xc8] sm:$0xff]
      %v408 = vld [vmem:[%s266 + $0xd0] sm:$0xff]
      %v409 = vld [vmem:[%s266 + $0xd8] sm:$0xff]
      %v410 = vld [vmem:[%s266 + $0xe0] sm:$0xff]
      %v411 = vld [vmem:[%s266 + $0xe8] sm:$0xff]
      %v412 = vld [vmem:[%s266 + $0xf0] sm:$0xff]
      %v413 = vld [vmem:[%s266 + $0xf8] sm:$0xff]
      %v414 = vld [vmem:[%s4] sm:$0x1]
      %v416 = vlaneseq
      %v417 = vshrl.u32 %v416, 7
      %v418 = vsub.s32 0, %v417
      %v419 = vrot.slane %v414, %v418
      %v421 = vmul.f32 %v382, %v419
      %v422 = vmul.f32 %v383, %v419
      %v423 = vmul.f32 %v384, %v419
      %v424 = vmul.f32 %v385, %v419
      %v425 = vmul.f32 %v386, %v419
      %v426 = vmul.f32 %v387, %v419
      %v427 = vmul.f32 %v388, %v419
      %v428 = vmul.f32 %v389, %v419
      %v429 = vmul.f32 %v390, %v419
      %v430 = vmul.f32 %v391, %v419
      %v431 = vmul.f32 %v392, %v419
      %v432 = vmul.f32 %v393, %v419
      %v433 = vmul.f32 %v394, %v419
      %v434 = vmul.f32 %v395, %v419
      %v435 = vmul.f32 %v396, %v419
      %v436 = vmul.f32 %v397, %v419
      %v437 = vmul.f32 %v398, %v419
      %v438 = vmul.f32 %v399, %v419
      %v439 = vmul.f32 %v400, %v419
      %v440 = vmul.f32 %v401, %v419
      %v441 = vmul.f32 %v402, %v419
      %v442 = vmul.f32 %v403, %v419
      %v443 = vmul.f32 %v404, %v419
      %v444 = vmul.f32 %v405, %v419
      %v445 = vmul.f32 %v406, %v419
      %v446 = vmul.f32 %v407, %v419
      %v447 = vmul.f32 %v408, %v419
      %v448 = vmul.f32 %v409, %v419
      %v449 = vmul.f32 %v410, %v419
      %v450 = vmul.f32 %v411, %v419
      %v451 = vmul.f32 %v412, %v419
      %v452 = vmul.f32 %v413, %v419
      %v453 = vadd.f32 %v350, %v421
      %v454 = vadd.f32 %v351, %v422
      %v455 = vadd.f32 %v352, %v423
      %v456 = vadd.f32 %v353, %v424
      %v457 = vadd.f32 %v354, %v425
      %v458 = vadd.f32 %v355, %v426
      %v459 = vadd.f32 %v356, %v427
      %v460 = vadd.f32 %v357, %v428
      %v461 = vadd.f32 %v358, %v429
      %v462 = vadd.f32 %v359, %v430
      %v463 = vadd.f32 %v360, %v431
      %v464 = vadd.f32 %v361, %v432
      %v465 = vadd.f32 %v362, %v433
      %v466 = vadd.f32 %v363, %v434
      %v467 = vadd.f32 %v364, %v435
      %v468 = vadd.f32 %v365, %v436
      %v469 = vadd.f32 %v366, %v437
      %v470 = vadd.f32 %v367, %v438
      %v471 = vadd.f32 %v368, %v439
      %v472 = vadd.f32 %v369, %v440
      %v473 = vadd.f32 %v370, %v441
      %v474 = vadd.f32 %v371, %v442
      %v475 = vadd.f32 %v372, %v443
      %v476 = vadd.f32 %v373, %v444
      %v477 = vadd.f32 %v374, %v445
      %v478 = vadd.f32 %v375, %v446
      %v479 = vadd.f32 %v376, %v447
      %v480 = vadd.f32 %v377, %v448
      %v481 = vadd.f32 %v378, %v449
      %v482 = vadd.f32 %v379, %v450
      %v483 = vadd.f32 %v380, %v451
      %v484 = vadd.f32 %v381, %v452
      %v485 = vld [vmem:[%s5] sm:$0x1]
      %v487 = vlaneseq
      %v488 = vshrl.u32 %v487, 7
      %v489 = vsub.s32 0, %v488
      %v490 = vrot.slane %v485, %v489
      %v492 = vadd.f32 %v453, %v490
      %v493 = vadd.f32 %v454, %v490
      %v494 = vadd.f32 %v455, %v490
      %v495 = vadd.f32 %v456, %v490
      %v496 = vadd.f32 %v457, %v490
      %v497 = vadd.f32 %v458, %v490
      %v498 = vadd.f32 %v459, %v490
      %v499 = vadd.f32 %v460, %v490
      %v500 = vadd.f32 %v461, %v490
      %v501 = vadd.f32 %v462, %v490
      %v502 = vadd.f32 %v463, %v490
      %v503 = vadd.f32 %v464, %v490
      %v504 = vadd.f32 %v465, %v490
      %v505 = vadd.f32 %v466, %v490
      %v506 = vadd.f32 %v467, %v490
      %v507 = vadd.f32 %v468, %v490
      %v508 = vadd.f32 %v469, %v490
      %v509 = vadd.f32 %v470, %v490
      %v510 = vadd.f32 %v471, %v490
      %v511 = vadd.f32 %v472, %v490
      %v512 = vadd.f32 %v473, %v490
      %v513 = vadd.f32 %v474, %v490
      %v514 = vadd.f32 %v475, %v490
      %v515 = vadd.f32 %v476, %v490
      %v516 = vadd.f32 %v477, %v490
      %v517 = vadd.f32 %v478, %v490
      %v518 = vadd.f32 %v479, %v490
      %v519 = vadd.f32 %v480, %v490
      %v520 = vadd.f32 %v481, %v490
      %v521 = vadd.f32 %v482, %v490
      %v522 = vadd.f32 %v483, %v490
      %v523 = vadd.f32 %v484, %v490
      %v524 = vmax.f32 %v492, 0.0
      %v525 = vmax.f32 %v493, 0.0
      %v526 = vmax.f32 %v494, 0.0
      %v527 = vmax.f32 %v495, 0.0
      %v528 = vmax.f32 %v496, 0.0
      %v529 = vmax.f32 %v497, 0.0
      %v530 = vmax.f32 %v498, 0.0
      %v531 = vmax.f32 %v499, 0.0
      %v532 = vmax.f32 %v500, 0.0
      %v533 = vmax.f32 %v501, 0.0
      %v534 = vmax.f32 %v502, 0.0
      %v535 = vmax.f32 %v503, 0.0
      %v536 = vmax.f32 %v504, 0.0
      %v537 = vmax.f32 %v505, 0.0
      %v538 = vmax.f32 %v506, 0.0
      %v539 = vmax.f32 %v507, 0.0
      %v540 = vmax.f32 %v508, 0.0
      %v541 = vmax.f32 %v509, 0.0
      %v542 = vmax.f32 %v510, 0.0
      %v543 = vmax.f32 %v511, 0.0
      %v544 = vmax.f32 %v512, 0.0
      %v545 = vmax.f32 %v513, 0.0
      %v546 = vmax.f32 %v514, 0.0
      %v547 = vmax.f32 %v515, 0.0
      %v548 = vmax.f32 %v516, 0.0
      %v549 = vmax.f32 %v517, 0.0
      %v550 = vmax.f32 %v518, 0.0
      %v551 = vmax.f32 %v519, 0.0
      %v552 = vmax.f32 %v520, 0.0
      %v553 = vmax.f32 %v521, 0.0
      %v554 = vmax.f32 %v522, 0.0
      %v555 = vmax.f32 %v523, 0.0
      %556 = vst [vmem:[%s271] sm:$0xff] %v524
      %557 = vst [vmem:[%s271 + $0x8] sm:$0xff] %v525
      %558 = vst [vmem:[%s271 + $0x10] sm:$0xff] %v526
      %559 = vst [vmem:[%s271 + $0x18] sm:$0xff] %v527
      %560 = vst [vmem:[%s271 + $0x20] sm:$0xff] %v528
      %561 = vst [vmem:[%s271 + $0x28] sm:$0xff] %v529
      %562 = vst [vmem:[%s271 + $0x30] sm:$0xff] %v530
      %563 = vst [vmem:[%s271 + $0x38] sm:$0xff] %v531
      %564 = vst [vmem:[%s271 + $0x40] sm:$0xff] %v532
      %565 = vst [vmem:[%s271 + $0x48] sm:$0xff] %v533
      %566 = vst [vmem:[%s271 + $0x50] sm:$0xff] %v534
      %567 = vst [vmem:[%s271 + $0x58] sm:$0xff] %v535
      %568 = vst [vmem:[%s271 + $0x60] sm:$0xff] %v536
      %569 = vst [vmem:[%s271 + $0x68] sm:$0xff] %v537
      %570 = vst [vmem:[%s271 + $0x70] sm:$0xff] %v538
      %571 = vst [vmem:[%s271 + $0x78] sm:$0xff] %v539
      %572 = vst [vmem:[%s271 + $0x80] sm:$0xff] %v540
      %573 = vst [vmem:[%s271 + $0x88] sm:$0xff] %v541
      %574 = vst [vmem:[%s271 + $0x90] sm:$0xff] %v542
      %575 = vst [vmem:[%s271 + $0x98] sm:$0xff] %v543
      %576 = vst [vmem:[%s271 + $0xa0] sm:$0xff] %v544
      %577 = vst [vmem:[%s271 + $0xa8] sm:$0xff] %v545
      %578 = vst [vmem:[%s271 + $0xb0] sm:$0xff] %v546
      %579 = vst [vmem:[%s271 + $0xb8] sm:$0xff] %v547
      %580 = vst [vmem:[%s271 + $0xc0] sm:$0xff] %v548
      %581 = vst [vmem:[%s271 + $0xc8] sm:$0xff] %v549
      %582 = vst [vmem:[%s271 + $0xd0] sm:$0xff] %v550
      %583 = vst [vmem:[%s271 + $0xd8] sm:$0xff] %v551
      %584 = vst [vmem:[%s271 + $0xe0] sm:$0xff] %v552
      %585 = vst [vmem:[%s271 + $0xe8] sm:$0xff] %v553
      %586 = vst [vmem:[%s271 + $0xf0] sm:$0xff] %v554
      %587 = vst [vmem:[%s271 + $0xf8] sm:$0xff] %v555
      %p588 = scmp.lt.s32.totalorder %s17, 1
      %s589 = scalar_select %p588, %s17, 1
      %s590 = smul.addr %s589, 32
      %s591 = smul.addr %s590, 8
      %s592 = scalar_lea.vmem %s6, %s591
      // Predicated region
      $region45: #{res_block.5} parent=43 // pred_check
        %p593 = pneg %p171
      $region46: #{res_block.5} parent=43 // pred_check_branch
        %595 = sbr.rel (%p593) target = $region48
      $region47: #{res_block.5} parent=43 // pred_region
        _
      $region48: #{res_block.5} parent=43 // pred_fallthru
        _
    $region44: #{res_block.5} parent=5 // pred_fallthru
      _
    %p596 = scmp.le.s32.totalorder 2, %s12
    // Predicated region
    $region49: #{res_block.5} parent=5 // pred_check
      %p597 = pneg %p596
    $region50: #{res_block.5} parent=5 // pred_check_branch
      %599 = sbr.rel (%p597) target = $region52
    $region51: #{res_block.5} parent=5 // pred_region
      %s600 = ssub.s32 %s12, 2
      // Predicated region
      $region53: #{res_block.5} parent=51 // pred_check
        %p601 = pneg %p177
      $region54: #{res_block.5} parent=51 // pred_check_branch
        %603 = sbr.rel (%p601) target = $region56
      $region55: #{res_block.5} parent=51 // pred_region
        %p604 = scmp.lt.s32.totalorder %s18, 1
        %s605 = scalar_select %p604, %s18, 1
        %s606 = smul.addr %s605, 32
        %s607 = smul.addr %s606, 8
        %s608 = scalar_lea.vmem %s6, %s607
      $region56: #{res_block.5} parent=51 // pred_fallthru
        _
    $region52: #{res_block.5} parent=5 // pred_fallthru
      _
  $region6: #{res_block.5} parent=0 // loop_footer
    %s16 = sadd.s32 1, %s12
  $region7: #{res_block.5} parent=0 // loop_footer_branch
    %11 = sbr.rel target = $region3
  $region8: #{res_block.5} parent=0 // loop_exit
    _

// kernel: res_block.4
$region0: #{res_block.4}
  #allocation0 [shape = 'u32[]', space=smem, size = 0x4, offset = 0x4, fixed_abs, tag = 'smem constant byte address 0x4 - core index']
  #allocation1 [shape = 'u32[144,128]{1,0:T(1,128)}', space=vmem, size = 0x12000, scoped, tag = 'internal scratch']
  #allocation2 [shape = 'f32[18,25,128]{2,1,0:T(8,128)}', space=vmem, size = 0x48000, scoped, tag = 'scratch operand']
  %s0 = inlined_call_operand.vmem [shape: f32[2,16,16,128], index: 0, kind: input, shape index: {}]
  %s1 = inlined_call_operand.vmem [shape: f32[1,128], index: 1, kind: input, shape index: {}]
  %s2 = inlined_call_operand.vmem [shape: f32[1,128], index: 2, kind: input, shape index: {}]
  %s3 = inlined_call_operand.vmem [shape: bf16[9,128,128], index: 3, kind: input, shape index: {}]
  %s4 = inlined_call_operand.vmem [shape: f32[1,128], index: 4, kind: input, shape index: {}]
  %s5 = inlined_call_operand.vmem [shape: f32[2,16,16,128], index: 5, kind: output, shape index: {0}]
  %s6 = inlined_call_operand.vmem [shape: f32[1,128], index: 6, kind: output, shape index: {1}]
  %s7 = inlined_call_operand.vmem [shape: f32[1,128], index: 7, kind: output, shape index: {2}]
  %8 = xla_tuple %s5, %s6, %s7
  %s9 = sld [smem:[#allocation0]]
  $region73: #{res_block.4} parent=0
    _
  %s11 = ssub.s32 1, %s9
  %s12 = scalar_select 0, %s11, %s9
  loop: start=0, step=1, limit=4
  $region2: #{res_block.4} parent=0 // loop_pre_header
    _
  $region3: #{res_block.4} parent=0 // loop_header
    %s14 = sphi 0, %s18
    %p15 = scmp.ge.s32.totalorder %s14, 4
    %s24 = sphi 0, %s26
    %s27 = sphi 0, %s24
    %s28 = sphi 0, %s27
    %s44 = sphi 0, %s28
    %s48 = sphi 0, %s48
    %s50 = sphi 0, %s48
    %s51 = sphi 0, %s50
    %s65 = sphi 0, %s51
    %s69 = sphi 0, %s69
    %s71 = sphi 0, %s69
    %s72 = sphi 0, %s71
    %s86 = sphi 0, %s72
    %s90 = sphi 0, %s90
    %s92 = sphi 0, %s90
    %s93 = sphi 0, %s92
    %s107 = sphi 0, %s93
    %s111 = sphi 0, %s111
    %s113 = sphi 0, %s111
    %s114 = sphi 0, %s113
    %s128 = sphi 0, %s114
    %s134 = sphi 0, %s136
    %s137 = sphi 0, %s134
    %s138 = sphi 0, %s137
    %s154 = sphi 0, %s138
    %s158 = sphi 0, %s158
    %s160 = sphi 0, %s158
    %s161 = sphi 0, %s160
    %s175 = sphi 0, %s161
    %s179 = sphi 0, %s179
    %s181 = sphi 0, %s179
    %s182 = sphi 0, %s181
    %s196 = sphi 0, %s182
  $region4: #{res_block.4} parent=0 // loop_header_branch
    %17 = sbr.rel (%p15) target = $region8
  $region5: #{res_block.4} parent=0 // loop_body
    %s19 = ssub.s32 %s14, 1
    %s20 = ssub.s32 %s14, 2
    %s21 = sadd.s32 %s14, 1
    %s22 = ssub.s32 %s14, %s21
    %p23 = scmp.eq.s32.totalorder %s22, 0
    %s25 = sadd.s32 %s24, 1
    %s26 = scalar_select %p23, %s24, %s25
    %p29 = pneg %p23
    %p30 = scmp.eq.s32.totalorder %s14, 1
    %p31 = por %p29, %p30
    %p32 = scmp.ne.s32.totalorder %s24, %s27
    %p33 = scmp.eq.s32.totalorder %s14, 0
    %p34 = por %p32, %p33
    %p35 = scmp.ne.s32.totalorder %s24, %s27
    %p36 = scmp.eq.s32.totalorder %s19, 1
    %p37 = por %p35, %p36
    %p38 = scmp.ne.s32.totalorder %s27, %s28
    %p39 = scmp.eq.s32.totalorder %s19, 0
    %p40 = por %p38, %p39
    %p41 = scmp.ne.s32.totalorder %s27, %s28
    %p42 = scmp.eq.s32.totalorder %s20, 1
    %p43 = por %p41, %p42
    %p45 = scmp.ne.s32.totalorder %s28, %s44
    %p46 = scmp.eq.s32.totalorder %s20, 0
    %p47 = por %p45, %p46
    %s49 = sadd.s32 %s48, 1
    %p52 = scmp.eq.s32.totalorder %s14, 1
    %p53 = scmp.ne.s32.totalorder %s48, %s50
    %p54 = scmp.eq.s32.totalorder %s14, 0
    %p55 = por %p53, %p54
    %p56 = scmp.ne.s32.totalorder %s48, %s50
    %p57 = scmp.eq.s32.totalorder %s19, 1
    %p58 = por %p56, %p57
    %p59 = scmp.ne.s32.totalorder %s50, %s51
    %p60 = scmp.eq.s32.totalorder %s19, 0
    %p61 = por %p59, %p60
    %p62 = scmp.ne.s32.totalorder %s50, %s51
    %p63 = scmp.eq.s32.totalorder %s20, 1
    %p64 = por %p62, %p63
    %p66 = scmp.ne.s32.totalorder %s51, %s65
    %p67 = scmp.eq.s32.totalorder %s20, 0
    %p68 = por %p66, %p67
    %s70 = sadd.s32 %s69, 1
    %p73 = scmp.eq.s32.totalorder %s14, 1
    %p74 = scmp.ne.s32.totalorder %s69, %s71
    %p75 = scmp.eq.s32.totalorder %s14, 0
    %p76 = por %p74, %p75
    %p77 = scmp.ne.s32.totalorder %s69, %s71
    %p78 = scmp.eq.s32.totalorder %s19, 1
    %p79 = por %p77, %p78
    %p80 = scmp.ne.s32.totalorder %s71, %s72
    %p81 = scmp.eq.s32.totalorder %s19, 0
    %p82 = por %p80, %p81
    %p83 = scmp.ne.s32.totalorder %s71, %s72
    %p84 = scmp.eq.s32.totalorder %s20, 1
    %p85 = por %p83, %p84
    %p87 = scmp.ne.s32.totalorder %s72, %s86
    %p88 = scmp.eq.s32.totalorder %s20, 0
    %p89 = por %p87, %p88
    %s91 = sadd.s32 %s90, 1
    %p94 = scmp.eq.s32.totalorder %s14, 1
    %p95 = scmp.ne.s32.totalorder %s90, %s92
    %p96 = scmp.eq.s32.totalorder %s14, 0
    %p97 = por %p95, %p96
    %p98 = scmp.ne.s32.totalorder %s90, %s92
    %p99 = scmp.eq.s32.totalorder %s19, 1
    %p100 = por %p98, %p99
    %p101 = scmp.ne.s32.totalorder %s92, %s93
    %p102 = scmp.eq.s32.totalorder %s19, 0
    %p103 = por %p101, %p102
    %p104 = scmp.ne.s32.totalorder %s92, %s93
    %p105 = scmp.eq.s32.totalorder %s20, 1
    %p106 = por %p104, %p105
    %p108 = scmp.ne.s32.totalorder %s93, %s107
    %p109 = scmp.eq.s32.totalorder %s20, 0
    %p110 = por %p108, %p109
    %s112 = sadd.s32 %s111, 1
    %p115 = scmp.eq.s32.totalorder %s14, 1
    %p116 = scmp.ne.s32.totalorder %s111, %s113
    %p117 = scmp.eq.s32.totalorder %s14, 0
    %p118 = por %p116, %p117
    %p119 = scmp.ne.s32.totalorder %s111, %s113
    %p120 = scmp.eq.s32.totalorder %s19, 1
    %p121 = por %p119, %p120
    %p122 = scmp.ne.s32.totalorder %s113, %s114
    %p123 = scmp.eq.s32.totalorder %s19, 0
    %p124 = por %p122, %p123
    %p125 = scmp.ne.s32.totalorder %s113, %s114
    %p126 = scmp.eq.s32.totalorder %s20, 1
    %p127 = por %p125, %p126
    %p129 = scmp.ne.s32.totalorder %s114, %s128
    %p130 = scmp.eq.s32.totalorder %s20, 0
    %p131 = por %p129, %p130
    %s132 = ssub.s32 %s14, %s21
    %p133 = scmp.eq.s32.totalorder %s132, 0
    %s135 = sadd.s32 %s134, 1
    %s136 = scalar_select %p133, %s134, %s135
    %p139 = pneg %p133
    %p140 = scmp.eq.s32.totalorder %s14, 1
    %p141 = por %p139, %p140
    %p142 = scmp.ne.s32.totalorder %s134, %s137
    %p143 = scmp.eq.s32.totalorder %s14, 0
    %p144 = por %p142, %p143
    %p145 = scmp.ne.s32.totalorder %s134, %s137
    %p146 = scmp.eq.s32.totalorder %s19, 1
    %p147 = por %p145, %p146
    %p148 = scmp.ne.s32.totalorder %s137, %s138
    %p149 = scmp.eq.s32.totalorder %s19, 0
    %p150 = por %p148, %p149
    %p151 = scmp.ne.s32.totalorder %s137, %s138
    %p152 = scmp.eq.s32.totalorder %s20, 1
    %p153 = por %p151, %p152
    %p155 = scmp.ne.s32.totalorder %s138, %s154
    %p156 = scmp.eq.s32.totalorder %s20, 0
    %p157 = por %p155, %p156
    %s159 = sadd.s32 %s158, 1
    %p162 = scmp.eq.s32.totalorder %s14, 1
    %p163 = scmp.ne.s32.totalorder %s158, %s160
    %p164 = scmp.eq.s32.totalorder %s14, 0
    %p165 = por %p163, %p164
    %p166 = scmp.ne.s32.totalorder %s158, %s160
    %p167 = scmp.eq.s32.totalorder %s19, 1
    %p168 = por %p166, %p167
    %p169 = scmp.ne.s32.totalorder %s160, %s161
    %p170 = scmp.eq.s32.totalorder %s19, 0
    %p171 = por %p169, %p170
    %p172 = scmp.ne.s32.totalorder %s160, %s161
    %p173 = scmp.eq.s32.totalorder %s20, 1
    %p174 = por %p172, %p173
    %p176 = scmp.ne.s32.totalorder %s161, %s175
    %p177 = scmp.eq.s32.totalorder %s20, 0
    %p178 = por %p176, %p177
    %s180 = sadd.s32 %s179, 1
    %p183 = scmp.eq.s32.totalorder %s14, 1
    %p184 = scmp.ne.s32.totalorder %s179, %s181
    %p185 = scmp.eq.s32.totalorder %s14, 0
    %p186 = por %p184, %p185
    %p187 = scmp.ne.s32.totalorder %s179, %s181
    %p188 = scmp.eq.s32.totalorder %s19, 1
    %p189 = por %p187, %p188
    %p190 = scmp.ne.s32.totalorder %s181, %s182
    %p191 = scmp.eq.s32.totalorder %s19, 0
    %p192 = por %p190, %p191
    %p193 = scmp.ne.s32.totalorder %s181, %s182
    %p194 = scmp.eq.s32.totalorder %s20, 1
    %p195 = por %p193, %p194
    %p197 = scmp.ne.s32.totalorder %s182, %s196
    %p198 = scmp.eq.s32.totalorder %s20, 0
    %p199 = por %p197, %p198
    %p200 = scmp.le.s32.totalorder 1, %s14
    %p201 = scmp.lt.s32.totalorder %s14, 3
    %p202 = pnand %p200, %p201
    %p203 = pneg %p202
    // Predicated region
    $region9: #{res_block.4} parent=5 // pred_check
      _
    $region10: #{res_block.4} parent=5 // pred_check_branch
      %205 = sbr.rel (%p202) target = $region12
    $region11: #{res_block.4} parent=5 // pred_region
      %s206 = ssub.s32 %s14, 1
      // Predicated region
      $region13: #{res_block.4} parent=11 // pred_check
        %p207 = pneg %p61
      $region14: #{res_block.4} parent=11 // pred_check_branch
        %209 = sbr.rel (%p207) target = $region16
      $region15: #{res_block.4} parent=11 // pred_region
        _
      $region16: #{res_block.4} parent=11 // pred_fallthru
        _
      // Predicated region
      $region17: #{res_block.4} parent=11 // pred_check
        %p210 = pneg %p82
      $region18: #{res_block.4} parent=11 // pred_check_branch
        %212 = sbr.rel (%p210) target = $region20
      $region19: #{res_block.4} parent=11 // pred_region
        _
      $region20: #{res_block.4} parent=11 // pred_fallthru
        _
      // Predicated region
      $region21: #{res_block.4} parent=11 // pred_check
        %p213 = pneg %p103
      $region22: #{res_block.4} parent=11 // pred_check_branch
        %215 = sbr.rel (%p213) target = $region24
      $region23: #{res_block.4} parent=11 // pred_region
        _
      $region24: #{res_block.4} parent=11 // pred_fallthru
        _
      // Predicated region
      $region25: #{res_block.4} parent=11 // pred_check
        %p216 = pneg %p124
      $region26: #{res_block.4} parent=11 // pred_check_branch
        %218 = sbr.rel (%p216) target = $region28
      $region27: #{res_block.4} parent=11 // pred_region
        _
      $region28: #{res_block.4} parent=11 // pred_fallthru
        _
    $region12: #{res_block.4} parent=5 // pred_fallthru
      _
    %p219 = scmp.lt.s32.totalorder %s14, 2
    // Predicated region
    $region29: #{res_block.4} parent=5 // pred_check
      %p220 = pneg %p219
    $region30: #{res_block.4} parent=5 // pred_check_branch
      %222 = sbr.rel (%p220) target = $region32
    $region31: #{res_block.4} parent=5 // pred_region
      // Predicated region
      $region33: #{res_block.4} parent=31 // pred_check
        %p223 = pneg %p34
      $region34: #{res_block.4} parent=31 // pred_check_branch
        %225 = sbr.rel (%p223) target = $region36
      $region35: #{res_block.4} parent=31 // pred_region
        %p226 = scmp.lt.s32.totalorder %s14, 1
        %s227 = scalar_select %p226, %s14, 1
        %s228 = smul.addr %s227, 32
        %s229 = smul.addr %s228, 8
        %s230 = scalar_lea.vmem %s0, %s229
      $region36: #{res_block.4} parent=31 // pred_fallthru
        _
    $region32: #{res_block.4} parent=5 // pred_fallthru
      _
    %p231 = scmp.le.s32.totalorder 1, %s14
    %p232 = scmp.lt.s32.totalorder %s14, 3
    %p233 = pnand %p231, %p232
    %p234 = pneg %p233
    // Predicated region
    $region37: #{res_block.4} parent=5 // pred_check
      _
    $region38: #{res_block.4} parent=5 // pred_check_branch
      %236 = sbr.rel (%p233) target = $region40
    $region39: #{res_block.4} parent=5 // pred_region
      %s237 = ssub.s32 %s14, 1
      %p238 = scmp.lt.s32.totalorder %s19, 1
      %s239 = scalar_select %p238, %s19, 1
      %s240 = smul.addr %s239, 32
      %s241 = smul.addr %s240, 8
      %s242 = scalar_lea.vmem %s0, %s241
      %p243 = pneg %p40
      %p244 = pneg %p37
      %p245 = pneg %p61
      %p246 = pneg %p58
      %p247 = pneg %p82
      %p248 = pneg %p79
      %p249 = pneg %p103
      %p250 = pneg %p100
      %p251 = pneg %p124
      %p252 = pneg %p121
      %p253 = pneg %p150
      %p254 = pneg %p147
      %p255 = scmp.lt.s32.totalorder %s19, 1
      %s256 = scalar_select %p255, %s19, 1
      %s257 = smul.addr %s256, 32
      %s258 = smul.addr %s257, 8
      %s259 = scalar_lea.vmem %s5, %s258
      %p260 = pneg %p171
      %p261 = pneg %p168
      %p262 = pneg %p192
      %p263 = pneg %p189
      %p264 = scmp.lt.s32.totalorder %s19, 1
      %s265 = scalar_select %p264, %s19, 1
      %s266 = smul.addr %s265, 32
      %s267 = smul.addr %s266, 8
      %s268 = scalar_lea.vmem %s0, %s267
      %p269 = scmp.lt.s32.totalorder %s19, 1
      %s270 = scalar_select %p269, %s19, 1
      %s271 = smul.addr %s270, 32
      %s272 = smul.addr %s271, 8
      %s273 = scalar_lea.vmem %s5, %s272
      %p275 = scmp.eq.s32.totalorder %s19, 0
      // Predicated region
      $region41: #{res_block.4} parent=39 // pred_check
        %p276 = pneg %p275
      $region42: #{res_block.4} parent=39 // pred_check_branch
        %278 = sbr.rel (%p276) target = $region44
      $region43: #{res_block.4} parent=39 // pred_region
        %279 = vst [vmem:[%s6] sm:$0x1] 0.0
        %280 = vst [vmem:[%s7] sm:$0x1] 0.0
        %281 = vst [vmem:[#allocation2] sm:$0xff] 0.0
        %282 = vst [vmem:[#allocation2 + $0x8] sm:$0xff] 0.0
        %283 = vst [vmem:[#allocation2 + $0x10] sm:$0xff] 0.0
        %284 = vst [vmem:[#allocation2 + $0x18] sm:$0x1] 0.0
        %285 = vst [vmem:[#allocation2 + $0x20] sm:$0xff] 0.0
        %286 = vst [vmem:[#allocation2 + $0x28] sm:$0xff] 0.0
        %287 = vst [vmem:[#allocation2 + $0x30] sm:$0xff] 0.0
        %288 = vst [vmem:[#allocation2 + $0x38] sm:$0x1] 0.0
        %289 = vst [vmem:[#allocation2 + $0x40] sm:$0xff] 0.0
        %290 = vst [vmem:[#allocation2 + $0x48] sm:$0xff] 0.0
        %291 = vst [vmem:[#allocation2 + $0x50] sm:$0xff] 0.0
        %292 = vst [vmem:[#allocation2 + $0x58] sm:$0x1] 0.0
        %293 = vst [vmem:[#allocation2 + $0x60] sm:$0xff] 0.0
        %294 = vst [vmem:[#allocation2 + $0x68] sm:$0xff] 0.0
        %295 = vst [vmem:[#allocation2 + $0x70] sm:$0xff] 0.0
        %296 = vst [vmem:[#allocation2 + $0x78] sm:$0x1] 0.0
        %297 = vst [vmem:[#allocation2 + $0x80] sm:$0xff] 0.0
        %298 = vst [vmem:[#allocation2 + $0x88] sm:$0xff] 0.0
        %299 = vst [vmem:[#allocation2 + $0x90] sm:$0xff] 0.0
        %300 = vst [vmem:[#allocation2 + $0x98] sm:$0x1] 0.0
        %301 = vst [vmem:[#allocation2 + $0xa0] sm:$0xff] 0.0
        %302 = vst [vmem:[#allocation2 + $0xa8] sm:$0xff] 0.0
        %303 = vst [vmem:[#allocation2 + $0xb0] sm:$0xff] 0.0
        %304 = vst [vmem:[#allocation2 + $0xb8] sm:$0x1] 0.0
        %305 = vst [vmem:[#allocation2 + $0xc0] sm:$0xff] 0.0
        %306 = vst [vmem:[#allocation2 + $0xc8] sm:$0xff] 0.0
        %307 = vst [vmem:[#allocation2 + $0xd0] sm:$0xff] 0.0
        %308 = vst [vmem:[#allocation2 + $0xd8] sm:$0x1] 0.0
        %309 = vst [vmem:[#allocation2 + $0xe0] sm:$0xff] 0.0
        %310 = vst [vmem:[#allocation2 + $0xe8] sm:$0xff] 0.0
        %311 = vst [vmem:[#allocation2 + $0xf0] sm:$0xff] 0.0
        %312 = vst [vmem:[#allocation2 + $0xf8] sm:$0x1] 0.0
        %313 = vst [vmem:[#allocation2 + $0x100] sm:$0xff] 0.0
        %314 = vst [vmem:[#allocation2 + $0x108] sm:$0xff] 0.0
        %315 = vst [vmem:[#allocation2 + $0x110] sm:$0xff] 0.0
        %316 = vst [vmem:[#allocation2 + $0x118] sm:$0x1] 0.0
        %317 = vst [vmem:[#allocation2 + $0x120] sm:$0xff] 0.0
        %318 = vst [vmem:[#allocation2 + $0x128] sm:$0xff] 0.0
        %319 = vst [vmem:[#allocation2 + $0x130] sm:$0xff] 0.0
        %320 = vst [vmem:[#allocation2 + $0x138] sm:$0x1] 0.0
        %321 = vst [vmem:[#allocation2 + $0x140] sm:$0xff] 0.0
        %322 = vst [vmem:[#allocation2 + $0x148] sm:$0xff] 0.0
        %323 = vst [vmem:[#allocation2 + $0x150] sm:$0xff] 0.0
        %324 = vst [vmem:[#allocation2 + $0x158] sm:$0x1] 0.0
        %325 = vst [vmem:[#allocation2 + $0x160] sm:$0xff] 0.0
        %326 = vst [vmem:[#allocation2 + $0x168] sm:$0xff] 0.0
        %327 = vst [vmem:[#allocation2 + $0x170] sm:$0xff] 0.0
        %328 = vst [vmem:[#allocation2 + $0x178] sm:$0x1] 0.0
        %329 = vst [vmem:[#allocation2 + $0x180] sm:$0xff] 0.0
        %330 = vst [vmem:[#allocation2 + $0x188] sm:$0xff] 0.0
        %331 = vst [vmem:[#allocation2 + $0x190] sm:$0xff] 0.0
        %332 = vst [vmem:[#allocation2 + $0x198] sm:$0x1] 0.0
        %333 = vst [vmem:[#allocation2 + $0x1a0] sm:$0xff] 0.0
        %334 = vst [vmem:[#allocation2 + $0x1a8] sm:$0xff] 0.0
        %335 = vst [vmem:[#allocation2 + $0x1b0] sm:$0xff] 0.0
        %336 = vst [vmem:[#allocation2 + $0x1b8] sm:$0x1] 0.0
        %337 = vst [vmem:[#allocation2 + $0x1c0] sm:$0xff] 0.0
        %338 = vst [vmem:[#allocation2 + $0x1c8] sm:$0xff] 0.0
        %339 = vst [vmem:[#allocation2 + $0x1d0] sm:$0xff] 0.0
        %340 = vst [vmem:[#allocation2 + $0x1d8] sm:$0x1] 0.0
        %341 = vst [vmem:[#allocation2 + $0x1e0] sm:$0xff] 0.0
        %342 = vst [vmem:[#allocation2 + $0x1e8] sm:$0xff] 0.0
        %343 = vst [vmem:[#allocation2 + $0x1f0] sm:$0xff] 0.0
        %344 = vst [vmem:[#allocation2 + $0x1f8] sm:$0x1] 0.0
        %345 = vst [vmem:[#allocation2 + $0x200] sm:$0xff] 0.0
        %346 = vst [vmem:[#allocation2 + $0x208] sm:$0xff] 0.0
        %347 = vst [vmem:[#allocation2 + $0x210] sm:$0xff] 0.0
        %348 = vst [vmem:[#allocation2 + $0x218] sm:$0x1] 0.0
        %349 = vst [vmem:[#allocation2 + $0x220] sm:$0xff] 0.0
        %350 = vst [vmem:[#allocation2 + $0x228] sm:$0xff] 0.0
        %351 = vst [vmem:[#allocation2 + $0x230] sm:$0xff] 0.0
        %352 = vst [vmem:[#allocation2 + $0x238] sm:$0x1] 0.0
      $region44: #{res_block.4} parent=39 // pred_fallthru
        _
      %v353 = vld [vmem:[%s268] sm:$0xff]
      %v354 = vld [vmem:[%s268 + $0x8] sm:$0xff]
      %v355 = vld [vmem:[%s268 + $0x10] sm:$0xff]
      %v356 = vld [vmem:[%s268 + $0x18] sm:$0xff]
      %v357 = vld [vmem:[%s268 + $0x20] sm:$0xff]
      %v358 = vld [vmem:[%s268 + $0x28] sm:$0xff]
      %v359 = vld [vmem:[%s268 + $0x30] sm:$0xff]
      %v360 = vld [vmem:[%s268 + $0x38] sm:$0xff]
      %v361 = vld [vmem:[%s268 + $0x40] sm:$0xff]
      %v362 = vld [vmem:[%s268 + $0x48] sm:$0xff]
      %v363 = vld [vmem:[%s268 + $0x50] sm:$0xff]
      %v364 = vld [vmem:[%s268 + $0x58] sm:$0xff]
      %v365 = vld [vmem:[%s268 + $0x60] sm:$0xff]
      %v366 = vld [vmem:[%s268 + $0x68] sm:$0xff]
      %v367 = vld [vmem:[%s268 + $0x70] sm:$0xff]
      %v368 = vld [vmem:[%s268 + $0x78] sm:$0xff]
      %v369 = vld [vmem:[%s268 + $0x80] sm:$0xff]
      %v370 = vld [vmem:[%s268 + $0x88] sm:$0xff]
      %v371 = vld [vmem:[%s268 + $0x90] sm:$0xff]
      %v372 = vld [vmem:[%s268 + $0x98] sm:$0xff]
      %v373 = vld [vmem:[%s268 + $0xa0] sm:$0xff]
      %v374 = vld [vmem:[%s268 + $0xa8] sm:$0xff]
      %v375 = vld [vmem:[%s268 + $0xb0] sm:$0xff]
      %v376 = vld [vmem:[%s268 + $0xb8] sm:$0xff]
      %v377 = vld [vmem:[%s268 + $0xc0] sm:$0xff]
      %v378 = vld [vmem:[%s268 + $0xc8] sm:$0xff]
      %v379 = vld [vmem:[%s268 + $0xd0] sm:$0xff]
      %v380 = vld [vmem:[%s268 + $0xd8] sm:$0xff]
      %v381 = vld [vmem:[%s268 + $0xe0] sm:$0xff]
      %v382 = vld [vmem:[%s268 + $0xe8] sm:$0xff]
      %v383 = vld [vmem:[%s268 + $0xf0] sm:$0xff]
      %v384 = vld [vmem:[%s268 + $0xf8] sm:$0xff]
      %v385 = vld [vmem:[%s1] sm:$0x1]
      %v387 = vlaneseq
      %v388 = vshrl.u32 %v387, 7
      %v389 = vsub.s32 0, %v388
      %v390 = vrot.slane %v385, %v389
      %v392 = vmul.f32 %v353, %v390
      %v393 = vmul.f32 %v354, %v390
      %v394 = vmul.f32 %v355, %v390
      %v395 = vmul.f32 %v356, %v390
      %v396 = vmul.f32 %v357, %v390
      %v397 = vmul.f32 %v358, %v390
      %v398 = vmul.f32 %v359, %v390
      %v399 = vmul.f32 %v360, %v390
      %v400 = vmul.f32 %v361, %v390
      %v401 = vmul.f32 %v362, %v390
      %v402 = vmul.f32 %v363, %v390
      %v403 = vmul.f32 %v364, %v390
      %v404 = vmul.f32 %v365, %v390
      %v405 = vmul.f32 %v366, %v390
      %v406 = vmul.f32 %v367, %v390
      %v407 = vmul.f32 %v368, %v390
      %v408 = vmul.f32 %v369, %v390
      %v409 = vmul.f32 %v370, %v390
      %v410 = vmul.f32 %v371, %v390
      %v411 = vmul.f32 %v372, %v390
      %v412 = vmul.f32 %v373, %v390
      %v413 = vmul.f32 %v374, %v390
      %v414 = vmul.f32 %v375, %v390
      %v415 = vmul.f32 %v376, %v390
      %v416 = vmul.f32 %v377, %v390
      %v417 = vmul.f32 %v378, %v390
      %v418 = vmul.f32 %v379, %v390
      %v419 = vmul.f32 %v380, %v390
      %v420 = vmul.f32 %v381, %v390
      %v421 = vmul.f32 %v382, %v390
      %v422 = vmul.f32 %v383, %v390
      %v423 = vmul.f32 %v384, %v390
      %v424 = vld [vmem:[%s2] sm:$0x1]
      %v426 = vlaneseq
      %v427 = vshrl.u32 %v426, 7
      %v428 = vsub.s32 0, %v427
      %v429 = vrot.slane %v424, %v428
      %v431 = vadd.f32 %v392, %v429
      %v432 = vadd.f32 %v393, %v429
      %v433 = vadd.f32 %v394, %v429
      %v434 = vadd.f32 %v395, %v429
      %v435 = vadd.f32 %v396, %v429
      %v436 = vadd.f32 %v397, %v429
      %v437 = vadd.f32 %v398, %v429
      %v438 = vadd.f32 %v399, %v429
      %v439 = vadd.f32 %v400, %v429
      %v440 = vadd.f32 %v401, %v429
      %v441 = vadd.f32 %v402, %v429
      %v442 = vadd.f32 %v403, %v429
      %v443 = vadd.f32 %v404, %v429
      %v444 = vadd.f32 %v405, %v429
      %v445 = vadd.f32 %v406, %v429
      %v446 = vadd.f32 %v407, %v429
      %v447 = vadd.f32 %v408, %v429
      %v448 = vadd.f32 %v409, %v429
      %v449 = vadd.f32 %v410, %v429
      %v450 = vadd.f32 %v411, %v429
      %v451 = vadd.f32 %v412, %v429
      %v452 = vadd.f32 %v413, %v429
      %v453 = vadd.f32 %v414, %v429
      %v454 = vadd.f32 %v415, %v429
      %v455 = vadd.f32 %v416, %v429
      %v456 = vadd.f32 %v417, %v429
      %v457 = vadd.f32 %v418, %v429
      %v458 = vadd.f32 %v419, %v429
      %v459 = vadd.f32 %v420, %v429
      %v460 = vadd.f32 %v421, %v429
      %v461 = vadd.f32 %v422, %v429
      %v462 = vadd.f32 %v423, %v429
      %v463 = vmax.f32 %v431, 0.0
      %v464 = vmax.f32 %v432, 0.0
      %v465 = vmax.f32 %v433, 0.0
      %v466 = vmax.f32 %v434, 0.0
      %v467 = vmax.f32 %v435, 0.0
      %v468 = vmax.f32 %v436, 0.0
      %v469 = vmax.f32 %v437, 0.0
      %v470 = vmax.f32 %v438, 0.0
      %v471 = vmax.f32 %v439, 0.0
      %v472 = vmax.f32 %v440, 0.0
      %v473 = vmax.f32 %v441, 0.0
      %v474 = vmax.f32 %v442, 0.0
      %v475 = vmax.f32 %v443, 0.0
      %v476 = vmax.f32 %v444, 0.0
      %v477 = vmax.f32 %v445, 0.0
      %v478 = vmax.f32 %v446, 0.0
      %v479 = vmax.f32 %v447, 0.0
      %v480 = vmax.f32 %v448, 0.0
      %v481 = vmax.f32 %v449, 0.0
      %v482 = vmax.f32 %v450, 0.0
      %v483 = vmax.f32 %v451, 0.0
      %v484 = vmax.f32 %v452, 0.0
      %v485 = vmax.f32 %v453, 0.0
      %v486 = vmax.f32 %v454, 0.0
      %v487 = vmax.f32 %v455, 0.0
      %v488 = vmax.f32 %v456, 0.0
      %v489 = vmax.f32 %v457, 0.0
      %v490 = vmax.f32 %v458, 0.0
      %v491 = vmax.f32 %v459, 0.0
      %v492 = vmax.f32 %v460, 0.0
      %v493 = vmax.f32 %v461, 0.0
      %v494 = vmax.f32 %v462, 0.0
      %s495 = scalar_lea.vmem [#allocation2], 32
      %496 = vst [vmem:[%s495 + $0x8] sm:$0xff] %v463
      %497 = vst [vmem:[%s495 + $0x10] sm:$0xff] %v464
      %498 = vst [vmem:[%s495 + $0x28] sm:$0xff] %v465
      %499 = vst [vmem:[%s495 + $0x30] sm:$0xff] %v466
      %500 = vst [vmem:[%s495 + $0x48] sm:$0xff] %v467
      %501 = vst [vmem:[%s495 + $0x50] sm:$0xff] %v468
      %502 = vst [vmem:[%s495 + $0x68] sm:$0xff] %v469
      %503 = vst [vmem:[%s495 + $0x70] sm:$0xff] %v470
      %504 = vst [vmem:[%s495 + $0x88] sm:$0xff] %v471
      %505 = vst [vmem:[%s495 + $0x90] sm:$0xff] %v472
      %506 = vst [vmem:[%s495 + $0xa8] sm:$0xff] %v473
      %507 = vst [vmem:[%s495 + $0xb0] sm:$0xff] %v474
      %508 = vst [vmem:[%s495 + $0xc8] sm:$0xff] %v475
      %509 = vst [vmem:[%s495 + $0xd0] sm:$0xff] %v476
      %510 = vst [vmem:[%s495 + $0xe8] sm:$0xff] %v477
      %511 = vst [vmem:[%s495 + $0xf0] sm:$0xff] %v478
      %512 = vst [vmem:[%s495 + $0x108] sm:$0xff] %v479
      %513 = vst [vmem:[%s495 + $0x110] sm:$0xff] %v480
      %514 = vst [vmem:[%s495 + $0x128] sm:$0xff] %v481
      %515 = vst [vmem:[%s495 + $0x130] sm:$0xff] %v482
      %516 = vst [vmem:[%s495 + $0x148] sm:$0xff] %v483
      %517 = vst [vmem:[%s495 + $0x150] sm:$0xff] %v484
      %518 = vst [vmem:[%s495 + $0x168] sm:$0xff] %v485
      %519 = vst [vmem:[%s495 + $0x170] sm:$0xff] %v486
      %520 = vst [vmem:[%s495 + $0x188] sm:$0xff] %v487
      %521 = vst [vmem:[%s495 + $0x190] sm:$0xff] %v488
      %522 = vst [vmem:[%s495 + $0x1a8] sm:$0xff] %v489
      %523 = vst [vmem:[%s495 + $0x1b0] sm:$0xff] %v490
      %524 = vst [vmem:[%s495 + $0x1c8] sm:$0xff] %v491
      %525 = vst [vmem:[%s495 + $0x1d0] sm:$0xff] %v492
      %526 = vst [vmem:[%s495 + $0x1e8] sm:$0xff] %v493
      %527 = vst [vmem:[%s495 + $0x1f0] sm:$0xff] %v494
      %v528 = vld [vmem:[#allocation2 + $0x7] sm:$0xff]
      %v529 = vld [vmem:[#allocation2 + $0xf] sm:$0xff]
      %v530 = vld [vmem:[#allocation2 + $0x27] sm:$0xff]
      %v531 = vld [vmem:[#allocation2 + $0x2f] sm:$0xff]
      %v532 = vld [vmem:[#allocation2 + $0x47] sm:$0xff]
      %v533 = vld [vmem:[#allocation2 + $0x4f] sm:$0xff]
      %v534 = vld [vmem:[#allocation2 + $0x67] sm:$0xff]
      %v535 = vld [vmem:[#allocation2 + $0x6f] sm:$0xff]
      %v536 = vld [vmem:[#allocation2 + $0x87] sm:$0xff]
      %v537 = vld [vmem:[#allocation2 + $0x8f] sm:$0xff]
      %v538 = vld [vmem:[#allocation2 + $0xa7] sm:$0xff]
      %v539 = vld [vmem:[#allocation2 + $0xaf] sm:$0xff]
      %v540 = vld [vmem:[#allocation2 + $0xc7] sm:$0xff]
      %v541 = vld [vmem:[#allocation2 + $0xcf] sm:$0xff]
      %v542 = vld [vmem:[#allocation2 + $0xe7] sm:$0xff]
      %v543 = vld [vmem:[#allocation2 + $0xef] sm:$0xff]
      %v544 = vld [vmem:[#allocation2 + $0x107] sm:$0xff]
      %v545 = vld [vmem:[#allocation2 + $0x10f] sm:$0xff]
      %v546 = vld [vmem:[#allocation2 + $0x127] sm:$0xff]
      %v547 = vld [vmem:[#allocation2 + $0x12f] sm:$0xff]
      %v548 = vld [vmem:[#allocation2 + $0x147] sm:$0xff]
      %v549 = vld [vmem:[#allocation2 + $0x14f] sm:$0xff]
      %v550 = vld [vmem:[#allocation2 + $0x167] sm:$0xff]
      %v551 = vld [vmem:[#allocation2 + $0x16f] sm:$0xff]
      %v552 = vld [vmem:[#allocation2 + $0x187] sm:$0xff]
      %v553 = vld [vmem:[#allocation2 + $0x18f] sm:$0xff]
      %v554 = vld [vmem:[#allocation2 + $0x1a7] sm:$0xff]
      %v555 = vld [vmem:[#allocation2 + $0x1af] sm:$0xff]
      %v556 = vld [vmem:[#allocation2 + $0x1c7] sm:$0xff]
      %v557 = vld [vmem:[#allocation2 + $0x1cf] sm:$0xff]
      %v558 = vld [vmem:[#allocation2 + $0x1e7] sm:$0xff]
      %v559 = vld [vmem:[#allocation2 + $0x1ef] sm:$0xff]
      %v560 = vpack.c.bf16 %v529, %v528
      %v561 = vpack.c.bf16 %v531, %v530
      %v562 = vpack.c.bf16 %v533, %v532
      %v563 = vpack.c.bf16 %v535, %v534
      %v564 = vpack.c.bf16 %v537, %v536
      %v565 = vpack.c.bf16 %v539, %v538
      %v566 = vpack.c.bf16 %v541, %v540
      %v567 = vpack.c.bf16 %v543, %v542
      %v568 = vpack.c.bf16 %v545, %v544
      %v569 = vpack.c.bf16 %v547, %v546
      %v570 = vpack.c.bf16 %v549, %v548
      %v571 = vpack.c.bf16 %v551, %v550
      %v572 = vpack.c.bf16 %v553, %v552
      %v573 = vpack.c.bf16 %v555, %v554
      %v574 = vpack.c.bf16 %v557, %v556
      %v575 = vpack.c.bf16 %v559, %v558
      %v576 = vld [vmem:[%s3] sm:$0xf]
      %v577 = vld [vmem:[%s3 + $0x4] sm:$0xf]
      %v578 = vld [vmem:[%s3 + $0x8] sm:$0xf]
      %v579 = vld [vmem:[%s3 + $0xc] sm:$0xf]
      %v580 = vld [vmem:[%s3 + $0x10] sm:$0xf]
      %v581 = vld [vmem:[%s3 + $0x14] sm:$0xf]
      %v582 = vld [vmem:[%s3 + $0x18] sm:$0xf]
      %v583 = vld [vmem:[%s3 + $0x1c] sm:$0xf]
      %v584 = vld [vmem:[%s3 + $0x20] sm:$0xf]
      %v585 = vld [vmem:[%s3 + $0x24] sm:$0xf]
      %v586 = vld [vmem:[%s3 + $0x28] sm:$0xf]
      %v587 = vld [vmem:[%s3 + $0x2c] sm:$0xf]
      %v588 = vld [vmem:[%s3 + $0x30] sm:$0xf]
      %v589 = vld [vmem:[%s3 + $0x34] sm:$0xf]
      %v590 = vld [vmem:[%s3 + $0x38] sm:$0xf]
      %v591 = vld [vmem:[%s3 + $0x3c] sm:$0xf]
      %v592 = vld [vmem:[#allocation2 + $0x8] sm:$0xff]
      %v593 = vld [vmem:[#allocation2 + $0x10] sm:$0xff]
      %v594 = vld [vmem:[#allocation2 + $0x28] sm:$0xff]
      %v595 = vld [vmem:[#allocation2 + $0x30] sm:$0xff]
      %v596 = vld [vmem:[#allocation2 + $0x48] sm:$0xff]
      %v597 = vld [vmem:[#allocation2 + $0x50] sm:$0xff]
      %v598 = vld [vmem:[#allocation2 + $0x68] sm:$0xff]
      %v599 = vld [vmem:[#allocation2 + $0x70] sm:$0xff]
      %v600 = vld [vmem:[#allocation2 + $0x88] sm:$0xff]
      %v601 = vld [vmem:[#allocation2 + $0x90] sm:$0xff]
      %v602 = vld [vmem:[#allocation2 + $0xa8] sm:$0xff]
      %v603 = vld [vmem:[#allocation2 + $0xb0] sm:$0xff]
      %v604 = vld [vmem:[#allocation2 + $0xc8] sm:$0xff]
      %v605 = vld [vmem:[#allocation2 + $0xd0] sm:$0xff]
      %v606 = vld [vmem:[#allocation2 + $0xe8] sm:$0xff]
      %v607 = vld [vmem:[#allocation2 + $0xf0] sm:$0xff]
      %v608 = vld [vmem:[#allocation2 + $0x108] sm:$0xff]
      %v609 = vld [vmem:[#allocation2 + $0x110] sm:$0xff]
      %v610 = vld [vmem:[#allocation2 + $0x128] sm:$0xff]
      %v611 = vld [vmem:[#allocation2 + $0x130] sm:$0xff]
      %v612 = vld [vmem:[#allocation2 + $0x148] sm:$0xff]
      %v613 = vld [vmem:[#allocation2 + $0x150] sm:$0xff]
      %v614 = vld [vmem:[#allocation2 + $0x168] sm:$0xff]
      %v615 = vld [vmem:[#allocation2 + $0x170] sm:$0xff]
      %v616 = vld [vmem:[#allocation2 + $0x188] sm:$0xff]
      %v617 = vld [vmem:[#allocation2 + $0x190] sm:$0xff]
      %v618 = vld [vmem:[#allocation2 + $0x1a8] sm:$0xff]
      %v619 = vld [vmem:[#allocation2 + $0x1b0] sm:$0xff]
      %v620 = vld [vmem:[#allocation2 + $0x1c8] sm:$0xff]
      %v621 = vld [vmem:[#allocation2 + $0x1d0] sm:$0xff]
      %v622 = vld [vmem:[#allocation2 + $0x1e8] sm:$0xff]
      %v623 = vld [vmem:[#allocation2 + $0x1f0] sm:$0xff]
      %v624 = vpack.c.bf16 %v593, %v592
      %v625 = vpack.c.bf16 %v595, %v594
      %v626 = vpack.c.bf16 %v597, %v596
      %v627 = vpack.c.bf16 %v599, %v598
      %v628 = vpack.c.bf16 %v601, %v600
      %v629 = vpack.c.bf16 %v603, %v602
      %v630 = vpack.c.bf16 %v605, %v604
      %v631 = vpack.c.bf16 %v607, %v606
      %v632 = vpack.c.bf16 %v609, %v608
      %v633 = vpack.c.bf16 %v611, %v610
      %v634 = vpack.c.bf16 %v613, %v612
      %v635 = vpack.c.bf16 %v615, %v614
      %v636 = vpack.c.bf16 %v617, %v616
      %v637 = vpack.c.bf16 %v619, %v618
      %v638 = vpack.c.bf16 %v621, %v620
      %v639 = vpack.c.bf16 %v623, %v622
      %s640 = scalar_lea.vmem %s3, 64
      %v641 = vld [vmem:[%s640] sm:$0xf]
      %v642 = vld [vmem:[%s640 + $0x4] sm:$0xf]
      %v643 = vld [vmem:[%s640 + $0x8] sm:$0xf]
      %v644 = vld [vmem:[%s640 + $0xc] sm:$0xf]
      %v645 = vld [vmem:[%s640 + $0x10] sm:$0xf]
      %v646 = vld [vmem:[%s640 + $0x14] sm:$0xf]
      %v647 = vld [vmem:[%s640 + $0x18] sm:$0xf]
      %v648 = vld [vmem:[%s640 + $0x1c] sm:$0xf]
      %v649 = vld [vmem:[%s640 + $0x20] sm:$0xf]
      %v650 = vld [vmem:[%s640 + $0x24] sm:$0xf]
      %v651 = vld [vmem:[%s640 + $0x28] sm:$0xf]
      %v652 = vld [vmem:[%s640 + $0x2c] sm:$0xf]
      %v653 = vld [vmem:[%s640 + $0x30] sm:$0xf]
      %v654 = vld [vmem:[%s640 + $0x34] sm:$0xf]
      %v655 = vld [vmem:[%s640 + $0x38] sm:$0xf]
      %v656 = vld [vmem:[%s640 + $0x3c] sm:$0xf]
      %v673 = vunpack.c.l.b16 %v641
      %v674 = vunpack.c.l.b16 %v642
      %v675 = vunpack.c.l.b16 %v643
      %v676 = vunpack.c.l.b16 %v644
      %v677 = vunpack.c.l.b16 %v645
      %v678 = vunpack.c.l.b16 %v646
      %v679 = vunpack.c.l.b16 %v647
      %v680 = vunpack.c.l.b16 %v648
      %v681 = vunpack.c.l.b16 %v649
      %v682 = vunpack.c.l.b16 %v650
      %v683 = vunpack.c.l.b16 %v651
      %v684 = vunpack.c.l.b16 %v652
      %v685 = vunpack.c.l.b16 %v653
      %v686 = vunpack.c.l.b16 %v654
      %v687 = vunpack.c.l.b16 %v655
      %v688 = vunpack.c.l.b16 %v656
      %v689 = vpack.c.b16 %v674, %v673
      %v690 = vpack.c.b16 %v676, %v675
      %v691 = vpack.c.b16 %v678, %v677
      %v692 = vpack.c.b16 %v680, %v679
      %v693 = vpack.c.b16 %v682, %v681
      %v694 = vpack.c.b16 %v684, %v683
      %v695 = vpack.c.b16 %v686, %v685
      %v696 = vpack.c.b16 %v688, %v687
      %705 = vmatprep.subr.bf16.mxu0 0
      %706 = vmatpush1.bf16.msra.mxu0 %v689
      %707 = vmatprep.subr.bf16.mxu0 0
      %708 = vmatpush1.bf16.msra.mxu0 %v690
      %709 = vmatprep.subr.bf16.mxu0 0
      %710 = vmatpush1.bf16.msra.mxu0 %v691
      %711 = vmatprep.subr.bf16.mxu0 0
      %712 = vmatpush1.bf16.msra.mxu0 %v692
      %713 = vmatprep.subr.bf16.mxu0 0
      %714 = vmatpush1.bf16.msra.mxu0 %v693
      %715 = vmatprep.subr.bf16.mxu0 0
      %716 = vmatpush1.bf16.msra.mxu0 %v694
      %717 = vmatprep.subr.bf16.mxu0 0
      %718 = vmatpush1.bf16.msra.mxu0 %v695
      %719 = vmatprep.subr.bf16.mxu0 0
      %720 = vmatpush1.bf16.msra.mxu0 %v696
      %721 = vmatprep.subr.bf16.mxu0 0
      %722 = vmatpush1.bf16.msra.mxu0 0
      %723 = vmatprep.subr.bf16.mxu0 0
      %724 = vmatpush1.bf16.msra.mxu0 0
      %725 = vmatprep.subr.bf16.mxu0 0
      %726 = vmatpush1.bf16.msra.mxu0 0
      %727 = vmatprep.subr.bf16.mxu0 0
      %728 = vmatpush1.bf16.msra.mxu0 0
      %729 = vmatprep.subr.bf16.mxu0 0
      %730 = vmatpush1.bf16.msra.mxu0 0
      %731 = vmatprep.subr.bf16.mxu0 0
      %732 = vmatpush1.bf16.msra.mxu0 0
      %733 = vmatprep.subr.bf16.mxu0 0
      %734 = vmatpush1.bf16.msra.mxu0 0
      %735 = vmatprep.subr.bf16.mxu0 0
      %736 = vmatpush1.bf16.msra.mxu0 0
      %737 = vmatprep.mubr.bf16.mxu0 0
      %738 = vmatmul.mubr.bf16.gmra.mrb[0].mxu0 %v624
      %v739 = vpop.f32.mrb[0].mxu0
      %v740 = vadd.f32 0.0, %v739
      %v741 = vpop.f32.mrb[0].mxu0
      %v742 = vpop.f32.mrb[0].mxu0
      %v743 = vadd.f32 0.0, %v742
      %v744 = vpop.f32.mrb[0].mxu0
      %745 = vmatprep.mubr.bf16.mxu0 0
      %746 = vmatmul.mubr.bf16.gmra.mrb[0].mxu0 %v625
      %v747 = vpop.f32.mrb[0].mxu0
      %v748 = vadd.f32 0.0, %v747
      %v749 = vpop.f32.mrb[0].mxu0
      %v750 = vpop.f32.mrb[0].mxu0
      %v751 = vadd.f32 0.0, %v750
      %v752 = vpop.f32.mrb[0].mxu0
      %753 = vmatprep.mubr.bf16.mxu0 0
      %754 = vmatmul.mubr.bf16.gmra.mrb[0].mxu0 %v626
      %v755 = vpop.f32.mrb[0].mxu0
      %v756 = vadd.f32 0.0, %v755
      %v757 = vpop.f32.mrb[0].mxu0
      %v758 = vpop.f32.mrb[0].mxu0
      %v759 = vadd.f32 0.0, %v758
      %v760 = vpop.f32.mrb[0].mxu0
      %761 = vmatprep.mubr.bf16.mxu0 0
      %762 = vmatmul.mubr.bf16.gmra.mrb[0].mxu0 %v627
      %v763 = vpop.f32.mrb[0].mxu0
      %v764 = vadd.f32 0.0, %v763
      %v765 = vpop.f32.mrb[0].mxu0
      %v766 = vpop.f32.mrb[0].mxu0
      %v767 = vadd.f32 0.0, %v766
      %v768 = vpop.f32.mrb[0].mxu0
      %769 = vmatprep.mubr.bf16.mxu0 0
      %770 = vmatmul.mubr.bf16.gmra.mrb[0].mxu0 %v628
      %v771 = vpop.f32.mrb[0].mxu0
      %v772 = vadd.f32 0.0, %v771
      %v773 = vpop.f32.mrb[0].mxu0
      %v774 = vpop.f32.mrb[0].mxu0
      %v775 = vadd.f32 0.0, %v774
      %v776 = vpop.f32.mrb[0].mxu0
      %777 = vmatprep.mubr.bf16.mxu0 0
      %778 = vmatmul.mubr.bf16.gmra.mrb[0].mxu0 %v629
      %v779 = vpop.f32.mrb[0].mxu0
      %v780 = vadd.f32 0.0, %v779
      %v781 = vpop.f32.mrb[0].mxu0
      %v782 = vpop.f32.mrb[0].mxu0
      %v783 = vadd.f32 0.0, %v782
      %v784 = vpop.f32.mrb[0].mxu0
      %785 = vmatprep.mubr.bf16.mxu0 0
      %786 = vmatmul.mubr.bf16.gmra.mrb[0].mxu0 %v630
      %v787 = vpop.f32.mrb[0].mxu0
      %v788 = vadd.f32 0.0, %v787
      %v789 = vpop.f32.mrb[0].mxu0
      %v790 = vpop.f32.mrb[0].mxu0
      %v791 = vadd.f32 0.0, %v790
      %v792 = vpop.f32.mrb[0].mxu0
      %793 = vmatprep.mubr.bf16.mxu0 0
      %794 = vmatmul.mubr.bf16.gmra.mrb[0].mxu0 %v631
      %v795 = vpop.f32.mrb[0].mxu0
      %v796 = vadd.f32 0.0, %v795
      %v797 = vpop.f32.mrb[0].mxu0
      %v798 = vpop.f32.mrb[0].mxu0
      %v799 = vadd.f32 0.0, %v798
      %v800 = vpop.f32.mrb[0].mxu0
      %801 = vmatprep.mubr.bf16.mxu0 0
      %802 = vmatmul.mubr.bf16.gmra.mrb[0].mxu0 %v632
      %v803 = vpop.f32.mrb[0].mxu0
      %v804 = vadd.f32 0.0, %v803
      %v805 = vpop.f32.mrb[0].mxu0
      %v806 = vpop.f32.mrb[0].mxu0
      %v807 = vadd.f32 0.0, %v806
      %v808 = vpop.f32.mrb[0].mxu0
      %809 = vmatprep.mubr.bf16.mxu0 0
      %810 = vmatmul.mubr.bf16.gmra.mrb[0].mxu0 %v633
      %v811 = vpop.f32.mrb[0].mxu0
      %v812 = vadd.f32 0.0, %v811
      %v813 = vpop.f32.mrb[0].mxu0
      %v814 = vpop.f32.mrb[0].mxu0
      %v815 = vadd.f32 0.0, %v814
      %v816 = vpop.f32.mrb[0].mxu0
      %817 = vmatprep.mubr.bf16.mxu0 0
      %818 = vmatmul.mubr.bf16.gmra.mrb[0].mxu0 %v634
      %v819 = vpop.f32.mrb[0].mxu0
      %v820 = vadd.f32 0.0, %v819
      %v821 = vpop.f32.mrb[0].mxu0
      %v822 = vpop.f32.mrb[0].mxu0
      %v823 = vadd.f32 0.0, %v822
      %v824 = vpop.f32.mrb[0].mxu0
      %825 = vmatprep.mubr.bf16.mxu0 0
      %826 = vmatmul.mubr.bf16.gmra.mrb[0].mxu0 %v635
      %v827 = vpop.f32.mrb[0].mxu0
      %v828 = vadd.f32 0.0, %v827
      %v829 = vpop.f32.mrb[0].mxu0
      %v830 = vpop.f32.mrb[0].mxu0
      %v831 = vadd.f32 0.0, %v830
      %v832 = vpop.f32.mrb[0].mxu0
      %833 = vmatprep.mubr.bf16.mxu0 0
      %834 = vmatmul.mubr.bf16.gmra.mrb[0].mxu0 %v636
      %v835 = vpop.f32.mrb[0].mxu0
      %v836 = vadd.f32 0.0, %v835
      %v837 = vpop.f32.mrb[0].mxu0
      %v838 = vpop.f32.mrb[0].mxu0
      %v839 = vadd.f32 0.0, %v838
      %v840 = vpop.f32.mrb[0].mxu0
      %841 = vmatprep.mubr.bf16.mxu0 0
      %842 = vmatmul.mubr.bf16.gmra.mrb[0].mxu0 %v637
      %v843 = vpop.f32.mrb[0].mxu0
      %v844 = vadd.f32 0.0, %v843
      %v845 = vpop.f32.mrb[0].mxu0
      %v846 = vpop.f32.mrb[0].mxu0
      %v847 = vadd.f32 0.0, %v846
      %v848 = vpop.f32.mrb[0].mxu0
      %849 = vmatprep.mubr.bf16.mxu0 0
      %850 = vmatmul.mubr.bf16.gmra.mrb[0].mxu0 %v638
      %v851 = vpop.f32.mrb[0].mxu0
      %v852 = vadd.f32 0.0, %v851
      %v853 = vpop.f32.mrb[0].mxu0
      %v854 = vpop.f32.mrb[0].mxu0
      %v855 = vadd.f32 0.0, %v854
      %v856 = vpop.f32.mrb[0].mxu0
      %857 = vmatprep.mubr.bf16.mxu0 0
      %858 = vmatmul.mubr.bf16.gmra.mrb[0].mxu0 %v639
      %v859 = vpop.f32.mrb[0].mxu0
      %v860 = vadd.f32 0.0, %v859
      %v861 = vpop.f32.mrb[0].mxu0
      %v862 = vpop.f32.mrb[0].mxu0
      %v863 = vadd.f32 0.0, %v862
      %v864 = vpop.f32.mrb[0].mxu0
      %865 = vdwg.mxu0
      %v882 = vunpack.c.l.b16 %v576
      %v883 = vunpack.c.l.b16 %v577
      %v884 = vunpack.c.l.b16 %v578
      %v885 = vunpack.c.l.b16 %v579
      %v886 = vunpack.c.l.b16 %v580
      %v887 = vunpack.c.l.b16 %v581
      %v888 = vunpack.c.l.b16 %v582
      %v889 = vunpack.c.l.b16 %v583
      %v890 = vunpack.c.l.b16 %v584
      %v891 = vunpack.c.l.b16 %v585
      %v892 = vunpack.c.l.b16 %v586
      %v893 = vunpack.c.l.b16 %v587
      %v894 = vunpack.c.l.b16 %v588
      %v895 = vunpack.c.l.b16 %v589
      %v896 = vunpack.c.l.b16 %v590
      %v897 = vunpack.c.l.b16 %v591
      %v898 = vpack.c.b16 %v883, %v882
      %v899 = vpack.c.b16 %v885, %v884
      %v900 = vpack.c.b16 %v887, %v886
      %v901 = vpack.c.b16 %v889, %v888
      %v902 = vpack.c.b16 %v891, %v890
      %v903 = vpack.c.b16 %v893, %v892
      %v904 = vpack.c.b16 %v895, %v894
      %v905 = vpack.c.b16 %v897, %v896
      %914 = vmatprep.subr.bf16.mxu0 0
      %915 = vmatpush1.bf16.msra.mxu0 %v898
      %916 = vmatprep.subr.bf16.mxu0 0
      %917 = vmatpush1.bf16.msra.mxu0 %v899
      %918 = vmatprep.subr.bf16.mxu0 0
      %919 = vmatpush1.bf16.msra.mxu0 %v900
      %920 = vmatprep.subr.bf16.mxu0 0
      %921 = vmatpush1.bf16.msra.mxu0 %v901
      %922 = vmatprep.subr.bf16.mxu0 0
      %923 = vmatpush1.bf16.msra.mxu0 %v902
      %924 = vmatprep.subr.bf16.mxu0 0
      %925 = vmatpush1.bf16.msra.mxu0 %v903
      %926 = vmatprep.subr.bf16.mxu0 0
      %927 = vmatpush1.bf16.msra.mxu0 %v904
      %928 = vmatprep.subr.bf16.mxu0 0
      %929 = vmatpush1.bf16.msra.mxu0 %v905
      %930 = vmatprep.subr.bf16.mxu0 0
      %931 = vmatpush1.bf16.msra.mxu0 0
      %932 = vmatprep.subr.bf16.mxu0 0
      %933 = vmatpush1.bf16.msra.mxu0 0
      %934 = vmatprep.subr.bf16.mxu0 0
      %935 = vmatpush1.bf16.msra.mxu0 0
      %936 = vmatprep.subr.bf16.mxu0 0
      %937 = vmatpush1.bf16.msra.mxu0 0
      %938 = vmatprep.subr.bf16.mxu0 0
      %939 = vmatpush1.bf16.msra.mxu0 0
      %940 = vmatprep.subr.bf16.mxu0 0
      %941 = vmatpush1.bf16.msra.mxu0 0
      %942 = vmatprep.subr.bf16.mxu0 0
      %943 = vmatpush1.bf16.msra.mxu0 0
      %944 = vmatprep.subr.bf16.mxu0 0
      %945 = vmatpush1.bf16.msra.mxu0 0
      %946 = vmatprep.mubr.bf16.mxu0 0
      %947 = vmatmul.mubr.bf16.gmra.mrb[0].mxu0 %v560
      %v948 = vpop.f32.mrb[0].mxu0
      %v949 = vadd.f32 %v740, %v948
      %v950 = vpop.f32.mrb[0].mxu0
      %v951 = vpop.f32.mrb[0].mxu0
      %v952 = vadd.f32 %v743, %v951
      %v953 = vpop.f32.mrb[0].mxu0
      %954 = vmatprep.mubr.bf16.mxu0 0
      %955 = vmatmul.mubr.bf16.gmra.mrb[0].mxu0 %v561
      %v956 = vpop.f32.mrb[0].mxu0
      %v957 = vadd.f32 %v748, %v956
      %v958 = vpop.f32.mrb[0].mxu0
      %v959 = vpop.f32.mrb[0].mxu0
      %v960 = vadd.f32 %v751, %v959
      %v961 = vpop.f32.mrb[0].mxu0
      %962 = vmatprep.mubr.bf16.mxu0 0
      %963 = vmatmul.mubr.bf16.gmra.mrb[0].mxu0 %v562
      %v964 = vpop.f32.mrb[0].mxu0
      %v965 = vadd.f32 %v756, %v964
      %v966 = vpop.f32.mrb[0].mxu0
      %v967 = vpop.f32.mrb[0].mxu0
      %v968 = vadd.f32 %v759, %v967
      %v969 = vpop.f32.mrb[0].mxu0
      %970 = vmatprep.mubr.bf16.mxu0 0
      %971 = vmatmul.mubr.bf16.gmra.mrb[0].mxu0 %v563
      %v972 = vpop.f32.mrb[0].mxu0
      %v973 = vadd.f32 %v764, %v972
      %v974 = vpop.f32.mrb[0].mxu0
      %v975 = vpop.f32.mrb[0].mxu0
      %v976 = vadd.f32 %v767, %v975
      %v977 = vpop.f32.mrb[0].mxu0
      %978 = vmatprep.mubr.bf16.mxu0 0
      %979 = vmatmul.mubr.bf16.gmra.mrb[0].mxu0 %v564
      %v980 = vpop.f32.mrb[0].mxu0
      %v981 = vadd.f32 %v772, %v980
      %v982 = vpop.f32.mrb[0].mxu0
      %v983 = vpop.f32.mrb[0].mxu0
      %v984 = vadd.f32 %v775, %v983
      %v985 = vpop.f32.mrb[0].mxu0
      %986 = vmatprep.mubr.bf16.mxu0 0
      %987 = vmatmul.mubr.bf16.gmra.mrb[0].mxu0 %v565
      %v988 = vpop.f32.mrb[0].mxu0
      %v989 = vadd.f32 %v780, %v988
      %v990 = vpop.f32.mrb[0].mxu0
      %v991 = vpop.f32.mrb[0].mxu0
      %v992 = vadd.f32 %v783, %v991
      %v993 = vpop.f32.mrb[0].mxu0
      %994 = vmatprep.mubr.bf16.mxu0 0
      %995 = vmatmul.mubr.bf16.gmra.mrb[0].mxu0 %v566
      %v996 = vpop.f32.mrb[0].mxu0
      %v997 = vadd.f32 %v788, %v996
      %v998 = vpop.f32.mrb[0].mxu0
      %v999 = vpop.f32.mrb[0].mxu0
      %v1000 = vadd.f32 %v791, %v999
      %v1001 = vpop.f32.mrb[0].mxu0
      %1002 = vmatprep.mubr.bf16.mxu0 0
      %1003 = vmatmul.mubr.bf16.gmra.mrb[0].mxu0 %v567
      %v1004 = vpop.f32.mrb[0].mxu0
      %v1005 = vadd.f32 %v796, %v1004
      %v1006 = vpop.f32.mrb[0].mxu0
      %v1007 = vpop.f32.mrb[0].mxu0
      %v1008 = vadd.f32 %v799, %v1007
      %v1009 = vpop.f32.mrb[0].mxu0
      %1010 = vmatprep.mubr.bf16.mxu0 0
      %1011 = vmatmul.mubr.bf16.gmra.mrb[0].mxu0 %v568
      %v1012 = vpop.f32.mrb[0].mxu0
      %v1013 = vadd.f32 %v804, %v1012
      %v1014 = vpop.f32.mrb[0].mxu0
      %v1015 = vpop.f32.mrb[0].mxu0
      %v1016 = vadd.f32 %v807, %v1015
      %v1017 = vpop.f32.mrb[0].mxu0
      %1018 = vmatprep.mubr.bf16.mxu0 0
      %1019 = vmatmul.mubr.bf16.gmra.mrb[0].mxu0 %v569
      %v1020 = vpop.f32.mrb[0].mxu0
      %v1021 = vadd.f32 %v812, %v1020
      %v1022 = vpop.f32.mrb[0].mxu0
      %v1023 = vpop.f32.mrb[0].mxu0
      %v1024 = vadd.f32 %v815, %v1023
      %v1025 = vpop.f32.mrb[0].mxu0
      %1026 = vmatprep.mubr.bf16.mxu0 0
      %1027 = vmatmul.mubr.bf16.gmra.mrb[0].mxu0 %v570
      %v1028 = vpop.f32.mrb[0].mxu0
      %v1029 = vadd.f32 %v820, %v1028
      %v1030 = vpop.f32.mrb[0].mxu0
      %v1031 = vpop.f32.mrb[0].mxu0
      %v1032 = vadd.f32 %v823, %v1031
      %v1033 = vpop.f32.mrb[0].mxu0
      %1034 = vmatprep.mubr.bf16.mxu0 0
      %1035 = vmatmul.mubr.bf16.gmra.mrb[0].mxu0 %v571
      %v1036 = vpop.f32.mrb[0].mxu0
      %v1037 = vadd.f32 %v828, %v1036
      %v1038 = vpop.f32.mrb[0].mxu0
      %v1039 = vpop.f32.mrb[0].mxu0
      %v1040 = vadd.f32 %v831, %v1039
      %v1041 = vpop.f32.mrb[0].mxu0
      %1042 = vmatprep.mubr.bf16.mxu0 0
      %1043 = vmatmul.mubr.bf16.gmra.mrb[0].mxu0 %v572
      %v1044 = vpop.f32.mrb[0].mxu0
      %v1045 = vadd.f32 %v836, %v1044
      %v1046 = vpop.f32.mrb[0].mxu0
      %v1047 = vpop.f32.mrb[0].mxu0
      %v1048 = vadd.f32 %v839, %v1047
      %v1049 = vpop.f32.mrb[0].mxu0
      %1050 = vmatprep.mubr.bf16.mxu0 0
      %1051 = vmatmul.mubr.bf16.gmra.mrb[0].mxu0 %v573
      %v1052 = vpop.f32.mrb[0].mxu0
      %v1053 = vadd.f32 %v844, %v1052
      %v1054 = vpop.f32.mrb[0].mxu0
      %v1055 = vpop.f32.mrb[0].mxu0
      %v1056 = vadd.f32 %v847, %v1055
      %v1057 = vpop.f32.mrb[0].mxu0
      %1058 = vmatprep.mubr.bf16.mxu0 0
      %1059 = vmatmul.mubr.bf16.gmra.mrb[0].mxu0 %v574
      %v1060 = vpop.f32.mrb[0].mxu0
      %v1061 = vadd.f32 %v852, %v1060
      %v1062 = vpop.f32.mrb[0].mxu0
      %v1063 = vpop.f32.mrb[0].mxu0
      %v1064 = vadd.f32 %v855, %v1063
      %v1065 = vpop.f32.mrb[0].mxu0
      %1066 = vmatprep.mubr.bf16.mxu0 0
      %1067 = vmatmul.mubr.bf16.gmra.mrb[0].mxu0 %v575
      %v1068 = vpop.f32.mrb[0].mxu0
      %v1069 = vadd.f32 %v860, %v1068
      %v1070 = vpop.f32.mrb[0].mxu0
      %v1071 = vpop.f32.mrb[0].mxu0
      %v1072 = vadd.f32 %v863, %v1071
      %v1073 = vpop.f32.mrb[0].mxu0
      %1074 = vdwg.mxu0
      %v1075 = vld [vmem:[#allocation2 + $0x9] sm:$0xff]
      %v1076 = vld [vmem:[#allocation2 + $0x11] sm:$0xff]
      %v1077 = vld [vmem:[#allocation2 + $0x29] sm:$0xff]
      %v1078 = vld [vmem:[#allocation2 + $0x31] sm:$0xff]
      %v1079 = vld [vmem:[#allocation2 + $0x49] sm:$0xff]
      %v1080 = vld [vmem:[#allocation2 + $0x51] sm:$0xff]
      %v1081 = vld [vmem:[#allocation2 + $0x69] sm:$0xff]
      %v1082 = vld [vmem:[#allocation2 + $0x71] sm:$0xff]
      %v1083 = vld [vmem:[#allocation2 + $0x89] sm:$0xff]
      %v1084 = vld [vmem:[#allocation2 + $0x91] sm:$0xff]
      %v1085 = vld [vmem:[#allocation2 + $0xa9] sm:$0xff]
      %v1086 = vld [vmem:[#allocation2 + $0xb1] sm:$0xff]
      %v1087 = vld [vmem:[#allocation2 + $0xc9] sm:$0xff]
      %v1088 = vld [vmem:[#allocation2 + $0xd1] sm:$0xff]
      %v1089 = vld [vmem:[#allocation2 + $0xe9] sm:$0xff]
      %v1090 = vld [vmem:[#allocation2 + $0xf1] sm:$0xff]
      %v1091 = vld [vmem:[#allocation2 + $0x109] sm:$0xff]
      %v1092 = vld [vmem:[#allocation2 + $0x111] sm:$0xff]
      %v1093 = vld [vmem:[#allocation2 + $0x129] sm:$0xff]
      %v1094 = vld [vmem:[#allocation2 + $0x131] sm:$0xff]
      %v1095 = vld [vmem:[#allocation2 + $0x149] sm:$0xff]
      %v1096 = vld [vmem:[#allocation2 + $0x151] sm:$0xff]
      %v1097 = vld [vmem:[#allocation2 + $0x169] sm:$0xff]
      %v1098 = vld [vmem:[#allocation2 + $0x171] sm:$0xff]
      %v1099 = vld [vmem:[#allocation2 + $0x189] sm:$0xff]
      %v1100 = vld [vmem:[#allocation2 + $0x191] sm:$0xff]
      %v1101 = vld [vmem:[#allocation2 + $0x1a9] sm:$0xff]
      %v1102 = vld [vmem:[#allocation2 + $0x1b1] sm:$0xff]
      %v1103 = vld [vmem:[#allocation2 + $0x1c9] sm:$0xff]
      %v1104 = vld [vmem:[#allocation2 + $0x1d1] sm:$0xff]
      %v1105 = vld [vmem:[#allocation2 + $0x1e9] sm:$0xff]
      %v1106 = vld [vmem:[#allocation2 + $0x1f1] sm:$0xff]
      %v1107 = vpack.c.bf16 %v1076, %v1075
      %v1108 = vpack.c.bf16 %v1078, %v1077
      %v1109 = vpack.c.bf16 %v1080, %v1079
      %v1110 = vpack.c.bf16 %v1082, %v1081
      %v1111 = vpack.c.bf16 %v1084, %v1083
      %v1112 = vpack.c.bf16 %v1086, %v1085
      %v1113 = vpack.c.bf16 %v1088, %v1087
      %v1114 = vpack.c.bf16 %v1090, %v1089
      %v1115 = vpack.c.bf16 %v1092, %v1091
      %v1116 = vpack.c.bf16 %v1094, %v1093
      %v1117 = vpack.c.bf16 %v1096, %v1095
      %v1118 = vpack.c.bf16 %v1098, %v1097
      %v1119 = vpack.c.bf16 %v1100, %v1099
      %v1120 = vpack.c.bf16 %v1102, %v1101
      %v1121 = vpack.c.bf16 %v1104, %v1103
      %v1122 = vpack.c.bf16 %v1106, %v1105
      %s1123 = scalar_lea.vmem %s3, 128
      %v1124 = vld [vmem:[%s1123] sm:$0xf]
      %v1125 = vld [vmem:[%s1123 + $0x4] sm:$0xf]
      %v1126 = vld [vmem:[%s1123 + $0x8] sm:$0xf]
      %v1127 = vld [vmem:[%s1123 + $0xc] sm:$0xf]
      %v1128 = vld [vmem:[%s1123 + $0x10] sm:$0xf]
      %v1129 = vld [vmem:[%s1123 + $0x14] sm:$0xf]
      %v1130 = vld [vmem:[%s1123 + $0x18] sm:$0xf]
      %v1131 = vld [vmem:[%s1123 + $0x1c] sm:$0xf]
      %v1132 = vld [vmem:[%s1123 + $0x20] sm:$0xf]
      %v1133 = vld [vmem:[%s1123 + $0x24] sm:$0xf]
      %v1134 = vld [vmem:[%s1123 + $0x28] sm:$0xf]
      %v1135 = vld [vmem:[%s1123 + $0x2c] sm:$0xf]
      %v1136 = vld [vmem:[%s1123 + $0x30] sm:$0xf]
      %v1137 = vld [vmem:[%s1123 + $0x34] sm:$0xf]
      %v1138 = vld [vmem:[%s1123 + $0x38] sm:$0xf]
      %v1139 = vld [vmem:[%s1123 + $0x3c] sm:$0xf]
      %v1156 = vunpack.c.l.b16 %v1124
      %v1157 = vunpack.c.l.b16 %v1125
      %v1158 = vunpack.c.l.b16 %v1126
      %v1159 = vunpack.c.l.b16 %v1127
      %v1160 = vunpack.c.l.b16 %v1128
      %v1161 = vunpack.c.l.b16 %v1129
      %v1162 = vunpack.c.l.b16 %v1130
      %v1163 = vunpack.c.l.b16 %v1131
      %v1164 = vunpack.c.l.b16 %v1132
      %v1165 = vunpack.c.l.b16 %v1133
      %v1166 = vunpack.c.l.b16 %v1134
      %v1167 = vunpack.c.l.b16 %v1135
      %v1168 = vunpack.c.l.b16 %v1136
      %v1169 = vunpack.c.l.b16 %v1137
      %v1170 = vunpack.c.l.b16 %v1138
      %v1171 = vunpack.c.l.b16 %v1139
      %v1172 = vpack.c.b16 %v1157, %v1156
      %v1173 = vpack.c.b16 %v1159, %v1158
      %v1174 = vpack.c.b16 %v1161, %v1160
      %v1175 = vpack.c.b16 %v1163, %v1162
      %v1176 = vpack.c.b16 %v1165, %v1164
      %v1177 = vpack.c.b16 %v1167, %v1166
      %v1178 = vpack.c.b16 %v1169, %v1168
      %v1179 = vpack.c.b16 %v1171, %v1170
      %1188 = vmatprep.subr.bf16.mxu0 0
      %1189 = vmatpush1.bf16.msra.mxu0 %v1172
      %1190 = vmatprep.subr.bf16.mxu0 0
      %1191 = vmatpush1.bf16.msra.mxu0 %v1173
      %1192 = vmatprep.subr.bf16.mxu0 0
      %1193 = vmatpush1.bf16.msra.mxu0 %v1174
      %1194 = vmatprep.subr.bf16.mxu0 0
      %1195 = vmatpush1.bf16.msra.mxu0 %v1175
      %1196 = vmatprep.subr.bf16.mxu0 0
      %1197 = vmatpush1.bf16.msra.mxu0 %v1176
      %1198 = vmatprep.subr.bf16.mxu0 0
      %1199 = vmatpush1.bf16.msra.mxu0 %v1177
      %1200 = vmatprep.subr.bf16.mxu0 0
      %1201 = vmatpush1.bf16.msra.mxu0 %v1178
      %1202 = vmatprep.subr.bf16.mxu0 0
      %1203 = vmatpush1.bf16.msra.mxu0 %v1179
      %1204 = vmatprep.subr.bf16.mxu0 0
      %1205 = vmatpush1.bf16.msra.mxu0 0
      %1206 = vmatprep.subr.bf16.mxu0 0
      %1207 = vmatpush1.bf16.msra.mxu0 0
      %1208 = vmatprep.subr.bf16.mxu0 0
      %1209 = vmatpush1.bf16.msra.mxu0 0
      %1210 = vmatprep.subr.bf16.mxu0 0
      %1211 = vmatpush1.bf16.msra.mxu0 0
      %1212 = vmatprep.subr.bf16.mxu0 0
      %1213 = vmatpush1.bf16.msra.mxu0 0
      %1214 = vmatprep.subr.bf16.mxu0 0
      %1215 = vmatpush1.bf16.msra.mxu0 0
      %1216 = vmatprep.subr.bf16.mxu0 0
      %1217 = vmatpush1.bf16.msra.mxu0 0
      %1218 = vmatprep.subr.bf16.mxu0 0
      %1219 = vmatpush1.bf16.msra.mxu0 0
      %1220 = vmatprep.mubr.bf16.mxu0 0
      %1221 = vmatmul.mubr.bf16.gmra.mrb[0].mxu0 %v1107
      %v1222 = vpop.f32.mrb[0].mxu0
      %v1223 = vadd.f32 0.0, %v1222
      %v1224 = vpop.f32.mrb[0].mxu0
      %v1225 = vpop.f32.mrb[0].mxu0
      %v1226 = vadd.f32 0.0, %v1225
      %v1227 = vpop.f32.mrb[0].mxu0
      %1228 = vmatprep.mubr.bf16.mxu0 0
      %1229 = vmatmul.mubr.bf16.gmra.mrb[0].mxu0 %v1108
      %v1230 = vpop.f32.mrb[0].mxu0
      %v1231 = vadd.f32 0.0, %v1230
      %v1232 = vpop.f32.mrb[0].mxu0
      %v1233 = vpop.f32.mrb[0].mxu0
      %v1234 = vadd.f32 0.0, %v1233
      %v1235 = vpop.f32.mrb[0].mxu0
      %1236 = vmatprep.mubr.bf16.mxu0 0
      %1237 = vmatmul.mubr.bf16.gmra.mrb[0].mxu0 %v1109
      %v1238 = vpop.f32.mrb[0].mxu0
      %v1239 = vadd.f32 0.0, %v1238
      %v1240 = vpop.f32.mrb[0].mxu0
      %v1241 = vpop.f32.mrb[0].mxu0
      %v1242 = vadd.f32 0.0, %v1241
      %v1243 = vpop.f32.mrb[0].mxu0
      %1244 = vmatprep.mubr.bf16.mxu0 0
      %1245 = vmatmul.mubr.bf16.gmra.mrb[0].mxu0 %v1110
      %v1246 = vpop.f32.mrb[0].mxu0
      %v1247 = vadd.f32 0.0, %v1246
      %v1248 = vpop.f32.mrb[0].mxu0
      %v1249 = vpop.f32.mrb[0].mxu0
      %v1250 = vadd.f32 0.0, %v1249
      %v1251 = vpop.f32.mrb[0].mxu0
      %1252 = vmatprep.mubr.bf16.mxu0 0
      %1253 = vmatmul.mubr.bf16.gmra.mrb[0].mxu0 %v1111
      %v1254 = vpop.f32.mrb[0].mxu0
      %v1255 = vadd.f32 0.0, %v1254
      %v1256 = vpop.f32.mrb[0].mxu0
      %v1257 = vpop.f32.mrb[0].mxu0
      %v1258 = vadd.f32 0.0, %v1257
      %v1259 = vpop.f32.mrb[0].mxu0
      %1260 = vmatprep.mubr.bf16.mxu0 0
      %1261 = vmatmul.mubr.bf16.gmra.mrb[0].mxu0 %v1112
      %v1262 = vpop.f32.mrb[0].mxu0
      %v1263 = vadd.f32 0.0, %v1262
      %v1264 = vpop.f32.mrb[0].mxu0
      %v1265 = vpop.f32.mrb[0].mxu0
      %v1266 = vadd.f32 0.0, %v1265
      %v1267 = vpop.f32.mrb[0].mxu0
      %1268 = vmatprep.mubr.bf16.mxu0 0
      %1269 = vmatmul.mubr.bf16.gmra.mrb[0].mxu0 %v1113
      %v1270 = vpop.f32.mrb[0].mxu0
      %v1271 = vadd.f32 0.0, %v1270
      %v1272 = vpop.f32.mrb[0].mxu0
      %v1273 = vpop.f32.mrb[0].mxu0
      %v1274 = vadd.f32 0.0, %v1273
      %v1275 = vpop.f32.mrb[0].mxu0
      %1276 = vmatprep.mubr.bf16.mxu0 0
      %1277 = vmatmul.mubr.bf16.gmra.mrb[0].mxu0 %v1114
      %v1278 = vpop.f32.mrb[0].mxu0
      %v1279 = vadd.f32 0.0, %v1278
      %v1280 = vpop.f32.mrb[0].mxu0
      %v1281 = vpop.f32.mrb[0].mxu0
      %v1282 = vadd.f32 0.0, %v1281
      %v1283 = vpop.f32.mrb[0].mxu0
      %1284 = vmatprep.mubr.bf16.mxu0 0
      %1285 = vmatmul.mubr.bf16.gmra.mrb[0].mxu0 %v1115
      %v1286 = vpop.f32.mrb[0].mxu0
      %v1287 = vadd.f32 0.0, %v1286
      %v1288 = vpop.f32.mrb[0].mxu0
      %v1289 = vpop.f32.mrb[0].mxu0
      %v1290 = vadd.f32 0.0, %v1289
      %v1291 = vpop.f32.mrb[0].mxu0
      %1292 = vmatprep.mubr.bf16.mxu0 0
      %1293 = vmatmul.mubr.bf16.gmra.mrb[0].mxu0 %v1116
      %v1294 = vpop.f32.mrb[0].mxu0
      %v1295 = vadd.f32 0.0, %v1294
      %v1296 = vpop.f32.mrb[0].mxu0
      %v1297 = vpop.f32.mrb[0].mxu0
      %v1298 = vadd.f32 0.0, %v1297
      %v1299 = vpop.f32.mrb[0].mxu0
      %1300 = vmatprep.mubr.bf16.mxu0 0
      %1301 = vmatmul.mubr.bf16.gmra.mrb[0].mxu0 %v1117
      %v1302 = vpop.f32.mrb[0].mxu0
      %v1303 = vadd.f32 0.0, %v1302
      %v1304 = vpop.f32.mrb[0].mxu0
      %v1305 = vpop.f32.mrb[0].mxu0
      %v1306 = vadd.f32 0.0, %v1305
      %v1307 = vpop.f32.mrb[0].mxu0
      %1308 = vmatprep.mubr.bf16.mxu0 0
      %1309 = vmatmul.mubr.bf16.gmra.mrb[0].mxu0 %v1118
      %v1310 = vpop.f32.mrb[0].mxu0
      %v1311 = vadd.f32 0.0, %v1310
      %v1312 = vpop.f32.mrb[0].mxu0
      %v1313 = vpop.f32.mrb[0].mxu0
      %v1314 = vadd.f32 0.0, %v1313
      %v1315 = vpop.f32.mrb[0].mxu0
      %1316 = vmatprep.mubr.bf16.mxu0 0
      %1317 = vmatmul.mubr.bf16.gmra.mrb[0].mxu0 %v1119
      %v1318 = vpop.f32.mrb[0].mxu0
      %v1319 = vadd.f32 0.0, %v1318
      %v1320 = vpop.f32.mrb[0].mxu0
      %v1321 = vpop.f32.mrb[0].mxu0
      %v1322 = vadd.f32 0.0, %v1321
      %v1323 = vpop.f32.mrb[0].mxu0
      %1324 = vmatprep.mubr.bf16.mxu0 0
      %1325 = vmatmul.mubr.bf16.gmra.mrb[0].mxu0 %v1120
      %v1326 = vpop.f32.mrb[0].mxu0
      %v1327 = vadd.f32 0.0, %v1326
      %v1328 = vpop.f32.mrb[0].mxu0
      %v1329 = vpop.f32.mrb[0].mxu0
      %v1330 = vadd.f32 0.0, %v1329
      %v1331 = vpop.f32.mrb[0].mxu0
      %1332 = vmatprep.mubr.bf16.mxu0 0
      %1333 = vmatmul.mubr.bf16.gmra.mrb[0].mxu0 %v1121
      %v1334 = vpop.f32.mrb[0].mxu0
      %v1335 = vadd.f32 0.0, %v1334
      %v1336 = vpop.f32.mrb[0].mxu0
      %v1337 = vpop.f32.mrb[0].mxu0
      %v1338 = vadd.f32 0.0, %v1337
      %v1339 = vpop.f32.mrb[0].mxu0
      %1340 = vmatprep.mubr.bf16.mxu0 0
      %1341 = vmatmul.mubr.bf16.gmra.mrb[0].mxu0 %v1122
      %v1342 = vpop.f32.mrb[0].mxu0
      %v1343 = vadd.f32 0.0, %v1342
      %v1344 = vpop.f32.mrb[0].mxu0
      %v1345 = vpop.f32.mrb[0].mxu0
      %v1346 = vadd.f32 0.0, %v1345
      %v1347 = vpop.f32.mrb[0].mxu0
      %1348 = vdwg.mxu0
      %v1349 = vadd.f32 %v949, %v1223
      %v1350 = vadd.f32 %v952, %v1226
      %v1351 = vadd.f32 %v957, %v1231
      %v1352 = vadd.f32 %v960, %v1234
      %v1353 = vadd.f32 %v965, %v1239
      %v1354 = vadd.f32 %v968, %v1242
      %v1355 = vadd.f32 %v973, %v1247
      %v1356 = vadd.f32 %v976, %v1250
      %v1357 = vadd.f32 %v981, %v1255
      %v1358 = vadd.f32 %v984, %v1258
      %v1359 = vadd.f32 %v989, %v1263
      %v1360 = vadd.f32 %v992, %v1266
      %v1361 = vadd.f32 %v997, %v1271
      %v1362 = vadd.f32 %v1000, %v1274
      %v1363 = vadd.f32 %v1005, %v1279
      %v1364 = vadd.f32 %v1008, %v1282
      %v1365 = vadd.f32 %v1013, %v1287
      %v1366 = vadd.f32 %v1016, %v1290
      %v1367 = vadd.f32 %v1021, %v1295
      %v1368 = vadd.f32 %v1024, %v1298
      %v1369 = vadd.f32 %v1029, %v1303
      %v1370 = vadd.f32 %v1032, %v1306
      %v1371 = vadd.f32 %v1037, %v1311
      %v1372 = vadd.f32 %v1040, %v1314
      %v1373 = vadd.f32 %v1045, %v1319
      %v1374 = vadd.f32 %v1048, %v1322
      %v1375 = vadd.f32 %v1053, %v1327
      %v1376 = vadd.f32 %v1056, %v1330
      %v1377 = vadd.f32 %v1061, %v1335
      %v1378 = vadd.f32 %v1064, %v1338
      %v1379 = vadd.f32 %v1069, %v1343
      %v1380 = vadd.f32 %v1072, %v1346
      %v1381 = vld [vmem:[%s495 + $0x7] sm:$0xff]
      %v1382 = vld [vmem:[%s495 + $0xf] sm:$0xff]
      %v1383 = vld [vmem:[%s495 + $0x27] sm:$0xff]
      %v1384 = vld [vmem:[%s495 + $0x2f] sm:$0xff]
      %v1385 = vld [vmem:[%s495 + $0x47] sm:$0xff]
      %v1386 = vld [vmem:[%s495 + $0x4f] sm:$0xff]
      %v1387 = vld [vmem:[%s495 + $0x67] sm:$0xff]
      %v1388 = vld [vmem:[%s495 + $0x6f] sm:$0xff]
      %v1389 = vld [vmem:[%s495 + $0x87] sm:$0xff]
      %v1390 = vld [vmem:[%s495 + $0x8f] sm:$0xff]
      %v1391 = vld [vmem:[%s495 + $0xa7] sm:$0xff]
      %v1392 = vld [vmem:[%s495 + $0xaf] sm:$0xff]
      %v1393 = vld [vmem:[%s495 + $0xc7] sm:$0xff]
      %v1394 = vld [vmem:[%s495 + $0xcf] sm:$0xff]
      %v1395 = vld [vmem:[%s495 + $0xe7] sm:$0xff]
      %v1396 = vld [vmem:[%s495 + $0xef] sm:$0xff]
      %v1397 = vld [vmem:[%s495 + $0x107] sm:$0xff]
      %v1398 = vld [vmem:[%s495 + $0x10f] sm:$0xff]
      %v1399 = vld [vmem:[%s495 + $0x127] sm:$0xff]
      %v1400 = vld [vmem:[%s495 + $0x12f] sm:$0xff]
      %v1401 = vld [vmem:[%s495 + $0x147] sm:$0xff]
      %v1402 = vld [vmem:[%s495 + $0x14f] sm:$0xff]
      %v1403 = vld [vmem:[%s495 + $0x167] sm:$0xff]
      %v1404 = vld [vmem:[%s495 + $0x16f] sm:$0xff]
      %v1405 = vld [vmem:[%s495 + $0x187] sm:$0xff]
      %v1406 = vld [vmem:[%s495 + $0x18f] sm:$0xff]
      %v1407 = vld [vmem:[%s495 + $0x1a7] sm:$0xff]
      %v1408 = vld [vmem:[%s495 + $0x1af] sm:$0xff]
      %v1409 = vld [vmem:[%s495 + $0x1c7] sm:$0xff]
      %v1410 = vld [vmem:[%s495 + $0x1cf] sm:$0xff]
      %v1411 = vld [vmem:[%s495 + $0x1e7] sm:$0xff]
      %v1412 = vld [vmem:[%s495 + $0x1ef] sm:$0xff]
      %v1413 = vpack.c.bf16 %v1382, %v1381
      %v1414 = vpack.c.bf16 %v1384, %v1383
      %v1415 = vpack.c.bf16 %v1386, %v1385
      %v1416 = vpack.c.bf16 %v1388, %v1387
      %v1417 = vpack.c.bf16 %v1390, %v1389
      %v1418 = vpack.c.bf16 %v1392, %v1391
      %v1419 = vpack.c.bf16 %v1394, %v1393
      %v1420 = vpack.c.bf16 %v1396, %v1395
      %v1421 = vpack.c.bf16 %v1398, %v1397
      %v1422 = vpack.c.bf16 %v1400, %v1399
      %v1423 = vpack.c.bf16 %v1402, %v1401
      %v1424 = vpack.c.bf16 %v1404, %v1403
      %v1425 = vpack.c.bf16 %v1406, %v1405
      %v1426 = vpack.c.bf16 %v1408, %v1407
      %v1427 = vpack.c.bf16 %v1410, %v1409
      %v1428 = vpack.c.bf16 %v1412, %v1411
      %s1429 = scalar_lea.vmem %s3, 192
      %v1430 = vld [vmem:[%s1429] sm:$0xf]
      %v1431 = vld [vmem:[%s1429 + $0x4] sm:$0xf]
      %v1432 = vld [vmem:[%s1429 + $0x8] sm:$0xf]
      %v1433 = vld [vmem:[%s1429 + $0xc] sm:$0xf]
      %v1434 = vld [vmem:[%s1429 + $0x10] sm:$0xf]
      %v1435 = vld [vmem:[%s1429 + $0x14] sm:$0xf]
      %v1436 = vld [vmem:[%s1429 + $0x18] sm:$0xf]
      %v1437 = vld [vmem:[%s1429 + $0x1c] sm:$0xf]
      %v1438 = vld [vmem:[%s1429 + $0x20] sm:$0xf]
      %v1439 = vld [vmem:[%s1429 + $0x24] sm:$0xf]
      %v1440 = vld [vmem:[%s1429 + $0x28] sm:$0xf]
      %v1441 = vld [vmem:[%s1429 + $0x2c] sm:$0xf]
      %v1442 = vld [vmem:[%s1429 + $0x30] sm:$0xf]
      %v1443 = vld [vmem:[%s1429 + $0x34] sm:$0xf]
      %v1444 = vld [vmem:[%s1429 + $0x38] sm:$0xf]
      %v1445 = vld [vmem:[%s1429 + $0x3c] sm:$0xf]
      %v1462 = vunpack.c.l.b16 %v1430
      %v1463 = vunpack.c.l.b16 %v1431
      %v1464 = vunpack.c.l.b16 %v1432
      %v1465 = vunpack.c.l.b16 %v1433
      %v1466 = vunpack.c.l.b16 %v1434
      %v1467 = vunpack.c.l.b16 %v1435
      %v1468 = vunpack.c.l.b16 %v1436
      %v1469 = vunpack.c.l.b16 %v1437
      %v1470 = vunpack.c.l.b16 %v1438
      %v1471 = vunpack.c.l.b16 %v1439
      %v1472 = vunpack.c.l.b16 %v1440
      %v1473 = vunpack.c.l.b16 %v1441
      %v1474 = vunpack.c.l.b16 %v1442
      %v1475 = vunpack.c.l.b16 %v1443
      %v1476 = vunpack.c.l.b16 %v1444
      %v1477 = vunpack.c.l.b16 %v1445
      %v1478 = vpack.c.b16 %v1463, %v1462
      %v1479 = vpack.c.b16 %v1465, %v1464
      %v1480 = vpack.c.b16 %v1467, %v1466
      %v1481 = vpack.c.b16 %v1469, %v1468
      %v1482 = vpack.c.b16 %v1471, %v1470
      %v1483 = vpack.c.b16 %v1473, %v1472
      %v1484 = vpack.c.b16 %v1475, %v1474
      %v1485 = vpack.c.b16 %v1477, %v1476
      %1494 = vmatprep.subr.bf16.mxu0 0
      %1495 = vmatpush1.bf16.msra.mxu0 %v1478
      %1496 = vmatprep.subr.bf16.mxu0 0
      %1497 = vmatpush1.bf16.msra.mxu0 %v1479
      %1498 = vmatprep.subr.bf16.mxu0 0
      %1499 = vmatpush1.bf16.msra.mxu0 %v1480
      %1500 = vmatprep.subr.bf16.mxu0 0
      %1501 = vmatpush1.bf16.msra.mxu0 %v1481
      %1502 = vmatprep.subr.bf16.mxu0 0
      %1503 = vmatpush1.bf16.msra.mxu0 %v1482
      %1504 = vmatprep.subr.bf16.mxu0 0
      %1505 = vmatpush1.bf16.msra.mxu0 %v1483
      %1506 = vmatprep.subr.bf16.mxu0 0
      %1507 = vmatpush1.bf16.msra.mxu0 %v1484
      %1508 = vmatprep.subr.bf16.mxu0 0
      %1509 = vmatpush1.bf16.msra.mxu0 %v1485
      %1510 = vmatprep.subr.bf16.mxu0 0
      %1511 = vmatpush1.bf16.msra.mxu0 0
      %1512 = vmatprep.subr.bf16.mxu0 0
      %1513 = vmatpush1.bf16.msra.mxu0 0
      %1514 = vmatprep.subr.bf16.mxu0 0
      %1515 = vmatpush1.bf16.msra.mxu0 0
      %1516 = vmatprep.subr.bf16.mxu0 0
      %1517 = vmatpush1.bf16.msra.mxu0 0
      %1518 = vmatprep.subr.bf16.mxu0 0
      %1519 = vmatpush1.bf16.msra.mxu0 0
      %1520 = vmatprep.subr.bf16.mxu0 0
      %1521 = vmatpush1.bf16.msra.mxu0 0
      %1522 = vmatprep.subr.bf16.mxu0 0
      %1523 = vmatpush1.bf16.msra.mxu0 0
      %1524 = vmatprep.subr.bf16.mxu0 0
      %1525 = vmatpush1.bf16.msra.mxu0 0
      %1526 = vmatprep.mubr.bf16.mxu0 0
      %1527 = vmatmul.mubr.bf16.gmra.mrb[0].mxu0 %v1413
      %v1528 = vpop.f32.mrb[0].mxu0
      %v1529 = vadd.f32 0.0, %v1528
      %v1530 = vpop.f32.mrb[0].mxu0
      %v1531 = vpop.f32.mrb[0].mxu0
      %v1532 = vadd.f32 0.0, %v1531
      %v1533 = vpop.f32.mrb[0].mxu0
      %1534 = vmatprep.mubr.bf16.mxu0 0
      %1535 = vmatmul.mubr.bf16.gmra.mrb[0].mxu0 %v1414
      %v1536 = vpop.f32.mrb[0].mxu0
      %v1537 = vadd.f32 0.0, %v1536
      %v1538 = vpop.f32.mrb[0].mxu0
      %v1539 = vpop.f32.mrb[0].mxu0
      %v1540 = vadd.f32 0.0, %v1539
      %v1541 = vpop.f32.mrb[0].mxu0
      %1542 = vmatprep.mubr.bf16.mxu0 0
      %1543 = vmatmul.mubr.bf16.gmra.mrb[0].mxu0 %v1415
      %v1544 = vpop.f32.mrb[0].mxu0
      %v1545 = vadd.f32 0.0, %v1544
      %v1546 = vpop.f32.mrb[0].mxu0
      %v1547 = vpop.f32.mrb[0].mxu0
      %v1548 = vadd.f32 0.0, %v1547
      %v1549 = vpop.f32.mrb[0].mxu0
      %1550 = vmatprep.mubr.bf16.mxu0 0
      %1551 = vmatmul.mubr.bf16.gmra.mrb[0].mxu0 %v1416
      %v1552 = vpop.f32.mrb[0].mxu0
      %v1553 = vadd.f32 0.0, %v1552
      %v1554 = vpop.f32.mrb[0].mxu0
      %v1555 = vpop.f32.mrb[0].mxu0
      %v1556 = vadd.f32 0.0, %v1555
      %v1557 = vpop.f32.mrb[0].mxu0
      %1558 = vmatprep.mubr.bf16.mxu0 0
      %1559 = vmatmul.mubr.bf16.gmra.mrb[0].mxu0 %v1417
      %v1560 = vpop.f32.mrb[0].mxu0
      %v1561 = vadd.f32 0.0, %v1560
      %v1562 = vpop.f32.mrb[0].mxu0
      %v1563 = vpop.f32.mrb[0].mxu0
      %v1564 = vadd.f32 0.0, %v1563
      %v1565 = vpop.f32.mrb[0].mxu0
      %1566 = vmatprep.mubr.bf16.mxu0 0
      %1567 = vmatmul.mubr.bf16.gmra.mrb[0].mxu0 %v1418
      %v1568 = vpop.f32.mrb[0].mxu0
      %v1569 = vadd.f32 0.0, %v1568
      %v1570 = vpop.f32.mrb[0].mxu0
      %v1571 = vpop.f32.mrb[0].mxu0
      %v1572 = vadd.f32 0.0, %v1571
      %v1573 = vpop.f32.mrb[0].mxu0
      %1574 = vmatprep.mubr.bf16.mxu0 0
      %1575 = vmatmul.mubr.bf16.gmra.mrb[0].mxu0 %v1419
      %v1576 = vpop.f32.mrb[0].mxu0
      %v1577 = vadd.f32 0.0, %v1576
      %v1578 = vpop.f32.mrb[0].mxu0
      %v1579 = vpop.f32.mrb[0].mxu0
      %v1580 = vadd.f32 0.0, %v1579
      %v1581 = vpop.f32.mrb[0].mxu0
      %1582 = vmatprep.mubr.bf16.mxu0 0
      %1583 = vmatmul.mubr.bf16.gmra.mrb[0].mxu0 %v1420
      %v1584 = vpop.f32.mrb[0].mxu0
      %v1585 = vadd.f32 0.0, %v1584
      %v1586 = vpop.f32.mrb[0].mxu0
      %v1587 = vpop.f32.mrb[0].mxu0
      %v1588 = vadd.f32 0.0, %v1587
      %v1589 = vpop.f32.mrb[0].mxu0
      %1590 = vmatprep.mubr.bf16.mxu0 0
      %1591 = vmatmul.mubr.bf16.gmra.mrb[0].mxu0 %v1421
      %v1592 = vpop.f32.mrb[0].mxu0
      %v1593 = vadd.f32 0.0, %v1592
      %v1594 = vpop.f32.mrb[0].mxu0
      %v1595 = vpop.f32.mrb[0].mxu0
      %v1596 = vadd.f32 0.0, %v1595
      %v1597 = vpop.f32.mrb[0].mxu0
      %1598 = vmatprep.mubr.bf16.mxu0 0
      %1599 = vmatmul.mubr.bf16.gmra.mrb[0].mxu0 %v1422
      %v1600 = vpop.f32.mrb[0].mxu0
      %v1601 = vadd.f32 0.0, %v1600
      %v1602 = vpop.f32.mrb[0].mxu0
      %v1603 = vpop.f32.mrb[0].mxu0
      %v1604 = vadd.f32 0.0, %v1603
      %v1605 = vpop.f32.mrb[0].mxu0
      %1606 = vmatprep.mubr.bf16.mxu0 0
      %1607 = vmatmul.mubr.bf16.gmra.mrb[0].mxu0 %v1423
      %v1608 = vpop.f32.mrb[0].mxu0
      %v1609 = vadd.f32 0.0, %v1608
      %v1610 = vpop.f32.mrb[0].mxu0
      %v1611 = vpop.f32.mrb[0].mxu0
      %v1612 = vadd.f32 0.0, %v1611
      %v1613 = vpop.f32.mrb[0].mxu0
      %1614 = vmatprep.mubr.bf16.mxu0 0
      %1615 = vmatmul.mubr.bf16.gmra.mrb[0].mxu0 %v1424
      %v1616 = vpop.f32.mrb[0].mxu0
      %v1617 = vadd.f32 0.0, %v1616
      %v1618 = vpop.f32.mrb[0].mxu0
      %v1619 = vpop.f32.mrb[0].mxu0
      %v1620 = vadd.f32 0.0, %v1619
      %v1621 = vpop.f32.mrb[0].mxu0
      %1622 = vmatprep.mubr.bf16.mxu0 0
      %1623 = vmatmul.mubr.bf16.gmra.mrb[0].mxu0 %v1425
      %v1624 = vpop.f32.mrb[0].mxu0
      %v1625 = vadd.f32 0.0, %v1624
      %v1626 = vpop.f32.mrb[0].mxu0
      %v1627 = vpop.f32.mrb[0].mxu0
      %v1628 = vadd.f32 0.0, %v1627
      %v1629 = vpop.f32.mrb[0].mxu0
      %1630 = vmatprep.mubr.bf16.mxu0 0
      %1631 = vmatmul.mubr.bf16.gmra.mrb[0].mxu0 %v1426
      %v1632 = vpop.f32.mrb[0].mxu0
      %v1633 = vadd.f32 0.0, %v1632
      %v1634 = vpop.f32.mrb[0].mxu0
      %v1635 = vpop.f32.mrb[0].mxu0
      %v1636 = vadd.f32 0.0, %v1635
      %v1637 = vpop.f32.mrb[0].mxu0
      %1638 = vmatprep.mubr.bf16.mxu0 0
      %1639 = vmatmul.mubr.bf16.gmra.mrb[0].mxu0 %v1427
      %v1640 = vpop.f32.mrb[0].mxu0
      %v1641 = vadd.f32 0.0, %v1640
      %v1642 = vpop.f32.mrb[0].mxu0
      %v1643 = vpop.f32.mrb[0].mxu0
      %v1644 = vadd.f32 0.0, %v1643
      %v1645 = vpop.f32.mrb[0].mxu0
      %1646 = vmatprep.mubr.bf16.mxu0 0
      %1647 = vmatmul.mubr.bf16.gmra.mrb[0].mxu0 %v1428
      %v1648 = vpop.f32.mrb[0].mxu0
      %v1649 = vadd.f32 0.0, %v1648
      %v1650 = vpop.f32.mrb[0].mxu0
      %v1651 = vpop.f32.mrb[0].mxu0
      %v1652 = vadd.f32 0.0, %v1651
      %v1653 = vpop.f32.mrb[0].mxu0
      %1654 = vdwg.mxu0
      %v1655 = vadd.f32 %v1349, %v1529
      %v1656 = vadd.f32 %v1350, %v1532
      %v1657 = vadd.f32 %v1351, %v1537
      %v1658 = vadd.f32 %v1352, %v1540
      %v1659 = vadd.f32 %v1353, %v1545
      %v1660 = vadd.f32 %v1354, %v1548
      %v1661 = vadd.f32 %v1355, %v1553
      %v1662 = vadd.f32 %v1356, %v1556
      %v1663 = vadd.f32 %v1357, %v1561
      %v1664 = vadd.f32 %v1358, %v1564
      %v1665 = vadd.f32 %v1359, %v1569
      %v1666 = vadd.f32 %v1360, %v1572
      %v1667 = vadd.f32 %v1361, %v1577
      %v1668 = vadd.f32 %v1362, %v1580
      %v1669 = vadd.f32 %v1363, %v1585
      %v1670 = vadd.f32 %v1364, %v1588
      %v1671 = vadd.f32 %v1365, %v1593
      %v1672 = vadd.f32 %v1366, %v1596
      %v1673 = vadd.f32 %v1367, %v1601
      %v1674 = vadd.f32 %v1368, %v1604
      %v1675 = vadd.f32 %v1369, %v1609
      %v1676 = vadd.f32 %v1370, %v1612
      %v1677 = vadd.f32 %v1371, %v1617
      %v1678 = vadd.f32 %v1372, %v1620
      %v1679 = vadd.f32 %v1373, %v1625
      %v1680 = vadd.f32 %v1374, %v1628
      %v1681 = vadd.f32 %v1375, %v1633
      %v1682 = vadd.f32 %v1376, %v1636
      %v1683 = vadd.f32 %v1377, %v1641
      %v1684 = vadd.f32 %v1378, %v1644
      %v1685 = vadd.f32 %v1379, %v1649
      %v1686 = vadd.f32 %v1380, %v1652
      %v1687 = vld [vmem:[%s495 + $0x8] sm:$0xff]
      %v1688 = vld [vmem:[%s495 + $0x10] sm:$0xff]
      %v1689 = vld [vmem:[%s495 + $0x28] sm:$0xff]
      %v1690 = vld [vmem:[%s495 + $0x30] sm:$0xff]
      %v1691 = vld [vmem:[%s495 + $0x48] sm:$0xff]
      %v1692 = vld [vmem:[%s495 + $0x50] sm:$0xff]
      %v1693 = vld [vmem:[%s495 + $0x68] sm:$0xff]
      %v1694 = vld [vmem:[%s495 + $0x70] sm:$0xff]
      %v1695 = vld [vmem:[%s495 + $0x88] sm:$0xff]
      %v1696 = vld [vmem:[%s495 + $0x90] sm:$0xff]
      %v1697 = vld [vmem:[%s495 + $0xa8] sm:$0xff]
      %v1698 = vld [vmem:[%s495 + $0xb0] sm:$0xff]
      %v1699 = vld [vmem:[%s495 + $0xc8] sm:$0xff]
      %v1700 = vld [vmem:[%s495 + $0xd0] sm:$0xff]
      %v1701 = vld [vmem:[%s495 + $0xe8] sm:$0xff]
      %v1702 = vld [vmem:[%s495 + $0xf0] sm:$0xff]
      %v1703 = vld [vmem:[%s495 + $0x108] sm:$0xff]
      %v1704 = vld [vmem:[%s495 + $0x110] sm:$0xff]
      %v1705 = vld [vmem:[%s495 + $0x128] sm:$0xff]
      %v1706 = vld [vmem:[%s495 + $0x130] sm:$0xff]
      %v1707 = vld [vmem:[%s495 + $0x148] sm:$0xff]
      %v1708 = vld [vmem:[%s495 + $0x150] sm:$0xff]
      %v1709 = vld [vmem:[%s495 + $0x168] sm:$0xff]
      %v1710 = vld [vmem:[%s495 + $0x170] sm:$0xff]
      %v1711 = vld [vmem:[%s495 + $0x188] sm:$0xff]
      %v1712 = vld [vmem:[%s495 + $0x190] sm:$0xff]
      %v1713 = vld [vmem:[%s495 + $0x1a8] sm:$0xff]
      %v1714 = vld [vmem:[%s495 + $0x1b0] sm:$0xff]
      %v1715 = vld [vmem:[%s495 + $0x1c8] sm:$0xff]
      %v1716 = vld [vmem:[%s495 + $0x1d0] sm:$0xff]
      %v1717 = vld [vmem:[%s495 + $0x1e8] sm:$0xff]
      %v1718 = vld [vmem:[%s495 + $0x1f0] sm:$0xff]
      %v1719 = vpack.c.bf16 %v1688, %v1687
      %v1720 = vpack.c.bf16 %v1690, %v1689
      %v1721 = vpack.c.bf16 %v1692, %v1691
      %v1722 = vpack.c.bf16 %v1694, %v1693
      %v1723 = vpack.c.bf16 %v1696, %v1695
      %v1724 = vpack.c.bf16 %v1698, %v1697
      %v1725 = vpack.c.bf16 %v1700, %v1699
      %v1726 = vpack.c.bf16 %v1702, %v1701
      %v1727 = vpack.c.bf16 %v1704, %v1703
      %v1728 = vpack.c.bf16 %v1706, %v1705
      %v1729 = vpack.c.bf16 %v1708, %v1707
      %v1730 = vpack.c.bf16 %v1710, %v1709
      %v1731 = vpack.c.bf16 %v1712, %v1711
      %v1732 = vpack.c.bf16 %v1714, %v1713
      %v1733 = vpack.c.bf16 %v1716, %v1715
      %v1734 = vpack.c.bf16 %v1718, %v1717
      %s1735 = scalar_lea.vmem %s3, 256
      %v1736 = vld [vmem:[%s1735] sm:$0xf]
      %v1737 = vld [vmem:[%s1735 + $0x4] sm:$0xf]
      %v1738 = vld [vmem:[%s1735 + $0x8] sm:$0xf]
      %v1739 = vld [vmem:[%s1735 + $0xc] sm:$0xf]
      %v1740 = vld [vmem:[%s1735 + $0x10] sm:$0xf]
      %v1741 = vld [vmem:[%s1735 + $0x14] sm:$0xf]
      %v1742 = vld [vmem:[%s1735 + $0x18] sm:$0xf]
      %v1743 = vld [vmem:[%s1735 + $0x1c] sm:$0xf]
      %v1744 = vld [vmem:[%s1735 + $0x20] sm:$0xf]
      %v1745 = vld [vmem:[%s1735 + $0x24] sm:$0xf]
      %v1746 = vld [vmem:[%s1735 + $0x28] sm:$0xf]
      %v1747 = vld [vmem:[%s1735 + $0x2c] sm:$0xf]
      %v1748 = vld [vmem:[%s1735 + $0x30] sm:$0xf]
      %v1749 = vld [vmem:[%s1735 + $0x34] sm:$0xf]
      %v1750 = vld [vmem:[%s1735 + $0x38] sm:$0xf]
      %v1751 = vld [vmem:[%s1735 + $0x3c] sm:$0xf]
      %v1768 = vunpack.c.l.b16 %v1736
      %v1769 = vunpack.c.l.b16 %v1737
      %v1770 = vunpack.c.l.b16 %v1738
      %v1771 = vunpack.c.l.b16 %v1739
      %v1772 = vunpack.c.l.b16 %v1740
      %v1773 = vunpack.c.l.b16 %v1741
      %v1774 = vunpack.c.l.b16 %v1742
      %v1775 = vunpack.c.l.b16 %v1743
      %v1776 = vunpack.c.l.b16 %v1744
      %v1777 = vunpack.c.l.b16 %v1745
      %v1778 = vunpack.c.l.b16 %v1746
      %v1779 = vunpack.c.l.b16 %v1747
      %v1780 = vunpack.c.l.b16 %v1748
      %v1781 = vunpack.c.l.b16 %v1749
      %v1782 = vunpack.c.l.b16 %v1750
      %v1783 = vunpack.c.l.b16 %v1751
      %v1784 = vpack.c.b16 %v1769, %v1768
      %v1785 = vpack.c.b16 %v1771, %v1770
      %v1786 = vpack.c.b16 %v1773, %v1772
      %v1787 = vpack.c.b16 %v1775, %v1774
      %v1788 = vpack.c.b16 %v1777, %v1776
      %v1789 = vpack.c.b16 %v1779, %v1778
      %v1790 = vpack.c.b16 %v1781, %v1780
      %v1791 = vpack.c.b16 %v1783, %v1782
      %1800 = vmatprep.subr.bf16.mxu0 0
      %1801 = vmatpush1.bf16.msra.mxu0 %v1784
      %1802 = vmatprep.subr.bf16.mxu0 0
      %1803 = vmatpush1.bf16.msra.mxu0 %v1785
      %1804 = vmatprep.subr.bf16.mxu0 0
      %1805 = vmatpush1.bf16.msra.mxu0 %v1786
      %1806 = vmatprep.subr.bf16.mxu0 0
      %1807 = vmatpush1.bf16.msra.mxu0 %v1787
      %1808 = vmatprep.subr.bf16.mxu0 0
      %1809 = vmatpush1.bf16.msra.mxu0 %v1788
      %1810 = vmatprep.subr.bf16.mxu0 0
      %1811 = vmatpush1.bf16.msra.mxu0 %v1789
      %1812 = vmatprep.subr.bf16.mxu0 0
      %1813 = vmatpush1.bf16.msra.mxu0 %v1790
      %1814 = vmatprep.subr.bf16.mxu0 0
      %1815 = vmatpush1.bf16.msra.mxu0 %v1791
      %1816 = vmatprep.subr.bf16.mxu0 0
      %1817 = vmatpush1.bf16.msra.mxu0 0
      %1818 = vmatprep.subr.bf16.mxu0 0
      %1819 = vmatpush1.bf16.msra.mxu0 0
      %1820 = vmatprep.subr.bf16.mxu0 0
      %1821 = vmatpush1.bf16.msra.mxu0 0
      %1822 = vmatprep.subr.bf16.mxu0 0
      %1823 = vmatpush1.bf16.msra.mxu0 0
      %1824 = vmatprep.subr.bf16.mxu0 0
      %1825 = vmatpush1.bf16.msra.mxu0 0
      %1826 = vmatprep.subr.bf16.mxu0 0
      %1827 = vmatpush1.bf16.msra.mxu0 0
      %1828 = vmatprep.subr.bf16.mxu0 0
      %1829 = vmatpush1.bf16.msra.mxu0 0
      %1830 = vmatprep.subr.bf16.mxu0 0
      %1831 = vmatpush1.bf16.msra.mxu0 0
      %1832 = vmatprep.mubr.bf16.mxu0 0
      %1833 = vmatmul.mubr.bf16.gmra.mrb[0].mxu0 %v1719
      %v1834 = vpop.f32.mrb[0].mxu0
      %v1835 = vadd.f32 0.0, %v1834
      %v1836 = vpop.f32.mrb[0].mxu0
      %v1837 = vpop.f32.mrb[0].mxu0
      %v1838 = vadd.f32 0.0, %v1837
      %v1839 = vpop.f32.mrb[0].mxu0
      %1840 = vmatprep.mubr.bf16.mxu0 0
      %1841 = vmatmul.mubr.bf16.gmra.mrb[0].mxu0 %v1720
      %v1842 = vpop.f32.mrb[0].mxu0
      %v1843 = vadd.f32 0.0, %v1842
      %v1844 = vpop.f32.mrb[0].mxu0
      %v1845 = vpop.f32.mrb[0].mxu0
      %v1846 = vadd.f32 0.0, %v1845
      %v1847 = vpop.f32.mrb[0].mxu0
      %1848 = vmatprep.mubr.bf16.mxu0 0
      %1849 = vmatmul.mubr.bf16.gmra.mrb[0].mxu0 %v1721
      %v1850 = vpop.f32.mrb[0].mxu0
      %v1851 = vadd.f32 0.0, %v1850
      %v1852 = vpop.f32.mrb[0].mxu0
      %v1853 = vpop.f32.mrb[0].mxu0
      %v1854 = vadd.f32 0.0, %v1853
      %v1855 = vpop.f32.mrb[0].mxu0
      %1856 = vmatprep.mubr.bf16.mxu0 0
      %1857 = vmatmul.mubr.bf16.gmra.mrb[0].mxu0 %v1722
      %v1858 = vpop.f32.mrb[0].mxu0
      %v1859 = vadd.f32 0.0, %v1858
      %v1860 = vpop.f32.mrb[0].mxu0
      %v1861 = vpop.f32.mrb[0].mxu0
      %v1862 = vadd.f32 0.0, %v1861
      %v1863 = vpop.f32.mrb[0].mxu0
      %1864 = vmatprep.mubr.bf16.mxu0 0
      %1865 = vmatmul.mubr.bf16.gmra.mrb[0].mxu0 %v1723
      %v1866 = vpop.f32.mrb[0].mxu0
      %v1867 = vadd.f32 0.0, %v1866
      %v1868 = vpop.f32.mrb[0].mxu0
      %v1869 = vpop.f32.mrb[0].mxu0
      %v1870 = vadd.f32 0.0, %v1869
      %v1871 = vpop.f32.mrb[0].mxu0
      %1872 = vmatprep.mubr.bf16.mxu0 0
      %1873 = vmatmul.mubr.bf16.gmra.mrb[0].mxu0 %v1724
      %v1874 = vpop.f32.mrb[0].mxu0
      %v1875 = vadd.f32 0.0, %v1874
      %v1876 = vpop.f32.mrb[0].mxu0
      %v1877 = vpop.f32.mrb[0].mxu0
      %v1878 = vadd.f32 0.0, %v1877
      %v1879 = vpop.f32.mrb[0].mxu0
      %1880 = vmatprep.mubr.bf16.mxu0 0
      %1881 = vmatmul.mubr.bf16.gmra.mrb[0].mxu0 %v1725
      %v1882 = vpop.f32.mrb[0].mxu0
      %v1883 = vadd.f32 0.0, %v1882
      %v1884 = vpop.f32.mrb[0].mxu0
      %v1885 = vpop.f32.mrb[0].mxu0
      %v1886 = vadd.f32 0.0, %v1885
      %v1887 = vpop.f32.mrb[0].mxu0
      %1888 = vmatprep.mubr.bf16.mxu0 0
      %1889 = vmatmul.mubr.bf16.gmra.mrb[0].mxu0 %v1726
      %v1890 = vpop.f32.mrb[0].mxu0
      %v1891 = vadd.f32 0.0, %v1890
      %v1892 = vpop.f32.mrb[0].mxu0
      %v1893 = vpop.f32.mrb[0].mxu0
      %v1894 = vadd.f32 0.0, %v1893
      %v1895 = vpop.f32.mrb[0].mxu0
      %1896 = vmatprep.mubr.bf16.mxu0 0
      %1897 = vmatmul.mubr.bf16.gmra.mrb[0].mxu0 %v1727
      %v1898 = vpop.f32.mrb[0].mxu0
      %v1899 = vadd.f32 0.0, %v1898
      %v1900 = vpop.f32.mrb[0].mxu0
      %v1901 = vpop.f32.mrb[0].mxu0
      %v1902 = vadd.f32 0.0, %v1901
      %v1903 = vpop.f32.mrb[0].mxu0
      %1904 = vmatprep.mubr.bf16.mxu0 0
      %1905 = vmatmul.mubr.bf16.gmra.mrb[0].mxu0 %v1728
      %v1906 = vpop.f32.mrb[0].mxu0
      %v1907 = vadd.f32 0.0, %v1906
      %v1908 = vpop.f32.mrb[0].mxu0
      %v1909 = vpop.f32.mrb[0].mxu0
      %v1910 = vadd.f32 0.0, %v1909
      %v1911 = vpop.f32.mrb[0].mxu0
      %1912 = vmatprep.mubr.bf16.mxu0 0
      %1913 = vmatmul.mubr.bf16.gmra.mrb[0].mxu0 %v1729
      %v1914 = vpop.f32.mrb[0].mxu0
      %v1915 = vadd.f32 0.0, %v1914
      %v1916 = vpop.f32.mrb[0].mxu0
      %v1917 = vpop.f32.mrb[0].mxu0
      %v1918 = vadd.f32 0.0, %v1917
      %v1919 = vpop.f32.mrb[0].mxu0
      %1920 = vmatprep.mubr.bf16.mxu0 0
      %1921 = vmatmul.mubr.bf16.gmra.mrb[0].mxu0 %v1730
      %v1922 = vpop.f32.mrb[0].mxu0
      %v1923 = vadd.f32 0.0, %v1922
      %v1924 = vpop.f32.mrb[0].mxu0
      %v1925 = vpop.f32.mrb[0].mxu0
      %v1926 = vadd.f32 0.0, %v1925
      %v1927 = vpop.f32.mrb[0].mxu0
      %1928 = vmatprep.mubr.bf16.mxu0 0
      %1929 = vmatmul.mubr.bf16.gmra.mrb[0].mxu0 %v1731
      %v1930 = vpop.f32.mrb[0].mxu0
      %v1931 = vadd.f32 0.0, %v1930
      %v1932 = vpop.f32.mrb[0].mxu0
      %v1933 = vpop.f32.mrb[0].mxu0
      %v1934 = vadd.f32 0.0, %v1933
      %v1935 = vpop.f32.mrb[0].mxu0
      %1936 = vmatprep.mubr.bf16.mxu0 0
      %1937 = vmatmul.mubr.bf16.gmra.mrb[0].mxu0 %v1732
      %v1938 = vpop.f32.mrb[0].mxu0
      %v1939 = vadd.f32 0.0, %v1938
      %v1940 = vpop.f32.mrb[0].mxu0
      %v1941 = vpop.f32.mrb[0].mxu0
      %v1942 = vadd.f32 0.0, %v1941
      %v1943 = vpop.f32.mrb[0].mxu0
      %1944 = vmatprep.mubr.bf16.mxu0 0
      %1945 = vmatmul.mubr.bf16.gmra.mrb[0].mxu0 %v1733
      %v1946 = vpop.f32.mrb[0].mxu0
      %v1947 = vadd.f32 0.0, %v1946
      %v1948 = vpop.f32.mrb[0].mxu0
      %v1949 = vpop.f32.mrb[0].mxu0
      %v1950 = vadd.f32 0.0, %v1949
      %v1951 = vpop.f32.mrb[0].mxu0
      %1952 = vmatprep.mubr.bf16.mxu0 0
      %1953 = vmatmul.mubr.bf16.gmra.mrb[0].mxu0 %v1734
      %v1954 = vpop.f32.mrb[0].mxu0
      %v1955 = vadd.f32 0.0, %v1954
      %v1956 = vpop.f32.mrb[0].mxu0
      %v1957 = vpop.f32.mrb[0].mxu0
      %v1958 = vadd.f32 0.0, %v1957
      %v1959 = vpop.f32.mrb[0].mxu0
      %1960 = vdwg.mxu0
      %v1961 = vadd.f32 %v1655, %v1835
      %v1962 = vadd.f32 %v1656, %v1838
      %v1963 = vadd.f32 %v1657, %v1843
      %v1964 = vadd.f32 %v1658, %v1846
      %v1965 = vadd.f32 %v1659, %v1851
      %v1966 = vadd.f32 %v1660, %v1854
      %v1967 = vadd.f32 %v1661, %v1859
      %v1968 = vadd.f32 %v1662, %v1862
      %v1969 = vadd.f32 %v1663, %v1867
      %v1970 = vadd.f32 %v1664, %v1870
      %v1971 = vadd.f32 %v1665, %v1875
      %v1972 = vadd.f32 %v1666, %v1878
      %v1973 = vadd.f32 %v1667, %v1883
      %v1974 = vadd.f32 %v1668, %v1886
      %v1975 = vadd.f32 %v1669, %v1891
      %v1976 = vadd.f32 %v1670, %v1894
      %v1977 = vadd.f32 %v1671, %v1899
      %v1978 = vadd.f32 %v1672, %v1902
      %v1979 = vadd.f32 %v1673, %v1907
      %v1980 = vadd.f32 %v1674, %v1910
      %v1981 = vadd.f32 %v1675, %v1915
      %v1982 = vadd.f32 %v1676, %v1918
      %v1983 = vadd.f32 %v1677, %v1923
      %v1984 = vadd.f32 %v1678, %v1926
      %v1985 = vadd.f32 %v1679, %v1931
      %v1986 = vadd.f32 %v1680, %v1934
      %v1987 = vadd.f32 %v1681, %v1939
      %v1988 = vadd.f32 %v1682, %v1942
      %v1989 = vadd.f32 %v1683, %v1947
      %v1990 = vadd.f32 %v1684, %v1950
      %v1991 = vadd.f32 %v1685, %v1955
      %v1992 = vadd.f32 %v1686, %v1958
      %v1993 = vld [vmem:[%s495 + $0x9] sm:$0xff]
      %v1994 = vld [vmem:[%s495 + $0x11] sm:$0xff]
      %v1995 = vld [vmem:[%s495 + $0x29] sm:$0xff]
      %v1996 = vld [vmem:[%s495 + $0x31] sm:$0xff]
      %v1997 = vld [vmem:[%s495 + $0x49] sm:$0xff]
      %v1998 = vld [vmem:[%s495 + $0x51] sm:$0xff]
      %v1999 = vld [vmem:[%s495 + $0x69] sm:$0xff]
      %v2000 = vld [vmem:[%s495 + $0x71] sm:$0xff]
      %v2001 = vld [vmem:[%s495 + $0x89] sm:$0xff]
      %v2002 = vld [vmem:[%s495 + $0x91] sm:$0xff]
      %v2003 = vld [vmem:[%s495 + $0xa9] sm:$0xff]
      %v2004 = vld [vmem:[%s495 + $0xb1] sm:$0xff]
      %v2005 = vld [vmem:[%s495 + $0xc9] sm:$0xff]
      %v2006 = vld [vmem:[%s495 + $0xd1] sm:$0xff]
      %v2007 = vld [vmem:[%s495 + $0xe9] sm:$0xff]
      %v2008 = vld [vmem:[%s495 + $0xf1] sm:$0xff]
      %v2009 = vld [vmem:[%s495 + $0x109] sm:$0xff]
      %v2010 = vld [vmem:[%s495 + $0x111] sm:$0xff]
      %v2011 = vld [vmem:[%s495 + $0x129] sm:$0xff]
      %v2012 = vld [vmem:[%s495 + $0x131] sm:$0xff]
      %v2013 = vld [vmem:[%s495 + $0x149] sm:$0xff]
      %v2014 = vld [vmem:[%s495 + $0x151] sm:$0xff]
      %v2015 = vld [vmem:[%s495 + $0x169] sm:$0xff]
      %v2016 = vld [vmem:[%s495 + $0x171] sm:$0xff]
      %v2017 = vld [vmem:[%s495 + $0x189] sm:$0xff]
      %v2018 = vld [vmem:[%s495 + $0x191] sm:$0xff]
      %v2019 = vld [vmem:[%s495 + $0x1a9] sm:$0xff]
      %v2020 = vld [vmem:[%s495 + $0x1b1] sm:$0xff]
      %v2021 = vld [vmem:[%s495 + $0x1c9] sm:$0xff]
      %v2022 = vld [vmem:[%s495 + $0x1d1] sm:$0xff]
      %v2023 = vld [vmem:[%s495 + $0x1e9] sm:$0xff]
      %v2024 = vld [vmem:[%s495 + $0x1f1] sm:$0xff]
      %v2025 = vpack.c.bf16 %v1994, %v1993
      %v2026 = vpack.c.bf16 %v1996, %v1995
      %v2027 = vpack.c.bf16 %v1998, %v1997
      %v2028 = vpack.c.bf16 %v2000, %v1999
      %v2029 = vpack.c.bf16 %v2002, %v2001
      %v2030 = vpack.c.bf16 %v2004, %v2003
      %v2031 = vpack.c.bf16 %v2006, %v2005
      %v2032 = vpack.c.bf16 %v2008, %v2007
      %v2033 = vpack.c.bf16 %v2010, %v2009
      %v2034 = vpack.c.bf16 %v2012, %v2011
      %v2035 = vpack.c.bf16 %v2014, %v2013
      %v2036 = vpack.c.bf16 %v2016, %v2015
      %v2037 = vpack.c.bf16 %v2018, %v2017
      %v2038 = vpack.c.bf16 %v2020, %v2019
      %v2039 = vpack.c.bf16 %v2022, %v2021
      %v2040 = vpack.c.bf16 %v2024, %v2023
      %s2041 = scalar_lea.vmem %s3, 320
      %v2042 = vld [vmem:[%s2041] sm:$0xf]
      %v2043 = vld [vmem:[%s2041 + $0x4] sm:$0xf]
      %v2044 = vld [vmem:[%s2041 + $0x8] sm:$0xf]
      %v2045 = vld [vmem:[%s2041 + $0xc] sm:$0xf]
      %v2046 = vld [vmem:[%s2041 + $0x10] sm:$0xf]
      %v2047 = vld [vmem:[%s2041 + $0x14] sm:$0xf]
      %v2048 = vld [vmem:[%s2041 + $0x18] sm:$0xf]
      %v2049 = vld [vmem:[%s2041 + $0x1c] sm:$0xf]
      %v2050 = vld [vmem:[%s2041 + $0x20] sm:$0xf]
      %v2051 = vld [vmem:[%s2041 + $0x24] sm:$0xf]
      %v2052 = vld [vmem:[%s2041 + $0x28] sm:$0xf]
      %v2053 = vld [vmem:[%s2041 + $0x2c] sm:$0xf]
      %v2054 = vld [vmem:[%s2041 + $0x30] sm:$0xf]
      %v2055 = vld [vmem:[%s2041 + $0x34] sm:$0xf]
      %v2056 = vld [vmem:[%s2041 + $0x38] sm:$0xf]
      %v2057 = vld [vmem:[%s2041 + $0x3c] sm:$0xf]
      %v2074 = vunpack.c.l.b16 %v2042
      %v2075 = vunpack.c.l.b16 %v2043
      %v2076 = vunpack.c.l.b16 %v2044
      %v2077 = vunpack.c.l.b16 %v2045
      %v2078 = vunpack.c.l.b16 %v2046
      %v2079 = vunpack.c.l.b16 %v2047
      %v2080 = vunpack.c.l.b16 %v2048
      %v2081 = vunpack.c.l.b16 %v2049
      %v2082 = vunpack.c.l.b16 %v2050
      %v2083 = vunpack.c.l.b16 %v2051
      %v2084 = vunpack.c.l.b16 %v2052
      %v2085 = vunpack.c.l.b16 %v2053
      %v2086 = vunpack.c.l.b16 %v2054
      %v2087 = vunpack.c.l.b16 %v2055
      %v2088 = vunpack.c.l.b16 %v2056
      %v2089 = vunpack.c.l.b16 %v2057
      %v2090 = vpack.c.b16 %v2075, %v2074
      %v2091 = vpack.c.b16 %v2077, %v2076
      %v2092 = vpack.c.b16 %v2079, %v2078
      %v2093 = vpack.c.b16 %v2081, %v2080
      %v2094 = vpack.c.b16 %v2083, %v2082
      %v2095 = vpack.c.b16 %v2085, %v2084
      %v2096 = vpack.c.b16 %v2087, %v2086
      %v2097 = vpack.c.b16 %v2089, %v2088
      %2106 = vmatprep.subr.bf16.mxu0 0
      %2107 = vmatpush1.bf16.msra.mxu0 %v2090
      %2108 = vmatprep.subr.bf16.mxu0 0
      %2109 = vmatpush1.bf16.msra.mxu0 %v2091
      %2110 = vmatprep.subr.bf16.mxu0 0
      %2111 = vmatpush1.bf16.msra.mxu0 %v2092
      %2112 = vmatprep.subr.bf16.mxu0 0
      %2113 = vmatpush1.bf16.msra.mxu0 %v2093
      %2114 = vmatprep.subr.bf16.mxu0 0
      %2115 = vmatpush1.bf16.msra.mxu0 %v2094
      %2116 = vmatprep.subr.bf16.mxu0 0
      %2117 = vmatpush1.bf16.msra.mxu0 %v2095
      %2118 = vmatprep.subr.bf16.mxu0 0
      %2119 = vmatpush1.bf16.msra.mxu0 %v2096
      %2120 = vmatprep.subr.bf16.mxu0 0
      %2121 = vmatpush1.bf16.msra.mxu0 %v2097
      %2122 = vmatprep.subr.bf16.mxu0 0
      %2123 = vmatpush1.bf16.msra.mxu0 0
      %2124 = vmatprep.subr.bf16.mxu0 0
      %2125 = vmatpush1.bf16.msra.mxu0 0
      %2126 = vmatprep.subr.bf16.mxu0 0
      %2127 = vmatpush1.bf16.msra.mxu0 0
      %2128 = vmatprep.subr.bf16.mxu0 0
      %2129 = vmatpush1.bf16.msra.mxu0 0
      %2130 = vmatprep.subr.bf16.mxu0 0
      %2131 = vmatpush1.bf16.msra.mxu0 0
      %2132 = vmatprep.subr.bf16.mxu0 0
      %2133 = vmatpush1.bf16.msra.mxu0 0
      %2134 = vmatprep.subr.bf16.mxu0 0
      %2135 = vmatpush1.bf16.msra.mxu0 0
      %2136 = vmatprep.subr.bf16.mxu0 0
      %2137 = vmatpush1.bf16.msra.mxu0 0
      %2138 = vmatprep.mubr.bf16.mxu0 0
      %2139 = vmatmul.mubr.bf16.gmra.mrb[0].mxu0 %v2025
      %v2140 = vpop.f32.mrb[0].mxu0
      %v2141 = vadd.f32 0.0, %v2140
      %v2142 = vpop.f32.mrb[0].mxu0
      %v2143 = vpop.f32.mrb[0].mxu0
      %v2144 = vadd.f32 0.0, %v2143
      %v2145 = vpop.f32.mrb[0].mxu0
      %2146 = vmatprep.mubr.bf16.mxu0 0
      %2147 = vmatmul.mubr.bf16.gmra.mrb[0].mxu0 %v2026
      %v2148 = vpop.f32.mrb[0].mxu0
      %v2149 = vadd.f32 0.0, %v2148
      %v2150 = vpop.f32.mrb[0].mxu0
      %v2151 = vpop.f32.mrb[0].mxu0
      %v2152 = vadd.f32 0.0, %v2151
      %v2153 = vpop.f32.mrb[0].mxu0
      %2154 = vmatprep.mubr.bf16.mxu0 0
      %2155 = vmatmul.mubr.bf16.gmra.mrb[0].mxu0 %v2027
      %v2156 = vpop.f32.mrb[0].mxu0
      %v2157 = vadd.f32 0.0, %v2156
      %v2158 = vpop.f32.mrb[0].mxu0
      %v2159 = vpop.f32.mrb[0].mxu0
      %v2160 = vadd.f32 0.0, %v2159
      %v2161 = vpop.f32.mrb[0].mxu0
      %2162 = vmatprep.mubr.bf16.mxu0 0
      %2163 = vmatmul.mubr.bf16.gmra.mrb[0].mxu0 %v2028
      %v2164 = vpop.f32.mrb[0].mxu0
      %v2165 = vadd.f32 0.0, %v2164
      %v2166 = vpop.f32.mrb[0].mxu0
      %v2167 = vpop.f32.mrb[0].mxu0
      %v2168 = vadd.f32 0.0, %v2167
      %v2169 = vpop.f32.mrb[0].mxu0
      %2170 = vmatprep.mubr.bf16.mxu0 0
      %2171 = vmatmul.mubr.bf16.gmra.mrb[0].mxu0 %v2029
      %v2172 = vpop.f32.mrb[0].mxu0
      %v2173 = vadd.f32 0.0, %v2172
      %v2174 = vpop.f32.mrb[0].mxu0
      %v2175 = vpop.f32.mrb[0].mxu0
      %v2176 = vadd.f32 0.0, %v2175
      %v2177 = vpop.f32.mrb[0].mxu0
      %2178 = vmatprep.mubr.bf16.mxu0 0
      %2179 = vmatmul.mubr.bf16.gmra.mrb[0].mxu0 %v2030
      %v2180 = vpop.f32.mrb[0].mxu0
      %v2181 = vadd.f32 0.0, %v2180
      %v2182 = vpop.f32.mrb[0].mxu0
      %v2183 = vpop.f32.mrb[0].mxu0
      %v2184 = vadd.f32 0.0, %v2183
      %v2185 = vpop.f32.mrb[0].mxu0
      %2186 = vmatprep.mubr.bf16.mxu0 0
      %2187 = vmatmul.mubr.bf16.gmra.mrb[0].mxu0 %v2031
      %v2188 = vpop.f32.mrb[0].mxu0
      %v2189 = vadd.f32 0.0, %v2188
      %v2190 = vpop.f32.mrb[0].mxu0
      %v2191 = vpop.f32.mrb[0].mxu0
      %v2192 = vadd.f32 0.0, %v2191
      %v2193 = vpop.f32.mrb[0].mxu0
      %2194 = vmatprep.mubr.bf16.mxu0 0
      %2195 = vmatmul.mubr.bf16.gmra.mrb[0].mxu0 %v2032
      %v2196 = vpop.f32.mrb[0].mxu0
      %v2197 = vadd.f32 0.0, %v2196
      %v2198 = vpop.f32.mrb[0].mxu0
      %v2199 = vpop.f32.mrb[0].mxu0
      %v2200 = vadd.f32 0.0, %v2199
      %v2201 = vpop.f32.mrb[0].mxu0
      %2202 = vmatprep.mubr.bf16.mxu0 0
      %2203 = vmatmul.mubr.bf16.gmra.mrb[0].mxu0 %v2033
      %v2204 = vpop.f32.mrb[0].mxu0
      %v2205 = vadd.f32 0.0, %v2204
      %v2206 = vpop.f32.mrb[0].mxu0
      %v2207 = vpop.f32.mrb[0].mxu0
      %v2208 = vadd.f32 0.0, %v2207
      %v2209 = vpop.f32.mrb[0].mxu0
      %2210 = vmatprep.mubr.bf16.mxu0 0
      %2211 = vmatmul.mubr.bf16.gmra.mrb[0].mxu0 %v2034
      %v2212 = vpop.f32.mrb[0].mxu0
      %v2213 = vadd.f32 0.0, %v2212
      %v2214 = vpop.f32.mrb[0].mxu0
      %v2215 = vpop.f32.mrb[0].mxu0
      %v2216 = vadd.f32 0.0, %v2215
      %v2217 = vpop.f32.mrb[0].mxu0
      %2218 = vmatprep.mubr.bf16.mxu0 0
      %2219 = vmatmul.mubr.bf16.gmra.mrb[0].mxu0 %v2035
      %v2220 = vpop.f32.mrb[0].mxu0
      %v2221 = vadd.f32 0.0, %v2220
      %v2222 = vpop.f32.mrb[0].mxu0
      %v2223 = vpop.f32.mrb[0].mxu0
      %v2224 = vadd.f32 0.0, %v2223
      %v2225 = vpop.f32.mrb[0].mxu0
      %2226 = vmatprep.mubr.bf16.mxu0 0
      %2227 = vmatmul.mubr.bf16.gmra.mrb[0].mxu0 %v2036
      %v2228 = vpop.f32.mrb[0].mxu0
      %v2229 = vadd.f32 0.0, %v2228
      %v2230 = vpop.f32.mrb[0].mxu0
      %v2231 = vpop.f32.mrb[0].mxu0
      %v2232 = vadd.f32 0.0, %v2231
      %v2233 = vpop.f32.mrb[0].mxu0
      %2234 = vmatprep.mubr.bf16.mxu0 0
      %2235 = vmatmul.mubr.bf16.gmra.mrb[0].mxu0 %v2037
      %v2236 = vpop.f32.mrb[0].mxu0
      %v2237 = vadd.f32 0.0, %v2236
      %v2238 = vpop.f32.mrb[0].mxu0
      %v2239 = vpop.f32.mrb[0].mxu0
      %v2240 = vadd.f32 0.0, %v2239
      %v2241 = vpop.f32.mrb[0].mxu0
      %2242 = vmatprep.mubr.bf16.mxu0 0
      %2243 = vmatmul.mubr.bf16.gmra.mrb[0].mxu0 %v2038
      %v2244 = vpop.f32.mrb[0].mxu0
      %v2245 = vadd.f32 0.0, %v2244
      %v2246 = vpop.f32.mrb[0].mxu0
      %v2247 = vpop.f32.mrb[0].mxu0
      %v2248 = vadd.f32 0.0, %v2247
      %v2249 = vpop.f32.mrb[0].mxu0
      %2250 = vmatprep.mubr.bf16.mxu0 0
      %2251 = vmatmul.mubr.bf16.gmra.mrb[0].mxu0 %v2039
      %v2252 = vpop.f32.mrb[0].mxu0
      %v2253 = vadd.f32 0.0, %v2252
      %v2254 = vpop.f32.mrb[0].mxu0
      %v2255 = vpop.f32.mrb[0].mxu0
      %v2256 = vadd.f32 0.0, %v2255
      %v2257 = vpop.f32.mrb[0].mxu0
      %2258 = vmatprep.mubr.bf16.mxu0 0
      %2259 = vmatmul.mubr.bf16.gmra.mrb[0].mxu0 %v2040
      %v2260 = vpop.f32.mrb[0].mxu0
      %v2261 = vadd.f32 0.0, %v2260
      %v2262 = vpop.f32.mrb[0].mxu0
      %v2263 = vpop.f32.mrb[0].mxu0
      %v2264 = vadd.f32 0.0, %v2263
      %v2265 = vpop.f32.mrb[0].mxu0
      %2266 = vdwg.mxu0
      %v2267 = vadd.f32 %v1961, %v2141
      %v2268 = vadd.f32 %v1962, %v2144
      %v2269 = vadd.f32 %v1963, %v2149
      %v2270 = vadd.f32 %v1964, %v2152
      %v2271 = vadd.f32 %v1965, %v2157
      %v2272 = vadd.f32 %v1966, %v2160
      %v2273 = vadd.f32 %v1967, %v2165
      %v2274 = vadd.f32 %v1968, %v2168
      %v2275 = vadd.f32 %v1969, %v2173
      %v2276 = vadd.f32 %v1970, %v2176
      %v2277 = vadd.f32 %v1971, %v2181
      %v2278 = vadd.f32 %v1972, %v2184
      %v2279 = vadd.f32 %v1973, %v2189
      %v2280 = vadd.f32 %v1974, %v2192
      %v2281 = vadd.f32 %v1975, %v2197
      %v2282 = vadd.f32 %v1976, %v2200
      %v2283 = vadd.f32 %v1977, %v2205
      %v2284 = vadd.f32 %v1978, %v2208
      %v2285 = vadd.f32 %v1979, %v2213
      %v2286 = vadd.f32 %v1980, %v2216
      %v2287 = vadd.f32 %v1981, %v2221
      %v2288 = vadd.f32 %v1982, %v2224
      %v2289 = vadd.f32 %v1983, %v2229
      %v2290 = vadd.f32 %v1984, %v2232
      %v2291 = vadd.f32 %v1985, %v2237
      %v2292 = vadd.f32 %v1986, %v2240
      %v2293 = vadd.f32 %v1987, %v2245
      %v2294 = vadd.f32 %v1988, %v2248
      %v2295 = vadd.f32 %v1989, %v2253
      %v2296 = vadd.f32 %v1990, %v2256
      %v2297 = vadd.f32 %v1991, %v2261
      %v2298 = vadd.f32 %v1992, %v2264
      %s2299 = scalar_lea.vmem [#allocation2], 64
      %v2300 = vld [vmem:[%s2299 + $0x7] sm:$0xff]
      %v2301 = vld [vmem:[%s2299 + $0xf] sm:$0xff]
      %v2302 = vld [vmem:[%s2299 + $0x27] sm:$0xff]
      %v2303 = vld [vmem:[%s2299 + $0x2f] sm:$0xff]
      %v2304 = vld [vmem:[%s2299 + $0x47] sm:$0xff]
      %v2305 = vld [vmem:[%s2299 + $0x4f] sm:$0xff]
      %v2306 = vld [vmem:[%s2299 + $0x67] sm:$0xff]
      %v2307 = vld [vmem:[%s2299 + $0x6f] sm:$0xff]
      %v2308 = vld [vmem:[%s2299 + $0x87] sm:$0xff]
      %v2309 = vld [vmem:[%s2299 + $0x8f] sm:$0xff]
      %v2310 = vld [vmem:[%s2299 + $0xa7] sm:$0xff]
      %v2311 = vld [vmem:[%s2299 + $0xaf] sm:$0xff]
      %v2312 = vld [vmem:[%s2299 + $0xc7] sm:$0xff]
      %v2313 = vld [vmem:[%s2299 + $0xcf] sm:$0xff]
      %v2314 = vld [vmem:[%s2299 + $0xe7] sm:$0xff]
      %v2315 = vld [vmem:[%s2299 + $0xef] sm:$0xff]
      %v2316 = vld [vmem:[%s2299 + $0x107] sm:$0xff]
      %v2317 = vld [vmem:[%s2299 + $0x10f] sm:$0xff]
      %v2318 = vld [vmem:[%s2299 + $0x127] sm:$0xff]
      %v2319 = vld [vmem:[%s2299 + $0x12f] sm:$0xff]
      %v2320 = vld [vmem:[%s2299 + $0x147] sm:$0xff]
      %v2321 = vld [vmem:[%s2299 + $0x14f] sm:$0xff]
      %v2322 = vld [vmem:[%s2299 + $0x167] sm:$0xff]
      %v2323 = vld [vmem:[%s2299 + $0x16f] sm:$0xff]
      %v2324 = vld [vmem:[%s2299 + $0x187] sm:$0xff]
      %v2325 = vld [vmem:[%s2299 + $0x18f] sm:$0xff]
      %v2326 = vld [vmem:[%s2299 + $0x1a7] sm:$0xff]
      %v2327 = vld [vmem:[%s2299 + $0x1af] sm:$0xff]
      %v2328 = vld [vmem:[%s2299 + $0x1c7] sm:$0xff]
      %v2329 = vld [vmem:[%s2299 + $0x1cf] sm:$0xff]
      %v2330 = vld [vmem:[%s2299 + $0x1e7] sm:$0xff]
      %v2331 = vld [vmem:[%s2299 + $0x1ef] sm:$0xff]
      %v2332 = vpack.c.bf16 %v2301, %v2300
      %v2333 = vpack.c.bf16 %v2303, %v2302
      %v2334 = vpack.c.bf16 %v2305, %v2304
      %v2335 = vpack.c.bf16 %v2307, %v2306
      %v2336 = vpack.c.bf16 %v2309, %v2308
      %v2337 = vpack.c.bf16 %v2311, %v2310
      %v2338 = vpack.c.bf16 %v2313, %v2312
      %v2339 = vpack.c.bf16 %v2315, %v2314
      %v2340 = vpack.c.bf16 %v2317, %v2316
      %v2341 = vpack.c.bf16 %v2319, %v2318
      %v2342 = vpack.c.bf16 %v2321, %v2320
      %v2343 = vpack.c.bf16 %v2323, %v2322
      %v2344 = vpack.c.bf16 %v2325, %v2324
      %v2345 = vpack.c.bf16 %v2327, %v2326
      %v2346 = vpack.c.bf16 %v2329, %v2328
      %v2347 = vpack.c.bf16 %v2331, %v2330
      %s2348 = scalar_lea.vmem %s3, 384
      %v2349 = vld [vmem:[%s2348] sm:$0xf]
      %v2350 = vld [vmem:[%s2348 + $0x4] sm:$0xf]
      %v2351 = vld [vmem:[%s2348 + $0x8] sm:$0xf]
      %v2352 = vld [vmem:[%s2348 + $0xc] sm:$0xf]
      %v2353 = vld [vmem:[%s2348 + $0x10] sm:$0xf]
      %v2354 = vld [vmem:[%s2348 + $0x14] sm:$0xf]
      %v2355 = vld [vmem:[%s2348 + $0x18] sm:$0xf]
      %v2356 = vld [vmem:[%s2348 + $0x1c] sm:$0xf]
      %v2357 = vld [vmem:[%s2348 + $0x20] sm:$0xf]
      %v2358 = vld [vmem:[%s2348 + $0x24] sm:$0xf]
      %v2359 = vld [vmem:[%s2348 + $0x28] sm:$0xf]
      %v2360 = vld [vmem:[%s2348 + $0x2c] sm:$0xf]
      %v2361 = vld [vmem:[%s2348 + $0x30] sm:$0xf]
      %v2362 = vld [vmem:[%s2348 + $0x34] sm:$0xf]
      %v2363 = vld [vmem:[%s2348 + $0x38] sm:$0xf]
      %v2364 = vld [vmem:[%s2348 + $0x3c] sm:$0xf]
      %v2381 = vunpack.c.l.b16 %v2349
      %v2382 = vunpack.c.l.b16 %v2350
      %v2383 = vunpack.c.l.b16 %v2351
      %v2384 = vunpack.c.l.b16 %v2352
      %v2385 = vunpack.c.l.b16 %v2353
      %v2386 = vunpack.c.l.b16 %v2354
      %v2387 = vunpack.c.l.b16 %v2355
      %v2388 = vunpack.c.l.b16 %v2356
      %v2389 = vunpack.c.l.b16 %v2357
      %v2390 = vunpack.c.l.b16 %v2358
      %v2391 = vunpack.c.l.b16 %v2359
      %v2392 = vunpack.c.l.b16 %v2360
      %v2393 = vunpack.c.l.b16 %v2361
      %v2394 = vunpack.c.l.b16 %v2362
      %v2395 = vunpack.c.l.b16 %v2363
      %v2396 = vunpack.c.l.b16 %v2364
      %v2397 = vpack.c.b16 %v2382, %v2381
      %v2398 = vpack.c.b16 %v2384, %v2383
      %v2399 = vpack.c.b16 %v2386, %v2385
      %v2400 = vpack.c.b16 %v2388, %v2387
      %v2401 = vpack.c.b16 %v2390, %v2389
      %v2402 = vpack.c.b16 %v2392, %v2391
      %v2403 = vpack.c.b16 %v2394, %v2393
      %v2404 = vpack.c.b16 %v2396, %v2395
      %2413 = vmatprep.subr.bf16.mxu0 0
      %2414 = vmatpush1.bf16.msra.mxu0 %v2397
      %2415 = vmatprep.subr.bf16.mxu0 0
      %2416 = vmatpush1.bf16.msra.mxu0 %v2398
      %2417 = vmatprep.subr.bf16.mxu0 0
      %2418 = vmatpush1.bf16.msra.mxu0 %v2399
      %2419 = vmatprep.subr.bf16.mxu0 0
      %2420 = vmatpush1.bf16.msra.mxu0 %v2400
      %2421 = vmatprep.subr.bf16.mxu0 0
      %2422 = vmatpush1.bf16.msra.mxu0 %v2401
      %2423 = vmatprep.subr.bf16.mxu0 0
      %2424 = vmatpush1.bf16.msra.mxu0 %v2402
      %2425 = vmatprep.subr.bf16.mxu0 0
      %2426 = vmatpush1.bf16.msra.mxu0 %v2403
      %2427 = vmatprep.subr.bf16.mxu0 0
      %2428 = vmatpush1.bf16.msra.mxu0 %v2404
      %2429 = vmatprep.subr.bf16.mxu0 0
      %2430 = vmatpush1.bf16.msra.mxu0 0
      %2431 = vmatprep.subr.bf16.mxu0 0
      %2432 = vmatpush1.bf16.msra.mxu0 0
      %2433 = vmatprep.subr.bf16.mxu0 0
      %2434 = vmatpush1.bf16.msra.mxu0 0
      %2435 = vmatprep.subr.bf16.mxu0 0
      %2436 = vmatpush1.bf16.msra.mxu0 0
      %2437 = vmatprep.subr.bf16.mxu0 0
      %2438 = vmatpush1.bf16.msra.mxu0 0
      %2439 = vmatprep.subr.bf16.mxu0 0
      %2440 = vmatpush1.bf16.msra.mxu0 0
      %2441 = vmatprep.subr.bf16.mxu0 0
      %2442 = vmatpush1.bf16.msra.mxu0 0
      %2443 = vmatprep.subr.bf16.mxu0 0
      %2444 = vmatpush1.bf16.msra.mxu0 0
      %2445 = vmatprep.mubr.bf16.mxu0 0
      %2446 = vmatmul.mubr.bf16.gmra.mrb[0].mxu0 %v2332
      %v2447 = vpop.f32.mrb[0].mxu0
      %v2448 = vadd.f32 0.0, %v2447
      %v2449 = vpop.f32.mrb[0].mxu0
      %v2450 = vpop.f32.mrb[0].mxu0
      %v2451 = vadd.f32 0.0, %v2450
      %v2452 = vpop.f32.mrb[0].mxu0
      %2453 = vmatprep.mubr.bf16.mxu0 0
      %2454 = vmatmul.mubr.bf16.gmra.mrb[0].mxu0 %v2333
      %v2455 = vpop.f32.mrb[0].mxu0
      %v2456 = vadd.f32 0.0, %v2455
      %v2457 = vpop.f32.mrb[0].mxu0
      %v2458 = vpop.f32.mrb[0].mxu0
      %v2459 = vadd.f32 0.0, %v2458
      %v2460 = vpop.f32.mrb[0].mxu0
      %2461 = vmatprep.mubr.bf16.mxu0 0
      %2462 = vmatmul.mubr.bf16.gmra.mrb[0].mxu0 %v2334
      %v2463 = vpop.f32.mrb[0].mxu0
      %v2464 = vadd.f32 0.0, %v2463
      %v2465 = vpop.f32.mrb[0].mxu0
      %v2466 = vpop.f32.mrb[0].mxu0
      %v2467 = vadd.f32 0.0, %v2466
      %v2468 = vpop.f32.mrb[0].mxu0
      %2469 = vmatprep.mubr.bf16.mxu0 0
      %2470 = vmatmul.mubr.bf16.gmra.mrb[0].mxu0 %v2335
      %v2471 = vpop.f32.mrb[0].mxu0
      %v2472 = vadd.f32 0.0, %v2471
      %v2473 = vpop.f32.mrb[0].mxu0
      %v2474 = vpop.f32.mrb[0].mxu0
      %v2475 = vadd.f32 0.0, %v2474
      %v2476 = vpop.f32.mrb[0].mxu0
      %2477 = vmatprep.mubr.bf16.mxu0 0
      %2478 = vmatmul.mubr.bf16.gmra.mrb[0].mxu0 %v2336
      %v2479 = vpop.f32.mrb[0].mxu0
      %v2480 = vadd.f32 0.0, %v2479
      %v2481 = vpop.f32.mrb[0].mxu0
      %v2482 = vpop.f32.mrb[0].mxu0
      %v2483 = vadd.f32 0.0, %v2482
      %v2484 = vpop.f32.mrb[0].mxu0
      %2485 = vmatprep.mubr.bf16.mxu0 0
      %2486 = vmatmul.mubr.bf16.gmra.mrb[0].mxu0 %v2337
      %v2487 = vpop.f32.mrb[0].mxu0
      %v2488 = vadd.f32 0.0, %v2487
      %v2489 = vpop.f32.mrb[0].mxu0
      %v2490 = vpop.f32.mrb[0].mxu0
      %v2491 = vadd.f32 0.0, %v2490
      %v2492 = vpop.f32.mrb[0].mxu0
      %2493 = vmatprep.mubr.bf16.mxu0 0
      %2494 = vmatmul.mubr.bf16.gmra.mrb[0].mxu0 %v2338
      %v2495 = vpop.f32.mrb[0].mxu0
      %v2496 = vadd.f32 0.0, %v2495
      %v2497 = vpop.f32.mrb[0].mxu0
      %v2498 = vpop.f32.mrb[0].mxu0
      %v2499 = vadd.f32 0.0, %v2498
      %v2500 = vpop.f32.mrb[0].mxu0
      %2501 = vmatprep.mubr.bf16.mxu0 0
      %2502 = vmatmul.mubr.bf16.gmra.mrb[0].mxu0 %v2339
      %v2503 = vpop.f32.mrb[0].mxu0
      %v2504 = vadd.f32 0.0, %v2503
      %v2505 = vpop.f32.mrb[0].mxu0
      %v2506 = vpop.f32.mrb[0].mxu0
      %v2507 = vadd.f32 0.0, %v2506
      %v2508 = vpop.f32.mrb[0].mxu0
      %2509 = vmatprep.mubr.bf16.mxu0 0
      %2510 = vmatmul.mubr.bf16.gmra.mrb[0].mxu0 %v2340
      %v2511 = vpop.f32.mrb[0].mxu0
      %v2512 = vadd.f32 0.0, %v2511
      %v2513 = vpop.f32.mrb[0].mxu0
      %v2514 = vpop.f32.mrb[0].mxu0
      %v2515 = vadd.f32 0.0, %v2514
      %v2516 = vpop.f32.mrb[0].mxu0
      %2517 = vmatprep.mubr.bf16.mxu0 0
      %2518 = vmatmul.mubr.bf16.gmra.mrb[0].mxu0 %v2341
      %v2519 = vpop.f32.mrb[0].mxu0
      %v2520 = vadd.f32 0.0, %v2519
      %v2521 = vpop.f32.mrb[0].mxu0
      %v2522 = vpop.f32.mrb[0].mxu0
      %v2523 = vadd.f32 0.0, %v2522
      %v2524 = vpop.f32.mrb[0].mxu0
      %2525 = vmatprep.mubr.bf16.mxu0 0
      %2526 = vmatmul.mubr.bf16.gmra.mrb[0].mxu0 %v2342
      %v2527 = vpop.f32.mrb[0].mxu0
      %v2528 = vadd.f32 0.0, %v2527
      %v2529 = vpop.f32.mrb[0].mxu0
      %v2530 = vpop.f32.mrb[0].mxu0
      %v2531 = vadd.f32 0.0, %v2530
      %v2532 = vpop.f32.mrb[0].mxu0
      %2533 = vmatprep.mubr.bf16.mxu0 0
      %2534 = vmatmul.mubr.bf16.gmra.mrb[0].mxu0 %v2343
      %v2535 = vpop.f32.mrb[0].mxu0
      %v2536 = vadd.f32 0.0, %v2535
      %v2537 = vpop.f32.mrb[0].mxu0
      %v2538 = vpop.f32.mrb[0].mxu0
      %v2539 = vadd.f32 0.0, %v2538
      %v2540 = vpop.f32.mrb[0].mxu0
      %2541 = vmatprep.mubr.bf16.mxu0 0
      %2542 = vmatmul.mubr.bf16.gmra.mrb[0].mxu0 %v2344
      %v2543 = vpop.f32.mrb[0].mxu0
      %v2544 = vadd.f32 0.0, %v2543
      %v2545 = vpop.f32.mrb[0].mxu0
      %v2546 = vpop.f32.mrb[0].mxu0
      %v2547 = vadd.f32 0.0, %v2546
      %v2548 = vpop.f32.mrb[0].mxu0
      %2549 = vmatprep.mubr.bf16.mxu0 0
      %2550 = vmatmul.mubr.bf16.gmra.mrb[0].mxu0 %v2345
      %v2551 = vpop.f32.mrb[0].mxu0
      %v2552 = vadd.f32 0.0, %v2551
      %v2553 = vpop.f32.mrb[0].mxu0
      %v2554 = vpop.f32.mrb[0].mxu0
      %v2555 = vadd.f32 0.0, %v2554
      %v2556 = vpop.f32.mrb[0].mxu0
      %2557 = vmatprep.mubr.bf16.mxu0 0
      %2558 = vmatmul.mubr.bf16.gmra.mrb[0].mxu0 %v2346
      %v2559 = vpop.f32.mrb[0].mxu0
      %v2560 = vadd.f32 0.0, %v2559
      %v2561 = vpop.f32.mrb[0].mxu0
      %v2562 = vpop.f32.mrb[0].mxu0
      %v2563 = vadd.f32 0.0, %v2562
      %v2564 = vpop.f32.mrb[0].mxu0
      %2565 = vmatprep.mubr.bf16.mxu0 0
      %2566 = vmatmul.mubr.bf16.gmra.mrb[0].mxu0 %v2347
      %v2567 = vpop.f32.mrb[0].mxu0
      %v2568 = vadd.f32 0.0, %v2567
      %v2569 = vpop.f32.mrb[0].mxu0
      %v2570 = vpop.f32.mrb[0].mxu0
      %v2571 = vadd.f32 0.0, %v2570
      %v2572 = vpop.f32.mrb[0].mxu0
      %2573 = vdwg.mxu0
      %v2574 = vadd.f32 %v2267, %v2448
      %v2575 = vadd.f32 %v2268, %v2451
      %v2576 = vadd.f32 %v2269, %v2456
      %v2577 = vadd.f32 %v2270, %v2459
      %v2578 = vadd.f32 %v2271, %v2464
      %v2579 = vadd.f32 %v2272, %v2467
      %v2580 = vadd.f32 %v2273, %v2472
      %v2581 = vadd.f32 %v2274, %v2475
      %v2582 = vadd.f32 %v2275, %v2480
      %v2583 = vadd.f32 %v2276, %v2483
      %v2584 = vadd.f32 %v2277, %v2488
      %v2585 = vadd.f32 %v2278, %v2491
      %v2586 = vadd.f32 %v2279, %v2496
      %v2587 = vadd.f32 %v2280, %v2499
      %v2588 = vadd.f32 %v2281, %v2504
      %v2589 = vadd.f32 %v2282, %v2507
      %v2590 = vadd.f32 %v2283, %v2512
      %v2591 = vadd.f32 %v2284, %v2515
      %v2592 = vadd.f32 %v2285, %v2520
      %v2593 = vadd.f32 %v2286, %v2523
      %v2594 = vadd.f32 %v2287, %v2528
      %v2595 = vadd.f32 %v2288, %v2531
      %v2596 = vadd.f32 %v2289, %v2536
      %v2597 = vadd.f32 %v2290, %v2539
      %v2598 = vadd.f32 %v2291, %v2544
      %v2599 = vadd.f32 %v2292, %v2547
      %v2600 = vadd.f32 %v2293, %v2552
      %v2601 = vadd.f32 %v2294, %v2555
      %v2602 = vadd.f32 %v2295, %v2560
      %v2603 = vadd.f32 %v2296, %v2563
      %v2604 = vadd.f32 %v2297, %v2568
      %v2605 = vadd.f32 %v2298, %v2571
      %v2606 = vld [vmem:[%s2299 + $0x8] sm:$0xff]
      %v2607 = vld [vmem:[%s2299 + $0x10] sm:$0xff]
      %v2608 = vld [vmem:[%s2299 + $0x28] sm:$0xff]
      %v2609 = vld [vmem:[%s2299 + $0x30] sm:$0xff]
      %v2610 = vld [vmem:[%s2299 + $0x48] sm:$0xff]
      %v2611 = vld [vmem:[%s2299 + $0x50] sm:$0xff]
      %v2612 = vld [vmem:[%s2299 + $0x68] sm:$0xff]
      %v2613 = vld [vmem:[%s2299 + $0x70] sm:$0xff]
      %v2614 = vld [vmem:[%s2299 + $0x88] sm:$0xff]
      %v2615 = vld [vmem:[%s2299 + $0x90] sm:$0xff]
      %v2616 = vld [vmem:[%s2299 + $0xa8] sm:$0xff]
      %v2617 = vld [vmem:[%s2299 + $0xb0] sm:$0xff]
      %v2618 = vld [vmem:[%s2299 + $0xc8] sm:$0xff]
      %v2619 = vld [vmem:[%s2299 + $0xd0] sm:$0xff]
      %v2620 = vld [vmem:[%s2299 + $0xe8] sm:$0xff]
      %v2621 = vld [vmem:[%s2299 + $0xf0] sm:$0xff]
      %v2622 = vld [vmem:[%s2299 + $0x108] sm:$0xff]
      %v2623 = vld [vmem:[%s2299 + $0x110] sm:$0xff]
      %v2624 = vld [vmem:[%s2299 + $0x128] sm:$0xff]
      %v2625 = vld [vmem:[%s2299 + $0x130] sm:$0xff]
      %v2626 = vld [vmem:[%s2299 + $0x148] sm:$0xff]
      %v2627 = vld [vmem:[%s2299 + $0x150] sm:$0xff]
      %v2628 = vld [vmem:[%s2299 + $0x168] sm:$0xff]
      %v2629 = vld [vmem:[%s2299 + $0x170] sm:$0xff]
      %v2630 = vld [vmem:[%s2299 + $0x188] sm:$0xff]
      %v2631 = vld [vmem:[%s2299 + $0x190] sm:$0xff]
      %v2632 = vld [vmem:[%s2299 + $0x1a8] sm:$0xff]
      %v2633 = vld [vmem:[%s2299 + $0x1b0] sm:$0xff]
      %v2634 = vld [vmem:[%s2299 + $0x1c8] sm:$0xff]
      %v2635 = vld [vmem:[%s2299 + $0x1d0] sm:$0xff]
      %v2636 = vld [vmem:[%s2299 + $0x1e8] sm:$0xff]
      %v2637 = vld [vmem:[%s2299 + $0x1f0] sm:$0xff]
      %v2638 = vpack.c.bf16 %v2607, %v2606
      %v2639 = vpack.c.bf16 %v2609, %v2608
      %v2640 = vpack.c.bf16 %v2611, %v2610
      %v2641 = vpack.c.bf16 %v2613, %v2612
      %v2642 = vpack.c.bf16 %v2615, %v2614
      %v2643 = vpack.c.bf16 %v2617, %v2616
      %v2644 = vpack.c.bf16 %v2619, %v2618
      %v2645 = vpack.c.bf16 %v2621, %v2620
      %v2646 = vpack.c.bf16 %v2623, %v2622
      %v2647 = vpack.c.bf16 %v2625, %v2624
      %v2648 = vpack.c.bf16 %v2627, %v2626
      %v2649 = vpack.c.bf16 %v2629, %v2628
      %v2650 = vpack.c.bf16 %v2631, %v2630
      %v2651 = vpack.c.bf16 %v2633, %v2632
      %v2652 = vpack.c.bf16 %v2635, %v2634
      %v2653 = vpack.c.bf16 %v2637, %v2636
      %s2654 = scalar_lea.vmem %s3, 448
      %v2655 = vld [vmem:[%s2654] sm:$0xf]
      %v2656 = vld [vmem:[%s2654 + $0x4] sm:$0xf]
      %v2657 = vld [vmem:[%s2654 + $0x8] sm:$0xf]
      %v2658 = vld [vmem:[%s2654 + $0xc] sm:$0xf]
      %v2659 = vld [vmem:[%s2654 + $0x10] sm:$0xf]
      %v2660 = vld [vmem:[%s2654 + $0x14] sm:$0xf]
      %v2661 = vld [vmem:[%s2654 + $0x18] sm:$0xf]
      %v2662 = vld [vmem:[%s2654 + $0x1c] sm:$0xf]
      %v2663 = vld [vmem:[%s2654 + $0x20] sm:$0xf]
      %v2664 = vld [vmem:[%s2654 + $0x24] sm:$0xf]
      %v2665 = vld [vmem:[%s2654 + $0x28] sm:$0xf]
      %v2666 = vld [vmem:[%s2654 + $0x2c] sm:$0xf]
      %v2667 = vld [vmem:[%s2654 + $0x30] sm:$0xf]
      %v2668 = vld [vmem:[%s2654 + $0x34] sm:$0xf]
      %v2669 = vld [vmem:[%s2654 + $0x38] sm:$0xf]
      %v2670 = vld [vmem:[%s2654 + $0x3c] sm:$0xf]
      %v2687 = vunpack.c.l.b16 %v2655
      %v2688 = vunpack.c.l.b16 %v2656
      %v2689 = vunpack.c.l.b16 %v2657
      %v2690 = vunpack.c.l.b16 %v2658
      %v2691 = vunpack.c.l.b16 %v2659
      %v2692 = vunpack.c.l.b16 %v2660
      %v2693 = vunpack.c.l.b16 %v2661
      %v2694 = vunpack.c.l.b16 %v2662
      %v2695 = vunpack.c.l.b16 %v2663
      %v2696 = vunpack.c.l.b16 %v2664
      %v2697 = vunpack.c.l.b16 %v2665
      %v2698 = vunpack.c.l.b16 %v2666
      %v2699 = vunpack.c.l.b16 %v2667
      %v2700 = vunpack.c.l.b16 %v2668
      %v2701 = vunpack.c.l.b16 %v2669
      %v2702 = vunpack.c.l.b16 %v2670
      %v2703 = vpack.c.b16 %v2688, %v2687
      %v2704 = vpack.c.b16 %v2690, %v2689
      %v2705 = vpack.c.b16 %v2692, %v2691
      %v2706 = vpack.c.b16 %v2694, %v2693
      %v2707 = vpack.c.b16 %v2696, %v2695
      %v2708 = vpack.c.b16 %v2698, %v2697
      %v2709 = vpack.c.b16 %v2700, %v2699
      %v2710 = vpack.c.b16 %v2702, %v2701
      %2719 = vmatprep.subr.bf16.mxu0 0
      %2720 = vmatpush1.bf16.msra.mxu0 %v2703
      %2721 = vmatprep.subr.bf16.mxu0 0
      %2722 = vmatpush1.bf16.msra.mxu0 %v2704
      %2723 = vmatprep.subr.bf16.mxu0 0
      %2724 = vmatpush1.bf16.msra.mxu0 %v2705
      %2725 = vmatprep.subr.bf16.mxu0 0
      %2726 = vmatpush1.bf16.msra.mxu0 %v2706
      %2727 = vmatprep.subr.bf16.mxu0 0
      %2728 = vmatpush1.bf16.msra.mxu0 %v2707
      %2729 = vmatprep.subr.bf16.mxu0 0
      %2730 = vmatpush1.bf16.msra.mxu0 %v2708
      %2731 = vmatprep.subr.bf16.mxu0 0
      %2732 = vmatpush1.bf16.msra.mxu0 %v2709
      %2733 = vmatprep.subr.bf16.mxu0 0
      %2734 = vmatpush1.bf16.msra.mxu0 %v2710
      %2735 = vmatprep.subr.bf16.mxu0 0
      %2736 = vmatpush1.bf16.msra.mxu0 0
      %2737 = vmatprep.subr.bf16.mxu0 0
      %2738 = vmatpush1.bf16.msra.mxu0 0
      %2739 = vmatprep.subr.bf16.mxu0 0
      %2740 = vmatpush1.bf16.msra.mxu0 0
      %2741 = vmatprep.subr.bf16.mxu0 0
      %2742 = vmatpush1.bf16.msra.mxu0 0
      %2743 = vmatprep.subr.bf16.mxu0 0
      %2744 = vmatpush1.bf16.msra.mxu0 0
      %2745 = vmatprep.subr.bf16.mxu0 0
      %2746 = vmatpush1.bf16.msra.mxu0 0
      %2747 = vmatprep.subr.bf16.mxu0 0
      %2748 = vmatpush1.bf16.msra.mxu0 0
      %2749 = vmatprep.subr.bf16.mxu0 0
      %2750 = vmatpush1.bf16.msra.mxu0 0
      %2751 = vmatprep.mubr.bf16.mxu0 0
      %2752 = vmatmul.mubr.bf16.gmra.mrb[0].mxu0 %v2638
      %v2753 = vpop.f32.mrb[0].mxu0
      %v2754 = vadd.f32 0.0, %v2753
      %v2755 = vpop.f32.mrb[0].mxu0
      %v2756 = vpop.f32.mrb[0].mxu0
      %v2757 = vadd.f32 0.0, %v2756
      %v2758 = vpop.f32.mrb[0].mxu0
      %2759 = vmatprep.mubr.bf16.mxu0 0
      %2760 = vmatmul.mubr.bf16.gmra.mrb[0].mxu0 %v2639
      %v2761 = vpop.f32.mrb[0].mxu0
      %v2762 = vadd.f32 0.0, %v2761
      %v2763 = vpop.f32.mrb[0].mxu0
      %v2764 = vpop.f32.mrb[0].mxu0
      %v2765 = vadd.f32 0.0, %v2764
      %v2766 = vpop.f32.mrb[0].mxu0
      %2767 = vmatprep.mubr.bf16.mxu0 0
      %2768 = vmatmul.mubr.bf16.gmra.mrb[0].mxu0 %v2640
      %v2769 = vpop.f32.mrb[0].mxu0
      %v2770 = vadd.f32 0.0, %v2769
      %v2771 = vpop.f32.mrb[0].mxu0
      %v2772 = vpop.f32.mrb[0].mxu0
      %v2773 = vadd.f32 0.0, %v2772
      %v2774 = vpop.f32.mrb[0].mxu0
      %2775 = vmatprep.mubr.bf16.mxu0 0
      %2776 = vmatmul.mubr.bf16.gmra.mrb[0].mxu0 %v2641
      %v2777 = vpop.f32.mrb[0].mxu0
      %v2778 = vadd.f32 0.0, %v2777
      %v2779 = vpop.f32.mrb[0].mxu0
      %v2780 = vpop.f32.mrb[0].mxu0
      %v2781 = vadd.f32 0.0, %v2780
      %v2782 = vpop.f32.mrb[0].mxu0
      %2783 = vmatprep.mubr.bf16.mxu0 0
      %2784 = vmatmul.mubr.bf16.gmra.mrb[0].mxu0 %v2642
      %v2785 = vpop.f32.mrb[0].mxu0
      %v2786 = vadd.f32 0.0, %v2785
      %v2787 = vpop.f32.mrb[0].mxu0
      %v2788 = vpop.f32.mrb[0].mxu0
      %v2789 = vadd.f32 0.0, %v2788
      %v2790 = vpop.f32.mrb[0].mxu0
      %2791 = vmatprep.mubr.bf16.mxu0 0
      %2792 = vmatmul.mubr.bf16.gmra.mrb[0].mxu0 %v2643
      %v2793 = vpop.f32.mrb[0].mxu0
      %v2794 = vadd.f32 0.0, %v2793
      %v2795 = vpop.f32.mrb[0].mxu0
      %v2796 = vpop.f32.mrb[0].mxu0
      %v2797 = vadd.f32 0.0, %v2796
      %v2798 = vpop.f32.mrb[0].mxu0
      %2799 = vmatprep.mubr.bf16.mxu0 0
      %2800 = vmatmul.mubr.bf16.gmra.mrb[0].mxu0 %v2644
      %v2801 = vpop.f32.mrb[0].mxu0
      %v2802 = vadd.f32 0.0, %v2801
      %v2803 = vpop.f32.mrb[0].mxu0
      %v2804 = vpop.f32.mrb[0].mxu0
      %v2805 = vadd.f32 0.0, %v2804
      %v2806 = vpop.f32.mrb[0].mxu0
      %2807 = vmatprep.mubr.bf16.mxu0 0
      %2808 = vmatmul.mubr.bf16.gmra.mrb[0].mxu0 %v2645
      %v2809 = vpop.f32.mrb[0].mxu0
      %v2810 = vadd.f32 0.0, %v2809
      %v2811 = vpop.f32.mrb[0].mxu0
      %v2812 = vpop.f32.mrb[0].mxu0
      %v2813 = vadd.f32 0.0, %v2812
      %v2814 = vpop.f32.mrb[0].mxu0
      %2815 = vmatprep.mubr.bf16.mxu0 0
      %2816 = vmatmul.mubr.bf16.gmra.mrb[0].mxu0 %v2646
      %v2817 = vpop.f32.mrb[0].mxu0
      %v2818 = vadd.f32 0.0, %v2817
      %v2819 = vpop.f32.mrb[0].mxu0
      %v2820 = vpop.f32.mrb[0].mxu0
      %v2821 = vadd.f32 0.0, %v2820
      %v2822 = vpop.f32.mrb[0].mxu0
      %2823 = vmatprep.mubr.bf16.mxu0 0
      %2824 = vmatmul.mubr.bf16.gmra.mrb[0].mxu0 %v2647
      %v2825 = vpop.f32.mrb[0].mxu0
      %v2826 = vadd.f32 0.0, %v2825
      %v2827 = vpop.f32.mrb[0].mxu0
      %v2828 = vpop.f32.mrb[0].mxu0
      %v2829 = vadd.f32 0.0, %v2828
      %v2830 = vpop.f32.mrb[0].mxu0
      %2831 = vmatprep.mubr.bf16.mxu0 0
      %2832 = vmatmul.mubr.bf16.gmra.mrb[0].mxu0 %v2648
      %v2833 = vpop.f32.mrb[0].mxu0
      %v2834 = vadd.f32 0.0, %v2833
      %v2835 = vpop.f32.mrb[0].mxu0
      %v2836 = vpop.f32.mrb[0].mxu0
      %v2837 = vadd.f32 0.0, %v2836
      %v2838 = vpop.f32.mrb[0].mxu0
      %2839 = vmatprep.mubr.bf16.mxu0 0
      %2840 = vmatmul.mubr.bf16.gmra.mrb[0].mxu0 %v2649
      %v2841 = vpop.f32.mrb[0].mxu0
      %v2842 = vadd.f32 0.0, %v2841
      %v2843 = vpop.f32.mrb[0].mxu0
      %v2844 = vpop.f32.mrb[0].mxu0
      %v2845 = vadd.f32 0.0, %v2844
      %v2846 = vpop.f32.mrb[0].mxu0
      %2847 = vmatprep.mubr.bf16.mxu0 0
      %2848 = vmatmul.mubr.bf16.gmra.mrb[0].mxu0 %v2650
      %v2849 = vpop.f32.mrb[0].mxu0
      %v2850 = vadd.f32 0.0, %v2849
      %v2851 = vpop.f32.mrb[0].mxu0
      %v2852 = vpop.f32.mrb[0].mxu0
      %v2853 = vadd.f32 0.0, %v2852
      %v2854 = vpop.f32.mrb[0].mxu0
      %2855 = vmatprep.mubr.bf16.mxu0 0
      %2856 = vmatmul.mubr.bf16.gmra.mrb[0].mxu0 %v2651
      %v2857 = vpop.f32.mrb[0].mxu0
      %v2858 = vadd.f32 0.0, %v2857
      %v2859 = vpop.f32.mrb[0].mxu0
      %v2860 = vpop.f32.mrb[0].mxu0
      %v2861 = vadd.f32 0.0, %v2860
      %v2862 = vpop.f32.mrb[0].mxu0
      %2863 = vmatprep.mubr.bf16.mxu0 0
      %2864 = vmatmul.mubr.bf16.gmra.mrb[0].mxu0 %v2652
      %v2865 = vpop.f32.mrb[0].mxu0
      %v2866 = vadd.f32 0.0, %v2865
      %v2867 = vpop.f32.mrb[0].mxu0
      %v2868 = vpop.f32.mrb[0].mxu0
      %v2869 = vadd.f32 0.0, %v2868
      %v2870 = vpop.f32.mrb[0].mxu0
      %2871 = vmatprep.mubr.bf16.mxu0 0
      %2872 = vmatmul.mubr.bf16.gmra.mrb[0].mxu0 %v2653
      %v2873 = vpop.f32.mrb[0].mxu0
      %v2874 = vadd.f32 0.0, %v2873
      %v2875 = vpop.f32.mrb[0].mxu0
      %v2876 = vpop.f32.mrb[0].mxu0
      %v2877 = vadd.f32 0.0, %v2876
      %v2878 = vpop.f32.mrb[0].mxu0
      %2879 = vdwg.mxu0
      %v2880 = vadd.f32 %v2574, %v2754
      %v2881 = vadd.f32 %v2575, %v2757
      %v2882 = vadd.f32 %v2576, %v2762
      %v2883 = vadd.f32 %v2577, %v2765
      %v2884 = vadd.f32 %v2578, %v2770
      %v2885 = vadd.f32 %v2579, %v2773
      %v2886 = vadd.f32 %v2580, %v2778
      %v2887 = vadd.f32 %v2581, %v2781
      %v2888 = vadd.f32 %v2582, %v2786
      %v2889 = vadd.f32 %v2583, %v2789
      %v2890 = vadd.f32 %v2584, %v2794
      %v2891 = vadd.f32 %v2585, %v2797
      %v2892 = vadd.f32 %v2586, %v2802
      %v2893 = vadd.f32 %v2587, %v2805
      %v2894 = vadd.f32 %v2588, %v2810
      %v2895 = vadd.f32 %v2589, %v2813
      %v2896 = vadd.f32 %v2590, %v2818
      %v2897 = vadd.f32 %v2591, %v2821
      %v2898 = vadd.f32 %v2592, %v2826
      %v2899 = vadd.f32 %v2593, %v2829
      %v2900 = vadd.f32 %v2594, %v2834
      %v2901 = vadd.f32 %v2595, %v2837
      %v2902 = vadd.f32 %v2596, %v2842
      %v2903 = vadd.f32 %v2597, %v2845
      %v2904 = vadd.f32 %v2598, %v2850
      %v2905 = vadd.f32 %v2599, %v2853
      %v2906 = vadd.f32 %v2600, %v2858
      %v2907 = vadd.f32 %v2601, %v2861
      %v2908 = vadd.f32 %v2602, %v2866
      %v2909 = vadd.f32 %v2603, %v2869
      %v2910 = vadd.f32 %v2604, %v2874
      %v2911 = vadd.f32 %v2605, %v2877
      %v2912 = vld [vmem:[%s2299 + $0x9] sm:$0xff]
      %v2913 = vld [vmem:[%s2299 + $0x11] sm:$0xff]
      %v2914 = vld [vmem:[%s2299 + $0x29] sm:$0xff]
      %v2915 = vld [vmem:[%s2299 + $0x31] sm:$0xff]
      %v2916 = vld [vmem:[%s2299 + $0x49] sm:$0xff]
      %v2917 = vld [vmem:[%s2299 + $0x51] sm:$0xff]
      %v2918 = vld [vmem:[%s2299 + $0x69] sm:$0xff]
      %v2919 = vld [vmem:[%s2299 + $0x71] sm:$0xff]
      %v2920 = vld [vmem:[%s2299 + $0x89] sm:$0xff]
      %v2921 = vld [vmem:[%s2299 + $0x91] sm:$0xff]
      %v2922 = vld [vmem:[%s2299 + $0xa9] sm:$0xff]
      %v2923 = vld [vmem:[%s2299 + $0xb1] sm:$0xff]
      %v2924 = vld [vmem:[%s2299 + $0xc9] sm:$0xff]
      %v2925 = vld [vmem:[%s2299 + $0xd1] sm:$0xff]
      %v2926 = vld [vmem:[%s2299 + $0xe9] sm:$0xff]
      %v2927 = vld [vmem:[%s2299 + $0xf1] sm:$0xff]
      %v2928 = vld [vmem:[%s2299 + $0x109] sm:$0xff]
      %v2929 = vld [vmem:[%s2299 + $0x111] sm:$0xff]
      %v2930 = vld [vmem:[%s2299 + $0x129] sm:$0xff]
      %v2931 = vld [vmem:[%s2299 + $0x131] sm:$0xff]
      %v2932 = vld [vmem:[%s2299 + $0x149] sm:$0xff]
      %v2933 = vld [vmem:[%s2299 + $0x151] sm:$0xff]
      %v2934 = vld [vmem:[%s2299 + $0x169] sm:$0xff]
      %v2935 = vld [vmem:[%s2299 + $0x171] sm:$0xff]
      %v2936 = vld [vmem:[%s2299 + $0x189] sm:$0xff]
      %v2937 = vld [vmem:[%s2299 + $0x191] sm:$0xff]
      %v2938 = vld [vmem:[%s2299 + $0x1a9] sm:$0xff]
      %v2939 = vld [vmem:[%s2299 + $0x1b1] sm:$0xff]
      %v2940 = vld [vmem:[%s2299 + $0x1c9] sm:$0xff]
      %v2941 = vld [vmem:[%s2299 + $0x1d1] sm:$0xff]
      %v2942 = vld [vmem:[%s2299 + $0x1e9] sm:$0xff]
      %v2943 = vld [vmem:[%s2299 + $0x1f1] sm:$0xff]
      %v2944 = vpack.c.bf16 %v2913, %v2912
      %v2945 = vpack.c.bf16 %v2915, %v2914
      %v2946 = vpack.c.bf16 %v2917, %v2916
      %v2947 = vpack.c.bf16 %v2919, %v2918
      %v2948 = vpack.c.bf16 %v2921, %v2920
      %v2949 = vpack.c.bf16 %v2923, %v2922
      %v2950 = vpack.c.bf16 %v2925, %v2924
      %v2951 = vpack.c.bf16 %v2927, %v2926
      %v2952 = vpack.c.bf16 %v2929, %v2928
      %v2953 = vpack.c.bf16 %v2931, %v2930
      %v2954 = vpack.c.bf16 %v2933, %v2932
      %v2955 = vpack.c.bf16 %v2935, %v2934
      %v2956 = vpack.c.bf16 %v2937, %v2936
      %v2957 = vpack.c.bf16 %v2939, %v2938
      %v2958 = vpack.c.bf16 %v2941, %v2940
      %v2959 = vpack.c.bf16 %v2943, %v2942
      %s2960 = scalar_lea.vmem %s3, 512
      %v2961 = vld [vmem:[%s2960] sm:$0xf]
      %v2962 = vld [vmem:[%s2960 + $0x4] sm:$0xf]
      %v2963 = vld [vmem:[%s2960 + $0x8] sm:$0xf]
      %v2964 = vld [vmem:[%s2960 + $0xc] sm:$0xf]
      %v2965 = vld [vmem:[%s2960 + $0x10] sm:$0xf]
      %v2966 = vld [vmem:[%s2960 + $0x14] sm:$0xf]
      %v2967 = vld [vmem:[%s2960 + $0x18] sm:$0xf]
      %v2968 = vld [vmem:[%s2960 + $0x1c] sm:$0xf]
      %v2969 = vld [vmem:[%s2960 + $0x20] sm:$0xf]
      %v2970 = vld [vmem:[%s2960 + $0x24] sm:$0xf]
      %v2971 = vld [vmem:[%s2960 + $0x28] sm:$0xf]
      %v2972 = vld [vmem:[%s2960 + $0x2c] sm:$0xf]
      %v2973 = vld [vmem:[%s2960 + $0x30] sm:$0xf]
      %v2974 = vld [vmem:[%s2960 + $0x34] sm:$0xf]
      %v2975 = vld [vmem:[%s2960 + $0x38] sm:$0xf]
      %v2976 = vld [vmem:[%s2960 + $0x3c] sm:$0xf]
      %v2993 = vunpack.c.l.b16 %v2961
      %v2994 = vunpack.c.l.b16 %v2962
      %v2995 = vunpack.c.l.b16 %v2963
      %v2996 = vunpack.c.l.b16 %v2964
      %v2997 = vunpack.c.l.b16 %v2965
      %v2998 = vunpack.c.l.b16 %v2966
      %v2999 = vunpack.c.l.b16 %v2967
      %v3000 = vunpack.c.l.b16 %v2968
      %v3001 = vunpack.c.l.b16 %v2969
      %v3002 = vunpack.c.l.b16 %v2970
      %v3003 = vunpack.c.l.b16 %v2971
      %v3004 = vunpack.c.l.b16 %v2972
      %v3005 = vunpack.c.l.b16 %v2973
      %v3006 = vunpack.c.l.b16 %v2974
      %v3007 = vunpack.c.l.b16 %v2975
      %v3008 = vunpack.c.l.b16 %v2976
      %v3009 = vpack.c.b16 %v2994, %v2993
      %v3010 = vpack.c.b16 %v2996, %v2995
      %v3011 = vpack.c.b16 %v2998, %v2997
      %v3012 = vpack.c.b16 %v3000, %v2999
      %v3013 = vpack.c.b16 %v3002, %v3001
      %v3014 = vpack.c.b16 %v3004, %v3003
      %v3015 = vpack.c.b16 %v3006, %v3005
      %v3016 = vpack.c.b16 %v3008, %v3007
      %3025 = vmatprep.subr.bf16.mxu0 0
      %3026 = vmatpush1.bf16.msra.mxu0 %v3009
      %3027 = vmatprep.subr.bf16.mxu0 0
      %3028 = vmatpush1.bf16.msra.mxu0 %v3010
      %3029 = vmatprep.subr.bf16.mxu0 0
      %3030 = vmatpush1.bf16.msra.mxu0 %v3011
      %3031 = vmatprep.subr.bf16.mxu0 0
      %3032 = vmatpush1.bf16.msra.mxu0 %v3012
      %3033 = vmatprep.subr.bf16.mxu0 0
      %3034 = vmatpush1.bf16.msra.mxu0 %v3013
      %3035 = vmatprep.subr.bf16.mxu0 0
      %3036 = vmatpush1.bf16.msra.mxu0 %v3014
      %3037 = vmatprep.subr.bf16.mxu0 0
      %3038 = vmatpush1.bf16.msra.mxu0 %v3015
      %3039 = vmatprep.subr.bf16.mxu0 0
      %3040 = vmatpush1.bf16.msra.mxu0 %v3016
      %3041 = vmatprep.subr.bf16.mxu0 0
      %3042 = vmatpush1.bf16.msra.mxu0 0
      %3043 = vmatprep.subr.bf16.mxu0 0
      %3044 = vmatpush1.bf16.msra.mxu0 0
      %3045 = vmatprep.subr.bf16.mxu0 0
      %3046 = vmatpush1.bf16.msra.mxu0 0
      %3047 = vmatprep.subr.bf16.mxu0 0
      %3048 = vmatpush1.bf16.msra.mxu0 0
      %3049 = vmatprep.subr.bf16.mxu0 0
      %3050 = vmatpush1.bf16.msra.mxu0 0
      %3051 = vmatprep.subr.bf16.mxu0 0
      %3052 = vmatpush1.bf16.msra.mxu0 0
      %3053 = vmatprep.subr.bf16.mxu0 0
      %3054 = vmatpush1.bf16.msra.mxu0 0
      %3055 = vmatprep.subr.bf16.mxu0 0
      %3056 = vmatpush1.bf16.msra.mxu0 0
      %3057 = vmatprep.mubr.bf16.mxu0 0
      %3058 = vmatmul.mubr.bf16.gmra.mrb[0].mxu0 %v2944
      %v3059 = vpop.f32.mrb[0].mxu0
      %v3060 = vadd.f32 0.0, %v3059
      %v3061 = vpop.f32.mrb[0].mxu0
      %v3062 = vpop.f32.mrb[0].mxu0
      %v3063 = vadd.f32 0.0, %v3062
      %v3064 = vpop.f32.mrb[0].mxu0
      %3065 = vmatprep.mubr.bf16.mxu0 0
      %3066 = vmatmul.mubr.bf16.gmra.mrb[0].mxu0 %v2945
      %v3067 = vpop.f32.mrb[0].mxu0
      %v3068 = vadd.f32 0.0, %v3067
      %v3069 = vpop.f32.mrb[0].mxu0
      %v3070 = vpop.f32.mrb[0].mxu0
      %v3071 = vadd.f32 0.0, %v3070
      %v3072 = vpop.f32.mrb[0].mxu0
      %3073 = vmatprep.mubr.bf16.mxu0 0
      %3074 = vmatmul.mubr.bf16.gmra.mrb[0].mxu0 %v2946
      %v3075 = vpop.f32.mrb[0].mxu0
      %v3076 = vadd.f32 0.0, %v3075
      %v3077 = vpop.f32.mrb[0].mxu0
      %v3078 = vpop.f32.mrb[0].mxu0
      %v3079 = vadd.f32 0.0, %v3078
      %v3080 = vpop.f32.mrb[0].mxu0
      %3081 = vmatprep.mubr.bf16.mxu0 0
      %3082 = vmatmul.mubr.bf16.gmra.mrb[0].mxu0 %v2947
      %v3083 = vpop.f32.mrb[0].mxu0
      %v3084 = vadd.f32 0.0, %v3083
      %v3085 = vpop.f32.mrb[0].mxu0
      %v3086 = vpop.f32.mrb[0].mxu0
      %v3087 = vadd.f32 0.0, %v3086
      %v3088 = vpop.f32.mrb[0].mxu0
      %3089 = vmatprep.mubr.bf16.mxu0 0
      %3090 = vmatmul.mubr.bf16.gmra.mrb[0].mxu0 %v2948
      %v3091 = vpop.f32.mrb[0].mxu0
      %v3092 = vadd.f32 0.0, %v3091
      %v3093 = vpop.f32.mrb[0].mxu0
      %v3094 = vpop.f32.mrb[0].mxu0
      %v3095 = vadd.f32 0.0, %v3094
      %v3096 = vpop.f32.mrb[0].mxu0
      %3097 = vmatprep.mubr.bf16.mxu0 0
      %3098 = vmatmul.mubr.bf16.gmra.mrb[0].mxu0 %v2949
      %v3099 = vpop.f32.mrb[0].mxu0
      %v3100 = vadd.f32 0.0, %v3099
      %v3101 = vpop.f32.mrb[0].mxu0
      %v3102 = vpop.f32.mrb[0].mxu0
      %v3103 = vadd.f32 0.0, %v3102
      %v3104 = vpop.f32.mrb[0].mxu0
      %3105 = vmatprep.mubr.bf16.mxu0 0
      %3106 = vmatmul.mubr.bf16.gmra.mrb[0].mxu0 %v2950
      %v3107 = vpop.f32.mrb[0].mxu0
      %v3108 = vadd.f32 0.0, %v3107
      %v3109 = vpop.f32.mrb[0].mxu0
      %v3110 = vpop.f32.mrb[0].mxu0
      %v3111 = vadd.f32 0.0, %v3110
      %v3112 = vpop.f32.mrb[0].mxu0
      %3113 = vmatprep.mubr.bf16.mxu0 0
      %3114 = vmatmul.mubr.bf16.gmra.mrb[0].mxu0 %v2951
      %v3115 = vpop.f32.mrb[0].mxu0
      %v3116 = vadd.f32 0.0, %v3115
      %v3117 = vpop.f32.mrb[0].mxu0
      %v3118 = vpop.f32.mrb[0].mxu0
      %v3119 = vadd.f32 0.0, %v3118
      %v3120 = vpop.f32.mrb[0].mxu0
      %3121 = vmatprep.mubr.bf16.mxu0 0
      %3122 = vmatmul.mubr.bf16.gmra.mrb[0].mxu0 %v2952
      %v3123 = vpop.f32.mrb[0].mxu0
      %v3124 = vadd.f32 0.0, %v3123
      %v3125 = vpop.f32.mrb[0].mxu0
      %v3126 = vpop.f32.mrb[0].mxu0
      %v3127 = vadd.f32 0.0, %v3126
      %v3128 = vpop.f32.mrb[0].mxu0
      %3129 = vmatprep.mubr.bf16.mxu0 0
      %3130 = vmatmul.mubr.bf16.gmra.mrb[0].mxu0 %v2953
      %v3131 = vpop.f32.mrb[0].mxu0
      %v3132 = vadd.f32 0.0, %v3131
      %v3133 = vpop.f32.mrb[0].mxu0
      %v3134 = vpop.f32.mrb[0].mxu0
      %v3135 = vadd.f32 0.0, %v3134
      %v3136 = vpop.f32.mrb[0].mxu0
      %3137 = vmatprep.mubr.bf16.mxu0 0
      %3138 = vmatmul.mubr.bf16.gmra.mrb[0].mxu0 %v2954
      %v3139 = vpop.f32.mrb[0].mxu0
      %v3140 = vadd.f32 0.0, %v3139
      %v3141 = vpop.f32.mrb[0].mxu0
      %v3142 = vpop.f32.mrb[0].mxu0
      %v3143 = vadd.f32 0.0, %v3142
      %v3144 = vpop.f32.mrb[0].mxu0
      %3145 = vmatprep.mubr.bf16.mxu0 0
      %3146 = vmatmul.mubr.bf16.gmra.mrb[0].mxu0 %v2955
      %v3147 = vpop.f32.mrb[0].mxu0
      %v3148 = vadd.f32 0.0, %v3147
      %v3149 = vpop.f32.mrb[0].mxu0
      %v3150 = vpop.f32.mrb[0].mxu0
      %v3151 = vadd.f32 0.0, %v3150
      %v3152 = vpop.f32.mrb[0].mxu0
      %3153 = vmatprep.mubr.bf16.mxu0 0
      %3154 = vmatmul.mubr.bf16.gmra.mrb[0].mxu0 %v2956
      %v3155 = vpop.f32.mrb[0].mxu0
      %v3156 = vadd.f32 0.0, %v3155
      %v3157 = vpop.f32.mrb[0].mxu0
      %v3158 = vpop.f32.mrb[0].mxu0
      %v3159 = vadd.f32 0.0, %v3158
      %v3160 = vpop.f32.mrb[0].mxu0
      %3161 = vmatprep.mubr.bf16.mxu0 0
      %3162 = vmatmul.mubr.bf16.gmra.mrb[0].mxu0 %v2957
      %v3163 = vpop.f32.mrb[0].mxu0
      %v3164 = vadd.f32 0.0, %v3163
      %v3165 = vpop.f32.mrb[0].mxu0
      %v3166 = vpop.f32.mrb[0].mxu0
      %v3167 = vadd.f32 0.0, %v3166
      %v3168 = vpop.f32.mrb[0].mxu0
      %3169 = vmatprep.mubr.bf16.mxu0 0
      %3170 = vmatmul.mubr.bf16.gmra.mrb[0].mxu0 %v2958
      %v3171 = vpop.f32.mrb[0].mxu0
      %v3172 = vadd.f32 0.0, %v3171
      %v3173 = vpop.f32.mrb[0].mxu0
      %v3174 = vpop.f32.mrb[0].mxu0
      %v3175 = vadd.f32 0.0, %v3174
      %v3176 = vpop.f32.mrb[0].mxu0
      %3177 = vmatprep.mubr.bf16.mxu0 0
      %3178 = vmatmul.mubr.bf16.gmra.mrb[0].mxu0 %v2959
      %v3179 = vpop.f32.mrb[0].mxu0
      %v3180 = vadd.f32 0.0, %v3179
      %v3181 = vpop.f32.mrb[0].mxu0
      %v3182 = vpop.f32.mrb[0].mxu0
      %v3183 = vadd.f32 0.0, %v3182
      %v3184 = vpop.f32.mrb[0].mxu0
      %3185 = vdwg.mxu0
      %v3186 = vadd.f32 %v2880, %v3060
      %v3187 = vadd.f32 %v2881, %v3063
      %v3188 = vadd.f32 %v2882, %v3068
      %v3189 = vadd.f32 %v2883, %v3071
      %v3190 = vadd.f32 %v2884, %v3076
      %v3191 = vadd.f32 %v2885, %v3079
      %v3192 = vadd.f32 %v2886, %v3084
      %v3193 = vadd.f32 %v2887, %v3087
      %v3194 = vadd.f32 %v2888, %v3092
      %v3195 = vadd.f32 %v2889, %v3095
      %v3196 = vadd.f32 %v2890, %v3100
      %v3197 = vadd.f32 %v2891, %v3103
      %v3198 = vadd.f32 %v2892, %v3108
      %v3199 = vadd.f32 %v2893, %v3111
      %v3200 = vadd.f32 %v2894, %v3116
      %v3201 = vadd.f32 %v2895, %v3119
      %v3202 = vadd.f32 %v2896, %v3124
      %v3203 = vadd.f32 %v2897, %v3127
      %v3204 = vadd.f32 %v2898, %v3132
      %v3205 = vadd.f32 %v2899, %v3135
      %v3206 = vadd.f32 %v2900, %v3140
      %v3207 = vadd.f32 %v2901, %v3143
      %v3208 = vadd.f32 %v2902, %v3148
      %v3209 = vadd.f32 %v2903, %v3151
      %v3210 = vadd.f32 %v2904, %v3156
      %v3211 = vadd.f32 %v2905, %v3159
      %v3212 = vadd.f32 %v2906, %v3164
      %v3213 = vadd.f32 %v2907, %v3167
      %v3214 = vadd.f32 %v2908, %v3172
      %v3215 = vadd.f32 %v2909, %v3175
      %v3216 = vadd.f32 %v2910, %v3180
      %v3217 = vadd.f32 %v2911, %v3183
      %v3218 = vld [vmem:[%s4] sm:$0x1]
      %v3220 = vlaneseq
      %v3221 = vshrl.u32 %v3220, 7
      %v3222 = vsub.s32 0, %v3221
      %v3223 = vrot.slane %v3218, %v3222
      %v3225 = vadd.f32 %v3186, %v3223
      %v3226 = vadd.f32 %v3187, %v3223
      %v3227 = vadd.f32 %v3188, %v3223
      %v3228 = vadd.f32 %v3189, %v3223
      %v3229 = vadd.f32 %v3190, %v3223
      %v3230 = vadd.f32 %v3191, %v3223
      %v3231 = vadd.f32 %v3192, %v3223
      %v3232 = vadd.f32 %v3193, %v3223
      %v3233 = vadd.f32 %v3194, %v3223
      %v3234 = vadd.f32 %v3195, %v3223
      %v3235 = vadd.f32 %v3196, %v3223
      %v3236 = vadd.f32 %v3197, %v3223
      %v3237 = vadd.f32 %v3198, %v3223
      %v3238 = vadd.f32 %v3199, %v3223
      %v3239 = vadd.f32 %v3200, %v3223
      %v3240 = vadd.f32 %v3201, %v3223
      %v3241 = vadd.f32 %v3202, %v3223
      %v3242 = vadd.f32 %v3203, %v3223
      %v3243 = vadd.f32 %v3204, %v3223
      %v3244 = vadd.f32 %v3205, %v3223
      %v3245 = vadd.f32 %v3206, %v3223
      %v3246 = vadd.f32 %v3207, %v3223
      %v3247 = vadd.f32 %v3208, %v3223
      %v3248 = vadd.f32 %v3209, %v3223
      %v3249 = vadd.f32 %v3210, %v3223
      %v3250 = vadd.f32 %v3211, %v3223
      %v3251 = vadd.f32 %v3212, %v3223
      %v3252 = vadd.f32 %v3213, %v3223
      %v3253 = vadd.f32 %v3214, %v3223
      %v3254 = vadd.f32 %v3215, %v3223
      %v3255 = vadd.f32 %v3216, %v3223
      %v3256 = vadd.f32 %v3217, %v3223
      %3257 = vst [vmem:[%s273] sm:$0xff] %v3225
      %3258 = vst [vmem:[%s273 + $0x8] sm:$0xff] %v3226
      %3259 = vst [vmem:[%s273 + $0x10] sm:$0xff] %v3227
      %3260 = vst [vmem:[%s273 + $0x18] sm:$0xff] %v3228
      %3261 = vst [vmem:[%s273 + $0x20] sm:$0xff] %v3229
      %3262 = vst [vmem:[%s273 + $0x28] sm:$0xff] %v3230
      %3263 = vst [vmem:[%s273 + $0x30] sm:$0xff] %v3231
      %3264 = vst [vmem:[%s273 + $0x38] sm:$0xff] %v3232
      %3265 = vst [vmem:[%s273 + $0x40] sm:$0xff] %v3233
      %3266 = vst [vmem:[%s273 + $0x48] sm:$0xff] %v3234
      %3267 = vst [vmem:[%s273 + $0x50] sm:$0xff] %v3235
      %3268 = vst [vmem:[%s273 + $0x58] sm:$0xff] %v3236
      %3269 = vst [vmem:[%s273 + $0x60] sm:$0xff] %v3237
      %3270 = vst [vmem:[%s273 + $0x68] sm:$0xff] %v3238
      %3271 = vst [vmem:[%s273 + $0x70] sm:$0xff] %v3239
      %3272 = vst [vmem:[%s273 + $0x78] sm:$0xff] %v3240
      %3273 = vst [vmem:[%s273 + $0x80] sm:$0xff] %v3241
      %3274 = vst [vmem:[%s273 + $0x88] sm:$0xff] %v3242
      %3275 = vst [vmem:[%s273 + $0x90] sm:$0xff] %v3243
      %3276 = vst [vmem:[%s273 + $0x98] sm:$0xff] %v3244
      %3277 = vst [vmem:[%s273 + $0xa0] sm:$0xff] %v3245
      %3278 = vst [vmem:[%s273 + $0xa8] sm:$0xff] %v3246
      %3279 = vst [vmem:[%s273 + $0xb0] sm:$0xff] %v3247
      %3280 = vst [vmem:[%s273 + $0xb8] sm:$0xff] %v3248
      %3281 = vst [vmem:[%s273 + $0xc0] sm:$0xff] %v3249
      %3282 = vst [vmem:[%s273 + $0xc8] sm:$0xff] %v3250
      %3283 = vst [vmem:[%s273 + $0xd0] sm:$0xff] %v3251
      %3284 = vst [vmem:[%s273 + $0xd8] sm:$0xff] %v3252
      %3285 = vst [vmem:[%s273 + $0xe0] sm:$0xff] %v3253
      %3286 = vst [vmem:[%s273 + $0xe8] sm:$0xff] %v3254
      %3287 = vst [vmem:[%s273 + $0xf0] sm:$0xff] %v3255
      %3288 = vst [vmem:[%s273 + $0xf8] sm:$0xff] %v3256
      %v3289 = vld [vmem:[%s6] sm:$0x1]
      %v3290 = vadd.f32 %v3225, %v3226
      %v3291 = vadd.f32 %v3290, %v3227
      %v3292 = vadd.f32 %v3291, %v3228
      %v3293 = vadd.f32 %v3292, %v3229
      %v3294 = vadd.f32 %v3293, %v3230
      %v3295 = vadd.f32 %v3294, %v3231
      %v3296 = vadd.f32 %v3295, %v3232
      %v3297 = vadd.f32 %v3296, %v3233
      %v3298 = vadd.f32 %v3297, %v3234
      %v3299 = vadd.f32 %v3298, %v3235
      %v3300 = vadd.f32 %v3299, %v3236
      %v3301 = vadd.f32 %v3300, %v3237
      %v3302 = vadd.f32 %v3301, %v3238
      %v3303 = vadd.f32 %v3302, %v3239
      %v3304 = vadd.f32 %v3303, %v3240
      %v3305 = vadd.f32 %v3304, %v3241
      %v3306 = vadd.f32 %v3305, %v3242
      %v3307 = vadd.f32 %v3306, %v3243
      %v3308 = vadd.f32 %v3307, %v3244
      %v3309 = vadd.f32 %v3308, %v3245
      %v3310 = vadd.f32 %v3309, %v3246
      %v3311 = vadd.f32 %v3310, %v3247
      %v3312 = vadd.f32 %v3311, %v3248
      %v3313 = vadd.f32 %v3312, %v3249
      %v3314 = vadd.f32 %v3313, %v3250
      %v3315 = vadd.f32 %v3314, %v3251
      %v3316 = vadd.f32 %v3315, %v3252
      %v3317 = vadd.f32 %v3316, %v3253
      %v3318 = vadd.f32 %v3317, %v3254
      %v3319 = vadd.f32 %v3318, %v3255
      %v3320 = vadd.f32 %v3319, %v3256
      %v3321 = vrot.slane %v3320, 4
      %v3322 = vadd.f32 %v3320, %v3321
      %v3323 = vrot.slane %v3322, 2
      %v3324 = vadd.f32 %v3322, %v3323
      %v3325 = vrot.slane %v3324, 1
      %v3326 = vadd.f32 %v3324, %v3325
      %v3327 = vadd.f32 %v3289, %v3326
      %3328 = vst [vmem:[%s6] sm:$0x1] %v3327
      %v3329 = vld [vmem:[%s7] sm:$0x1]
      %v3330 = vmul.f32 %v3225, %v3225
      %v3331 = vmul.f32 %v3226, %v3226
      %v3332 = vmul.f32 %v3227, %v3227
      %v3333 = vmul.f32 %v3228, %v3228
      %v3334 = vmul.f32 %v3229, %v3229
      %v3335 = vmul.f32 %v3230, %v3230
      %v3336 = vmul.f32 %v3231, %v3231
      %v3337 = vmul.f32 %v3232, %v3232
      %v3338 = vmul.f32 %v3233, %v3233
      %v3339 = vmul.f32 %v3234, %v3234
      %v3340 = vmul.f32 %v3235, %v3235
      %v3341 = vmul.f32 %v3236, %v3236
      %v3342 = vmul.f32 %v3237, %v3237
      %v3343 = vmul.f32 %v3238, %v3238
      %v3344 = vmul.f32 %v3239, %v3239
      %v3345 = vmul.f32 %v3240, %v3240
      %v3346 = vmul.f32 %v3241, %v3241
      %v3347 = vmul.f32 %v3242, %v3242
      %v3348 = vmul.f32 %v3243, %v3243
      %v3349 = vmul.f32 %v3244, %v3244
      %v3350 = vmul.f32 %v3245, %v3245
      %v3351 = vmul.f32 %v3246, %v3246
      %v3352 = vmul.f32 %v3247, %v3247
      %v3353 = vmul.f32 %v3248, %v3248
      %v3354 = vmul.f32 %v3249, %v3249
      %v3355 = vmul.f32 %v3250, %v3250
      %v3356 = vmul.f32 %v3251, %v3251
      %v3357 = vmul.f32 %v3252, %v3252
      %v3358 = vmul.f32 %v3253, %v3253
      %v3359 = vmul.f32 %v3254, %v3254
      %v3360 = vmul.f32 %v3255, %v3255
      %v3361 = vmul.f32 %v3256, %v3256
      %v3362 = vadd.f32 %v3330, %v3331
      %v3363 = vadd.f32 %v3362, %v3332
      %v3364 = vadd.f32 %v3363, %v3333
      %v3365 = vadd.f32 %v3364, %v3334
      %v3366 = vadd.f32 %v3365, %v3335
      %v3367 = vadd.f32 %v3366, %v3336
      %v3368 = vadd.f32 %v3367, %v3337
      %v3369 = vadd.f32 %v3368, %v3338
      %v3370 = vadd.f32 %v3369, %v3339
      %v3371 = vadd.f32 %v3370, %v3340
      %v3372 = vadd.f32 %v3371, %v3341
      %v3373 = vadd.f32 %v3372, %v3342
      %v3374 = vadd.f32 %v3373, %v3343
      %v3375 = vadd.f32 %v3374, %v3344
      %v3376 = vadd.f32 %v3375, %v3345
      %v3377 = vadd.f32 %v3376, %v3346
      %v3378 = vadd.f32 %v3377, %v3347
      %v3379 = vadd.f32 %v3378, %v3348
      %v3380 = vadd.f32 %v3379, %v3349
      %v3381 = vadd.f32 %v3380, %v3350
      %v3382 = vadd.f32 %v3381, %v3351
      %v3383 = vadd.f32 %v3382, %v3352
      %v3384 = vadd.f32 %v3383, %v3353
      %v3385 = vadd.f32 %v3384, %v3354
      %v3386 = vadd.f32 %v3385, %v3355
      %v3387 = vadd.f32 %v3386, %v3356
      %v3388 = vadd.f32 %v3387, %v3357
      %v3389 = vadd.f32 %v3388, %v3358
      %v3390 = vadd.f32 %v3389, %v3359
      %v3391 = vadd.f32 %v3390, %v3360
      %v3392 = vadd.f32 %v3391, %v3361
      %v3393 = vrot.slane %v3392, 4
      %v3394 = vadd.f32 %v3392, %v3393
      %v3395 = vrot.slane %v3394, 2
      %v3396 = vadd.f32 %v3394, %v3395
      %v3397 = vrot.slane %v3396, 1
      %v3398 = vadd.f32 %v3396, %v3397
      %v3399 = vadd.f32 %v3329, %v3398
      %3400 = vst [vmem:[%s7] sm:$0x1] %v3399
      %p3401 = scmp.lt.s32.totalorder %s19, 1
      %s3402 = scalar_select %p3401, %s19, 1
      %s3403 = smul.addr %s3402, 32
      %s3404 = smul.addr %s3403, 8
      %s3405 = scalar_lea.vmem %s5, %s3404
      // Predicated region
      $region45: #{res_block.4} parent=39 // pred_check
        %p3406 = pneg %p147
      $region46: #{res_block.4} parent=39 // pred_check_branch
        %3408 = sbr.rel (%p3406) target = $region48
      $region47: #{res_block.4} parent=39 // pred_region
        _
      $region48: #{res_block.4} parent=39 // pred_fallthru
        _
      // Predicated region
      $region49: #{res_block.4} parent=39 // pred_check
        %p3409 = pneg %p168
      $region50: #{res_block.4} parent=39 // pred_check_branch
        %3411 = sbr.rel (%p3409) target = $region52
      $region51: #{res_block.4} parent=39 // pred_region
        _
      $region52: #{res_block.4} parent=39 // pred_fallthru
        _
      // Predicated region
      $region53: #{res_block.4} parent=39 // pred_check
        %p3412 = pneg %p189
      $region54: #{res_block.4} parent=39 // pred_check_branch
        %3414 = sbr.rel (%p3412) target = $region56
      $region55: #{res_block.4} parent=39 // pred_region
        _
      $region56: #{res_block.4} parent=39 // pred_fallthru
        _
      // Predicated region
      $region57: #{res_block.4} parent=39 // pred_check
        %p3415 = pneg %p168
      $region58: #{res_block.4} parent=39 // pred_check_branch
        %3417 = sbr.rel (%p3415) target = $region60
      $region59: #{res_block.4} parent=39 // pred_region
        _
      $region60: #{res_block.4} parent=39 // pred_fallthru
        _
      // Predicated region
      $region61: #{res_block.4} parent=39 // pred_check
        %p3418 = pneg %p189
      $region62: #{res_block.4} parent=39 // pred_check_branch
        %3420 = sbr.rel (%p3418) target = $region64
      $region63: #{res_block.4} parent=39 // pred_region
        _
      $region64: #{res_block.4} parent=39 // pred_fallthru
        _
    $region40: #{res_block.4} parent=5 // pred_fallthru
      _
    %p3421 = scmp.le.s32.totalorder 2, %s14
    // Predicated region
    $region65: #{res_block.4} parent=5 // pred_check
      %p3422 = pneg %p3421
    $region66: #{res_block.4} parent=5 // pred_check_branch
      %3424 = sbr.rel (%p3422) target = $region68
    $region67: #{res_block.4} parent=5 // pred_region
      %s3425 = ssub.s32 %s14, 2
      // Predicated region
      $region69: #{res_block.4} parent=67 // pred_check
        %p3426 = pneg %p153
      $region70: #{res_block.4} parent=67 // pred_check_branch
        %3428 = sbr.rel (%p3426) target = $region72
      $region71: #{res_block.4} parent=67 // pred_region
        %p3429 = scmp.lt.s32.totalorder %s20, 1
        %s3430 = scalar_select %p3429, %s20, 1
        %s3431 = smul.addr %s3430, 32
        %s3432 = smul.addr %s3431, 8
        %s3433 = scalar_lea.vmem %s5, %s3432
      $region72: #{res_block.4} parent=67 // pred_fallthru
        _
    $region68: #{res_block.4} parent=5 // pred_fallthru
      _
  $region6: #{res_block.4} parent=0 // loop_footer
    %s18 = sadd.s32 1, %s14
  $region7: #{res_block.4} parent=0 // loop_footer_branch
    %13 = sbr.rel target = $region3
  $region8: #{res_block.4} parent=0 // loop_exit
    _

// kernel: res_block.3
$region0: #{res_block.3}
  #allocation0 [shape = 'u32[]', space=smem, size = 0x4, offset = 0x4, fixed_abs, tag = 'smem constant byte address 0x4 - core index']
  #allocation1 [shape = 'u32[144,128]{1,0:T(1,128)}', space=vmem, size = 0x12000, scoped, tag = 'internal scratch']
  %s0 = inlined_call_operand.vmem [shape: f32[2,18,18,128], index: 0, kind: input, shape index: {}]
  %s1 = inlined_call_operand.vmem [shape: bf16[9,128,128], index: 1, kind: input, shape index: {}]
  %s2 = inlined_call_operand.vmem [shape: f32[1,128], index: 2, kind: input, shape index: {}]
  %s3 = inlined_call_operand.vmem [shape: bf16[128,128], index: 3, kind: input, shape index: {}]
  %s4 = inlined_call_operand.vmem [shape: f32[1,128], index: 4, kind: input, shape index: {}]
  %s5 = inlined_call_operand.vmem [shape: f32[2,16,16,128], index: 5, kind: output, shape index: {0}]
  %s6 = inlined_call_operand.vmem [shape: f32[2,16,16,128], index: 6, kind: output, shape index: {1}]
  %s7 = inlined_call_operand.vmem [shape: f32[1,128], index: 7, kind: output, shape index: {2}]
  %s8 = inlined_call_operand.vmem [shape: f32[1,128], index: 8, kind: output, shape index: {3}]
  %s9 = inlined_call_operand.vmem [shape: f32[1,128], index: 9, kind: output, shape index: {4}]
  %s10 = inlined_call_operand.vmem [shape: f32[1,128], index: 10, kind: output, shape index: {5}]
  %11 = xla_tuple %s5, %s6, %s7, %s8, %s9, %s10
  %s12 = sld [smem:[#allocation0]]
  $region97: #{res_block.3} parent=0
    _
  %s14 = ssub.s32 1, %s12
  %s15 = scalar_select 0, %s14, %s12
  loop: start=0, step=1, limit=4
  $region2: #{res_block.3} parent=0 // loop_pre_header
    _
  $region3: #{res_block.3} parent=0 // loop_header
    %s17 = sphi 0, %s21
    %p18 = scmp.ge.s32.totalorder %s17, 4
    %s27 = sphi 0, %s29
    %s30 = sphi 0, %s27
    %s31 = sphi 0, %s30
    %s47 = sphi 0, %s31
    %s51 = sphi 0, %s51
    %s53 = sphi 0, %s51
    %s54 = sphi 0, %s53
    %s68 = sphi 0, %s54
    %s72 = sphi 0, %s72
    %s74 = sphi 0, %s72
    %s75 = sphi 0, %s74
    %s89 = sphi 0, %s75
    %s93 = sphi 0, %s93
    %s95 = sphi 0, %s93
    %s96 = sphi 0, %s95
    %s110 = sphi 0, %s96
    %s114 = sphi 0, %s114
    %s116 = sphi 0, %s114
    %s117 = sphi 0, %s116
    %s131 = sphi 0, %s117
    %s137 = sphi 0, %s139
    %s140 = sphi 0, %s137
    %s141 = sphi 0, %s140
    %s157 = sphi 0, %s141
    %s163 = sphi 0, %s165
    %s166 = sphi 0, %s163
    %s167 = sphi 0, %s166
    %s183 = sphi 0, %s167
    %s187 = sphi 0, %s187
    %s189 = sphi 0, %s187
    %s190 = sphi 0, %s189
    %s204 = sphi 0, %s190
    %s208 = sphi 0, %s208
    %s210 = sphi 0, %s208
    %s211 = sphi 0, %s210
    %s225 = sphi 0, %s211
    %s229 = sphi 0, %s229
    %s231 = sphi 0, %s229
    %s232 = sphi 0, %s231
    %s246 = sphi 0, %s232
    %s250 = sphi 0, %s250
    %s252 = sphi 0, %s250
    %s253 = sphi 0, %s252
    %s267 = sphi 0, %s253
  $region4: #{res_block.3} parent=0 // loop_header_branch
    %20 = sbr.rel (%p18) target = $region8
  $region5: #{res_block.3} parent=0 // loop_body
    %s22 = ssub.s32 %s17, 1
    %s23 = ssub.s32 %s17, 2
    %s24 = sadd.s32 %s17, 1
    %s25 = ssub.s32 %s17, %s24
    %p26 = scmp.eq.s32.totalorder %s25, 0
    %s28 = sadd.s32 %s27, 1
    %s29 = scalar_select %p26, %s27, %s28
    %p32 = pneg %p26
    %p33 = scmp.eq.s32.totalorder %s17, 1
    %p34 = por %p32, %p33
    %p35 = scmp.ne.s32.totalorder %s27, %s30
    %p36 = scmp.eq.s32.totalorder %s17, 0
    %p37 = por %p35, %p36
    %p38 = scmp.ne.s32.totalorder %s27, %s30
    %p39 = scmp.eq.s32.totalorder %s22, 1
    %p40 = por %p38, %p39
    %p41 = scmp.ne.s32.totalorder %s30, %s31
    %p42 = scmp.eq.s32.totalorder %s22, 0
    %p43 = por %p41, %p42
    %p44 = scmp.ne.s32.totalorder %s30, %s31
    %p45 = scmp.eq.s32.totalorder %s23, 1
    %p46 = por %p44, %p45
    %p48 = scmp.ne.s32.totalorder %s31, %s47
    %p49 = scmp.eq.s32.totalorder %s23, 0
    %p50 = por %p48, %p49
    %s52 = sadd.s32 %s51, 1
    %p55 = scmp.eq.s32.totalorder %s17, 1
    %p56 = scmp.ne.s32.totalorder %s51, %s53
    %p57 = scmp.eq.s32.totalorder %s17, 0
    %p58 = por %p56, %p57
    %p59 = scmp.ne.s32.totalorder %s51, %s53
    %p60 = scmp.eq.s32.totalorder %s22, 1
    %p61 = por %p59, %p60
    %p62 = scmp.ne.s32.totalorder %s53, %s54
    %p63 = scmp.eq.s32.totalorder %s22, 0
    %p64 = por %p62, %p63
    %p65 = scmp.ne.s32.totalorder %s53, %s54
    %p66 = scmp.eq.s32.totalorder %s23, 1
    %p67 = por %p65, %p66
    %p69 = scmp.ne.s32.totalorder %s54, %s68
    %p70 = scmp.eq.s32.totalorder %s23, 0
    %p71 = por %p69, %p70
    %s73 = sadd.s32 %s72, 1
    %p76 = scmp.eq.s32.totalorder %s17, 1
    %p77 = scmp.ne.s32.totalorder %s72, %s74
    %p78 = scmp.eq.s32.totalorder %s17, 0
    %p79 = por %p77, %p78
    %p80 = scmp.ne.s32.totalorder %s72, %s74
    %p81 = scmp.eq.s32.totalorder %s22, 1
    %p82 = por %p80, %p81
    %p83 = scmp.ne.s32.totalorder %s74, %s75
    %p84 = scmp.eq.s32.totalorder %s22, 0
    %p85 = por %p83, %p84
    %p86 = scmp.ne.s32.totalorder %s74, %s75
    %p87 = scmp.eq.s32.totalorder %s23, 1
    %p88 = por %p86, %p87
    %p90 = scmp.ne.s32.totalorder %s75, %s89
    %p91 = scmp.eq.s32.totalorder %s23, 0
    %p92 = por %p90, %p91
    %s94 = sadd.s32 %s93, 1
    %p97 = scmp.eq.s32.totalorder %s17, 1
    %p98 = scmp.ne.s32.totalorder %s93, %s95
    %p99 = scmp.eq.s32.totalorder %s17, 0
    %p100 = por %p98, %p99
    %p101 = scmp.ne.s32.totalorder %s93, %s95
    %p102 = scmp.eq.s32.totalorder %s22, 1
    %p103 = por %p101, %p102
    %p104 = scmp.ne.s32.totalorder %s95, %s96
    %p105 = scmp.eq.s32.totalorder %s22, 0
    %p106 = por %p104, %p105
    %p107 = scmp.ne.s32.totalorder %s95, %s96
    %p108 = scmp.eq.s32.totalorder %s23, 1
    %p109 = por %p107, %p108
    %p111 = scmp.ne.s32.totalorder %s96, %s110
    %p112 = scmp.eq.s32.totalorder %s23, 0
    %p113 = por %p111, %p112
    %s115 = sadd.s32 %s114, 1
    %p118 = scmp.eq.s32.totalorder %s17, 1
    %p119 = scmp.ne.s32.totalorder %s114, %s116
    %p120 = scmp.eq.s32.totalorder %s17, 0
    %p121 = por %p119, %p120
    %p122 = scmp.ne.s32.totalorder %s114, %s116
    %p123 = scmp.eq.s32.totalorder %s22, 1
    %p124 = por %p122, %p123
    %p125 = scmp.ne.s32.totalorder %s116, %s117
    %p126 = scmp.eq.s32.totalorder %s22, 0
    %p127 = por %p125, %p126
    %p128 = scmp.ne.s32.totalorder %s116, %s117
    %p129 = scmp.eq.s32.totalorder %s23, 1
    %p130 = por %p128, %p129
    %p132 = scmp.ne.s32.totalorder %s117, %s131
    %p133 = scmp.eq.s32.totalorder %s23, 0
    %p134 = por %p132, %p133
    %s135 = ssub.s32 %s17, %s24
    %p136 = scmp.eq.s32.totalorder %s135, 0
    %s138 = sadd.s32 %s137, 1
    %s139 = scalar_select %p136, %s137, %s138
    %p142 = pneg %p136
    %p143 = scmp.eq.s32.totalorder %s17, 1
    %p144 = por %p142, %p143
    %p145 = scmp.ne.s32.totalorder %s137, %s140
    %p146 = scmp.eq.s32.totalorder %s17, 0
    %p147 = por %p145, %p146
    %p148 = scmp.ne.s32.totalorder %s137, %s140
    %p149 = scmp.eq.s32.totalorder %s22, 1
    %p150 = por %p148, %p149
    %p151 = scmp.ne.s32.totalorder %s140, %s141
    %p152 = scmp.eq.s32.totalorder %s22, 0
    %p153 = por %p151, %p152
    %p154 = scmp.ne.s32.totalorder %s140, %s141
    %p155 = scmp.eq.s32.totalorder %s23, 1
    %p156 = por %p154, %p155
    %p158 = scmp.ne.s32.totalorder %s141, %s157
    %p159 = scmp.eq.s32.totalorder %s23, 0
    %p160 = por %p158, %p159
    %s161 = ssub.s32 %s17, %s24
    %p162 = scmp.eq.s32.totalorder %s161, 0
    %s164 = sadd.s32 %s163, 1
    %s165 = scalar_select %p162, %s163, %s164
    %p168 = pneg %p162
    %p169 = scmp.eq.s32.totalorder %s17, 1
    %p170 = por %p168, %p169
    %p171 = scmp.ne.s32.totalorder %s163, %s166
    %p172 = scmp.eq.s32.totalorder %s17, 0
    %p173 = por %p171, %p172
    %p174 = scmp.ne.s32.totalorder %s163, %s166
    %p175 = scmp.eq.s32.totalorder %s22, 1
    %p176 = por %p174, %p175
    %p177 = scmp.ne.s32.totalorder %s166, %s167
    %p178 = scmp.eq.s32.totalorder %s22, 0
    %p179 = por %p177, %p178
    %p180 = scmp.ne.s32.totalorder %s166, %s167
    %p181 = scmp.eq.s32.totalorder %s23, 1
    %p182 = por %p180, %p181
    %p184 = scmp.ne.s32.totalorder %s167, %s183
    %p185 = scmp.eq.s32.totalorder %s23, 0
    %p186 = por %p184, %p185
    %s188 = sadd.s32 %s187, 1
    %p191 = scmp.eq.s32.totalorder %s17, 1
    %p192 = scmp.ne.s32.totalorder %s187, %s189
    %p193 = scmp.eq.s32.totalorder %s17, 0
    %p194 = por %p192, %p193
    %p195 = scmp.ne.s32.totalorder %s187, %s189
    %p196 = scmp.eq.s32.totalorder %s22, 1
    %p197 = por %p195, %p196
    %p198 = scmp.ne.s32.totalorder %s189, %s190
    %p199 = scmp.eq.s32.totalorder %s22, 0
    %p200 = por %p198, %p199
    %p201 = scmp.ne.s32.totalorder %s189, %s190
    %p202 = scmp.eq.s32.totalorder %s23, 1
    %p203 = por %p201, %p202
    %p205 = scmp.ne.s32.totalorder %s190, %s204
    %p206 = scmp.eq.s32.totalorder %s23, 0
    %p207 = por %p205, %p206
    %s209 = sadd.s32 %s208, 1
    %p212 = scmp.eq.s32.totalorder %s17, 1
    %p213 = scmp.ne.s32.totalorder %s208, %s210
    %p214 = scmp.eq.s32.totalorder %s17, 0
    %p215 = por %p213, %p214
    %p216 = scmp.ne.s32.totalorder %s208, %s210
    %p217 = scmp.eq.s32.totalorder %s22, 1
    %p218 = por %p216, %p217
    %p219 = scmp.ne.s32.totalorder %s210, %s211
    %p220 = scmp.eq.s32.totalorder %s22, 0
    %p221 = por %p219, %p220
    %p222 = scmp.ne.s32.totalorder %s210, %s211
    %p223 = scmp.eq.s32.totalorder %s23, 1
    %p224 = por %p222, %p223
    %p226 = scmp.ne.s32.totalorder %s211, %s225
    %p227 = scmp.eq.s32.totalorder %s23, 0
    %p228 = por %p226, %p227
    %s230 = sadd.s32 %s229, 1
    %p233 = scmp.eq.s32.totalorder %s17, 1
    %p234 = scmp.ne.s32.totalorder %s229, %s231
    %p235 = scmp.eq.s32.totalorder %s17, 0
    %p236 = por %p234, %p235
    %p237 = scmp.ne.s32.totalorder %s229, %s231
    %p238 = scmp.eq.s32.totalorder %s22, 1
    %p239 = por %p237, %p238
    %p240 = scmp.ne.s32.totalorder %s231, %s232
    %p241 = scmp.eq.s32.totalorder %s22, 0
    %p242 = por %p240, %p241
    %p243 = scmp.ne.s32.totalorder %s231, %s232
    %p244 = scmp.eq.s32.totalorder %s23, 1
    %p245 = por %p243, %p244
    %p247 = scmp.ne.s32.totalorder %s232, %s246
    %p248 = scmp.eq.s32.totalorder %s23, 0
    %p249 = por %p247, %p248
    %s251 = sadd.s32 %s250, 1
    %p254 = scmp.eq.s32.totalorder %s17, 1
    %p255 = scmp.ne.s32.totalorder %s250, %s252
    %p256 = scmp.eq.s32.totalorder %s17, 0
    %p257 = por %p255, %p256
    %p258 = scmp.ne.s32.totalorder %s250, %s252
    %p259 = scmp.eq.s32.totalorder %s22, 1
    %p260 = por %p258, %p259
    %p261 = scmp.ne.s32.totalorder %s252, %s253
    %p262 = scmp.eq.s32.totalorder %s22, 0
    %p263 = por %p261, %p262
    %p264 = scmp.ne.s32.totalorder %s252, %s253
    %p265 = scmp.eq.s32.totalorder %s23, 1
    %p266 = por %p264, %p265
    %p268 = scmp.ne.s32.totalorder %s253, %s267
    %p269 = scmp.eq.s32.totalorder %s23, 0
    %p270 = por %p268, %p269
    %p271 = scmp.le.s32.totalorder 1, %s17
    %p272 = scmp.lt.s32.totalorder %s17, 3
    %p273 = pnand %p271, %p272
    %p274 = pneg %p273
    // Predicated region
    $region9: #{res_block.3} parent=5 // pred_check
      _
    $region10: #{res_block.3} parent=5 // pred_check_branch
      %276 = sbr.rel (%p273) target = $region12
    $region11: #{res_block.3} parent=5 // pred_region
      %s277 = ssub.s32 %s17, 1
      // Predicated region
      $region13: #{res_block.3} parent=11 // pred_check
        %p278 = pneg %p64
      $region14: #{res_block.3} parent=11 // pred_check_branch
        %280 = sbr.rel (%p278) target = $region16
      $region15: #{res_block.3} parent=11 // pred_region
        _
      $region16: #{res_block.3} parent=11 // pred_fallthru
        _
      // Predicated region
      $region17: #{res_block.3} parent=11 // pred_check
        %p281 = pneg %p85
      $region18: #{res_block.3} parent=11 // pred_check_branch
        %283 = sbr.rel (%p281) target = $region20
      $region19: #{res_block.3} parent=11 // pred_region
        _
      $region20: #{res_block.3} parent=11 // pred_fallthru
        _
      // Predicated region
      $region21: #{res_block.3} parent=11 // pred_check
        %p284 = pneg %p106
      $region22: #{res_block.3} parent=11 // pred_check_branch
        %286 = sbr.rel (%p284) target = $region24
      $region23: #{res_block.3} parent=11 // pred_region
        _
      $region24: #{res_block.3} parent=11 // pred_fallthru
        _
      // Predicated region
      $region25: #{res_block.3} parent=11 // pred_check
        %p287 = pneg %p127
      $region26: #{res_block.3} parent=11 // pred_check_branch
        %289 = sbr.rel (%p287) target = $region28
      $region27: #{res_block.3} parent=11 // pred_region
        _
      $region28: #{res_block.3} parent=11 // pred_fallthru
        _
    $region12: #{res_block.3} parent=5 // pred_fallthru
      _
    %p290 = scmp.lt.s32.totalorder %s17, 2
    // Predicated region
    $region29: #{res_block.3} parent=5 // pred_check
      %p291 = pneg %p290
    $region30: #{res_block.3} parent=5 // pred_check_branch
      %293 = sbr.rel (%p291) target = $region32
    $region31: #{res_block.3} parent=5 // pred_region
      // Predicated region
      $region33: #{res_block.3} parent=31 // pred_check
        %p294 = pneg %p37
      $region34: #{res_block.3} parent=31 // pred_check_branch
        %296 = sbr.rel (%p294) target = $region36
      $region35: #{res_block.3} parent=31 // pred_region
        %p297 = scmp.lt.s32.totalorder %s17, 1
        %s298 = scalar_select %p297, %s17, 1
        %s299 = smul.addr %s298, 54
        %s300 = smul.addr %s299, 8
        %s301 = scalar_lea.vmem %s0, %s300
      $region36: #{res_block.3} parent=31 // pred_fallthru
        _
    $region32: #{res_block.3} parent=5 // pred_fallthru
      _
    %p302 = scmp.le.s32.totalorder 1, %s17
    %p303 = scmp.lt.s32.totalorder %s17, 3
    %p304 = pnand %p302, %p303
    %p305 = pneg %p304
    // Predicated region
    $region37: #{res_block.3} parent=5 // pred_check
      _
    $region38: #{res_block.3} parent=5 // pred_check_branch
      %307 = sbr.rel (%p304) target = $region40
    $region39: #{res_block.3} parent=5 // pred_region
      %s308 = ssub.s32 %s17, 1
      %p309 = scmp.lt.s32.totalorder %s22, 1
      %s310 = scalar_select %p309, %s22, 1
      %s311 = smul.addr %s310, 54
      %s312 = smul.addr %s311, 8
      %s313 = scalar_lea.vmem %s0, %s312
      %p314 = pneg %p43
      %p315 = pneg %p40
      %p316 = pneg %p64
      %p317 = pneg %p61
      %p318 = pneg %p85
      %p319 = pneg %p82
      %p320 = pneg %p106
      %p321 = pneg %p103
      %p322 = pneg %p127
      %p323 = pneg %p124
      %p324 = pneg %p153
      %p325 = pneg %p150
      %p326 = scmp.lt.s32.totalorder %s22, 1
      %s327 = scalar_select %p326, %s22, 1
      %s328 = smul.addr %s327, 32
      %s329 = smul.addr %s328, 8
      %s330 = scalar_lea.vmem %s5, %s329
      %p331 = pneg %p179
      %p332 = pneg %p176
      %p333 = scmp.lt.s32.totalorder %s22, 1
      %s334 = scalar_select %p333, %s22, 1
      %s335 = smul.addr %s334, 32
      %s336 = smul.addr %s335, 8
      %s337 = scalar_lea.vmem %s6, %s336
      %p338 = pneg %p200
      %p339 = pneg %p197
      %p340 = pneg %p221
      %p341 = pneg %p218
      %p342 = pneg %p242
      %p343 = pneg %p239
      %p344 = pneg %p263
      %p345 = pneg %p260
      %p346 = scmp.lt.s32.totalorder %s22, 1
      %s347 = scalar_select %p346, %s22, 1
      %s348 = smul.addr %s347, 54
      %s349 = smul.addr %s348, 8
      %s350 = scalar_lea.vmem %s0, %s349
      %p351 = scmp.lt.s32.totalorder %s22, 1
      %s352 = scalar_select %p351, %s22, 1
      %s353 = smul.addr %s352, 32
      %s354 = smul.addr %s353, 8
      %s355 = scalar_lea.vmem %s5, %s354
      %p356 = scmp.lt.s32.totalorder %s22, 1
      %s357 = scalar_select %p356, %s22, 1
      %s358 = smul.addr %s357, 32
      %s359 = smul.addr %s358, 8
      %s360 = scalar_lea.vmem %s6, %s359
      %p362 = scmp.eq.s32.totalorder %s22, 0
      // Predicated region
      $region41: #{res_block.3} parent=39 // pred_check
        %p363 = pneg %p362
      $region42: #{res_block.3} parent=39 // pred_check_branch
        %365 = sbr.rel (%p363) target = $region44
      $region43: #{res_block.3} parent=39 // pred_region
        %366 = vst [vmem:[%s7] sm:$0x1] 0.0
        %367 = vst [vmem:[%s8] sm:$0x1] 0.0
        %368 = vst [vmem:[%s9] sm:$0x1] 0.0
        %369 = vst [vmem:[%s10] sm:$0x1] 0.0
      $region44: #{res_block.3} parent=39 // pred_fallthru
        _
      %v370 = vld [vmem:[%s350] sm:$0xff]
      %v371 = vld [vmem:[%s350 + $0x8] sm:$0xff]
      %v372 = vld [vmem:[%s350 + $0x18] sm:$0xff]
      %v373 = vld [vmem:[%s350 + $0x20] sm:$0xff]
      %v374 = vld [vmem:[%s350 + $0x30] sm:$0xff]
      %v375 = vld [vmem:[%s350 + $0x38] sm:$0xff]
      %v376 = vld [vmem:[%s350 + $0x48] sm:$0xff]
      %v377 = vld [vmem:[%s350 + $0x50] sm:$0xff]
      %v378 = vld [vmem:[%s350 + $0x60] sm:$0xff]
      %v379 = vld [vmem:[%s350 + $0x68] sm:$0xff]
      %v380 = vld [vmem:[%s350 + $0x78] sm:$0xff]
      %v381 = vld [vmem:[%s350 + $0x80] sm:$0xff]
      %v382 = vld [vmem:[%s350 + $0x90] sm:$0xff]
      %v383 = vld [vmem:[%s350 + $0x98] sm:$0xff]
      %v384 = vld [vmem:[%s350 + $0xa8] sm:$0xff]
      %v385 = vld [vmem:[%s350 + $0xb0] sm:$0xff]
      %v386 = vld [vmem:[%s350 + $0xc0] sm:$0xff]
      %v387 = vld [vmem:[%s350 + $0xc8] sm:$0xff]
      %v388 = vld [vmem:[%s350 + $0xd8] sm:$0xff]
      %v389 = vld [vmem:[%s350 + $0xe0] sm:$0xff]
      %v390 = vld [vmem:[%s350 + $0xf0] sm:$0xff]
      %v391 = vld [vmem:[%s350 + $0xf8] sm:$0xff]
      %v392 = vld [vmem:[%s350 + $0x108] sm:$0xff]
      %v393 = vld [vmem:[%s350 + $0x110] sm:$0xff]
      %v394 = vld [vmem:[%s350 + $0x120] sm:$0xff]
      %v395 = vld [vmem:[%s350 + $0x128] sm:$0xff]
      %v396 = vld [vmem:[%s350 + $0x138] sm:$0xff]
      %v397 = vld [vmem:[%s350 + $0x140] sm:$0xff]
      %v398 = vld [vmem:[%s350 + $0x150] sm:$0xff]
      %v399 = vld [vmem:[%s350 + $0x158] sm:$0xff]
      %v400 = vld [vmem:[%s350 + $0x168] sm:$0xff]
      %v401 = vld [vmem:[%s350 + $0x170] sm:$0xff]
      %v402 = vpack.c.bf16 %v371, %v370
      %v403 = vpack.c.bf16 %v373, %v372
      %v404 = vpack.c.bf16 %v375, %v374
      %v405 = vpack.c.bf16 %v377, %v376
      %v406 = vpack.c.bf16 %v379, %v378
      %v407 = vpack.c.bf16 %v381, %v380
      %v408 = vpack.c.bf16 %v383, %v382
      %v409 = vpack.c.bf16 %v385, %v384
      %v410 = vpack.c.bf16 %v387, %v386
      %v411 = vpack.c.bf16 %v389, %v388
      %v412 = vpack.c.bf16 %v391, %v390
      %v413 = vpack.c.bf16 %v393, %v392
      %v414 = vpack.c.bf16 %v395, %v394
      %v415 = vpack.c.bf16 %v397, %v396
      %v416 = vpack.c.bf16 %v399, %v398
      %v417 = vpack.c.bf16 %v401, %v400
      %v418 = vld [vmem:[%s1] sm:$0xf]
      %v419 = vld [vmem:[%s1 + $0x4] sm:$0xf]
      %v420 = vld [vmem:[%s1 + $0x8] sm:$0xf]
      %v421 = vld [vmem:[%s1 + $0xc] sm:$0xf]
      %v422 = vld [vmem:[%s1 + $0x10] sm:$0xf]
      %v423 = vld [vmem:[%s1 + $0x14] sm:$0xf]
      %v424 = vld [vmem:[%s1 + $0x18] sm:$0xf]
      %v425 = vld [vmem:[%s1 + $0x1c] sm:$0xf]
      %v426 = vld [vmem:[%s1 + $0x20] sm:$0xf]
      %v427 = vld [vmem:[%s1 + $0x24] sm:$0xf]
      %v428 = vld [vmem:[%s1 + $0x28] sm:$0xf]
      %v429 = vld [vmem:[%s1 + $0x2c] sm:$0xf]
      %v430 = vld [vmem:[%s1 + $0x30] sm:$0xf]
      %v431 = vld [vmem:[%s1 + $0x34] sm:$0xf]
      %v432 = vld [vmem:[%s1 + $0x38] sm:$0xf]
      %v433 = vld [vmem:[%s1 + $0x3c] sm:$0xf]
      %v434 = vld [vmem:[%s350 + $0x1] sm:$0xff]
      %v435 = vld [vmem:[%s350 + $0x9] sm:$0xff]
      %v436 = vld [vmem:[%s350 + $0x19] sm:$0xff]
      %v437 = vld [vmem:[%s350 + $0x21] sm:$0xff]
      %v438 = vld [vmem:[%s350 + $0x31] sm:$0xff]
      %v439 = vld [vmem:[%s350 + $0x39] sm:$0xff]
      %v440 = vld [vmem:[%s350 + $0x49] sm:$0xff]
      %v441 = vld [vmem:[%s350 + $0x51] sm:$0xff]
      %v442 = vld [vmem:[%s350 + $0x61] sm:$0xff]
      %v443 = vld [vmem:[%s350 + $0x69] sm:$0xff]
      %v444 = vld [vmem:[%s350 + $0x79] sm:$0xff]
      %v445 = vld [vmem:[%s350 + $0x81] sm:$0xff]
      %v446 = vld [vmem:[%s350 + $0x91] sm:$0xff]
      %v447 = vld [vmem:[%s350 + $0x99] sm:$0xff]
      %v448 = vld [vmem:[%s350 + $0xa9] sm:$0xff]
      %v449 = vld [vmem:[%s350 + $0xb1] sm:$0xff]
      %v450 = vld [vmem:[%s350 + $0xc1] sm:$0xff]
      %v451 = vld [vmem:[%s350 + $0xc9] sm:$0xff]
      %v452 = vld [vmem:[%s350 + $0xd9] sm:$0xff]
      %v453 = vld [vmem:[%s350 + $0xe1] sm:$0xff]
      %v454 = vld [vmem:[%s350 + $0xf1] sm:$0xff]
      %v455 = vld [vmem:[%s350 + $0xf9] sm:$0xff]
      %v456 = vld [vmem:[%s350 + $0x109] sm:$0xff]
      %v457 = vld [vmem:[%s350 + $0x111] sm:$0xff]
      %v458 = vld [vmem:[%s350 + $0x121] sm:$0xff]
      %v459 = vld [vmem:[%s350 + $0x129] sm:$0xff]
      %v460 = vld [vmem:[%s350 + $0x139] sm:$0xff]
      %v461 = vld [vmem:[%s350 + $0x141] sm:$0xff]
      %v462 = vld [vmem:[%s350 + $0x151] sm:$0xff]
      %v463 = vld [vmem:[%s350 + $0x159] sm:$0xff]
      %v464 = vld [vmem:[%s350 + $0x169] sm:$0xff]
      %v465 = vld [vmem:[%s350 + $0x171] sm:$0xff]
      %v466 = vpack.c.bf16 %v435, %v434
      %v467 = vpack.c.bf16 %v437, %v436
      %v468 = vpack.c.bf16 %v439, %v438
      %v469 = vpack.c.bf16 %v441, %v440
      %v470 = vpack.c.bf16 %v443, %v442
      %v471 = vpack.c.bf16 %v445, %v444
      %v472 = vpack.c.bf16 %v447, %v446
      %v473 = vpack.c.bf16 %v449, %v448
      %v474 = vpack.c.bf16 %v451, %v450
      %v475 = vpack.c.bf16 %v453, %v452
      %v476 = vpack.c.bf16 %v455, %v454
      %v477 = vpack.c.bf16 %v457, %v456
      %v478 = vpack.c.bf16 %v459, %v458
      %v479 = vpack.c.bf16 %v461, %v460
      %v480 = vpack.c.bf16 %v463, %v462
      %v481 = vpack.c.bf16 %v465, %v464
      %s482 = scalar_lea.vmem %s1, 64
      %v483 = vld [vmem:[%s482] sm:$0xf]
      %v484 = vld [vmem:[%s482 + $0x4] sm:$0xf]
      %v485 = vld [vmem:[%s482 + $0x8] sm:$0xf]
      %v486 = vld [vmem:[%s482 + $0xc] sm:$0xf]
      %v487 = vld [vmem:[%s482 + $0x10] sm:$0xf]
      %v488 = vld [vmem:[%s482 + $0x14] sm:$0xf]
      %v489 = vld [vmem:[%s482 + $0x18] sm:$0xf]
      %v490 = vld [vmem:[%s482 + $0x1c] sm:$0xf]
      %v491 = vld [vmem:[%s482 + $0x20] sm:$0xf]
      %v492 = vld [vmem:[%s482 + $0x24] sm:$0xf]
      %v493 = vld [vmem:[%s482 + $0x28] sm:$0xf]
      %v494 = vld [vmem:[%s482 + $0x2c] sm:$0xf]
      %v495 = vld [vmem:[%s482 + $0x30] sm:$0xf]
      %v496 = vld [vmem:[%s482 + $0x34] sm:$0xf]
      %v497 = vld [vmem:[%s482 + $0x38] sm:$0xf]
      %v498 = vld [vmem:[%s482 + $0x3c] sm:$0xf]
      %v515 = vunpack.c.l.b16 %v483
      %v516 = vunpack.c.l.b16 %v484
      %v517 = vunpack.c.l.b16 %v485
      %v518 = vunpack.c.l.b16 %v486
      %v519 = vunpack.c.l.b16 %v487
      %v520 = vunpack.c.l.b16 %v488
      %v521 = vunpack.c.l.b16 %v489
      %v522 = vunpack.c.l.b16 %v490
      %v523 = vunpack.c.l.b16 %v491
      %v524 = vunpack.c.l.b16 %v492
      %v525 = vunpack.c.l.b16 %v493
      %v526 = vunpack.c.l.b16 %v494
      %v527 = vunpack.c.l.b16 %v495
      %v528 = vunpack.c.l.b16 %v496
      %v529 = vunpack.c.l.b16 %v497
      %v530 = vunpack.c.l.b16 %v498
      %v531 = vpack.c.b16 %v516, %v515
      %v532 = vpack.c.b16 %v518, %v517
      %v533 = vpack.c.b16 %v520, %v519
      %v534 = vpack.c.b16 %v522, %v521
      %v535 = vpack.c.b16 %v524, %v523
      %v536 = vpack.c.b16 %v526, %v525
      %v537 = vpack.c.b16 %v528, %v527
      %v538 = vpack.c.b16 %v530, %v529
      %547 = vmatprep.subr.bf16.mxu0 0
      %548 = vmatpush1.bf16.msra.mxu0 %v531
      %549 = vmatprep.subr.bf16.mxu0 0
      %550 = vmatpush1.bf16.msra.mxu0 %v532
      %551 = vmatprep.subr.bf16.mxu0 0
      %552 = vmatpush1.bf16.msra.mxu0 %v533
      %553 = vmatprep.subr.bf16.mxu0 0
      %554 = vmatpush1.bf16.msra.mxu0 %v534
      %555 = vmatprep.subr.bf16.mxu0 0
      %556 = vmatpush1.bf16.msra.mxu0 %v535
      %557 = vmatprep.subr.bf16.mxu0 0
      %558 = vmatpush1.bf16.msra.mxu0 %v536
      %559 = vmatprep.subr.bf16.mxu0 0
      %560 = vmatpush1.bf16.msra.mxu0 %v537
      %561 = vmatprep.subr.bf16.mxu0 0
      %562 = vmatpush1.bf16.msra.mxu0 %v538
      %563 = vmatprep.subr.bf16.mxu0 0
      %564 = vmatpush1.bf16.msra.mxu0 0
      %565 = vmatprep.subr.bf16.mxu0 0
      %566 = vmatpush1.bf16.msra.mxu0 0
      %567 = vmatprep.subr.bf16.mxu0 0
      %568 = vmatpush1.bf16.msra.mxu0 0
      %569 = vmatprep.subr.bf16.mxu0 0
      %570 = vmatpush1.bf16.msra.mxu0 0
      %571 = vmatprep.subr.bf16.mxu0 0
      %572 = vmatpush1.bf16.msra.mxu0 0
      %573 = vmatprep.subr.bf16.mxu0 0
      %574 = vmatpush1.bf16.msra.mxu0 0
      %575 = vmatprep.subr.bf16.mxu0 0
      %576 = vmatpush1.bf16.msra.mxu0 0
      %577 = vmatprep.subr.bf16.mxu0 0
      %578 = vmatpush1.bf16.msra.mxu0 0
      %579 = vmatprep.mubr.bf16.mxu0 0
      %580 = vmatmul.mubr.bf16.gmra.mrb[0].mxu0 %v466
      %v581 = vpop.f32.mrb[0].mxu0
      %v582 = vadd.f32 0.0, %v581
      %v583 = vpop.f32.mrb[0].mxu0
      %v584 = vpop.f32.mrb[0].mxu0
      %v585 = vadd.f32 0.0, %v584
      %v586 = vpop.f32.mrb[0].mxu0
      %587 = vmatprep.mubr.bf16.mxu0 0
      %588 = vmatmul.mubr.bf16.gmra.mrb[0].mxu0 %v467
      %v589 = vpop.f32.mrb[0].mxu0
      %v590 = vadd.f32 0.0, %v589
      %v591 = vpop.f32.mrb[0].mxu0
      %v592 = vpop.f32.mrb[0].mxu0
      %v593 = vadd.f32 0.0, %v592
      %v594 = vpop.f32.mrb[0].mxu0
      %595 = vmatprep.mubr.bf16.mxu0 0
      %596 = vmatmul.mubr.bf16.gmra.mrb[0].mxu0 %v468
      %v597 = vpop.f32.mrb[0].mxu0
      %v598 = vadd.f32 0.0, %v597
      %v599 = vpop.f32.mrb[0].mxu0
      %v600 = vpop.f32.mrb[0].mxu0
      %v601 = vadd.f32 0.0, %v600
      %v602 = vpop.f32.mrb[0].mxu0
      %603 = vmatprep.mubr.bf16.mxu0 0
      %604 = vmatmul.mubr.bf16.gmra.mrb[0].mxu0 %v469
      %v605 = vpop.f32.mrb[0].mxu0
      %v606 = vadd.f32 0.0, %v605
      %v607 = vpop.f32.mrb[0].mxu0
      %v608 = vpop.f32.mrb[0].mxu0
      %v609 = vadd.f32 0.0, %v608
      %v610 = vpop.f32.mrb[0].mxu0
      %611 = vmatprep.mubr.bf16.mxu0 0
      %612 = vmatmul.mubr.bf16.gmra.mrb[0].mxu0 %v470
      %v613 = vpop.f32.mrb[0].mxu0
      %v614 = vadd.f32 0.0, %v613
      %v615 = vpop.f32.mrb[0].mxu0
      %v616 = vpop.f32.mrb[0].mxu0
      %v617 = vadd.f32 0.0, %v616
      %v618 = vpop.f32.mrb[0].mxu0
      %619 = vmatprep.mubr.bf16.mxu0 0
      %620 = vmatmul.mubr.bf16.gmra.mrb[0].mxu0 %v471
      %v621 = vpop.f32.mrb[0].mxu0
      %v622 = vadd.f32 0.0, %v621
      %v623 = vpop.f32.mrb[0].mxu0
      %v624 = vpop.f32.mrb[0].mxu0
      %v625 = vadd.f32 0.0, %v624
      %v626 = vpop.f32.mrb[0].mxu0
      %627 = vmatprep.mubr.bf16.mxu0 0
      %628 = vmatmul.mubr.bf16.gmra.mrb[0].mxu0 %v472
      %v629 = vpop.f32.mrb[0].mxu0
      %v630 = vadd.f32 0.0, %v629
      %v631 = vpop.f32.mrb[0].mxu0
      %v632 = vpop.f32.mrb[0].mxu0
      %v633 = vadd.f32 0.0, %v632
      %v634 = vpop.f32.mrb[0].mxu0
      %635 = vmatprep.mubr.bf16.mxu0 0
      %636 = vmatmul.mubr.bf16.gmra.mrb[0].mxu0 %v473
      %v637 = vpop.f32.mrb[0].mxu0
      %v638 = vadd.f32 0.0, %v637
      %v639 = vpop.f32.mrb[0].mxu0
      %v640 = vpop.f32.mrb[0].mxu0
      %v641 = vadd.f32 0.0, %v640
      %v642 = vpop.f32.mrb[0].mxu0
      %643 = vmatprep.mubr.bf16.mxu0 0
      %644 = vmatmul.mubr.bf16.gmra.mrb[0].mxu0 %v474
      %v645 = vpop.f32.mrb[0].mxu0
      %v646 = vadd.f32 0.0, %v645
      %v647 = vpop.f32.mrb[0].mxu0
      %v648 = vpop.f32.mrb[0].mxu0
      %v649 = vadd.f32 0.0, %v648
      %v650 = vpop.f32.mrb[0].mxu0
      %651 = vmatprep.mubr.bf16.mxu0 0
      %652 = vmatmul.mubr.bf16.gmra.mrb[0].mxu0 %v475
      %v653 = vpop.f32.mrb[0].mxu0
      %v654 = vadd.f32 0.0, %v653
      %v655 = vpop.f32.mrb[0].mxu0
      %v656 = vpop.f32.mrb[0].mxu0
      %v657 = vadd.f32 0.0, %v656
      %v658 = vpop.f32.mrb[0].mxu0
      %659 = vmatprep.mubr.bf16.mxu0 0
      %660 = vmatmul.mubr.bf16.gmra.mrb[0].mxu0 %v476
      %v661 = vpop.f32.mrb[0].mxu0
      %v662 = vadd.f32 0.0, %v661
      %v663 = vpop.f32.mrb[0].mxu0
      %v664 = vpop.f32.mrb[0].mxu0
      %v665 = vadd.f32 0.0, %v664
      %v666 = vpop.f32.mrb[0].mxu0
      %667 = vmatprep.mubr.bf16.mxu0 0
      %668 = vmatmul.mubr.bf16.gmra.mrb[0].mxu0 %v477
      %v669 = vpop.f32.mrb[0].mxu0
      %v670 = vadd.f32 0.0, %v669
      %v671 = vpop.f32.mrb[0].mxu0
      %v672 = vpop.f32.mrb[0].mxu0
      %v673 = vadd.f32 0.0, %v672
      %v674 = vpop.f32.mrb[0].mxu0
      %675 = vmatprep.mubr.bf16.mxu0 0
      %676 = vmatmul.mubr.bf16.gmra.mrb[0].mxu0 %v478
      %v677 = vpop.f32.mrb[0].mxu0
      %v678 = vadd.f32 0.0, %v677
      %v679 = vpop.f32.mrb[0].mxu0
      %v680 = vpop.f32.mrb[0].mxu0
      %v681 = vadd.f32 0.0, %v680
      %v682 = vpop.f32.mrb[0].mxu0
      %683 = vmatprep.mubr.bf16.mxu0 0
      %684 = vmatmul.mubr.bf16.gmra.mrb[0].mxu0 %v479
      %v685 = vpop.f32.mrb[0].mxu0
      %v686 = vadd.f32 0.0, %v685
      %v687 = vpop.f32.mrb[0].mxu0
      %v688 = vpop.f32.mrb[0].mxu0
      %v689 = vadd.f32 0.0, %v688
      %v690 = vpop.f32.mrb[0].mxu0
      %691 = vmatprep.mubr.bf16.mxu0 0
      %692 = vmatmul.mubr.bf16.gmra.mrb[0].mxu0 %v480
      %v693 = vpop.f32.mrb[0].mxu0
      %v694 = vadd.f32 0.0, %v693
      %v695 = vpop.f32.mrb[0].mxu0
      %v696 = vpop.f32.mrb[0].mxu0
      %v697 = vadd.f32 0.0, %v696
      %v698 = vpop.f32.mrb[0].mxu0
      %699 = vmatprep.mubr.bf16.mxu0 0
      %700 = vmatmul.mubr.bf16.gmra.mrb[0].mxu0 %v481
      %v701 = vpop.f32.mrb[0].mxu0
      %v702 = vadd.f32 0.0, %v701
      %v703 = vpop.f32.mrb[0].mxu0
      %v704 = vpop.f32.mrb[0].mxu0
      %v705 = vadd.f32 0.0, %v704
      %v706 = vpop.f32.mrb[0].mxu0
      %707 = vdwg.mxu0
      %v724 = vunpack.c.l.b16 %v418
      %v725 = vunpack.c.l.b16 %v419
      %v726 = vunpack.c.l.b16 %v420
      %v727 = vunpack.c.l.b16 %v421
      %v728 = vunpack.c.l.b16 %v422
      %v729 = vunpack.c.l.b16 %v423
      %v730 = vunpack.c.l.b16 %v424
      %v731 = vunpack.c.l.b16 %v425
      %v732 = vunpack.c.l.b16 %v426
      %v733 = vunpack.c.l.b16 %v427
      %v734 = vunpack.c.l.b16 %v428
      %v735 = vunpack.c.l.b16 %v429
      %v736 = vunpack.c.l.b16 %v430
      %v737 = vunpack.c.l.b16 %v431
      %v738 = vunpack.c.l.b16 %v432
      %v739 = vunpack.c.l.b16 %v433
      %v740 = vpack.c.b16 %v725, %v724
      %v741 = vpack.c.b16 %v727, %v726
      %v742 = vpack.c.b16 %v729, %v728
      %v743 = vpack.c.b16 %v731, %v730
      %v744 = vpack.c.b16 %v733, %v732
      %v745 = vpack.c.b16 %v735, %v734
      %v746 = vpack.c.b16 %v737, %v736
      %v747 = vpack.c.b16 %v739, %v738
      %756 = vmatprep.subr.bf16.mxu0 0
      %757 = vmatpush1.bf16.msra.mxu0 %v740
      %758 = vmatprep.subr.bf16.mxu0 0
      %759 = vmatpush1.bf16.msra.mxu0 %v741
      %760 = vmatprep.subr.bf16.mxu0 0
      %761 = vmatpush1.bf16.msra.mxu0 %v742
      %762 = vmatprep.subr.bf16.mxu0 0
      %763 = vmatpush1.bf16.msra.mxu0 %v743
      %764 = vmatprep.subr.bf16.mxu0 0
      %765 = vmatpush1.bf16.msra.mxu0 %v744
      %766 = vmatprep.subr.bf16.mxu0 0
      %767 = vmatpush1.bf16.msra.mxu0 %v745
      %768 = vmatprep.subr.bf16.mxu0 0
      %769 = vmatpush1.bf16.msra.mxu0 %v746
      %770 = vmatprep.subr.bf16.mxu0 0
      %771 = vmatpush1.bf16.msra.mxu0 %v747
      %772 = vmatprep.subr.bf16.mxu0 0
      %773 = vmatpush1.bf16.msra.mxu0 0
      %774 = vmatprep.subr.bf16.mxu0 0
      %775 = vmatpush1.bf16.msra.mxu0 0
      %776 = vmatprep.subr.bf16.mxu0 0
      %777 = vmatpush1.bf16.msra.mxu0 0
      %778 = vmatprep.subr.bf16.mxu0 0
      %779 = vmatpush1.bf16.msra.mxu0 0
      %780 = vmatprep.subr.bf16.mxu0 0
      %781 = vmatpush1.bf16.msra.mxu0 0
      %782 = vmatprep.subr.bf16.mxu0 0
      %783 = vmatpush1.bf16.msra.mxu0 0
      %784 = vmatprep.subr.bf16.mxu0 0
      %785 = vmatpush1.bf16.msra.mxu0 0
      %786 = vmatprep.subr.bf16.mxu0 0
      %787 = vmatpush1.bf16.msra.mxu0 0
      %788 = vmatprep.mubr.bf16.mxu0 0
      %789 = vmatmul.mubr.bf16.gmra.mrb[0].mxu0 %v402
      %v790 = vpop.f32.mrb[0].mxu0
      %v791 = vadd.f32 %v582, %v790
      %v792 = vpop.f32.mrb[0].mxu0
      %v793 = vpop.f32.mrb[0].mxu0
      %v794 = vadd.f32 %v585, %v793
      %v795 = vpop.f32.mrb[0].mxu0
      %796 = vmatprep.mubr.bf16.mxu0 0
      %797 = vmatmul.mubr.bf16.gmra.mrb[0].mxu0 %v403
      %v798 = vpop.f32.mrb[0].mxu0
      %v799 = vadd.f32 %v590, %v798
      %v800 = vpop.f32.mrb[0].mxu0
      %v801 = vpop.f32.mrb[0].mxu0
      %v802 = vadd.f32 %v593, %v801
      %v803 = vpop.f32.mrb[0].mxu0
      %804 = vmatprep.mubr.bf16.mxu0 0
      %805 = vmatmul.mubr.bf16.gmra.mrb[0].mxu0 %v404
      %v806 = vpop.f32.mrb[0].mxu0
      %v807 = vadd.f32 %v598, %v806
      %v808 = vpop.f32.mrb[0].mxu0
      %v809 = vpop.f32.mrb[0].mxu0
      %v810 = vadd.f32 %v601, %v809
      %v811 = vpop.f32.mrb[0].mxu0
      %812 = vmatprep.mubr.bf16.mxu0 0
      %813 = vmatmul.mubr.bf16.gmra.mrb[0].mxu0 %v405
      %v814 = vpop.f32.mrb[0].mxu0
      %v815 = vadd.f32 %v606, %v814
      %v816 = vpop.f32.mrb[0].mxu0
      %v817 = vpop.f32.mrb[0].mxu0
      %v818 = vadd.f32 %v609, %v817
      %v819 = vpop.f32.mrb[0].mxu0
      %820 = vmatprep.mubr.bf16.mxu0 0
      %821 = vmatmul.mubr.bf16.gmra.mrb[0].mxu0 %v406
      %v822 = vpop.f32.mrb[0].mxu0
      %v823 = vadd.f32 %v614, %v822
      %v824 = vpop.f32.mrb[0].mxu0
      %v825 = vpop.f32.mrb[0].mxu0
      %v826 = vadd.f32 %v617, %v825
      %v827 = vpop.f32.mrb[0].mxu0
      %828 = vmatprep.mubr.bf16.mxu0 0
      %829 = vmatmul.mubr.bf16.gmra.mrb[0].mxu0 %v407
      %v830 = vpop.f32.mrb[0].mxu0
      %v831 = vadd.f32 %v622, %v830
      %v832 = vpop.f32.mrb[0].mxu0
      %v833 = vpop.f32.mrb[0].mxu0
      %v834 = vadd.f32 %v625, %v833
      %v835 = vpop.f32.mrb[0].mxu0
      %836 = vmatprep.mubr.bf16.mxu0 0
      %837 = vmatmul.mubr.bf16.gmra.mrb[0].mxu0 %v408
      %v838 = vpop.f32.mrb[0].mxu0
      %v839 = vadd.f32 %v630, %v838
      %v840 = vpop.f32.mrb[0].mxu0
      %v841 = vpop.f32.mrb[0].mxu0
      %v842 = vadd.f32 %v633, %v841
      %v843 = vpop.f32.mrb[0].mxu0
      %844 = vmatprep.mubr.bf16.mxu0 0
      %845 = vmatmul.mubr.bf16.gmra.mrb[0].mxu0 %v409
      %v846 = vpop.f32.mrb[0].mxu0
      %v847 = vadd.f32 %v638, %v846
      %v848 = vpop.f32.mrb[0].mxu0
      %v849 = vpop.f32.mrb[0].mxu0
      %v850 = vadd.f32 %v641, %v849
      %v851 = vpop.f32.mrb[0].mxu0
      %852 = vmatprep.mubr.bf16.mxu0 0
      %853 = vmatmul.mubr.bf16.gmra.mrb[0].mxu0 %v410
      %v854 = vpop.f32.mrb[0].mxu0
      %v855 = vadd.f32 %v646, %v854
      %v856 = vpop.f32.mrb[0].mxu0
      %v857 = vpop.f32.mrb[0].mxu0
      %v858 = vadd.f32 %v649, %v857
      %v859 = vpop.f32.mrb[0].mxu0
      %860 = vmatprep.mubr.bf16.mxu0 0
      %861 = vmatmul.mubr.bf16.gmra.mrb[0].mxu0 %v411
      %v862 = vpop.f32.mrb[0].mxu0
      %v863 = vadd.f32 %v654, %v862
      %v864 = vpop.f32.mrb[0].mxu0
      %v865 = vpop.f32.mrb[0].mxu0
      %v866 = vadd.f32 %v657, %v865
      %v867 = vpop.f32.mrb[0].mxu0
      %868 = vmatprep.mubr.bf16.mxu0 0
      %869 = vmatmul.mubr.bf16.gmra.mrb[0].mxu0 %v412
      %v870 = vpop.f32.mrb[0].mxu0
      %v871 = vadd.f32 %v662, %v870
      %v872 = vpop.f32.mrb[0].mxu0
      %v873 = vpop.f32.mrb[0].mxu0
      %v874 = vadd.f32 %v665, %v873
      %v875 = vpop.f32.mrb[0].mxu0
      %876 = vmatprep.mubr.bf16.mxu0 0
      %877 = vmatmul.mubr.bf16.gmra.mrb[0].mxu0 %v413
      %v878 = vpop.f32.mrb[0].mxu0
      %v879 = vadd.f32 %v670, %v878
      %v880 = vpop.f32.mrb[0].mxu0
      %v881 = vpop.f32.mrb[0].mxu0
      %v882 = vadd.f32 %v673, %v881
      %v883 = vpop.f32.mrb[0].mxu0
      %884 = vmatprep.mubr.bf16.mxu0 0
      %885 = vmatmul.mubr.bf16.gmra.mrb[0].mxu0 %v414
      %v886 = vpop.f32.mrb[0].mxu0
      %v887 = vadd.f32 %v678, %v886
      %v888 = vpop.f32.mrb[0].mxu0
      %v889 = vpop.f32.mrb[0].mxu0
      %v890 = vadd.f32 %v681, %v889
      %v891 = vpop.f32.mrb[0].mxu0
      %892 = vmatprep.mubr.bf16.mxu0 0
      %893 = vmatmul.mubr.bf16.gmra.mrb[0].mxu0 %v415
      %v894 = vpop.f32.mrb[0].mxu0
      %v895 = vadd.f32 %v686, %v894
      %v896 = vpop.f32.mrb[0].mxu0
      %v897 = vpop.f32.mrb[0].mxu0
      %v898 = vadd.f32 %v689, %v897
      %v899 = vpop.f32.mrb[0].mxu0
      %900 = vmatprep.mubr.bf16.mxu0 0
      %901 = vmatmul.mubr.bf16.gmra.mrb[0].mxu0 %v416
      %v902 = vpop.f32.mrb[0].mxu0
      %v903 = vadd.f32 %v694, %v902
      %v904 = vpop.f32.mrb[0].mxu0
      %v905 = vpop.f32.mrb[0].mxu0
      %v906 = vadd.f32 %v697, %v905
      %v907 = vpop.f32.mrb[0].mxu0
      %908 = vmatprep.mubr.bf16.mxu0 0
      %909 = vmatmul.mubr.bf16.gmra.mrb[0].mxu0 %v417
      %v910 = vpop.f32.mrb[0].mxu0
      %v911 = vadd.f32 %v702, %v910
      %v912 = vpop.f32.mrb[0].mxu0
      %v913 = vpop.f32.mrb[0].mxu0
      %v914 = vadd.f32 %v705, %v913
      %v915 = vpop.f32.mrb[0].mxu0
      %916 = vdwg.mxu0
      %v917 = vld [vmem:[%s350 + $0x2] sm:$0xff]
      %v918 = vld [vmem:[%s350 + $0xa] sm:$0xff]
      %v919 = vld [vmem:[%s350 + $0x1a] sm:$0xff]
      %v920 = vld [vmem:[%s350 + $0x22] sm:$0xff]
      %v921 = vld [vmem:[%s350 + $0x32] sm:$0xff]
      %v922 = vld [vmem:[%s350 + $0x3a] sm:$0xff]
      %v923 = vld [vmem:[%s350 + $0x4a] sm:$0xff]
      %v924 = vld [vmem:[%s350 + $0x52] sm:$0xff]
      %v925 = vld [vmem:[%s350 + $0x62] sm:$0xff]
      %v926 = vld [vmem:[%s350 + $0x6a] sm:$0xff]
      %v927 = vld [vmem:[%s350 + $0x7a] sm:$0xff]
      %v928 = vld [vmem:[%s350 + $0x82] sm:$0xff]
      %v929 = vld [vmem:[%s350 + $0x92] sm:$0xff]
      %v930 = vld [vmem:[%s350 + $0x9a] sm:$0xff]
      %v931 = vld [vmem:[%s350 + $0xaa] sm:$0xff]
      %v932 = vld [vmem:[%s350 + $0xb2] sm:$0xff]
      %v933 = vld [vmem:[%s350 + $0xc2] sm:$0xff]
      %v934 = vld [vmem:[%s350 + $0xca] sm:$0xff]
      %v935 = vld [vmem:[%s350 + $0xda] sm:$0xff]
      %v936 = vld [vmem:[%s350 + $0xe2] sm:$0xff]
      %v937 = vld [vmem:[%s350 + $0xf2] sm:$0xff]
      %v938 = vld [vmem:[%s350 + $0xfa] sm:$0xff]
      %v939 = vld [vmem:[%s350 + $0x10a] sm:$0xff]
      %v940 = vld [vmem:[%s350 + $0x112] sm:$0xff]
      %v941 = vld [vmem:[%s350 + $0x122] sm:$0xff]
      %v942 = vld [vmem:[%s350 + $0x12a] sm:$0xff]
      %v943 = vld [vmem:[%s350 + $0x13a] sm:$0xff]
      %v944 = vld [vmem:[%s350 + $0x142] sm:$0xff]
      %v945 = vld [vmem:[%s350 + $0x152] sm:$0xff]
      %v946 = vld [vmem:[%s350 + $0x15a] sm:$0xff]
      %v947 = vld [vmem:[%s350 + $0x16a] sm:$0xff]
      %v948 = vld [vmem:[%s350 + $0x172] sm:$0xff]
      %v949 = vpack.c.bf16 %v918, %v917
      %v950 = vpack.c.bf16 %v920, %v919
      %v951 = vpack.c.bf16 %v922, %v921
      %v952 = vpack.c.bf16 %v924, %v923
      %v953 = vpack.c.bf16 %v926, %v925
      %v954 = vpack.c.bf16 %v928, %v927
      %v955 = vpack.c.bf16 %v930, %v929
      %v956 = vpack.c.bf16 %v932, %v931
      %v957 = vpack.c.bf16 %v934, %v933
      %v958 = vpack.c.bf16 %v936, %v935
      %v959 = vpack.c.bf16 %v938, %v937
      %v960 = vpack.c.bf16 %v940, %v939
      %v961 = vpack.c.bf16 %v942, %v941
      %v962 = vpack.c.bf16 %v944, %v943
      %v963 = vpack.c.bf16 %v946, %v945
      %v964 = vpack.c.bf16 %v948, %v947
      %s965 = scalar_lea.vmem %s1, 128
      %v966 = vld [vmem:[%s965] sm:$0xf]
      %v967 = vld [vmem:[%s965 + $0x4] sm:$0xf]
      %v968 = vld [vmem:[%s965 + $0x8] sm:$0xf]
      %v969 = vld [vmem:[%s965 + $0xc] sm:$0xf]
      %v970 = vld [vmem:[%s965 + $0x10] sm:$0xf]
      %v971 = vld [vmem:[%s965 + $0x14] sm:$0xf]
      %v972 = vld [vmem:[%s965 + $0x18] sm:$0xf]
      %v973 = vld [vmem:[%s965 + $0x1c] sm:$0xf]
      %v974 = vld [vmem:[%s965 + $0x20] sm:$0xf]
      %v975 = vld [vmem:[%s965 + $0x24] sm:$0xf]
      %v976 = vld [vmem:[%s965 + $0x28] sm:$0xf]
      %v977 = vld [vmem:[%s965 + $0x2c] sm:$0xf]
      %v978 = vld [vmem:[%s965 + $0x30] sm:$0xf]
      %v979 = vld [vmem:[%s965 + $0x34] sm:$0xf]
      %v980 = vld [vmem:[%s965 + $0x38] sm:$0xf]
      %v981 = vld [vmem:[%s965 + $0x3c] sm:$0xf]
      %v998 = vunpack.c.l.b16 %v966
      %v999 = vunpack.c.l.b16 %v967
      %v1000 = vunpack.c.l.b16 %v968
      %v1001 = vunpack.c.l.b16 %v969
      %v1002 = vunpack.c.l.b16 %v970
      %v1003 = vunpack.c.l.b16 %v971
      %v1004 = vunpack.c.l.b16 %v972
      %v1005 = vunpack.c.l.b16 %v973
      %v1006 = vunpack.c.l.b16 %v974
      %v1007 = vunpack.c.l.b16 %v975
      %v1008 = vunpack.c.l.b16 %v976
      %v1009 = vunpack.c.l.b16 %v977
      %v1010 = vunpack.c.l.b16 %v978
      %v1011 = vunpack.c.l.b16 %v979
      %v1012 = vunpack.c.l.b16 %v980
      %v1013 = vunpack.c.l.b16 %v981
      %v1014 = vpack.c.b16 %v999, %v998
      %v1015 = vpack.c.b16 %v1001, %v1000
      %v1016 = vpack.c.b16 %v1003, %v1002
      %v1017 = vpack.c.b16 %v1005, %v1004
      %v1018 = vpack.c.b16 %v1007, %v1006
      %v1019 = vpack.c.b16 %v1009, %v1008
      %v1020 = vpack.c.b16 %v1011, %v1010
      %v1021 = vpack.c.b16 %v1013, %v1012
      %1030 = vmatprep.subr.bf16.mxu0 0
      %1031 = vmatpush1.bf16.msra.mxu0 %v1014
      %1032 = vmatprep.subr.bf16.mxu0 0
      %1033 = vmatpush1.bf16.msra.mxu0 %v1015
      %1034 = vmatprep.subr.bf16.mxu0 0
      %1035 = vmatpush1.bf16.msra.mxu0 %v1016
      %1036 = vmatprep.subr.bf16.mxu0 0
      %1037 = vmatpush1.bf16.msra.mxu0 %v1017
      %1038 = vmatprep.subr.bf16.mxu0 0
      %1039 = vmatpush1.bf16.msra.mxu0 %v1018
      %1040 = vmatprep.subr.bf16.mxu0 0
      %1041 = vmatpush1.bf16.msra.mxu0 %v1019
      %1042 = vmatprep.subr.bf16.mxu0 0
      %1043 = vmatpush1.bf16.msra.mxu0 %v1020
      %1044 = vmatprep.subr.bf16.mxu0 0
      %1045 = vmatpush1.bf16.msra.mxu0 %v1021
      %1046 = vmatprep.subr.bf16.mxu0 0
      %1047 = vmatpush1.bf16.msra.mxu0 0
      %1048 = vmatprep.subr.bf16.mxu0 0
      %1049 = vmatpush1.bf16.msra.mxu0 0
      %1050 = vmatprep.subr.bf16.mxu0 0
      %1051 = vmatpush1.bf16.msra.mxu0 0
      %1052 = vmatprep.subr.bf16.mxu0 0
      %1053 = vmatpush1.bf16.msra.mxu0 0
      %1054 = vmatprep.subr.bf16.mxu0 0
      %1055 = vmatpush1.bf16.msra.mxu0 0
      %1056 = vmatprep.subr.bf16.mxu0 0
      %1057 = vmatpush1.bf16.msra.mxu0 0
      %1058 = vmatprep.subr.bf16.mxu0 0
      %1059 = vmatpush1.bf16.msra.mxu0 0
      %1060 = vmatprep.subr.bf16.mxu0 0
      %1061 = vmatpush1.bf16.msra.mxu0 0
      %1062 = vmatprep.mubr.bf16.mxu0 0
      %1063 = vmatmul.mubr.bf16.gmra.mrb[0].mxu0 %v949
      %v1064 = vpop.f32.mrb[0].mxu0
      %v1065 = vadd.f32 0.0, %v1064
      %v1066 = vpop.f32.mrb[0].mxu0
      %v1067 = vpop.f32.mrb[0].mxu0
      %v1068 = vadd.f32 0.0, %v1067
      %v1069 = vpop.f32.mrb[0].mxu0
      %1070 = vmatprep.mubr.bf16.mxu0 0
      %1071 = vmatmul.mubr.bf16.gmra.mrb[0].mxu0 %v950
      %v1072 = vpop.f32.mrb[0].mxu0
      %v1073 = vadd.f32 0.0, %v1072
      %v1074 = vpop.f32.mrb[0].mxu0
      %v1075 = vpop.f32.mrb[0].mxu0
      %v1076 = vadd.f32 0.0, %v1075
      %v1077 = vpop.f32.mrb[0].mxu0
      %1078 = vmatprep.mubr.bf16.mxu0 0
      %1079 = vmatmul.mubr.bf16.gmra.mrb[0].mxu0 %v951
      %v1080 = vpop.f32.mrb[0].mxu0
      %v1081 = vadd.f32 0.0, %v1080
      %v1082 = vpop.f32.mrb[0].mxu0
      %v1083 = vpop.f32.mrb[0].mxu0
      %v1084 = vadd.f32 0.0, %v1083
      %v1085 = vpop.f32.mrb[0].mxu0
      %1086 = vmatprep.mubr.bf16.mxu0 0
      %1087 = vmatmul.mubr.bf16.gmra.mrb[0].mxu0 %v952
      %v1088 = vpop.f32.mrb[0].mxu0
      %v1089 = vadd.f32 0.0, %v1088
      %v1090 = vpop.f32.mrb[0].mxu0
      %v1091 = vpop.f32.mrb[0].mxu0
      %v1092 = vadd.f32 0.0, %v1091
      %v1093 = vpop.f32.mrb[0].mxu0
      %1094 = vmatprep.mubr.bf16.mxu0 0
      %1095 = vmatmul.mubr.bf16.gmra.mrb[0].mxu0 %v953
      %v1096 = vpop.f32.mrb[0].mxu0
      %v1097 = vadd.f32 0.0, %v1096
      %v1098 = vpop.f32.mrb[0].mxu0
      %v1099 = vpop.f32.mrb[0].mxu0
      %v1100 = vadd.f32 0.0, %v1099
      %v1101 = vpop.f32.mrb[0].mxu0
      %1102 = vmatprep.mubr.bf16.mxu0 0
      %1103 = vmatmul.mubr.bf16.gmra.mrb[0].mxu0 %v954
      %v1104 = vpop.f32.mrb[0].mxu0
      %v1105 = vadd.f32 0.0, %v1104
      %v1106 = vpop.f32.mrb[0].mxu0
      %v1107 = vpop.f32.mrb[0].mxu0
      %v1108 = vadd.f32 0.0, %v1107
      %v1109 = vpop.f32.mrb[0].mxu0
      %1110 = vmatprep.mubr.bf16.mxu0 0
      %1111 = vmatmul.mubr.bf16.gmra.mrb[0].mxu0 %v955
      %v1112 = vpop.f32.mrb[0].mxu0
      %v1113 = vadd.f32 0.0, %v1112
      %v1114 = vpop.f32.mrb[0].mxu0
      %v1115 = vpop.f32.mrb[0].mxu0
      %v1116 = vadd.f32 0.0, %v1115
      %v1117 = vpop.f32.mrb[0].mxu0
      %1118 = vmatprep.mubr.bf16.mxu0 0
      %1119 = vmatmul.mubr.bf16.gmra.mrb[0].mxu0 %v956
      %v1120 = vpop.f32.mrb[0].mxu0
      %v1121 = vadd.f32 0.0, %v1120
      %v1122 = vpop.f32.mrb[0].mxu0
      %v1123 = vpop.f32.mrb[0].mxu0
      %v1124 = vadd.f32 0.0, %v1123
      %v1125 = vpop.f32.mrb[0].mxu0
      %1126 = vmatprep.mubr.bf16.mxu0 0
      %1127 = vmatmul.mubr.bf16.gmra.mrb[0].mxu0 %v957
      %v1128 = vpop.f32.mrb[0].mxu0
      %v1129 = vadd.f32 0.0, %v1128
      %v1130 = vpop.f32.mrb[0].mxu0
      %v1131 = vpop.f32.mrb[0].mxu0
      %v1132 = vadd.f32 0.0, %v1131
      %v1133 = vpop.f32.mrb[0].mxu0
      %1134 = vmatprep.mubr.bf16.mxu0 0
      %1135 = vmatmul.mubr.bf16.gmra.mrb[0].mxu0 %v958
      %v1136 = vpop.f32.mrb[0].mxu0
      %v1137 = vadd.f32 0.0, %v1136
      %v1138 = vpop.f32.mrb[0].mxu0
      %v1139 = vpop.f32.mrb[0].mxu0
      %v1140 = vadd.f32 0.0, %v1139
      %v1141 = vpop.f32.mrb[0].mxu0
      %1142 = vmatprep.mubr.bf16.mxu0 0
      %1143 = vmatmul.mubr.bf16.gmra.mrb[0].mxu0 %v959
      %v1144 = vpop.f32.mrb[0].mxu0
      %v1145 = vadd.f32 0.0, %v1144
      %v1146 = vpop.f32.mrb[0].mxu0
      %v1147 = vpop.f32.mrb[0].mxu0
      %v1148 = vadd.f32 0.0, %v1147
      %v1149 = vpop.f32.mrb[0].mxu0
      %1150 = vmatprep.mubr.bf16.mxu0 0
      %1151 = vmatmul.mubr.bf16.gmra.mrb[0].mxu0 %v960
      %v1152 = vpop.f32.mrb[0].mxu0
      %v1153 = vadd.f32 0.0, %v1152
      %v1154 = vpop.f32.mrb[0].mxu0
      %v1155 = vpop.f32.mrb[0].mxu0
      %v1156 = vadd.f32 0.0, %v1155
      %v1157 = vpop.f32.mrb[0].mxu0
      %1158 = vmatprep.mubr.bf16.mxu0 0
      %1159 = vmatmul.mubr.bf16.gmra.mrb[0].mxu0 %v961
      %v1160 = vpop.f32.mrb[0].mxu0
      %v1161 = vadd.f32 0.0, %v1160
      %v1162 = vpop.f32.mrb[0].mxu0
      %v1163 = vpop.f32.mrb[0].mxu0
      %v1164 = vadd.f32 0.0, %v1163
      %v1165 = vpop.f32.mrb[0].mxu0
      %1166 = vmatprep.mubr.bf16.mxu0 0
      %1167 = vmatmul.mubr.bf16.gmra.mrb[0].mxu0 %v962
      %v1168 = vpop.f32.mrb[0].mxu0
      %v1169 = vadd.f32 0.0, %v1168
      %v1170 = vpop.f32.mrb[0].mxu0
      %v1171 = vpop.f32.mrb[0].mxu0
      %v1172 = vadd.f32 0.0, %v1171
      %v1173 = vpop.f32.mrb[0].mxu0
      %1174 = vmatprep.mubr.bf16.mxu0 0
      %1175 = vmatmul.mubr.bf16.gmra.mrb[0].mxu0 %v963
      %v1176 = vpop.f32.mrb[0].mxu0
      %v1177 = vadd.f32 0.0, %v1176
      %v1178 = vpop.f32.mrb[0].mxu0
      %v1179 = vpop.f32.mrb[0].mxu0
      %v1180 = vadd.f32 0.0, %v1179
      %v1181 = vpop.f32.mrb[0].mxu0
      %1182 = vmatprep.mubr.bf16.mxu0 0
      %1183 = vmatmul.mubr.bf16.gmra.mrb[0].mxu0 %v964
      %v1184 = vpop.f32.mrb[0].mxu0
      %v1185 = vadd.f32 0.0, %v1184
      %v1186 = vpop.f32.mrb[0].mxu0
      %v1187 = vpop.f32.mrb[0].mxu0
      %v1188 = vadd.f32 0.0, %v1187
      %v1189 = vpop.f32.mrb[0].mxu0
      %1190 = vdwg.mxu0
      %v1191 = vadd.f32 %v791, %v1065
      %v1192 = vadd.f32 %v794, %v1068
      %v1193 = vadd.f32 %v799, %v1073
      %v1194 = vadd.f32 %v802, %v1076
      %v1195 = vadd.f32 %v807, %v1081
      %v1196 = vadd.f32 %v810, %v1084
      %v1197 = vadd.f32 %v815, %v1089
      %v1198 = vadd.f32 %v818, %v1092
      %v1199 = vadd.f32 %v823, %v1097
      %v1200 = vadd.f32 %v826, %v1100
      %v1201 = vadd.f32 %v831, %v1105
      %v1202 = vadd.f32 %v834, %v1108
      %v1203 = vadd.f32 %v839, %v1113
      %v1204 = vadd.f32 %v842, %v1116
      %v1205 = vadd.f32 %v847, %v1121
      %v1206 = vadd.f32 %v850, %v1124
      %v1207 = vadd.f32 %v855, %v1129
      %v1208 = vadd.f32 %v858, %v1132
      %v1209 = vadd.f32 %v863, %v1137
      %v1210 = vadd.f32 %v866, %v1140
      %v1211 = vadd.f32 %v871, %v1145
      %v1212 = vadd.f32 %v874, %v1148
      %v1213 = vadd.f32 %v879, %v1153
      %v1214 = vadd.f32 %v882, %v1156
      %v1215 = vadd.f32 %v887, %v1161
      %v1216 = vadd.f32 %v890, %v1164
      %v1217 = vadd.f32 %v895, %v1169
      %v1218 = vadd.f32 %v898, %v1172
      %v1219 = vadd.f32 %v903, %v1177
      %v1220 = vadd.f32 %v906, %v1180
      %v1221 = vadd.f32 %v911, %v1185
      %v1222 = vadd.f32 %v914, %v1188
      %s1223 = scalar_lea.vmem %s350, 24
      %v1224 = vld [vmem:[%s1223] sm:$0xff]
      %v1225 = vld [vmem:[%s1223 + $0x8] sm:$0xff]
      %v1226 = vld [vmem:[%s1223 + $0x18] sm:$0xff]
      %v1227 = vld [vmem:[%s1223 + $0x20] sm:$0xff]
      %v1228 = vld [vmem:[%s1223 + $0x30] sm:$0xff]
      %v1229 = vld [vmem:[%s1223 + $0x38] sm:$0xff]
      %v1230 = vld [vmem:[%s1223 + $0x48] sm:$0xff]
      %v1231 = vld [vmem:[%s1223 + $0x50] sm:$0xff]
      %v1232 = vld [vmem:[%s1223 + $0x60] sm:$0xff]
      %v1233 = vld [vmem:[%s1223 + $0x68] sm:$0xff]
      %v1234 = vld [vmem:[%s1223 + $0x78] sm:$0xff]
      %v1235 = vld [vmem:[%s1223 + $0x80] sm:$0xff]
      %v1236 = vld [vmem:[%s1223 + $0x90] sm:$0xff]
      %v1237 = vld [vmem:[%s1223 + $0x98] sm:$0xff]
      %v1238 = vld [vmem:[%s1223 + $0xa8] sm:$0xff]
      %v1239 = vld [vmem:[%s1223 + $0xb0] sm:$0xff]
      %v1240 = vld [vmem:[%s1223 + $0xc0] sm:$0xff]
      %v1241 = vld [vmem:[%s1223 + $0xc8] sm:$0xff]
      %v1242 = vld [vmem:[%s1223 + $0xd8] sm:$0xff]
      %v1243 = vld [vmem:[%s1223 + $0xe0] sm:$0xff]
      %v1244 = vld [vmem:[%s1223 + $0xf0] sm:$0xff]
      %v1245 = vld [vmem:[%s1223 + $0xf8] sm:$0xff]
      %v1246 = vld [vmem:[%s1223 + $0x108] sm:$0xff]
      %v1247 = vld [vmem:[%s1223 + $0x110] sm:$0xff]
      %v1248 = vld [vmem:[%s1223 + $0x120] sm:$0xff]
      %v1249 = vld [vmem:[%s1223 + $0x128] sm:$0xff]
      %v1250 = vld [vmem:[%s1223 + $0x138] sm:$0xff]
      %v1251 = vld [vmem:[%s1223 + $0x140] sm:$0xff]
      %v1252 = vld [vmem:[%s1223 + $0x150] sm:$0xff]
      %v1253 = vld [vmem:[%s1223 + $0x158] sm:$0xff]
      %v1254 = vld [vmem:[%s1223 + $0x168] sm:$0xff]
      %v1255 = vld [vmem:[%s1223 + $0x170] sm:$0xff]
      %v1256 = vpack.c.bf16 %v1225, %v1224
      %v1257 = vpack.c.bf16 %v1227, %v1226
      %v1258 = vpack.c.bf16 %v1229, %v1228
      %v1259 = vpack.c.bf16 %v1231, %v1230
      %v1260 = vpack.c.bf16 %v1233, %v1232
      %v1261 = vpack.c.bf16 %v1235, %v1234
      %v1262 = vpack.c.bf16 %v1237, %v1236
      %v1263 = vpack.c.bf16 %v1239, %v1238
      %v1264 = vpack.c.bf16 %v1241, %v1240
      %v1265 = vpack.c.bf16 %v1243, %v1242
      %v1266 = vpack.c.bf16 %v1245, %v1244
      %v1267 = vpack.c.bf16 %v1247, %v1246
      %v1268 = vpack.c.bf16 %v1249, %v1248
      %v1269 = vpack.c.bf16 %v1251, %v1250
      %v1270 = vpack.c.bf16 %v1253, %v1252
      %v1271 = vpack.c.bf16 %v1255, %v1254
      %s1272 = scalar_lea.vmem %s1, 192
      %v1273 = vld [vmem:[%s1272] sm:$0xf]
      %v1274 = vld [vmem:[%s1272 + $0x4] sm:$0xf]
      %v1275 = vld [vmem:[%s1272 + $0x8] sm:$0xf]
      %v1276 = vld [vmem:[%s1272 + $0xc] sm:$0xf]
      %v1277 = vld [vmem:[%s1272 + $0x10] sm:$0xf]
      %v1278 = vld [vmem:[%s1272 + $0x14] sm:$0xf]
      %v1279 = vld [vmem:[%s1272 + $0x18] sm:$0xf]
      %v1280 = vld [vmem:[%s1272 + $0x1c] sm:$0xf]
      %v1281 = vld [vmem:[%s1272 + $0x20] sm:$0xf]
      %v1282 = vld [vmem:[%s1272 + $0x24] sm:$0xf]
      %v1283 = vld [vmem:[%s1272 + $0x28] sm:$0xf]
      %v1284 = vld [vmem:[%s1272 + $0x2c] sm:$0xf]
      %v1285 = vld [vmem:[%s1272 + $0x30] sm:$0xf]
      %v1286 = vld [vmem:[%s1272 + $0x34] sm:$0xf]
      %v1287 = vld [vmem:[%s1272 + $0x38] sm:$0xf]
      %v1288 = vld [vmem:[%s1272 + $0x3c] sm:$0xf]
      %v1305 = vunpack.c.l.b16 %v1273
      %v1306 = vunpack.c.l.b16 %v1274
      %v1307 = vunpack.c.l.b16 %v1275
      %v1308 = vunpack.c.l.b16 %v1276
      %v1309 = vunpack.c.l.b16 %v1277
      %v1310 = vunpack.c.l.b16 %v1278
      %v1311 = vunpack.c.l.b16 %v1279
      %v1312 = vunpack.c.l.b16 %v1280
      %v1313 = vunpack.c.l.b16 %v1281
      %v1314 = vunpack.c.l.b16 %v1282
      %v1315 = vunpack.c.l.b16 %v1283
      %v1316 = vunpack.c.l.b16 %v1284
      %v1317 = vunpack.c.l.b16 %v1285
      %v1318 = vunpack.c.l.b16 %v1286
      %v1319 = vunpack.c.l.b16 %v1287
      %v1320 = vunpack.c.l.b16 %v1288
      %v1321 = vpack.c.b16 %v1306, %v1305
      %v1322 = vpack.c.b16 %v1308, %v1307
      %v1323 = vpack.c.b16 %v1310, %v1309
      %v1324 = vpack.c.b16 %v1312, %v1311
      %v1325 = vpack.c.b16 %v1314, %v1313
      %v1326 = vpack.c.b16 %v1316, %v1315
      %v1327 = vpack.c.b16 %v1318, %v1317
      %v1328 = vpack.c.b16 %v1320, %v1319
      %1337 = vmatprep.subr.bf16.mxu0 0
      %1338 = vmatpush1.bf16.msra.mxu0 %v1321
      %1339 = vmatprep.subr.bf16.mxu0 0
      %1340 = vmatpush1.bf16.msra.mxu0 %v1322
      %1341 = vmatprep.subr.bf16.mxu0 0
      %1342 = vmatpush1.bf16.msra.mxu0 %v1323
      %1343 = vmatprep.subr.bf16.mxu0 0
      %1344 = vmatpush1.bf16.msra.mxu0 %v1324
      %1345 = vmatprep.subr.bf16.mxu0 0
      %1346 = vmatpush1.bf16.msra.mxu0 %v1325
      %1347 = vmatprep.subr.bf16.mxu0 0
      %1348 = vmatpush1.bf16.msra.mxu0 %v1326
      %1349 = vmatprep.subr.bf16.mxu0 0
      %1350 = vmatpush1.bf16.msra.mxu0 %v1327
      %1351 = vmatprep.subr.bf16.mxu0 0
      %1352 = vmatpush1.bf16.msra.mxu0 %v1328
      %1353 = vmatprep.subr.bf16.mxu0 0
      %1354 = vmatpush1.bf16.msra.mxu0 0
      %1355 = vmatprep.subr.bf16.mxu0 0
      %1356 = vmatpush1.bf16.msra.mxu0 0
      %1357 = vmatprep.subr.bf16.mxu0 0
      %1358 = vmatpush1.bf16.msra.mxu0 0
      %1359 = vmatprep.subr.bf16.mxu0 0
      %1360 = vmatpush1.bf16.msra.mxu0 0
      %1361 = vmatprep.subr.bf16.mxu0 0
      %1362 = vmatpush1.bf16.msra.mxu0 0
      %1363 = vmatprep.subr.bf16.mxu0 0
      %1364 = vmatpush1.bf16.msra.mxu0 0
      %1365 = vmatprep.subr.bf16.mxu0 0
      %1366 = vmatpush1.bf16.msra.mxu0 0
      %1367 = vmatprep.subr.bf16.mxu0 0
      %1368 = vmatpush1.bf16.msra.mxu0 0
      %1369 = vmatprep.mubr.bf16.mxu0 0
      %1370 = vmatmul.mubr.bf16.gmra.mrb[0].mxu0 %v1256
      %v1371 = vpop.f32.mrb[0].mxu0
      %v1372 = vadd.f32 0.0, %v1371
      %v1373 = vpop.f32.mrb[0].mxu0
      %v1374 = vpop.f32.mrb[0].mxu0
      %v1375 = vadd.f32 0.0, %v1374
      %v1376 = vpop.f32.mrb[0].mxu0
      %1377 = vmatprep.mubr.bf16.mxu0 0
      %1378 = vmatmul.mubr.bf16.gmra.mrb[0].mxu0 %v1257
      %v1379 = vpop.f32.mrb[0].mxu0
      %v1380 = vadd.f32 0.0, %v1379
      %v1381 = vpop.f32.mrb[0].mxu0
      %v1382 = vpop.f32.mrb[0].mxu0
      %v1383 = vadd.f32 0.0, %v1382
      %v1384 = vpop.f32.mrb[0].mxu0
      %1385 = vmatprep.mubr.bf16.mxu0 0
      %1386 = vmatmul.mubr.bf16.gmra.mrb[0].mxu0 %v1258
      %v1387 = vpop.f32.mrb[0].mxu0
      %v1388 = vadd.f32 0.0, %v1387
      %v1389 = vpop.f32.mrb[0].mxu0
      %v1390 = vpop.f32.mrb[0].mxu0
      %v1391 = vadd.f32 0.0, %v1390
      %v1392 = vpop.f32.mrb[0].mxu0
      %1393 = vmatprep.mubr.bf16.mxu0 0
      %1394 = vmatmul.mubr.bf16.gmra.mrb[0].mxu0 %v1259
      %v1395 = vpop.f32.mrb[0].mxu0
      %v1396 = vadd.f32 0.0, %v1395
      %v1397 = vpop.f32.mrb[0].mxu0
      %v1398 = vpop.f32.mrb[0].mxu0
      %v1399 = vadd.f32 0.0, %v1398
      %v1400 = vpop.f32.mrb[0].mxu0
      %1401 = vmatprep.mubr.bf16.mxu0 0
      %1402 = vmatmul.mubr.bf16.gmra.mrb[0].mxu0 %v1260
      %v1403 = vpop.f32.mrb[0].mxu0
      %v1404 = vadd.f32 0.0, %v1403
      %v1405 = vpop.f32.mrb[0].mxu0
      %v1406 = vpop.f32.mrb[0].mxu0
      %v1407 = vadd.f32 0.0, %v1406
      %v1408 = vpop.f32.mrb[0].mxu0
      %1409 = vmatprep.mubr.bf16.mxu0 0
      %1410 = vmatmul.mubr.bf16.gmra.mrb[0].mxu0 %v1261
      %v1411 = vpop.f32.mrb[0].mxu0
      %v1412 = vadd.f32 0.0, %v1411
      %v1413 = vpop.f32.mrb[0].mxu0
      %v1414 = vpop.f32.mrb[0].mxu0
      %v1415 = vadd.f32 0.0, %v1414
      %v1416 = vpop.f32.mrb[0].mxu0
      %1417 = vmatprep.mubr.bf16.mxu0 0
      %1418 = vmatmul.mubr.bf16.gmra.mrb[0].mxu0 %v1262
      %v1419 = vpop.f32.mrb[0].mxu0
      %v1420 = vadd.f32 0.0, %v1419
      %v1421 = vpop.f32.mrb[0].mxu0
      %v1422 = vpop.f32.mrb[0].mxu0
      %v1423 = vadd.f32 0.0, %v1422
      %v1424 = vpop.f32.mrb[0].mxu0
      %1425 = vmatprep.mubr.bf16.mxu0 0
      %1426 = vmatmul.mubr.bf16.gmra.mrb[0].mxu0 %v1263
      %v1427 = vpop.f32.mrb[0].mxu0
      %v1428 = vadd.f32 0.0, %v1427
      %v1429 = vpop.f32.mrb[0].mxu0
      %v1430 = vpop.f32.mrb[0].mxu0
      %v1431 = vadd.f32 0.0, %v1430
      %v1432 = vpop.f32.mrb[0].mxu0
      %1433 = vmatprep.mubr.bf16.mxu0 0
      %1434 = vmatmul.mubr.bf16.gmra.mrb[0].mxu0 %v1264
      %v1435 = vpop.f32.mrb[0].mxu0
      %v1436 = vadd.f32 0.0, %v1435
      %v1437 = vpop.f32.mrb[0].mxu0
      %v1438 = vpop.f32.mrb[0].mxu0
      %v1439 = vadd.f32 0.0, %v1438
      %v1440 = vpop.f32.mrb[0].mxu0
      %1441 = vmatprep.mubr.bf16.mxu0 0
      %1442 = vmatmul.mubr.bf16.gmra.mrb[0].mxu0 %v1265
      %v1443 = vpop.f32.mrb[0].mxu0
      %v1444 = vadd.f32 0.0, %v1443
      %v1445 = vpop.f32.mrb[0].mxu0
      %v1446 = vpop.f32.mrb[0].mxu0
      %v1447 = vadd.f32 0.0, %v1446
      %v1448 = vpop.f32.mrb[0].mxu0
      %1449 = vmatprep.mubr.bf16.mxu0 0
      %1450 = vmatmul.mubr.bf16.gmra.mrb[0].mxu0 %v1266
      %v1451 = vpop.f32.mrb[0].mxu0
      %v1452 = vadd.f32 0.0, %v1451
      %v1453 = vpop.f32.mrb[0].mxu0
      %v1454 = vpop.f32.mrb[0].mxu0
      %v1455 = vadd.f32 0.0, %v1454
      %v1456 = vpop.f32.mrb[0].mxu0
      %1457 = vmatprep.mubr.bf16.mxu0 0
      %1458 = vmatmul.mubr.bf16.gmra.mrb[0].mxu0 %v1267
      %v1459 = vpop.f32.mrb[0].mxu0
      %v1460 = vadd.f32 0.0, %v1459
      %v1461 = vpop.f32.mrb[0].mxu0
      %v1462 = vpop.f32.mrb[0].mxu0
      %v1463 = vadd.f32 0.0, %v1462
      %v1464 = vpop.f32.mrb[0].mxu0
      %1465 = vmatprep.mubr.bf16.mxu0 0
      %1466 = vmatmul.mubr.bf16.gmra.mrb[0].mxu0 %v1268
      %v1467 = vpop.f32.mrb[0].mxu0
      %v1468 = vadd.f32 0.0, %v1467
      %v1469 = vpop.f32.mrb[0].mxu0
      %v1470 = vpop.f32.mrb[0].mxu0
      %v1471 = vadd.f32 0.0, %v1470
      %v1472 = vpop.f32.mrb[0].mxu0
      %1473 = vmatprep.mubr.bf16.mxu0 0
      %1474 = vmatmul.mubr.bf16.gmra.mrb[0].mxu0 %v1269
      %v1475 = vpop.f32.mrb[0].mxu0
      %v1476 = vadd.f32 0.0, %v1475
      %v1477 = vpop.f32.mrb[0].mxu0
      %v1478 = vpop.f32.mrb[0].mxu0
      %v1479 = vadd.f32 0.0, %v1478
      %v1480 = vpop.f32.mrb[0].mxu0
      %1481 = vmatprep.mubr.bf16.mxu0 0
      %1482 = vmatmul.mubr.bf16.gmra.mrb[0].mxu0 %v1270
      %v1483 = vpop.f32.mrb[0].mxu0
      %v1484 = vadd.f32 0.0, %v1483
      %v1485 = vpop.f32.mrb[0].mxu0
      %v1486 = vpop.f32.mrb[0].mxu0
      %v1487 = vadd.f32 0.0, %v1486
      %v1488 = vpop.f32.mrb[0].mxu0
      %1489 = vmatprep.mubr.bf16.mxu0 0
      %1490 = vmatmul.mubr.bf16.gmra.mrb[0].mxu0 %v1271
      %v1491 = vpop.f32.mrb[0].mxu0
      %v1492 = vadd.f32 0.0, %v1491
      %v1493 = vpop.f32.mrb[0].mxu0
      %v1494 = vpop.f32.mrb[0].mxu0
      %v1495 = vadd.f32 0.0, %v1494
      %v1496 = vpop.f32.mrb[0].mxu0
      %1497 = vdwg.mxu0
      %v1498 = vadd.f32 %v1191, %v1372
      %v1499 = vadd.f32 %v1192, %v1375
      %v1500 = vadd.f32 %v1193, %v1380
      %v1501 = vadd.f32 %v1194, %v1383
      %v1502 = vadd.f32 %v1195, %v1388
      %v1503 = vadd.f32 %v1196, %v1391
      %v1504 = vadd.f32 %v1197, %v1396
      %v1505 = vadd.f32 %v1198, %v1399
      %v1506 = vadd.f32 %v1199, %v1404
      %v1507 = vadd.f32 %v1200, %v1407
      %v1508 = vadd.f32 %v1201, %v1412
      %v1509 = vadd.f32 %v1202, %v1415
      %v1510 = vadd.f32 %v1203, %v1420
      %v1511 = vadd.f32 %v1204, %v1423
      %v1512 = vadd.f32 %v1205, %v1428
      %v1513 = vadd.f32 %v1206, %v1431
      %v1514 = vadd.f32 %v1207, %v1436
      %v1515 = vadd.f32 %v1208, %v1439
      %v1516 = vadd.f32 %v1209, %v1444
      %v1517 = vadd.f32 %v1210, %v1447
      %v1518 = vadd.f32 %v1211, %v1452
      %v1519 = vadd.f32 %v1212, %v1455
      %v1520 = vadd.f32 %v1213, %v1460
      %v1521 = vadd.f32 %v1214, %v1463
      %v1522 = vadd.f32 %v1215, %v1468
      %v1523 = vadd.f32 %v1216, %v1471
      %v1524 = vadd.f32 %v1217, %v1476
      %v1525 = vadd.f32 %v1218, %v1479
      %v1526 = vadd.f32 %v1219, %v1484
      %v1527 = vadd.f32 %v1220, %v1487
      %v1528 = vadd.f32 %v1221, %v1492
      %v1529 = vadd.f32 %v1222, %v1495
      %v1530 = vld [vmem:[%s1223 + $0x1] sm:$0xff]
      %v1531 = vld [vmem:[%s1223 + $0x9] sm:$0xff]
      %v1532 = vld [vmem:[%s1223 + $0x19] sm:$0xff]
      %v1533 = vld [vmem:[%s1223 + $0x21] sm:$0xff]
      %v1534 = vld [vmem:[%s1223 + $0x31] sm:$0xff]
      %v1535 = vld [vmem:[%s1223 + $0x39] sm:$0xff]
      %v1536 = vld [vmem:[%s1223 + $0x49] sm:$0xff]
      %v1537 = vld [vmem:[%s1223 + $0x51] sm:$0xff]
      %v1538 = vld [vmem:[%s1223 + $0x61] sm:$0xff]
      %v1539 = vld [vmem:[%s1223 + $0x69] sm:$0xff]
      %v1540 = vld [vmem:[%s1223 + $0x79] sm:$0xff]
      %v1541 = vld [vmem:[%s1223 + $0x81] sm:$0xff]
      %v1542 = vld [vmem:[%s1223 + $0x91] sm:$0xff]
      %v1543 = vld [vmem:[%s1223 + $0x99] sm:$0xff]
      %v1544 = vld [vmem:[%s1223 + $0xa9] sm:$0xff]
      %v1545 = vld [vmem:[%s1223 + $0xb1] sm:$0xff]
      %v1546 = vld [vmem:[%s1223 + $0xc1] sm:$0xff]
      %v1547 = vld [vmem:[%s1223 + $0xc9] sm:$0xff]
      %v1548 = vld [vmem:[%s1223 + $0xd9] sm:$0xff]
      %v1549 = vld [vmem:[%s1223 + $0xe1] sm:$0xff]
      %v1550 = vld [vmem:[%s1223 + $0xf1] sm:$0xff]
      %v1551 = vld [vmem:[%s1223 + $0xf9] sm:$0xff]
      %v1552 = vld [vmem:[%s1223 + $0x109] sm:$0xff]
      %v1553 = vld [vmem:[%s1223 + $0x111] sm:$0xff]
      %v1554 = vld [vmem:[%s1223 + $0x121] sm:$0xff]
      %v1555 = vld [vmem:[%s1223 + $0x129] sm:$0xff]
      %v1556 = vld [vmem:[%s1223 + $0x139] sm:$0xff]
      %v1557 = vld [vmem:[%s1223 + $0x141] sm:$0xff]
      %v1558 = vld [vmem:[%s1223 + $0x151] sm:$0xff]
      %v1559 = vld [vmem:[%s1223 + $0x159] sm:$0xff]
      %v1560 = vld [vmem:[%s1223 + $0x169] sm:$0xff]
      %v1561 = vld [vmem:[%s1223 + $0x171] sm:$0xff]
      %v1562 = vpack.c.bf16 %v1531, %v1530
      %v1563 = vpack.c.bf16 %v1533, %v1532
      %v1564 = vpack.c.bf16 %v1535, %v1534
      %v1565 = vpack.c.bf16 %v1537, %v1536
      %v1566 = vpack.c.bf16 %v1539, %v1538
      %v1567 = vpack.c.bf16 %v1541, %v1540
      %v1568 = vpack.c.bf16 %v1543, %v1542
      %v1569 = vpack.c.bf16 %v1545, %v1544
      %v1570 = vpack.c.bf16 %v1547, %v1546
      %v1571 = vpack.c.bf16 %v1549, %v1548
      %v1572 = vpack.c.bf16 %v1551, %v1550
      %v1573 = vpack.c.bf16 %v1553, %v1552
      %v1574 = vpack.c.bf16 %v1555, %v1554
      %v1575 = vpack.c.bf16 %v1557, %v1556
      %v1576 = vpack.c.bf16 %v1559, %v1558
      %v1577 = vpack.c.bf16 %v1561, %v1560
      %s1578 = scalar_lea.vmem %s1, 256
      %v1579 = vld [vmem:[%s1578] sm:$0xf]
      %v1580 = vld [vmem:[%s1578 + $0x4] sm:$0xf]
      %v1581 = vld [vmem:[%s1578 + $0x8] sm:$0xf]
      %v1582 = vld [vmem:[%s1578 + $0xc] sm:$0xf]
      %v1583 = vld [vmem:[%s1578 + $0x10] sm:$0xf]
      %v1584 = vld [vmem:[%s1578 + $0x14] sm:$0xf]
      %v1585 = vld [vmem:[%s1578 + $0x18] sm:$0xf]
      %v1586 = vld [vmem:[%s1578 + $0x1c] sm:$0xf]
      %v1587 = vld [vmem:[%s1578 + $0x20] sm:$0xf]
      %v1588 = vld [vmem:[%s1578 + $0x24] sm:$0xf]
      %v1589 = vld [vmem:[%s1578 + $0x28] sm:$0xf]
      %v1590 = vld [vmem:[%s1578 + $0x2c] sm:$0xf]
      %v1591 = vld [vmem:[%s1578 + $0x30] sm:$0xf]
      %v1592 = vld [vmem:[%s1578 + $0x34] sm:$0xf]
      %v1593 = vld [vmem:[%s1578 + $0x38] sm:$0xf]
      %v1594 = vld [vmem:[%s1578 + $0x3c] sm:$0xf]
      %v1611 = vunpack.c.l.b16 %v1579
      %v1612 = vunpack.c.l.b16 %v1580
      %v1613 = vunpack.c.l.b16 %v1581
      %v1614 = vunpack.c.l.b16 %v1582
      %v1615 = vunpack.c.l.b16 %v1583
      %v1616 = vunpack.c.l.b16 %v1584
      %v1617 = vunpack.c.l.b16 %v1585
      %v1618 = vunpack.c.l.b16 %v1586
      %v1619 = vunpack.c.l.b16 %v1587
      %v1620 = vunpack.c.l.b16 %v1588
      %v1621 = vunpack.c.l.b16 %v1589
      %v1622 = vunpack.c.l.b16 %v1590
      %v1623 = vunpack.c.l.b16 %v1591
      %v1624 = vunpack.c.l.b16 %v1592
      %v1625 = vunpack.c.l.b16 %v1593
      %v1626 = vunpack.c.l.b16 %v1594
      %v1627 = vpack.c.b16 %v1612, %v1611
      %v1628 = vpack.c.b16 %v1614, %v1613
      %v1629 = vpack.c.b16 %v1616, %v1615
      %v1630 = vpack.c.b16 %v1618, %v1617
      %v1631 = vpack.c.b16 %v1620, %v1619
      %v1632 = vpack.c.b16 %v1622, %v1621
      %v1633 = vpack.c.b16 %v1624, %v1623
      %v1634 = vpack.c.b16 %v1626, %v1625
      %1643 = vmatprep.subr.bf16.mxu0 0
      %1644 = vmatpush1.bf16.msra.mxu0 %v1627
      %1645 = vmatprep.subr.bf16.mxu0 0
      %1646 = vmatpush1.bf16.msra.mxu0 %v1628
      %1647 = vmatprep.subr.bf16.mxu0 0
      %1648 = vmatpush1.bf16.msra.mxu0 %v1629
      %1649 = vmatprep.subr.bf16.mxu0 0
      %1650 = vmatpush1.bf16.msra.mxu0 %v1630
      %1651 = vmatprep.subr.bf16.mxu0 0
      %1652 = vmatpush1.bf16.msra.mxu0 %v1631
      %1653 = vmatprep.subr.bf16.mxu0 0
      %1654 = vmatpush1.bf16.msra.mxu0 %v1632
      %1655 = vmatprep.subr.bf16.mxu0 0
      %1656 = vmatpush1.bf16.msra.mxu0 %v1633
      %1657 = vmatprep.subr.bf16.mxu0 0
      %1658 = vmatpush1.bf16.msra.mxu0 %v1634
      %1659 = vmatprep.subr.bf16.mxu0 0
      %1660 = vmatpush1.bf16.msra.mxu0 0
      %1661 = vmatprep.subr.bf16.mxu0 0
      %1662 = vmatpush1.bf16.msra.mxu0 0
      %1663 = vmatprep.subr.bf16.mxu0 0
      %1664 = vmatpush1.bf16.msra.mxu0 0
      %1665 = vmatprep.subr.bf16.mxu0 0
      %1666 = vmatpush1.bf16.msra.mxu0 0
      %1667 = vmatprep.subr.bf16.mxu0 0
      %1668 = vmatpush1.bf16.msra.mxu0 0
      %1669 = vmatprep.subr.bf16.mxu0 0
      %1670 = vmatpush1.bf16.msra.mxu0 0
      %1671 = vmatprep.subr.bf16.mxu0 0
      %1672 = vmatpush1.bf16.msra.mxu0 0
      %1673 = vmatprep.subr.bf16.mxu0 0
      %1674 = vmatpush1.bf16.msra.mxu0 0
      %1675 = vmatprep.mubr.bf16.mxu0 0
      %1676 = vmatmul.mubr.bf16.gmra.mrb[0].mxu0 %v1562
      %v1677 = vpop.f32.mrb[0].mxu0
      %v1678 = vadd.f32 0.0, %v1677
      %v1679 = vpop.f32.mrb[0].mxu0
      %v1680 = vpop.f32.mrb[0].mxu0
      %v1681 = vadd.f32 0.0, %v1680
      %v1682 = vpop.f32.mrb[0].mxu0
      %1683 = vmatprep.mubr.bf16.mxu0 0
      %1684 = vmatmul.mubr.bf16.gmra.mrb[0].mxu0 %v1563
      %v1685 = vpop.f32.mrb[0].mxu0
      %v1686 = vadd.f32 0.0, %v1685
      %v1687 = vpop.f32.mrb[0].mxu0
      %v1688 = vpop.f32.mrb[0].mxu0
      %v1689 = vadd.f32 0.0, %v1688
      %v1690 = vpop.f32.mrb[0].mxu0
      %1691 = vmatprep.mubr.bf16.mxu0 0
      %1692 = vmatmul.mubr.bf16.gmra.mrb[0].mxu0 %v1564
      %v1693 = vpop.f32.mrb[0].mxu0
      %v1694 = vadd.f32 0.0, %v1693
      %v1695 = vpop.f32.mrb[0].mxu0
      %v1696 = vpop.f32.mrb[0].mxu0
      %v1697 = vadd.f32 0.0, %v1696
      %v1698 = vpop.f32.mrb[0].mxu0
      %1699 = vmatprep.mubr.bf16.mxu0 0
      %1700 = vmatmul.mubr.bf16.gmra.mrb[0].mxu0 %v1565
      %v1701 = vpop.f32.mrb[0].mxu0
      %v1702 = vadd.f32 0.0, %v1701
      %v1703 = vpop.f32.mrb[0].mxu0
      %v1704 = vpop.f32.mrb[0].mxu0
      %v1705 = vadd.f32 0.0, %v1704
      %v1706 = vpop.f32.mrb[0].mxu0
      %1707 = vmatprep.mubr.bf16.mxu0 0
      %1708 = vmatmul.mubr.bf16.gmra.mrb[0].mxu0 %v1566
      %v1709 = vpop.f32.mrb[0].mxu0
      %v1710 = vadd.f32 0.0, %v1709
      %v1711 = vpop.f32.mrb[0].mxu0
      %v1712 = vpop.f32.mrb[0].mxu0
      %v1713 = vadd.f32 0.0, %v1712
      %v1714 = vpop.f32.mrb[0].mxu0
      %1715 = vmatprep.mubr.bf16.mxu0 0
      %1716 = vmatmul.mubr.bf16.gmra.mrb[0].mxu0 %v1567
      %v1717 = vpop.f32.mrb[0].mxu0
      %v1718 = vadd.f32 0.0, %v1717
      %v1719 = vpop.f32.mrb[0].mxu0
      %v1720 = vpop.f32.mrb[0].mxu0
      %v1721 = vadd.f32 0.0, %v1720
      %v1722 = vpop.f32.mrb[0].mxu0
      %1723 = vmatprep.mubr.bf16.mxu0 0
      %1724 = vmatmul.mubr.bf16.gmra.mrb[0].mxu0 %v1568
      %v1725 = vpop.f32.mrb[0].mxu0
      %v1726 = vadd.f32 0.0, %v1725
      %v1727 = vpop.f32.mrb[0].mxu0
      %v1728 = vpop.f32.mrb[0].mxu0
      %v1729 = vadd.f32 0.0, %v1728
      %v1730 = vpop.f32.mrb[0].mxu0
      %1731 = vmatprep.mubr.bf16.mxu0 0
      %1732 = vmatmul.mubr.bf16.gmra.mrb[0].mxu0 %v1569
      %v1733 = vpop.f32.mrb[0].mxu0
      %v1734 = vadd.f32 0.0, %v1733
      %v1735 = vpop.f32.mrb[0].mxu0
      %v1736 = vpop.f32.mrb[0].mxu0
      %v1737 = vadd.f32 0.0, %v1736
      %v1738 = vpop.f32.mrb[0].mxu0
      %1739 = vmatprep.mubr.bf16.mxu0 0
      %1740 = vmatmul.mubr.bf16.gmra.mrb[0].mxu0 %v1570
      %v1741 = vpop.f32.mrb[0].mxu0
      %v1742 = vadd.f32 0.0, %v1741
      %v1743 = vpop.f32.mrb[0].mxu0
      %v1744 = vpop.f32.mrb[0].mxu0
      %v1745 = vadd.f32 0.0, %v1744
      %v1746 = vpop.f32.mrb[0].mxu0
      %1747 = vmatprep.mubr.bf16.mxu0 0
      %1748 = vmatmul.mubr.bf16.gmra.mrb[0].mxu0 %v1571
      %v1749 = vpop.f32.mrb[0].mxu0
      %v1750 = vadd.f32 0.0, %v1749
      %v1751 = vpop.f32.mrb[0].mxu0
      %v1752 = vpop.f32.mrb[0].mxu0
      %v1753 = vadd.f32 0.0, %v1752
      %v1754 = vpop.f32.mrb[0].mxu0
      %1755 = vmatprep.mubr.bf16.mxu0 0
      %1756 = vmatmul.mubr.bf16.gmra.mrb[0].mxu0 %v1572
      %v1757 = vpop.f32.mrb[0].mxu0
      %v1758 = vadd.f32 0.0, %v1757
      %v1759 = vpop.f32.mrb[0].mxu0
      %v1760 = vpop.f32.mrb[0].mxu0
      %v1761 = vadd.f32 0.0, %v1760
      %v1762 = vpop.f32.mrb[0].mxu0
      %1763 = vmatprep.mubr.bf16.mxu0 0
      %1764 = vmatmul.mubr.bf16.gmra.mrb[0].mxu0 %v1573
      %v1765 = vpop.f32.mrb[0].mxu0
      %v1766 = vadd.f32 0.0, %v1765
      %v1767 = vpop.f32.mrb[0].mxu0
      %v1768 = vpop.f32.mrb[0].mxu0
      %v1769 = vadd.f32 0.0, %v1768
      %v1770 = vpop.f32.mrb[0].mxu0
      %1771 = vmatprep.mubr.bf16.mxu0 0
      %1772 = vmatmul.mubr.bf16.gmra.mrb[0].mxu0 %v1574
      %v1773 = vpop.f32.mrb[0].mxu0
      %v1774 = vadd.f32 0.0, %v1773
      %v1775 = vpop.f32.mrb[0].mxu0
      %v1776 = vpop.f32.mrb[0].mxu0
      %v1777 = vadd.f32 0.0, %v1776
      %v1778 = vpop.f32.mrb[0].mxu0
      %1779 = vmatprep.mubr.bf16.mxu0 0
      %1780 = vmatmul.mubr.bf16.gmra.mrb[0].mxu0 %v1575
      %v1781 = vpop.f32.mrb[0].mxu0
      %v1782 = vadd.f32 0.0, %v1781
      %v1783 = vpop.f32.mrb[0].mxu0
      %v1784 = vpop.f32.mrb[0].mxu0
      %v1785 = vadd.f32 0.0, %v1784
      %v1786 = vpop.f32.mrb[0].mxu0
      %1787 = vmatprep.mubr.bf16.mxu0 0
      %1788 = vmatmul.mubr.bf16.gmra.mrb[0].mxu0 %v1576
      %v1789 = vpop.f32.mrb[0].mxu0
      %v1790 = vadd.f32 0.0, %v1789
      %v1791 = vpop.f32.mrb[0].mxu0
      %v1792 = vpop.f32.mrb[0].mxu0
      %v1793 = vadd.f32 0.0, %v1792
      %v1794 = vpop.f32.mrb[0].mxu0
      %1795 = vmatprep.mubr.bf16.mxu0 0
      %1796 = vmatmul.mubr.bf16.gmra.mrb[0].mxu0 %v1577
      %v1797 = vpop.f32.mrb[0].mxu0
      %v1798 = vadd.f32 0.0, %v1797
      %v1799 = vpop.f32.mrb[0].mxu0
      %v1800 = vpop.f32.mrb[0].mxu0
      %v1801 = vadd.f32 0.0, %v1800
      %v1802 = vpop.f32.mrb[0].mxu0
      %1803 = vdwg.mxu0
      %v1804 = vadd.f32 %v1498, %v1678
      %v1805 = vadd.f32 %v1499, %v1681
      %v1806 = vadd.f32 %v1500, %v1686
      %v1807 = vadd.f32 %v1501, %v1689
      %v1808 = vadd.f32 %v1502, %v1694
      %v1809 = vadd.f32 %v1503, %v1697
      %v1810 = vadd.f32 %v1504, %v1702
      %v1811 = vadd.f32 %v1505, %v1705
      %v1812 = vadd.f32 %v1506, %v1710
      %v1813 = vadd.f32 %v1507, %v1713
      %v1814 = vadd.f32 %v1508, %v1718
      %v1815 = vadd.f32 %v1509, %v1721
      %v1816 = vadd.f32 %v1510, %v1726
      %v1817 = vadd.f32 %v1511, %v1729
      %v1818 = vadd.f32 %v1512, %v1734
      %v1819 = vadd.f32 %v1513, %v1737
      %v1820 = vadd.f32 %v1514, %v1742
      %v1821 = vadd.f32 %v1515, %v1745
      %v1822 = vadd.f32 %v1516, %v1750
      %v1823 = vadd.f32 %v1517, %v1753
      %v1824 = vadd.f32 %v1518, %v1758
      %v1825 = vadd.f32 %v1519, %v1761
      %v1826 = vadd.f32 %v1520, %v1766
      %v1827 = vadd.f32 %v1521, %v1769
      %v1828 = vadd.f32 %v1522, %v1774
      %v1829 = vadd.f32 %v1523, %v1777
      %v1830 = vadd.f32 %v1524, %v1782
      %v1831 = vadd.f32 %v1525, %v1785
      %v1832 = vadd.f32 %v1526, %v1790
      %v1833 = vadd.f32 %v1527, %v1793
      %v1834 = vadd.f32 %v1528, %v1798
      %v1835 = vadd.f32 %v1529, %v1801
      %v1836 = vld [vmem:[%s1223 + $0x2] sm:$0xff]
      %v1837 = vld [vmem:[%s1223 + $0xa] sm:$0xff]
      %v1838 = vld [vmem:[%s1223 + $0x1a] sm:$0xff]
      %v1839 = vld [vmem:[%s1223 + $0x22] sm:$0xff]
      %v1840 = vld [vmem:[%s1223 + $0x32] sm:$0xff]
      %v1841 = vld [vmem:[%s1223 + $0x3a] sm:$0xff]
      %v1842 = vld [vmem:[%s1223 + $0x4a] sm:$0xff]
      %v1843 = vld [vmem:[%s1223 + $0x52] sm:$0xff]
      %v1844 = vld [vmem:[%s1223 + $0x62] sm:$0xff]
      %v1845 = vld [vmem:[%s1223 + $0x6a] sm:$0xff]
      %v1846 = vld [vmem:[%s1223 + $0x7a] sm:$0xff]
      %v1847 = vld [vmem:[%s1223 + $0x82] sm:$0xff]
      %v1848 = vld [vmem:[%s1223 + $0x92] sm:$0xff]
      %v1849 = vld [vmem:[%s1223 + $0x9a] sm:$0xff]
      %v1850 = vld [vmem:[%s1223 + $0xaa] sm:$0xff]
      %v1851 = vld [vmem:[%s1223 + $0xb2] sm:$0xff]
      %v1852 = vld [vmem:[%s1223 + $0xc2] sm:$0xff]
      %v1853 = vld [vmem:[%s1223 + $0xca] sm:$0xff]
      %v1854 = vld [vmem:[%s1223 + $0xda] sm:$0xff]
      %v1855 = vld [vmem:[%s1223 + $0xe2] sm:$0xff]
      %v1856 = vld [vmem:[%s1223 + $0xf2] sm:$0xff]
      %v1857 = vld [vmem:[%s1223 + $0xfa] sm:$0xff]
      %v1858 = vld [vmem:[%s1223 + $0x10a] sm:$0xff]
      %v1859 = vld [vmem:[%s1223 + $0x112] sm:$0xff]
      %v1860 = vld [vmem:[%s1223 + $0x122] sm:$0xff]
      %v1861 = vld [vmem:[%s1223 + $0x12a] sm:$0xff]
      %v1862 = vld [vmem:[%s1223 + $0x13a] sm:$0xff]
      %v1863 = vld [vmem:[%s1223 + $0x142] sm:$0xff]
      %v1864 = vld [vmem:[%s1223 + $0x152] sm:$0xff]
      %v1865 = vld [vmem:[%s1223 + $0x15a] sm:$0xff]
      %v1866 = vld [vmem:[%s1223 + $0x16a] sm:$0xff]
      %v1867 = vld [vmem:[%s1223 + $0x172] sm:$0xff]
      %v1868 = vpack.c.bf16 %v1837, %v1836
      %v1869 = vpack.c.bf16 %v1839, %v1838
      %v1870 = vpack.c.bf16 %v1841, %v1840
      %v1871 = vpack.c.bf16 %v1843, %v1842
      %v1872 = vpack.c.bf16 %v1845, %v1844
      %v1873 = vpack.c.bf16 %v1847, %v1846
      %v1874 = vpack.c.bf16 %v1849, %v1848
      %v1875 = vpack.c.bf16 %v1851, %v1850
      %v1876 = vpack.c.bf16 %v1853, %v1852
      %v1877 = vpack.c.bf16 %v1855, %v1854
      %v1878 = vpack.c.bf16 %v1857, %v1856
      %v1879 = vpack.c.bf16 %v1859, %v1858
      %v1880 = vpack.c.bf16 %v1861, %v1860
      %v1881 = vpack.c.bf16 %v1863, %v1862
      %v1882 = vpack.c.bf16 %v1865, %v1864
      %v1883 = vpack.c.bf16 %v1867, %v1866
      %s1884 = scalar_lea.vmem %s1, 320
      %v1885 = vld [vmem:[%s1884] sm:$0xf]
      %v1886 = vld [vmem:[%s1884 + $0x4] sm:$0xf]
      %v1887 = vld [vmem:[%s1884 + $0x8] sm:$0xf]
      %v1888 = vld [vmem:[%s1884 + $0xc] sm:$0xf]
      %v1889 = vld [vmem:[%s1884 + $0x10] sm:$0xf]
      %v1890 = vld [vmem:[%s1884 + $0x14] sm:$0xf]
      %v1891 = vld [vmem:[%s1884 + $0x18] sm:$0xf]
      %v1892 = vld [vmem:[%s1884 + $0x1c] sm:$0xf]
      %v1893 = vld [vmem:[%s1884 + $0x20] sm:$0xf]
      %v1894 = vld [vmem:[%s1884 + $0x24] sm:$0xf]
      %v1895 = vld [vmem:[%s1884 + $0x28] sm:$0xf]
      %v1896 = vld [vmem:[%s1884 + $0x2c] sm:$0xf]
      %v1897 = vld [vmem:[%s1884 + $0x30] sm:$0xf]
      %v1898 = vld [vmem:[%s1884 + $0x34] sm:$0xf]
      %v1899 = vld [vmem:[%s1884 + $0x38] sm:$0xf]
      %v1900 = vld [vmem:[%s1884 + $0x3c] sm:$0xf]
      %v1917 = vunpack.c.l.b16 %v1885
      %v1918 = vunpack.c.l.b16 %v1886
      %v1919 = vunpack.c.l.b16 %v1887
      %v1920 = vunpack.c.l.b16 %v1888
      %v1921 = vunpack.c.l.b16 %v1889
      %v1922 = vunpack.c.l.b16 %v1890
      %v1923 = vunpack.c.l.b16 %v1891
      %v1924 = vunpack.c.l.b16 %v1892
      %v1925 = vunpack.c.l.b16 %v1893
      %v1926 = vunpack.c.l.b16 %v1894
      %v1927 = vunpack.c.l.b16 %v1895
      %v1928 = vunpack.c.l.b16 %v1896
      %v1929 = vunpack.c.l.b16 %v1897
      %v1930 = vunpack.c.l.b16 %v1898
      %v1931 = vunpack.c.l.b16 %v1899
      %v1932 = vunpack.c.l.b16 %v1900
      %v1933 = vpack.c.b16 %v1918, %v1917
      %v1934 = vpack.c.b16 %v1920, %v1919
      %v1935 = vpack.c.b16 %v1922, %v1921
      %v1936 = vpack.c.b16 %v1924, %v1923
      %v1937 = vpack.c.b16 %v1926, %v1925
      %v1938 = vpack.c.b16 %v1928, %v1927
      %v1939 = vpack.c.b16 %v1930, %v1929
      %v1940 = vpack.c.b16 %v1932, %v1931
      %1949 = vmatprep.subr.bf16.mxu0 0
      %1950 = vmatpush1.bf16.msra.mxu0 %v1933
      %1951 = vmatprep.subr.bf16.mxu0 0
      %1952 = vmatpush1.bf16.msra.mxu0 %v1934
      %1953 = vmatprep.subr.bf16.mxu0 0
      %1954 = vmatpush1.bf16.msra.mxu0 %v1935
      %1955 = vmatprep.subr.bf16.mxu0 0
      %1956 = vmatpush1.bf16.msra.mxu0 %v1936
      %1957 = vmatprep.subr.bf16.mxu0 0
      %1958 = vmatpush1.bf16.msra.mxu0 %v1937
      %1959 = vmatprep.subr.bf16.mxu0 0
      %1960 = vmatpush1.bf16.msra.mxu0 %v1938
      %1961 = vmatprep.subr.bf16.mxu0 0
      %1962 = vmatpush1.bf16.msra.mxu0 %v1939
      %1963 = vmatprep.subr.bf16.mxu0 0
      %1964 = vmatpush1.bf16.msra.mxu0 %v1940
      %1965 = vmatprep.subr.bf16.mxu0 0
      %1966 = vmatpush1.bf16.msra.mxu0 0
      %1967 = vmatprep.subr.bf16.mxu0 0
      %1968 = vmatpush1.bf16.msra.mxu0 0
      %1969 = vmatprep.subr.bf16.mxu0 0
      %1970 = vmatpush1.bf16.msra.mxu0 0
      %1971 = vmatprep.subr.bf16.mxu0 0
      %1972 = vmatpush1.bf16.msra.mxu0 0
      %1973 = vmatprep.subr.bf16.mxu0 0
      %1974 = vmatpush1.bf16.msra.mxu0 0
      %1975 = vmatprep.subr.bf16.mxu0 0
      %1976 = vmatpush1.bf16.msra.mxu0 0
      %1977 = vmatprep.subr.bf16.mxu0 0
      %1978 = vmatpush1.bf16.msra.mxu0 0
      %1979 = vmatprep.subr.bf16.mxu0 0
      %1980 = vmatpush1.bf16.msra.mxu0 0
      %1981 = vmatprep.mubr.bf16.mxu0 0
      %1982 = vmatmul.mubr.bf16.gmra.mrb[0].mxu0 %v1868
      %v1983 = vpop.f32.mrb[0].mxu0
      %v1984 = vadd.f32 0.0, %v1983
      %v1985 = vpop.f32.mrb[0].mxu0
      %v1986 = vpop.f32.mrb[0].mxu0
      %v1987 = vadd.f32 0.0, %v1986
      %v1988 = vpop.f32.mrb[0].mxu0
      %1989 = vmatprep.mubr.bf16.mxu0 0
      %1990 = vmatmul.mubr.bf16.gmra.mrb[0].mxu0 %v1869
      %v1991 = vpop.f32.mrb[0].mxu0
      %v1992 = vadd.f32 0.0, %v1991
      %v1993 = vpop.f32.mrb[0].mxu0
      %v1994 = vpop.f32.mrb[0].mxu0
      %v1995 = vadd.f32 0.0, %v1994
      %v1996 = vpop.f32.mrb[0].mxu0
      %1997 = vmatprep.mubr.bf16.mxu0 0
      %1998 = vmatmul.mubr.bf16.gmra.mrb[0].mxu0 %v1870
      %v1999 = vpop.f32.mrb[0].mxu0
      %v2000 = vadd.f32 0.0, %v1999
      %v2001 = vpop.f32.mrb[0].mxu0
      %v2002 = vpop.f32.mrb[0].mxu0
      %v2003 = vadd.f32 0.0, %v2002
      %v2004 = vpop.f32.mrb[0].mxu0
      %2005 = vmatprep.mubr.bf16.mxu0 0
      %2006 = vmatmul.mubr.bf16.gmra.mrb[0].mxu0 %v1871
      %v2007 = vpop.f32.mrb[0].mxu0
      %v2008 = vadd.f32 0.0, %v2007
      %v2009 = vpop.f32.mrb[0].mxu0
      %v2010 = vpop.f32.mrb[0].mxu0
      %v2011 = vadd.f32 0.0, %v2010
      %v2012 = vpop.f32.mrb[0].mxu0
      %2013 = vmatprep.mubr.bf16.mxu0 0
      %2014 = vmatmul.mubr.bf16.gmra.mrb[0].mxu0 %v1872
      %v2015 = vpop.f32.mrb[0].mxu0
      %v2016 = vadd.f32 0.0, %v2015
      %v2017 = vpop.f32.mrb[0].mxu0
      %v2018 = vpop.f32.mrb[0].mxu0
      %v2019 = vadd.f32 0.0, %v2018
      %v2020 = vpop.f32.mrb[0].mxu0
      %2021 = vmatprep.mubr.bf16.mxu0 0
      %2022 = vmatmul.mubr.bf16.gmra.mrb[0].mxu0 %v1873
      %v2023 = vpop.f32.mrb[0].mxu0
      %v2024 = vadd.f32 0.0, %v2023
      %v2025 = vpop.f32.mrb[0].mxu0
      %v2026 = vpop.f32.mrb[0].mxu0
      %v2027 = vadd.f32 0.0, %v2026
      %v2028 = vpop.f32.mrb[0].mxu0
      %2029 = vmatprep.mubr.bf16.mxu0 0
      %2030 = vmatmul.mubr.bf16.gmra.mrb[0].mxu0 %v1874
      %v2031 = vpop.f32.mrb[0].mxu0
      %v2032 = vadd.f32 0.0, %v2031
      %v2033 = vpop.f32.mrb[0].mxu0
      %v2034 = vpop.f32.mrb[0].mxu0
      %v2035 = vadd.f32 0.0, %v2034
      %v2036 = vpop.f32.mrb[0].mxu0
      %2037 = vmatprep.mubr.bf16.mxu0 0
      %2038 = vmatmul.mubr.bf16.gmra.mrb[0].mxu0 %v1875
      %v2039 = vpop.f32.mrb[0].mxu0
      %v2040 = vadd.f32 0.0, %v2039
      %v2041 = vpop.f32.mrb[0].mxu0
      %v2042 = vpop.f32.mrb[0].mxu0
      %v2043 = vadd.f32 0.0, %v2042
      %v2044 = vpop.f32.mrb[0].mxu0
      %2045 = vmatprep.mubr.bf16.mxu0 0
      %2046 = vmatmul.mubr.bf16.gmra.mrb[0].mxu0 %v1876
      %v2047 = vpop.f32.mrb[0].mxu0
      %v2048 = vadd.f32 0.0, %v2047
      %v2049 = vpop.f32.mrb[0].mxu0
      %v2050 = vpop.f32.mrb[0].mxu0
      %v2051 = vadd.f32 0.0, %v2050
      %v2052 = vpop.f32.mrb[0].mxu0
      %2053 = vmatprep.mubr.bf16.mxu0 0
      %2054 = vmatmul.mubr.bf16.gmra.mrb[0].mxu0 %v1877
      %v2055 = vpop.f32.mrb[0].mxu0
      %v2056 = vadd.f32 0.0, %v2055
      %v2057 = vpop.f32.mrb[0].mxu0
      %v2058 = vpop.f32.mrb[0].mxu0
      %v2059 = vadd.f32 0.0, %v2058
      %v2060 = vpop.f32.mrb[0].mxu0
      %2061 = vmatprep.mubr.bf16.mxu0 0
      %2062 = vmatmul.mubr.bf16.gmra.mrb[0].mxu0 %v1878
      %v2063 = vpop.f32.mrb[0].mxu0
      %v2064 = vadd.f32 0.0, %v2063
      %v2065 = vpop.f32.mrb[0].mxu0
      %v2066 = vpop.f32.mrb[0].mxu0
      %v2067 = vadd.f32 0.0, %v2066
      %v2068 = vpop.f32.mrb[0].mxu0
      %2069 = vmatprep.mubr.bf16.mxu0 0
      %2070 = vmatmul.mubr.bf16.gmra.mrb[0].mxu0 %v1879
      %v2071 = vpop.f32.mrb[0].mxu0
      %v2072 = vadd.f32 0.0, %v2071
      %v2073 = vpop.f32.mrb[0].mxu0
      %v2074 = vpop.f32.mrb[0].mxu0
      %v2075 = vadd.f32 0.0, %v2074
      %v2076 = vpop.f32.mrb[0].mxu0
      %2077 = vmatprep.mubr.bf16.mxu0 0
      %2078 = vmatmul.mubr.bf16.gmra.mrb[0].mxu0 %v1880
      %v2079 = vpop.f32.mrb[0].mxu0
      %v2080 = vadd.f32 0.0, %v2079
      %v2081 = vpop.f32.mrb[0].mxu0
      %v2082 = vpop.f32.mrb[0].mxu0
      %v2083 = vadd.f32 0.0, %v2082
      %v2084 = vpop.f32.mrb[0].mxu0
      %2085 = vmatprep.mubr.bf16.mxu0 0
      %2086 = vmatmul.mubr.bf16.gmra.mrb[0].mxu0 %v1881
      %v2087 = vpop.f32.mrb[0].mxu0
      %v2088 = vadd.f32 0.0, %v2087
      %v2089 = vpop.f32.mrb[0].mxu0
      %v2090 = vpop.f32.mrb[0].mxu0
      %v2091 = vadd.f32 0.0, %v2090
      %v2092 = vpop.f32.mrb[0].mxu0
      %2093 = vmatprep.mubr.bf16.mxu0 0
      %2094 = vmatmul.mubr.bf16.gmra.mrb[0].mxu0 %v1882
      %v2095 = vpop.f32.mrb[0].mxu0
      %v2096 = vadd.f32 0.0, %v2095
      %v2097 = vpop.f32.mrb[0].mxu0
      %v2098 = vpop.f32.mrb[0].mxu0
      %v2099 = vadd.f32 0.0, %v2098
      %v2100 = vpop.f32.mrb[0].mxu0
      %2101 = vmatprep.mubr.bf16.mxu0 0
      %2102 = vmatmul.mubr.bf16.gmra.mrb[0].mxu0 %v1883
      %v2103 = vpop.f32.mrb[0].mxu0
      %v2104 = vadd.f32 0.0, %v2103
      %v2105 = vpop.f32.mrb[0].mxu0
      %v2106 = vpop.f32.mrb[0].mxu0
      %v2107 = vadd.f32 0.0, %v2106
      %v2108 = vpop.f32.mrb[0].mxu0
      %2109 = vdwg.mxu0
      %v2110 = vadd.f32 %v1804, %v1984
      %v2111 = vadd.f32 %v1805, %v1987
      %v2112 = vadd.f32 %v1806, %v1992
      %v2113 = vadd.f32 %v1807, %v1995
      %v2114 = vadd.f32 %v1808, %v2000
      %v2115 = vadd.f32 %v1809, %v2003
      %v2116 = vadd.f32 %v1810, %v2008
      %v2117 = vadd.f32 %v1811, %v2011
      %v2118 = vadd.f32 %v1812, %v2016
      %v2119 = vadd.f32 %v1813, %v2019
      %v2120 = vadd.f32 %v1814, %v2024
      %v2121 = vadd.f32 %v1815, %v2027
      %v2122 = vadd.f32 %v1816, %v2032
      %v2123 = vadd.f32 %v1817, %v2035
      %v2124 = vadd.f32 %v1818, %v2040
      %v2125 = vadd.f32 %v1819, %v2043
      %v2126 = vadd.f32 %v1820, %v2048
      %v2127 = vadd.f32 %v1821, %v2051
      %v2128 = vadd.f32 %v1822, %v2056
      %v2129 = vadd.f32 %v1823, %v2059
      %v2130 = vadd.f32 %v1824, %v2064
      %v2131 = vadd.f32 %v1825, %v2067
      %v2132 = vadd.f32 %v1826, %v2072
      %v2133 = vadd.f32 %v1827, %v2075
      %v2134 = vadd.f32 %v1828, %v2080
      %v2135 = vadd.f32 %v1829, %v2083
      %v2136 = vadd.f32 %v1830, %v2088
      %v2137 = vadd.f32 %v1831, %v2091
      %v2138 = vadd.f32 %v1832, %v2096
      %v2139 = vadd.f32 %v1833, %v2099
      %v2140 = vadd.f32 %v1834, %v2104
      %v2141 = vadd.f32 %v1835, %v2107
      %s2142 = scalar_lea.vmem %s350, 48
      %v2143 = vld [vmem:[%s2142] sm:$0xff]
      %v2144 = vld [vmem:[%s2142 + $0x8] sm:$0xff]
      %v2145 = vld [vmem:[%s2142 + $0x18] sm:$0xff]
      %v2146 = vld [vmem:[%s2142 + $0x20] sm:$0xff]
      %v2147 = vld [vmem:[%s2142 + $0x30] sm:$0xff]
      %v2148 = vld [vmem:[%s2142 + $0x38] sm:$0xff]
      %v2149 = vld [vmem:[%s2142 + $0x48] sm:$0xff]
      %v2150 = vld [vmem:[%s2142 + $0x50] sm:$0xff]
      %v2151 = vld [vmem:[%s2142 + $0x60] sm:$0xff]
      %v2152 = vld [vmem:[%s2142 + $0x68] sm:$0xff]
      %v2153 = vld [vmem:[%s2142 + $0x78] sm:$0xff]
      %v2154 = vld [vmem:[%s2142 + $0x80] sm:$0xff]
      %v2155 = vld [vmem:[%s2142 + $0x90] sm:$0xff]
      %v2156 = vld [vmem:[%s2142 + $0x98] sm:$0xff]
      %v2157 = vld [vmem:[%s2142 + $0xa8] sm:$0xff]
      %v2158 = vld [vmem:[%s2142 + $0xb0] sm:$0xff]
      %v2159 = vld [vmem:[%s2142 + $0xc0] sm:$0xff]
      %v2160 = vld [vmem:[%s2142 + $0xc8] sm:$0xff]
      %v2161 = vld [vmem:[%s2142 + $0xd8] sm:$0xff]
      %v2162 = vld [vmem:[%s2142 + $0xe0] sm:$0xff]
      %v2163 = vld [vmem:[%s2142 + $0xf0] sm:$0xff]
      %v2164 = vld [vmem:[%s2142 + $0xf8] sm:$0xff]
      %v2165 = vld [vmem:[%s2142 + $0x108] sm:$0xff]
      %v2166 = vld [vmem:[%s2142 + $0x110] sm:$0xff]
      %v2167 = vld [vmem:[%s2142 + $0x120] sm:$0xff]
      %v2168 = vld [vmem:[%s2142 + $0x128] sm:$0xff]
      %v2169 = vld [vmem:[%s2142 + $0x138] sm:$0xff]
      %v2170 = vld [vmem:[%s2142 + $0x140] sm:$0xff]
      %v2171 = vld [vmem:[%s2142 + $0x150] sm:$0xff]
      %v2172 = vld [vmem:[%s2142 + $0x158] sm:$0xff]
      %v2173 = vld [vmem:[%s2142 + $0x168] sm:$0xff]
      %v2174 = vld [vmem:[%s2142 + $0x170] sm:$0xff]
      %v2175 = vpack.c.bf16 %v2144, %v2143
      %v2176 = vpack.c.bf16 %v2146, %v2145
      %v2177 = vpack.c.bf16 %v2148, %v2147
      %v2178 = vpack.c.bf16 %v2150, %v2149
      %v2179 = vpack.c.bf16 %v2152, %v2151
      %v2180 = vpack.c.bf16 %v2154, %v2153
      %v2181 = vpack.c.bf16 %v2156, %v2155
      %v2182 = vpack.c.bf16 %v2158, %v2157
      %v2183 = vpack.c.bf16 %v2160, %v2159
      %v2184 = vpack.c.bf16 %v2162, %v2161
      %v2185 = vpack.c.bf16 %v2164, %v2163
      %v2186 = vpack.c.bf16 %v2166, %v2165
      %v2187 = vpack.c.bf16 %v2168, %v2167
      %v2188 = vpack.c.bf16 %v2170, %v2169
      %v2189 = vpack.c.bf16 %v2172, %v2171
      %v2190 = vpack.c.bf16 %v2174, %v2173
      %s2191 = scalar_lea.vmem %s1, 384
      %v2192 = vld [vmem:[%s2191] sm:$0xf]
      %v2193 = vld [vmem:[%s2191 + $0x4] sm:$0xf]
      %v2194 = vld [vmem:[%s2191 + $0x8] sm:$0xf]
      %v2195 = vld [vmem:[%s2191 + $0xc] sm:$0xf]
      %v2196 = vld [vmem:[%s2191 + $0x10] sm:$0xf]
      %v2197 = vld [vmem:[%s2191 + $0x14] sm:$0xf]
      %v2198 = vld [vmem:[%s2191 + $0x18] sm:$0xf]
      %v2199 = vld [vmem:[%s2191 + $0x1c] sm:$0xf]
      %v2200 = vld [vmem:[%s2191 + $0x20] sm:$0xf]
      %v2201 = vld [vmem:[%s2191 + $0x24] sm:$0xf]
      %v2202 = vld [vmem:[%s2191 + $0x28] sm:$0xf]
      %v2203 = vld [vmem:[%s2191 + $0x2c] sm:$0xf]
      %v2204 = vld [vmem:[%s2191 + $0x30] sm:$0xf]
      %v2205 = vld [vmem:[%s2191 + $0x34] sm:$0xf]
      %v2206 = vld [vmem:[%s2191 + $0x38] sm:$0xf]
      %v2207 = vld [vmem:[%s2191 + $0x3c] sm:$0xf]
      %v2224 = vunpack.c.l.b16 %v2192
      %v2225 = vunpack.c.l.b16 %v2193
      %v2226 = vunpack.c.l.b16 %v2194
      %v2227 = vunpack.c.l.b16 %v2195
      %v2228 = vunpack.c.l.b16 %v2196
      %v2229 = vunpack.c.l.b16 %v2197
      %v2230 = vunpack.c.l.b16 %v2198
      %v2231 = vunpack.c.l.b16 %v2199
      %v2232 = vunpack.c.l.b16 %v2200
      %v2233 = vunpack.c.l.b16 %v2201
      %v2234 = vunpack.c.l.b16 %v2202
      %v2235 = vunpack.c.l.b16 %v2203
      %v2236 = vunpack.c.l.b16 %v2204
      %v2237 = vunpack.c.l.b16 %v2205
      %v2238 = vunpack.c.l.b16 %v2206
      %v2239 = vunpack.c.l.b16 %v2207
      %v2240 = vpack.c.b16 %v2225, %v2224
      %v2241 = vpack.c.b16 %v2227, %v2226
      %v2242 = vpack.c.b16 %v2229, %v2228
      %v2243 = vpack.c.b16 %v2231, %v2230
      %v2244 = vpack.c.b16 %v2233, %v2232
      %v2245 = vpack.c.b16 %v2235, %v2234
      %v2246 = vpack.c.b16 %v2237, %v2236
      %v2247 = vpack.c.b16 %v2239, %v2238
      %2256 = vmatprep.subr.bf16.mxu0 0
      %2257 = vmatpush1.bf16.msra.mxu0 %v2240
      %2258 = vmatprep.subr.bf16.mxu0 0
      %2259 = vmatpush1.bf16.msra.mxu0 %v2241
      %2260 = vmatprep.subr.bf16.mxu0 0
      %2261 = vmatpush1.bf16.msra.mxu0 %v2242
      %2262 = vmatprep.subr.bf16.mxu0 0
      %2263 = vmatpush1.bf16.msra.mxu0 %v2243
      %2264 = vmatprep.subr.bf16.mxu0 0
      %2265 = vmatpush1.bf16.msra.mxu0 %v2244
      %2266 = vmatprep.subr.bf16.mxu0 0
      %2267 = vmatpush1.bf16.msra.mxu0 %v2245
      %2268 = vmatprep.subr.bf16.mxu0 0
      %2269 = vmatpush1.bf16.msra.mxu0 %v2246
      %2270 = vmatprep.subr.bf16.mxu0 0
      %2271 = vmatpush1.bf16.msra.mxu0 %v2247
      %2272 = vmatprep.subr.bf16.mxu0 0
      %2273 = vmatpush1.bf16.msra.mxu0 0
      %2274 = vmatprep.subr.bf16.mxu0 0
      %2275 = vmatpush1.bf16.msra.mxu0 0
      %2276 = vmatprep.subr.bf16.mxu0 0
      %2277 = vmatpush1.bf16.msra.mxu0 0
      %2278 = vmatprep.subr.bf16.mxu0 0
      %2279 = vmatpush1.bf16.msra.mxu0 0
      %2280 = vmatprep.subr.bf16.mxu0 0
      %2281 = vmatpush1.bf16.msra.mxu0 0
      %2282 = vmatprep.subr.bf16.mxu0 0
      %2283 = vmatpush1.bf16.msra.mxu0 0
      %2284 = vmatprep.subr.bf16.mxu0 0
      %2285 = vmatpush1.bf16.msra.mxu0 0
      %2286 = vmatprep.subr.bf16.mxu0 0
      %2287 = vmatpush1.bf16.msra.mxu0 0
      %2288 = vmatprep.mubr.bf16.mxu0 0
      %2289 = vmatmul.mubr.bf16.gmra.mrb[0].mxu0 %v2175
      %v2290 = vpop.f32.mrb[0].mxu0
      %v2291 = vadd.f32 0.0, %v2290
      %v2292 = vpop.f32.mrb[0].mxu0
      %v2293 = vpop.f32.mrb[0].mxu0
      %v2294 = vadd.f32 0.0, %v2293
      %v2295 = vpop.f32.mrb[0].mxu0
      %2296 = vmatprep.mubr.bf16.mxu0 0
      %2297 = vmatmul.mubr.bf16.gmra.mrb[0].mxu0 %v2176
      %v2298 = vpop.f32.mrb[0].mxu0
      %v2299 = vadd.f32 0.0, %v2298
      %v2300 = vpop.f32.mrb[0].mxu0
      %v2301 = vpop.f32.mrb[0].mxu0
      %v2302 = vadd.f32 0.0, %v2301
      %v2303 = vpop.f32.mrb[0].mxu0
      %2304 = vmatprep.mubr.bf16.mxu0 0
      %2305 = vmatmul.mubr.bf16.gmra.mrb[0].mxu0 %v2177
      %v2306 = vpop.f32.mrb[0].mxu0
      %v2307 = vadd.f32 0.0, %v2306
      %v2308 = vpop.f32.mrb[0].mxu0
      %v2309 = vpop.f32.mrb[0].mxu0
      %v2310 = vadd.f32 0.0, %v2309
      %v2311 = vpop.f32.mrb[0].mxu0
      %2312 = vmatprep.mubr.bf16.mxu0 0
      %2313 = vmatmul.mubr.bf16.gmra.mrb[0].mxu0 %v2178
      %v2314 = vpop.f32.mrb[0].mxu0
      %v2315 = vadd.f32 0.0, %v2314
      %v2316 = vpop.f32.mrb[0].mxu0
      %v2317 = vpop.f32.mrb[0].mxu0
      %v2318 = vadd.f32 0.0, %v2317
      %v2319 = vpop.f32.mrb[0].mxu0
      %2320 = vmatprep.mubr.bf16.mxu0 0
      %2321 = vmatmul.mubr.bf16.gmra.mrb[0].mxu0 %v2179
      %v2322 = vpop.f32.mrb[0].mxu0
      %v2323 = vadd.f32 0.0, %v2322
      %v2324 = vpop.f32.mrb[0].mxu0
      %v2325 = vpop.f32.mrb[0].mxu0
      %v2326 = vadd.f32 0.0, %v2325
      %v2327 = vpop.f32.mrb[0].mxu0
      %2328 = vmatprep.mubr.bf16.mxu0 0
      %2329 = vmatmul.mubr.bf16.gmra.mrb[0].mxu0 %v2180
      %v2330 = vpop.f32.mrb[0].mxu0
      %v2331 = vadd.f32 0.0, %v2330
      %v2332 = vpop.f32.mrb[0].mxu0
      %v2333 = vpop.f32.mrb[0].mxu0
      %v2334 = vadd.f32 0.0, %v2333
      %v2335 = vpop.f32.mrb[0].mxu0
      %2336 = vmatprep.mubr.bf16.mxu0 0
      %2337 = vmatmul.mubr.bf16.gmra.mrb[0].mxu0 %v2181
      %v2338 = vpop.f32.mrb[0].mxu0
      %v2339 = vadd.f32 0.0, %v2338
      %v2340 = vpop.f32.mrb[0].mxu0
      %v2341 = vpop.f32.mrb[0].mxu0
      %v2342 = vadd.f32 0.0, %v2341
      %v2343 = vpop.f32.mrb[0].mxu0
      %2344 = vmatprep.mubr.bf16.mxu0 0
      %2345 = vmatmul.mubr.bf16.gmra.mrb[0].mxu0 %v2182
      %v2346 = vpop.f32.mrb[0].mxu0
      %v2347 = vadd.f32 0.0, %v2346
      %v2348 = vpop.f32.mrb[0].mxu0
      %v2349 = vpop.f32.mrb[0].mxu0
      %v2350 = vadd.f32 0.0, %v2349
      %v2351 = vpop.f32.mrb[0].mxu0
      %2352 = vmatprep.mubr.bf16.mxu0 0
      %2353 = vmatmul.mubr.bf16.gmra.mrb[0].mxu0 %v2183
      %v2354 = vpop.f32.mrb[0].mxu0
      %v2355 = vadd.f32 0.0, %v2354
      %v2356 = vpop.f32.mrb[0].mxu0
      %v2357 = vpop.f32.mrb[0].mxu0
      %v2358 = vadd.f32 0.0, %v2357
      %v2359 = vpop.f32.mrb[0].mxu0
      %2360 = vmatprep.mubr.bf16.mxu0 0
      %2361 = vmatmul.mubr.bf16.gmra.mrb[0].mxu0 %v2184
      %v2362 = vpop.f32.mrb[0].mxu0
      %v2363 = vadd.f32 0.0, %v2362
      %v2364 = vpop.f32.mrb[0].mxu0
      %v2365 = vpop.f32.mrb[0].mxu0
      %v2366 = vadd.f32 0.0, %v2365
      %v2367 = vpop.f32.mrb[0].mxu0
      %2368 = vmatprep.mubr.bf16.mxu0 0
      %2369 = vmatmul.mubr.bf16.gmra.mrb[0].mxu0 %v2185
      %v2370 = vpop.f32.mrb[0].mxu0
      %v2371 = vadd.f32 0.0, %v2370
      %v2372 = vpop.f32.mrb[0].mxu0
      %v2373 = vpop.f32.mrb[0].mxu0
      %v2374 = vadd.f32 0.0, %v2373
      %v2375 = vpop.f32.mrb[0].mxu0
      %2376 = vmatprep.mubr.bf16.mxu0 0
      %2377 = vmatmul.mubr.bf16.gmra.mrb[0].mxu0 %v2186
      %v2378 = vpop.f32.mrb[0].mxu0
      %v2379 = vadd.f32 0.0, %v2378
      %v2380 = vpop.f32.mrb[0].mxu0
      %v2381 = vpop.f32.mrb[0].mxu0
      %v2382 = vadd.f32 0.0, %v2381
      %v2383 = vpop.f32.mrb[0].mxu0
      %2384 = vmatprep.mubr.bf16.mxu0 0
      %2385 = vmatmul.mubr.bf16.gmra.mrb[0].mxu0 %v2187
      %v2386 = vpop.f32.mrb[0].mxu0
      %v2387 = vadd.f32 0.0, %v2386
      %v2388 = vpop.f32.mrb[0].mxu0
      %v2389 = vpop.f32.mrb[0].mxu0
      %v2390 = vadd.f32 0.0, %v2389
      %v2391 = vpop.f32.mrb[0].mxu0
      %2392 = vmatprep.mubr.bf16.mxu0 0
      %2393 = vmatmul.mubr.bf16.gmra.mrb[0].mxu0 %v2188
      %v2394 = vpop.f32.mrb[0].mxu0
      %v2395 = vadd.f32 0.0, %v2394
      %v2396 = vpop.f32.mrb[0].mxu0
      %v2397 = vpop.f32.mrb[0].mxu0
      %v2398 = vadd.f32 0.0, %v2397
      %v2399 = vpop.f32.mrb[0].mxu0
      %2400 = vmatprep.mubr.bf16.mxu0 0
      %2401 = vmatmul.mubr.bf16.gmra.mrb[0].mxu0 %v2189
      %v2402 = vpop.f32.mrb[0].mxu0
      %v2403 = vadd.f32 0.0, %v2402
      %v2404 = vpop.f32.mrb[0].mxu0
      %v2405 = vpop.f32.mrb[0].mxu0
      %v2406 = vadd.f32 0.0, %v2405
      %v2407 = vpop.f32.mrb[0].mxu0
      %2408 = vmatprep.mubr.bf16.mxu0 0
      %2409 = vmatmul.mubr.bf16.gmra.mrb[0].mxu0 %v2190
      %v2410 = vpop.f32.mrb[0].mxu0
      %v2411 = vadd.f32 0.0, %v2410
      %v2412 = vpop.f32.mrb[0].mxu0
      %v2413 = vpop.f32.mrb[0].mxu0
      %v2414 = vadd.f32 0.0, %v2413
      %v2415 = vpop.f32.mrb[0].mxu0
      %2416 = vdwg.mxu0
      %v2417 = vadd.f32 %v2110, %v2291
      %v2418 = vadd.f32 %v2111, %v2294
      %v2419 = vadd.f32 %v2112, %v2299
      %v2420 = vadd.f32 %v2113, %v2302
      %v2421 = vadd.f32 %v2114, %v2307
      %v2422 = vadd.f32 %v2115, %v2310
      %v2423 = vadd.f32 %v2116, %v2315
      %v2424 = vadd.f32 %v2117, %v2318
      %v2425 = vadd.f32 %v2118, %v2323
      %v2426 = vadd.f32 %v2119, %v2326
      %v2427 = vadd.f32 %v2120, %v2331
      %v2428 = vadd.f32 %v2121, %v2334
      %v2429 = vadd.f32 %v2122, %v2339
      %v2430 = vadd.f32 %v2123, %v2342
      %v2431 = vadd.f32 %v2124, %v2347
      %v2432 = vadd.f32 %v2125, %v2350
      %v2433 = vadd.f32 %v2126, %v2355
      %v2434 = vadd.f32 %v2127, %v2358
      %v2435 = vadd.f32 %v2128, %v2363
      %v2436 = vadd.f32 %v2129, %v2366
      %v2437 = vadd.f32 %v2130, %v2371
      %v2438 = vadd.f32 %v2131, %v2374
      %v2439 = vadd.f32 %v2132, %v2379
      %v2440 = vadd.f32 %v2133, %v2382
      %v2441 = vadd.f32 %v2134, %v2387
      %v2442 = vadd.f32 %v2135, %v2390
      %v2443 = vadd.f32 %v2136, %v2395
      %v2444 = vadd.f32 %v2137, %v2398
      %v2445 = vadd.f32 %v2138, %v2403
      %v2446 = vadd.f32 %v2139, %v2406
      %v2447 = vadd.f32 %v2140, %v2411
      %v2448 = vadd.f32 %v2141, %v2414
      %v2449 = vld [vmem:[%s2142 + $0x1] sm:$0xff]
      %v2450 = vld [vmem:[%s2142 + $0x9] sm:$0xff]
      %v2451 = vld [vmem:[%s2142 + $0x19] sm:$0xff]
      %v2452 = vld [vmem:[%s2142 + $0x21] sm:$0xff]
      %v2453 = vld [vmem:[%s2142 + $0x31] sm:$0xff]
      %v2454 = vld [vmem:[%s2142 + $0x39] sm:$0xff]
      %v2455 = vld [vmem:[%s2142 + $0x49] sm:$0xff]
      %v2456 = vld [vmem:[%s2142 + $0x51] sm:$0xff]
      %v2457 = vld [vmem:[%s2142 + $0x61] sm:$0xff]
      %v2458 = vld [vmem:[%s2142 + $0x69] sm:$0xff]
      %v2459 = vld [vmem:[%s2142 + $0x79] sm:$0xff]
      %v2460 = vld [vmem:[%s2142 + $0x81] sm:$0xff]
      %v2461 = vld [vmem:[%s2142 + $0x91] sm:$0xff]
      %v2462 = vld [vmem:[%s2142 + $0x99] sm:$0xff]
      %v2463 = vld [vmem:[%s2142 + $0xa9] sm:$0xff]
      %v2464 = vld [vmem:[%s2142 + $0xb1] sm:$0xff]
      %v2465 = vld [vmem:[%s2142 + $0xc1] sm:$0xff]
      %v2466 = vld [vmem:[%s2142 + $0xc9] sm:$0xff]
      %v2467 = vld [vmem:[%s2142 + $0xd9] sm:$0xff]
      %v2468 = vld [vmem:[%s2142 + $0xe1] sm:$0xff]
      %v2469 = vld [vmem:[%s2142 + $0xf1] sm:$0xff]
      %v2470 = vld [vmem:[%s2142 + $0xf9] sm:$0xff]
      %v2471 = vld [vmem:[%s2142 + $0x109] sm:$0xff]
      %v2472 = vld [vmem:[%s2142 + $0x111] sm:$0xff]
      %v2473 = vld [vmem:[%s2142 + $0x121] sm:$0xff]
      %v2474 = vld [vmem:[%s2142 + $0x129] sm:$0xff]
      %v2475 = vld [vmem:[%s2142 + $0x139] sm:$0xff]
      %v2476 = vld [vmem:[%s2142 + $0x141] sm:$0xff]
      %v2477 = vld [vmem:[%s2142 + $0x151] sm:$0xff]
      %v2478 = vld [vmem:[%s2142 + $0x159] sm:$0xff]
      %v2479 = vld [vmem:[%s2142 + $0x169] sm:$0xff]
      %v2480 = vld [vmem:[%s2142 + $0x171] sm:$0xff]
      %v2481 = vpack.c.bf16 %v2450, %v2449
      %v2482 = vpack.c.bf16 %v2452, %v2451
      %v2483 = vpack.c.bf16 %v2454, %v2453
      %v2484 = vpack.c.bf16 %v2456, %v2455
      %v2485 = vpack.c.bf16 %v2458, %v2457
      %v2486 = vpack.c.bf16 %v2460, %v2459
      %v2487 = vpack.c.bf16 %v2462, %v2461
      %v2488 = vpack.c.bf16 %v2464, %v2463
      %v2489 = vpack.c.bf16 %v2466, %v2465
      %v2490 = vpack.c.bf16 %v2468, %v2467
      %v2491 = vpack.c.bf16 %v2470, %v2469
      %v2492 = vpack.c.bf16 %v2472, %v2471
      %v2493 = vpack.c.bf16 %v2474, %v2473
      %v2494 = vpack.c.bf16 %v2476, %v2475
      %v2495 = vpack.c.bf16 %v2478, %v2477
      %v2496 = vpack.c.bf16 %v2480, %v2479
      %s2497 = scalar_lea.vmem %s1, 448
      %v2498 = vld [vmem:[%s2497] sm:$0xf]
      %v2499 = vld [vmem:[%s2497 + $0x4] sm:$0xf]
      %v2500 = vld [vmem:[%s2497 + $0x8] sm:$0xf]
      %v2501 = vld [vmem:[%s2497 + $0xc] sm:$0xf]
      %v2502 = vld [vmem:[%s2497 + $0x10] sm:$0xf]
      %v2503 = vld [vmem:[%s2497 + $0x14] sm:$0xf]
      %v2504 = vld [vmem:[%s2497 + $0x18] sm:$0xf]
      %v2505 = vld [vmem:[%s2497 + $0x1c] sm:$0xf]
      %v2506 = vld [vmem:[%s2497 + $0x20] sm:$0xf]
      %v2507 = vld [vmem:[%s2497 + $0x24] sm:$0xf]
      %v2508 = vld [vmem:[%s2497 + $0x28] sm:$0xf]
      %v2509 = vld [vmem:[%s2497 + $0x2c] sm:$0xf]
      %v2510 = vld [vmem:[%s2497 + $0x30] sm:$0xf]
      %v2511 = vld [vmem:[%s2497 + $0x34] sm:$0xf]
      %v2512 = vld [vmem:[%s2497 + $0x38] sm:$0xf]
      %v2513 = vld [vmem:[%s2497 + $0x3c] sm:$0xf]
      %v2530 = vunpack.c.l.b16 %v2498
      %v2531 = vunpack.c.l.b16 %v2499
      %v2532 = vunpack.c.l.b16 %v2500
      %v2533 = vunpack.c.l.b16 %v2501
      %v2534 = vunpack.c.l.b16 %v2502
      %v2535 = vunpack.c.l.b16 %v2503
      %v2536 = vunpack.c.l.b16 %v2504
      %v2537 = vunpack.c.l.b16 %v2505
      %v2538 = vunpack.c.l.b16 %v2506
      %v2539 = vunpack.c.l.b16 %v2507
      %v2540 = vunpack.c.l.b16 %v2508
      %v2541 = vunpack.c.l.b16 %v2509
      %v2542 = vunpack.c.l.b16 %v2510
      %v2543 = vunpack.c.l.b16 %v2511
      %v2544 = vunpack.c.l.b16 %v2512
      %v2545 = vunpack.c.l.b16 %v2513
      %v2546 = vpack.c.b16 %v2531, %v2530
      %v2547 = vpack.c.b16 %v2533, %v2532
      %v2548 = vpack.c.b16 %v2535, %v2534
      %v2549 = vpack.c.b16 %v2537, %v2536
      %v2550 = vpack.c.b16 %v2539, %v2538
      %v2551 = vpack.c.b16 %v2541, %v2540
      %v2552 = vpack.c.b16 %v2543, %v2542
      %v2553 = vpack.c.b16 %v2545, %v2544
      %2562 = vmatprep.subr.bf16.mxu0 0
      %2563 = vmatpush1.bf16.msra.mxu0 %v2546
      %2564 = vmatprep.subr.bf16.mxu0 0
      %2565 = vmatpush1.bf16.msra.mxu0 %v2547
      %2566 = vmatprep.subr.bf16.mxu0 0
      %2567 = vmatpush1.bf16.msra.mxu0 %v2548
      %2568 = vmatprep.subr.bf16.mxu0 0
      %2569 = vmatpush1.bf16.msra.mxu0 %v2549
      %2570 = vmatprep.subr.bf16.mxu0 0
      %2571 = vmatpush1.bf16.msra.mxu0 %v2550
      %2572 = vmatprep.subr.bf16.mxu0 0
      %2573 = vmatpush1.bf16.msra.mxu0 %v2551
      %2574 = vmatprep.subr.bf16.mxu0 0
      %2575 = vmatpush1.bf16.msra.mxu0 %v2552
      %2576 = vmatprep.subr.bf16.mxu0 0
      %2577 = vmatpush1.bf16.msra.mxu0 %v2553
      %2578 = vmatprep.subr.bf16.mxu0 0
      %2579 = vmatpush1.bf16.msra.mxu0 0
      %2580 = vmatprep.subr.bf16.mxu0 0
      %2581 = vmatpush1.bf16.msra.mxu0 0
      %2582 = vmatprep.subr.bf16.mxu0 0
      %2583 = vmatpush1.bf16.msra.mxu0 0
      %2584 = vmatprep.subr.bf16.mxu0 0
      %2585 = vmatpush1.bf16.msra.mxu0 0
      %2586 = vmatprep.subr.bf16.mxu0 0
      %2587 = vmatpush1.bf16.msra.mxu0 0
      %2588 = vmatprep.subr.bf16.mxu0 0
      %2589 = vmatpush1.bf16.msra.mxu0 0
      %2590 = vmatprep.subr.bf16.mxu0 0
      %2591 = vmatpush1.bf16.msra.mxu0 0
      %2592 = vmatprep.subr.bf16.mxu0 0
      %2593 = vmatpush1.bf16.msra.mxu0 0
      %2594 = vmatprep.mubr.bf16.mxu0 0
      %2595 = vmatmul.mubr.bf16.gmra.mrb[0].mxu0 %v2481
      %v2596 = vpop.f32.mrb[0].mxu0
      %v2597 = vadd.f32 0.0, %v2596
      %v2598 = vpop.f32.mrb[0].mxu0
      %v2599 = vpop.f32.mrb[0].mxu0
      %v2600 = vadd.f32 0.0, %v2599
      %v2601 = vpop.f32.mrb[0].mxu0
      %2602 = vmatprep.mubr.bf16.mxu0 0
      %2603 = vmatmul.mubr.bf16.gmra.mrb[0].mxu0 %v2482
      %v2604 = vpop.f32.mrb[0].mxu0
      %v2605 = vadd.f32 0.0, %v2604
      %v2606 = vpop.f32.mrb[0].mxu0
      %v2607 = vpop.f32.mrb[0].mxu0
      %v2608 = vadd.f32 0.0, %v2607
      %v2609 = vpop.f32.mrb[0].mxu0
      %2610 = vmatprep.mubr.bf16.mxu0 0
      %2611 = vmatmul.mubr.bf16.gmra.mrb[0].mxu0 %v2483
      %v2612 = vpop.f32.mrb[0].mxu0
      %v2613 = vadd.f32 0.0, %v2612
      %v2614 = vpop.f32.mrb[0].mxu0
      %v2615 = vpop.f32.mrb[0].mxu0
      %v2616 = vadd.f32 0.0, %v2615
      %v2617 = vpop.f32.mrb[0].mxu0
      %2618 = vmatprep.mubr.bf16.mxu0 0
      %2619 = vmatmul.mubr.bf16.gmra.mrb[0].mxu0 %v2484
      %v2620 = vpop.f32.mrb[0].mxu0
      %v2621 = vadd.f32 0.0, %v2620
      %v2622 = vpop.f32.mrb[0].mxu0
      %v2623 = vpop.f32.mrb[0].mxu0
      %v2624 = vadd.f32 0.0, %v2623
      %v2625 = vpop.f32.mrb[0].mxu0
      %2626 = vmatprep.mubr.bf16.mxu0 0
      %2627 = vmatmul.mubr.bf16.gmra.mrb[0].mxu0 %v2485
      %v2628 = vpop.f32.mrb[0].mxu0
      %v2629 = vadd.f32 0.0, %v2628
      %v2630 = vpop.f32.mrb[0].mxu0
      %v2631 = vpop.f32.mrb[0].mxu0
      %v2632 = vadd.f32 0.0, %v2631
      %v2633 = vpop.f32.mrb[0].mxu0
      %2634 = vmatprep.mubr.bf16.mxu0 0
      %2635 = vmatmul.mubr.bf16.gmra.mrb[0].mxu0 %v2486
      %v2636 = vpop.f32.mrb[0].mxu0
      %v2637 = vadd.f32 0.0, %v2636
      %v2638 = vpop.f32.mrb[0].mxu0
      %v2639 = vpop.f32.mrb[0].mxu0
      %v2640 = vadd.f32 0.0, %v2639
      %v2641 = vpop.f32.mrb[0].mxu0
      %2642 = vmatprep.mubr.bf16.mxu0 0
      %2643 = vmatmul.mubr.bf16.gmra.mrb[0].mxu0 %v2487
      %v2644 = vpop.f32.mrb[0].mxu0
      %v2645 = vadd.f32 0.0, %v2644
      %v2646 = vpop.f32.mrb[0].mxu0
      %v2647 = vpop.f32.mrb[0].mxu0
      %v2648 = vadd.f32 0.0, %v2647
      %v2649 = vpop.f32.mrb[0].mxu0
      %2650 = vmatprep.mubr.bf16.mxu0 0
      %2651 = vmatmul.mubr.bf16.gmra.mrb[0].mxu0 %v2488
      %v2652 = vpop.f32.mrb[0].mxu0
      %v2653 = vadd.f32 0.0, %v2652
      %v2654 = vpop.f32.mrb[0].mxu0
      %v2655 = vpop.f32.mrb[0].mxu0
      %v2656 = vadd.f32 0.0, %v2655
      %v2657 = vpop.f32.mrb[0].mxu0
      %2658 = vmatprep.mubr.bf16.mxu0 0
      %2659 = vmatmul.mubr.bf16.gmra.mrb[0].mxu0 %v2489
      %v2660 = vpop.f32.mrb[0].mxu0
      %v2661 = vadd.f32 0.0, %v2660
      %v2662 = vpop.f32.mrb[0].mxu0
      %v2663 = vpop.f32.mrb[0].mxu0
      %v2664 = vadd.f32 0.0, %v2663
      %v2665 = vpop.f32.mrb[0].mxu0
      %2666 = vmatprep.mubr.bf16.mxu0 0
      %2667 = vmatmul.mubr.bf16.gmra.mrb[0].mxu0 %v2490
      %v2668 = vpop.f32.mrb[0].mxu0
      %v2669 = vadd.f32 0.0, %v2668
      %v2670 = vpop.f32.mrb[0].mxu0
      %v2671 = vpop.f32.mrb[0].mxu0
      %v2672 = vadd.f32 0.0, %v2671
      %v2673 = vpop.f32.mrb[0].mxu0
      %2674 = vmatprep.mubr.bf16.mxu0 0
      %2675 = vmatmul.mubr.bf16.gmra.mrb[0].mxu0 %v2491
      %v2676 = vpop.f32.mrb[0].mxu0
      %v2677 = vadd.f32 0.0, %v2676
      %v2678 = vpop.f32.mrb[0].mxu0
      %v2679 = vpop.f32.mrb[0].mxu0
      %v2680 = vadd.f32 0.0, %v2679
      %v2681 = vpop.f32.mrb[0].mxu0
      %2682 = vmatprep.mubr.bf16.mxu0 0
      %2683 = vmatmul.mubr.bf16.gmra.mrb[0].mxu0 %v2492
      %v2684 = vpop.f32.mrb[0].mxu0
      %v2685 = vadd.f32 0.0, %v2684
      %v2686 = vpop.f32.mrb[0].mxu0
      %v2687 = vpop.f32.mrb[0].mxu0
      %v2688 = vadd.f32 0.0, %v2687
      %v2689 = vpop.f32.mrb[0].mxu0
      %2690 = vmatprep.mubr.bf16.mxu0 0
      %2691 = vmatmul.mubr.bf16.gmra.mrb[0].mxu0 %v2493
      %v2692 = vpop.f32.mrb[0].mxu0
      %v2693 = vadd.f32 0.0, %v2692
      %v2694 = vpop.f32.mrb[0].mxu0
      %v2695 = vpop.f32.mrb[0].mxu0
      %v2696 = vadd.f32 0.0, %v2695
      %v2697 = vpop.f32.mrb[0].mxu0
      %2698 = vmatprep.mubr.bf16.mxu0 0
      %2699 = vmatmul.mubr.bf16.gmra.mrb[0].mxu0 %v2494
      %v2700 = vpop.f32.mrb[0].mxu0
      %v2701 = vadd.f32 0.0, %v2700
      %v2702 = vpop.f32.mrb[0].mxu0
      %v2703 = vpop.f32.mrb[0].mxu0
      %v2704 = vadd.f32 0.0, %v2703
      %v2705 = vpop.f32.mrb[0].mxu0
      %2706 = vmatprep.mubr.bf16.mxu0 0
      %2707 = vmatmul.mubr.bf16.gmra.mrb[0].mxu0 %v2495
      %v2708 = vpop.f32.mrb[0].mxu0
      %v2709 = vadd.f32 0.0, %v2708
      %v2710 = vpop.f32.mrb[0].mxu0
      %v2711 = vpop.f32.mrb[0].mxu0
      %v2712 = vadd.f32 0.0, %v2711
      %v2713 = vpop.f32.mrb[0].mxu0
      %2714 = vmatprep.mubr.bf16.mxu0 0
      %2715 = vmatmul.mubr.bf16.gmra.mrb[0].mxu0 %v2496
      %v2716 = vpop.f32.mrb[0].mxu0
      %v2717 = vadd.f32 0.0, %v2716
      %v2718 = vpop.f32.mrb[0].mxu0
      %v2719 = vpop.f32.mrb[0].mxu0
      %v2720 = vadd.f32 0.0, %v2719
      %v2721 = vpop.f32.mrb[0].mxu0
      %2722 = vdwg.mxu0
      %v2723 = vadd.f32 %v2417, %v2597
      %v2724 = vadd.f32 %v2418, %v2600
      %v2725 = vadd.f32 %v2419, %v2605
      %v2726 = vadd.f32 %v2420, %v2608
      %v2727 = vadd.f32 %v2421, %v2613
      %v2728 = vadd.f32 %v2422, %v2616
      %v2729 = vadd.f32 %v2423, %v2621
      %v2730 = vadd.f32 %v2424, %v2624
      %v2731 = vadd.f32 %v2425, %v2629
      %v2732 = vadd.f32 %v2426, %v2632
      %v2733 = vadd.f32 %v2427, %v2637
      %v2734 = vadd.f32 %v2428, %v2640
      %v2735 = vadd.f32 %v2429, %v2645
      %v2736 = vadd.f32 %v2430, %v2648
      %v2737 = vadd.f32 %v2431, %v2653
      %v2738 = vadd.f32 %v2432, %v2656
      %v2739 = vadd.f32 %v2433, %v2661
      %v2740 = vadd.f32 %v2434, %v2664
      %v2741 = vadd.f32 %v2435, %v2669
      %v2742 = vadd.f32 %v2436, %v2672
      %v2743 = vadd.f32 %v2437, %v2677
      %v2744 = vadd.f32 %v2438, %v2680
      %v2745 = vadd.f32 %v2439, %v2685
      %v2746 = vadd.f32 %v2440, %v2688
      %v2747 = vadd.f32 %v2441, %v2693
      %v2748 = vadd.f32 %v2442, %v2696
      %v2749 = vadd.f32 %v2443, %v2701
      %v2750 = vadd.f32 %v2444, %v2704
      %v2751 = vadd.f32 %v2445, %v2709
      %v2752 = vadd.f32 %v2446, %v2712
      %v2753 = vadd.f32 %v2447, %v2717
      %v2754 = vadd.f32 %v2448, %v2720
      %v2755 = vld [vmem:[%s2142 + $0x2] sm:$0xff]
      %v2756 = vld [vmem:[%s2142 + $0xa] sm:$0xff]
      %v2757 = vld [vmem:[%s2142 + $0x1a] sm:$0xff]
      %v2758 = vld [vmem:[%s2142 + $0x22] sm:$0xff]
      %v2759 = vld [vmem:[%s2142 + $0x32] sm:$0xff]
      %v2760 = vld [vmem:[%s2142 + $0x3a] sm:$0xff]
      %v2761 = vld [vmem:[%s2142 + $0x4a] sm:$0xff]
      %v2762 = vld [vmem:[%s2142 + $0x52] sm:$0xff]
      %v2763 = vld [vmem:[%s2142 + $0x62] sm:$0xff]
      %v2764 = vld [vmem:[%s2142 + $0x6a] sm:$0xff]
      %v2765 = vld [vmem:[%s2142 + $0x7a] sm:$0xff]
      %v2766 = vld [vmem:[%s2142 + $0x82] sm:$0xff]
      %v2767 = vld [vmem:[%s2142 + $0x92] sm:$0xff]
      %v2768 = vld [vmem:[%s2142 + $0x9a] sm:$0xff]
      %v2769 = vld [vmem:[%s2142 + $0xaa] sm:$0xff]
      %v2770 = vld [vmem:[%s2142 + $0xb2] sm:$0xff]
      %v2771 = vld [vmem:[%s2142 + $0xc2] sm:$0xff]
      %v2772 = vld [vmem:[%s2142 + $0xca] sm:$0xff]
      %v2773 = vld [vmem:[%s2142 + $0xda] sm:$0xff]
      %v2774 = vld [vmem:[%s2142 + $0xe2] sm:$0xff]
      %v2775 = vld [vmem:[%s2142 + $0xf2] sm:$0xff]
      %v2776 = vld [vmem:[%s2142 + $0xfa] sm:$0xff]
      %v2777 = vld [vmem:[%s2142 + $0x10a] sm:$0xff]
      %v2778 = vld [vmem:[%s2142 + $0x112] sm:$0xff]
      %v2779 = vld [vmem:[%s2142 + $0x122] sm:$0xff]
      %v2780 = vld [vmem:[%s2142 + $0x12a] sm:$0xff]
      %v2781 = vld [vmem:[%s2142 + $0x13a] sm:$0xff]
      %v2782 = vld [vmem:[%s2142 + $0x142] sm:$0xff]
      %v2783 = vld [vmem:[%s2142 + $0x152] sm:$0xff]
      %v2784 = vld [vmem:[%s2142 + $0x15a] sm:$0xff]
      %v2785 = vld [vmem:[%s2142 + $0x16a] sm:$0xff]
      %v2786 = vld [vmem:[%s2142 + $0x172] sm:$0xff]
      %v2787 = vpack.c.bf16 %v2756, %v2755
      %v2788 = vpack.c.bf16 %v2758, %v2757
      %v2789 = vpack.c.bf16 %v2760, %v2759
      %v2790 = vpack.c.bf16 %v2762, %v2761
      %v2791 = vpack.c.bf16 %v2764, %v2763
      %v2792 = vpack.c.bf16 %v2766, %v2765
      %v2793 = vpack.c.bf16 %v2768, %v2767
      %v2794 = vpack.c.bf16 %v2770, %v2769
      %v2795 = vpack.c.bf16 %v2772, %v2771
      %v2796 = vpack.c.bf16 %v2774, %v2773
      %v2797 = vpack.c.bf16 %v2776, %v2775
      %v2798 = vpack.c.bf16 %v2778, %v2777
      %v2799 = vpack.c.bf16 %v2780, %v2779
      %v2800 = vpack.c.bf16 %v2782, %v2781
      %v2801 = vpack.c.bf16 %v2784, %v2783
      %v2802 = vpack.c.bf16 %v2786, %v2785
      %s2803 = scalar_lea.vmem %s1, 512
      %v2804 = vld [vmem:[%s2803] sm:$0xf]
      %v2805 = vld [vmem:[%s2803 + $0x4] sm:$0xf]
      %v2806 = vld [vmem:[%s2803 + $0x8] sm:$0xf]
      %v2807 = vld [vmem:[%s2803 + $0xc] sm:$0xf]
      %v2808 = vld [vmem:[%s2803 + $0x10] sm:$0xf]
      %v2809 = vld [vmem:[%s2803 + $0x14] sm:$0xf]
      %v2810 = vld [vmem:[%s2803 + $0x18] sm:$0xf]
      %v2811 = vld [vmem:[%s2803 + $0x1c] sm:$0xf]
      %v2812 = vld [vmem:[%s2803 + $0x20] sm:$0xf]
      %v2813 = vld [vmem:[%s2803 + $0x24] sm:$0xf]
      %v2814 = vld [vmem:[%s2803 + $0x28] sm:$0xf]
      %v2815 = vld [vmem:[%s2803 + $0x2c] sm:$0xf]
      %v2816 = vld [vmem:[%s2803 + $0x30] sm:$0xf]
      %v2817 = vld [vmem:[%s2803 + $0x34] sm:$0xf]
      %v2818 = vld [vmem:[%s2803 + $0x38] sm:$0xf]
      %v2819 = vld [vmem:[%s2803 + $0x3c] sm:$0xf]
      %v2836 = vunpack.c.l.b16 %v2804
      %v2837 = vunpack.c.l.b16 %v2805
      %v2838 = vunpack.c.l.b16 %v2806
      %v2839 = vunpack.c.l.b16 %v2807
      %v2840 = vunpack.c.l.b16 %v2808
      %v2841 = vunpack.c.l.b16 %v2809
      %v2842 = vunpack.c.l.b16 %v2810
      %v2843 = vunpack.c.l.b16 %v2811
      %v2844 = vunpack.c.l.b16 %v2812
      %v2845 = vunpack.c.l.b16 %v2813
      %v2846 = vunpack.c.l.b16 %v2814
      %v2847 = vunpack.c.l.b16 %v2815
      %v2848 = vunpack.c.l.b16 %v2816
      %v2849 = vunpack.c.l.b16 %v2817
      %v2850 = vunpack.c.l.b16 %v2818
      %v2851 = vunpack.c.l.b16 %v2819
      %v2852 = vpack.c.b16 %v2837, %v2836
      %v2853 = vpack.c.b16 %v2839, %v2838
      %v2854 = vpack.c.b16 %v2841, %v2840
      %v2855 = vpack.c.b16 %v2843, %v2842
      %v2856 = vpack.c.b16 %v2845, %v2844
      %v2857 = vpack.c.b16 %v2847, %v2846
      %v2858 = vpack.c.b16 %v2849, %v2848
      %v2859 = vpack.c.b16 %v2851, %v2850
      %2868 = vmatprep.subr.bf16.mxu0 0
      %2869 = vmatpush1.bf16.msra.mxu0 %v2852
      %2870 = vmatprep.subr.bf16.mxu0 0
      %2871 = vmatpush1.bf16.msra.mxu0 %v2853
      %2872 = vmatprep.subr.bf16.mxu0 0
      %2873 = vmatpush1.bf16.msra.mxu0 %v2854
      %2874 = vmatprep.subr.bf16.mxu0 0
      %2875 = vmatpush1.bf16.msra.mxu0 %v2855
      %2876 = vmatprep.subr.bf16.mxu0 0
      %2877 = vmatpush1.bf16.msra.mxu0 %v2856
      %2878 = vmatprep.subr.bf16.mxu0 0
      %2879 = vmatpush1.bf16.msra.mxu0 %v2857
      %2880 = vmatprep.subr.bf16.mxu0 0
      %2881 = vmatpush1.bf16.msra.mxu0 %v2858
      %2882 = vmatprep.subr.bf16.mxu0 0
      %2883 = vmatpush1.bf16.msra.mxu0 %v2859
      %2884 = vmatprep.subr.bf16.mxu0 0
      %2885 = vmatpush1.bf16.msra.mxu0 0
      %2886 = vmatprep.subr.bf16.mxu0 0
      %2887 = vmatpush1.bf16.msra.mxu0 0
      %2888 = vmatprep.subr.bf16.mxu0 0
      %2889 = vmatpush1.bf16.msra.mxu0 0
      %2890 = vmatprep.subr.bf16.mxu0 0
      %2891 = vmatpush1.bf16.msra.mxu0 0
      %2892 = vmatprep.subr.bf16.mxu0 0
      %2893 = vmatpush1.bf16.msra.mxu0 0
      %2894 = vmatprep.subr.bf16.mxu0 0
      %2895 = vmatpush1.bf16.msra.mxu0 0
      %2896 = vmatprep.subr.bf16.mxu0 0
      %2897 = vmatpush1.bf16.msra.mxu0 0
      %2898 = vmatprep.subr.bf16.mxu0 0
      %2899 = vmatpush1.bf16.msra.mxu0 0
      %2900 = vmatprep.mubr.bf16.mxu0 0
      %2901 = vmatmul.mubr.bf16.gmra.mrb[0].mxu0 %v2787
      %v2902 = vpop.f32.mrb[0].mxu0
      %v2903 = vadd.f32 0.0, %v2902
      %v2904 = vpop.f32.mrb[0].mxu0
      %v2905 = vpop.f32.mrb[0].mxu0
      %v2906 = vadd.f32 0.0, %v2905
      %v2907 = vpop.f32.mrb[0].mxu0
      %2908 = vmatprep.mubr.bf16.mxu0 0
      %2909 = vmatmul.mubr.bf16.gmra.mrb[0].mxu0 %v2788
      %v2910 = vpop.f32.mrb[0].mxu0
      %v2911 = vadd.f32 0.0, %v2910
      %v2912 = vpop.f32.mrb[0].mxu0
      %v2913 = vpop.f32.mrb[0].mxu0
      %v2914 = vadd.f32 0.0, %v2913
      %v2915 = vpop.f32.mrb[0].mxu0
      %2916 = vmatprep.mubr.bf16.mxu0 0
      %2917 = vmatmul.mubr.bf16.gmra.mrb[0].mxu0 %v2789
      %v2918 = vpop.f32.mrb[0].mxu0
      %v2919 = vadd.f32 0.0, %v2918
      %v2920 = vpop.f32.mrb[0].mxu0
      %v2921 = vpop.f32.mrb[0].mxu0
      %v2922 = vadd.f32 0.0, %v2921
      %v2923 = vpop.f32.mrb[0].mxu0
      %2924 = vmatprep.mubr.bf16.mxu0 0
      %2925 = vmatmul.mubr.bf16.gmra.mrb[0].mxu0 %v2790
      %v2926 = vpop.f32.mrb[0].mxu0
      %v2927 = vadd.f32 0.0, %v2926
      %v2928 = vpop.f32.mrb[0].mxu0
      %v2929 = vpop.f32.mrb[0].mxu0
      %v2930 = vadd.f32 0.0, %v2929
      %v2931 = vpop.f32.mrb[0].mxu0
      %2932 = vmatprep.mubr.bf16.mxu0 0
      %2933 = vmatmul.mubr.bf16.gmra.mrb[0].mxu0 %v2791
      %v2934 = vpop.f32.mrb[0].mxu0
      %v2935 = vadd.f32 0.0, %v2934
      %v2936 = vpop.f32.mrb[0].mxu0
      %v2937 = vpop.f32.mrb[0].mxu0
      %v2938 = vadd.f32 0.0, %v2937
      %v2939 = vpop.f32.mrb[0].mxu0
      %2940 = vmatprep.mubr.bf16.mxu0 0
      %2941 = vmatmul.mubr.bf16.gmra.mrb[0].mxu0 %v2792
      %v2942 = vpop.f32.mrb[0].mxu0
      %v2943 = vadd.f32 0.0, %v2942
      %v2944 = vpop.f32.mrb[0].mxu0
      %v2945 = vpop.f32.mrb[0].mxu0
      %v2946 = vadd.f32 0.0, %v2945
      %v2947 = vpop.f32.mrb[0].mxu0
      %2948 = vmatprep.mubr.bf16.mxu0 0
      %2949 = vmatmul.mubr.bf16.gmra.mrb[0].mxu0 %v2793
      %v2950 = vpop.f32.mrb[0].mxu0
      %v2951 = vadd.f32 0.0, %v2950
      %v2952 = vpop.f32.mrb[0].mxu0
      %v2953 = vpop.f32.mrb[0].mxu0
      %v2954 = vadd.f32 0.0, %v2953
      %v2955 = vpop.f32.mrb[0].mxu0
      %2956 = vmatprep.mubr.bf16.mxu0 0
      %2957 = vmatmul.mubr.bf16.gmra.mrb[0].mxu0 %v2794
      %v2958 = vpop.f32.mrb[0].mxu0
      %v2959 = vadd.f32 0.0, %v2958
      %v2960 = vpop.f32.mrb[0].mxu0
      %v2961 = vpop.f32.mrb[0].mxu0
      %v2962 = vadd.f32 0.0, %v2961
      %v2963 = vpop.f32.mrb[0].mxu0
      %2964 = vmatprep.mubr.bf16.mxu0 0
      %2965 = vmatmul.mubr.bf16.gmra.mrb[0].mxu0 %v2795
      %v2966 = vpop.f32.mrb[0].mxu0
      %v2967 = vadd.f32 0.0, %v2966
      %v2968 = vpop.f32.mrb[0].mxu0
      %v2969 = vpop.f32.mrb[0].mxu0
      %v2970 = vadd.f32 0.0, %v2969
      %v2971 = vpop.f32.mrb[0].mxu0
      %2972 = vmatprep.mubr.bf16.mxu0 0
      %2973 = vmatmul.mubr.bf16.gmra.mrb[0].mxu0 %v2796
      %v2974 = vpop.f32.mrb[0].mxu0
      %v2975 = vadd.f32 0.0, %v2974
      %v2976 = vpop.f32.mrb[0].mxu0
      %v2977 = vpop.f32.mrb[0].mxu0
      %v2978 = vadd.f32 0.0, %v2977
      %v2979 = vpop.f32.mrb[0].mxu0
      %2980 = vmatprep.mubr.bf16.mxu0 0
      %2981 = vmatmul.mubr.bf16.gmra.mrb[0].mxu0 %v2797
      %v2982 = vpop.f32.mrb[0].mxu0
      %v2983 = vadd.f32 0.0, %v2982
      %v2984 = vpop.f32.mrb[0].mxu0
      %v2985 = vpop.f32.mrb[0].mxu0
      %v2986 = vadd.f32 0.0, %v2985
      %v2987 = vpop.f32.mrb[0].mxu0
      %2988 = vmatprep.mubr.bf16.mxu0 0
      %2989 = vmatmul.mubr.bf16.gmra.mrb[0].mxu0 %v2798
      %v2990 = vpop.f32.mrb[0].mxu0
      %v2991 = vadd.f32 0.0, %v2990
      %v2992 = vpop.f32.mrb[0].mxu0
      %v2993 = vpop.f32.mrb[0].mxu0
      %v2994 = vadd.f32 0.0, %v2993
      %v2995 = vpop.f32.mrb[0].mxu0
      %2996 = vmatprep.mubr.bf16.mxu0 0
      %2997 = vmatmul.mubr.bf16.gmra.mrb[0].mxu0 %v2799
      %v2998 = vpop.f32.mrb[0].mxu0
      %v2999 = vadd.f32 0.0, %v2998
      %v3000 = vpop.f32.mrb[0].mxu0
      %v3001 = vpop.f32.mrb[0].mxu0
      %v3002 = vadd.f32 0.0, %v3001
      %v3003 = vpop.f32.mrb[0].mxu0
      %3004 = vmatprep.mubr.bf16.mxu0 0
      %3005 = vmatmul.mubr.bf16.gmra.mrb[0].mxu0 %v2800
      %v3006 = vpop.f32.mrb[0].mxu0
      %v3007 = vadd.f32 0.0, %v3006
      %v3008 = vpop.f32.mrb[0].mxu0
      %v3009 = vpop.f32.mrb[0].mxu0
      %v3010 = vadd.f32 0.0, %v3009
      %v3011 = vpop.f32.mrb[0].mxu0
      %3012 = vmatprep.mubr.bf16.mxu0 0
      %3013 = vmatmul.mubr.bf16.gmra.mrb[0].mxu0 %v2801
      %v3014 = vpop.f32.mrb[0].mxu0
      %v3015 = vadd.f32 0.0, %v3014
      %v3016 = vpop.f32.mrb[0].mxu0
      %v3017 = vpop.f32.mrb[0].mxu0
      %v3018 = vadd.f32 0.0, %v3017
      %v3019 = vpop.f32.mrb[0].mxu0
      %3020 = vmatprep.mubr.bf16.mxu0 0
      %3021 = vmatmul.mubr.bf16.gmra.mrb[0].mxu0 %v2802
      %v3022 = vpop.f32.mrb[0].mxu0
      %v3023 = vadd.f32 0.0, %v3022
      %v3024 = vpop.f32.mrb[0].mxu0
      %v3025 = vpop.f32.mrb[0].mxu0
      %v3026 = vadd.f32 0.0, %v3025
      %v3027 = vpop.f32.mrb[0].mxu0
      %3028 = vdwg.mxu0
      %v3029 = vadd.f32 %v2723, %v2903
      %v3030 = vadd.f32 %v2724, %v2906
      %v3031 = vadd.f32 %v2725, %v2911
      %v3032 = vadd.f32 %v2726, %v2914
      %v3033 = vadd.f32 %v2727, %v2919
      %v3034 = vadd.f32 %v2728, %v2922
      %v3035 = vadd.f32 %v2729, %v2927
      %v3036 = vadd.f32 %v2730, %v2930
      %v3037 = vadd.f32 %v2731, %v2935
      %v3038 = vadd.f32 %v2732, %v2938
      %v3039 = vadd.f32 %v2733, %v2943
      %v3040 = vadd.f32 %v2734, %v2946
      %v3041 = vadd.f32 %v2735, %v2951
      %v3042 = vadd.f32 %v2736, %v2954
      %v3043 = vadd.f32 %v2737, %v2959
      %v3044 = vadd.f32 %v2738, %v2962
      %v3045 = vadd.f32 %v2739, %v2967
      %v3046 = vadd.f32 %v2740, %v2970
      %v3047 = vadd.f32 %v2741, %v2975
      %v3048 = vadd.f32 %v2742, %v2978
      %v3049 = vadd.f32 %v2743, %v2983
      %v3050 = vadd.f32 %v2744, %v2986
      %v3051 = vadd.f32 %v2745, %v2991
      %v3052 = vadd.f32 %v2746, %v2994
      %v3053 = vadd.f32 %v2747, %v2999
      %v3054 = vadd.f32 %v2748, %v3002
      %v3055 = vadd.f32 %v2749, %v3007
      %v3056 = vadd.f32 %v2750, %v3010
      %v3057 = vadd.f32 %v2751, %v3015
      %v3058 = vadd.f32 %v2752, %v3018
      %v3059 = vadd.f32 %v2753, %v3023
      %v3060 = vadd.f32 %v2754, %v3026
      %v3061 = vld [vmem:[%s2] sm:$0x1]
      %v3063 = vlaneseq
      %v3064 = vshrl.u32 %v3063, 7
      %v3065 = vsub.s32 0, %v3064
      %v3066 = vrot.slane %v3061, %v3065
      %v3068 = vadd.f32 %v3029, %v3066
      %v3069 = vadd.f32 %v3030, %v3066
      %v3070 = vadd.f32 %v3031, %v3066
      %v3071 = vadd.f32 %v3032, %v3066
      %v3072 = vadd.f32 %v3033, %v3066
      %v3073 = vadd.f32 %v3034, %v3066
      %v3074 = vadd.f32 %v3035, %v3066
      %v3075 = vadd.f32 %v3036, %v3066
      %v3076 = vadd.f32 %v3037, %v3066
      %v3077 = vadd.f32 %v3038, %v3066
      %v3078 = vadd.f32 %v3039, %v3066
      %v3079 = vadd.f32 %v3040, %v3066
      %v3080 = vadd.f32 %v3041, %v3066
      %v3081 = vadd.f32 %v3042, %v3066
      %v3082 = vadd.f32 %v3043, %v3066
      %v3083 = vadd.f32 %v3044, %v3066
      %v3084 = vadd.f32 %v3045, %v3066
      %v3085 = vadd.f32 %v3046, %v3066
      %v3086 = vadd.f32 %v3047, %v3066
      %v3087 = vadd.f32 %v3048, %v3066
      %v3088 = vadd.f32 %v3049, %v3066
      %v3089 = vadd.f32 %v3050, %v3066
      %v3090 = vadd.f32 %v3051, %v3066
      %v3091 = vadd.f32 %v3052, %v3066
      %v3092 = vadd.f32 %v3053, %v3066
      %v3093 = vadd.f32 %v3054, %v3066
      %v3094 = vadd.f32 %v3055, %v3066
      %v3095 = vadd.f32 %v3056, %v3066
      %v3096 = vadd.f32 %v3057, %v3066
      %v3097 = vadd.f32 %v3058, %v3066
      %v3098 = vadd.f32 %v3059, %v3066
      %v3099 = vadd.f32 %v3060, %v3066
      %3100 = vst [vmem:[%s355] sm:$0xff] %v3068
      %3101 = vst [vmem:[%s355 + $0x8] sm:$0xff] %v3069
      %3102 = vst [vmem:[%s355 + $0x10] sm:$0xff] %v3070
      %3103 = vst [vmem:[%s355 + $0x18] sm:$0xff] %v3071
      %3104 = vst [vmem:[%s355 + $0x20] sm:$0xff] %v3072
      %3105 = vst [vmem:[%s355 + $0x28] sm:$0xff] %v3073
      %3106 = vst [vmem:[%s355 + $0x30] sm:$0xff] %v3074
      %3107 = vst [vmem:[%s355 + $0x38] sm:$0xff] %v3075
      %3108 = vst [vmem:[%s355 + $0x40] sm:$0xff] %v3076
      %3109 = vst [vmem:[%s355 + $0x48] sm:$0xff] %v3077
      %3110 = vst [vmem:[%s355 + $0x50] sm:$0xff] %v3078
      %3111 = vst [vmem:[%s355 + $0x58] sm:$0xff] %v3079
      %3112 = vst [vmem:[%s355 + $0x60] sm:$0xff] %v3080
      %3113 = vst [vmem:[%s355 + $0x68] sm:$0xff] %v3081
      %3114 = vst [vmem:[%s355 + $0x70] sm:$0xff] %v3082
      %3115 = vst [vmem:[%s355 + $0x78] sm:$0xff] %v3083
      %3116 = vst [vmem:[%s355 + $0x80] sm:$0xff] %v3084
      %3117 = vst [vmem:[%s355 + $0x88] sm:$0xff] %v3085
      %3118 = vst [vmem:[%s355 + $0x90] sm:$0xff] %v3086
      %3119 = vst [vmem:[%s355 + $0x98] sm:$0xff] %v3087
      %3120 = vst [vmem:[%s355 + $0xa0] sm:$0xff] %v3088
      %3121 = vst [vmem:[%s355 + $0xa8] sm:$0xff] %v3089
      %3122 = vst [vmem:[%s355 + $0xb0] sm:$0xff] %v3090
      %3123 = vst [vmem:[%s355 + $0xb8] sm:$0xff] %v3091
      %3124 = vst [vmem:[%s355 + $0xc0] sm:$0xff] %v3092
      %3125 = vst [vmem:[%s355 + $0xc8] sm:$0xff] %v3093
      %3126 = vst [vmem:[%s355 + $0xd0] sm:$0xff] %v3094
      %3127 = vst [vmem:[%s355 + $0xd8] sm:$0xff] %v3095
      %3128 = vst [vmem:[%s355 + $0xe0] sm:$0xff] %v3096
      %3129 = vst [vmem:[%s355 + $0xe8] sm:$0xff] %v3097
      %3130 = vst [vmem:[%s355 + $0xf0] sm:$0xff] %v3098
      %3131 = vst [vmem:[%s355 + $0xf8] sm:$0xff] %v3099
      %v3132 = vld [vmem:[%s7] sm:$0x1]
      %v3133 = vadd.f32 %v3068, %v3069
      %v3134 = vadd.f32 %v3133, %v3070
      %v3135 = vadd.f32 %v3134, %v3071
      %v3136 = vadd.f32 %v3135, %v3072
      %v3137 = vadd.f32 %v3136, %v3073
      %v3138 = vadd.f32 %v3137, %v3074
      %v3139 = vadd.f32 %v3138, %v3075
      %v3140 = vadd.f32 %v3139, %v3076
      %v3141 = vadd.f32 %v3140, %v3077
      %v3142 = vadd.f32 %v3141, %v3078
      %v3143 = vadd.f32 %v3142, %v3079
      %v3144 = vadd.f32 %v3143, %v3080
      %v3145 = vadd.f32 %v3144, %v3081
      %v3146 = vadd.f32 %v3145, %v3082
      %v3147 = vadd.f32 %v3146, %v3083
      %v3148 = vadd.f32 %v3147, %v3084
      %v3149 = vadd.f32 %v3148, %v3085
      %v3150 = vadd.f32 %v3149, %v3086
      %v3151 = vadd.f32 %v3150, %v3087
      %v3152 = vadd.f32 %v3151, %v3088
      %v3153 = vadd.f32 %v3152, %v3089
      %v3154 = vadd.f32 %v3153, %v3090
      %v3155 = vadd.f32 %v3154, %v3091
      %v3156 = vadd.f32 %v3155, %v3092
      %v3157 = vadd.f32 %v3156, %v3093
      %v3158 = vadd.f32 %v3157, %v3094
      %v3159 = vadd.f32 %v3158, %v3095
      %v3160 = vadd.f32 %v3159, %v3096
      %v3161 = vadd.f32 %v3160, %v3097
      %v3162 = vadd.f32 %v3161, %v3098
      %v3163 = vadd.f32 %v3162, %v3099
      %v3164 = vrot.slane %v3163, 4
      %v3165 = vadd.f32 %v3163, %v3164
      %v3166 = vrot.slane %v3165, 2
      %v3167 = vadd.f32 %v3165, %v3166
      %v3168 = vrot.slane %v3167, 1
      %v3169 = vadd.f32 %v3167, %v3168
      %v3170 = vadd.f32 %v3132, %v3169
      %3171 = vst [vmem:[%s7] sm:$0x1] %v3170
      %v3172 = vld [vmem:[%s8] sm:$0x1]
      %v3173 = vmul.f32 %v3068, %v3068
      %v3174 = vmul.f32 %v3069, %v3069
      %v3175 = vmul.f32 %v3070, %v3070
      %v3176 = vmul.f32 %v3071, %v3071
      %v3177 = vmul.f32 %v3072, %v3072
      %v3178 = vmul.f32 %v3073, %v3073
      %v3179 = vmul.f32 %v3074, %v3074
      %v3180 = vmul.f32 %v3075, %v3075
      %v3181 = vmul.f32 %v3076, %v3076
      %v3182 = vmul.f32 %v3077, %v3077
      %v3183 = vmul.f32 %v3078, %v3078
      %v3184 = vmul.f32 %v3079, %v3079
      %v3185 = vmul.f32 %v3080, %v3080
      %v3186 = vmul.f32 %v3081, %v3081
      %v3187 = vmul.f32 %v3082, %v3082
      %v3188 = vmul.f32 %v3083, %v3083
      %v3189 = vmul.f32 %v3084, %v3084
      %v3190 = vmul.f32 %v3085, %v3085
      %v3191 = vmul.f32 %v3086, %v3086
      %v3192 = vmul.f32 %v3087, %v3087
      %v3193 = vmul.f32 %v3088, %v3088
      %v3194 = vmul.f32 %v3089, %v3089
      %v3195 = vmul.f32 %v3090, %v3090
      %v3196 = vmul.f32 %v3091, %v3091
      %v3197 = vmul.f32 %v3092, %v3092
      %v3198 = vmul.f32 %v3093, %v3093
      %v3199 = vmul.f32 %v3094, %v3094
      %v3200 = vmul.f32 %v3095, %v3095
      %v3201 = vmul.f32 %v3096, %v3096
      %v3202 = vmul.f32 %v3097, %v3097
      %v3203 = vmul.f32 %v3098, %v3098
      %v3204 = vmul.f32 %v3099, %v3099
      %v3205 = vadd.f32 %v3173, %v3174
      %v3206 = vadd.f32 %v3205, %v3175
      %v3207 = vadd.f32 %v3206, %v3176
      %v3208 = vadd.f32 %v3207, %v3177
      %v3209 = vadd.f32 %v3208, %v3178
      %v3210 = vadd.f32 %v3209, %v3179
      %v3211 = vadd.f32 %v3210, %v3180
      %v3212 = vadd.f32 %v3211, %v3181
      %v3213 = vadd.f32 %v3212, %v3182
      %v3214 = vadd.f32 %v3213, %v3183
      %v3215 = vadd.f32 %v3214, %v3184
      %v3216 = vadd.f32 %v3215, %v3185
      %v3217 = vadd.f32 %v3216, %v3186
      %v3218 = vadd.f32 %v3217, %v3187
      %v3219 = vadd.f32 %v3218, %v3188
      %v3220 = vadd.f32 %v3219, %v3189
      %v3221 = vadd.f32 %v3220, %v3190
      %v3222 = vadd.f32 %v3221, %v3191
      %v3223 = vadd.f32 %v3222, %v3192
      %v3224 = vadd.f32 %v3223, %v3193
      %v3225 = vadd.f32 %v3224, %v3194
      %v3226 = vadd.f32 %v3225, %v3195
      %v3227 = vadd.f32 %v3226, %v3196
      %v3228 = vadd.f32 %v3227, %v3197
      %v3229 = vadd.f32 %v3228, %v3198
      %v3230 = vadd.f32 %v3229, %v3199
      %v3231 = vadd.f32 %v3230, %v3200
      %v3232 = vadd.f32 %v3231, %v3201
      %v3233 = vadd.f32 %v3232, %v3202
      %v3234 = vadd.f32 %v3233, %v3203
      %v3235 = vadd.f32 %v3234, %v3204
      %v3236 = vrot.slane %v3235, 4
      %v3237 = vadd.f32 %v3235, %v3236
      %v3238 = vrot.slane %v3237, 2
      %v3239 = vadd.f32 %v3237, %v3238
      %v3240 = vrot.slane %v3239, 1
      %v3241 = vadd.f32 %v3239, %v3240
      %v3242 = vadd.f32 %v3172, %v3241
      %3243 = vst [vmem:[%s8] sm:$0x1] %v3242
      %v3244 = vld [vmem:[%s1223 + $0x1] sm:$0xff]
      %v3245 = vld [vmem:[%s1223 + $0x9] sm:$0xff]
      %v3246 = vld [vmem:[%s1223 + $0x19] sm:$0xff]
      %v3247 = vld [vmem:[%s1223 + $0x21] sm:$0xff]
      %v3248 = vld [vmem:[%s1223 + $0x31] sm:$0xff]
      %v3249 = vld [vmem:[%s1223 + $0x39] sm:$0xff]
      %v3250 = vld [vmem:[%s1223 + $0x49] sm:$0xff]
      %v3251 = vld [vmem:[%s1223 + $0x51] sm:$0xff]
      %v3252 = vld [vmem:[%s1223 + $0x61] sm:$0xff]
      %v3253 = vld [vmem:[%s1223 + $0x69] sm:$0xff]
      %v3254 = vld [vmem:[%s1223 + $0x79] sm:$0xff]
      %v3255 = vld [vmem:[%s1223 + $0x81] sm:$0xff]
      %v3256 = vld [vmem:[%s1223 + $0x91] sm:$0xff]
      %v3257 = vld [vmem:[%s1223 + $0x99] sm:$0xff]
      %v3258 = vld [vmem:[%s1223 + $0xa9] sm:$0xff]
      %v3259 = vld [vmem:[%s1223 + $0xb1] sm:$0xff]
      %v3260 = vld [vmem:[%s1223 + $0xc1] sm:$0xff]
      %v3261 = vld [vmem:[%s1223 + $0xc9] sm:$0xff]
      %v3262 = vld [vmem:[%s1223 + $0xd9] sm:$0xff]
      %v3263 = vld [vmem:[%s1223 + $0xe1] sm:$0xff]
      %v3264 = vld [vmem:[%s1223 + $0xf1] sm:$0xff]
      %v3265 = vld [vmem:[%s1223 + $0xf9] sm:$0xff]
      %v3266 = vld [vmem:[%s1223 + $0x109] sm:$0xff]
      %v3267 = vld [vmem:[%s1223 + $0x111] sm:$0xff]
      %v3268 = vld [vmem:[%s1223 + $0x121] sm:$0xff]
      %v3269 = vld [vmem:[%s1223 + $0x129] sm:$0xff]
      %v3270 = vld [vmem:[%s1223 + $0x139] sm:$0xff]
      %v3271 = vld [vmem:[%s1223 + $0x141] sm:$0xff]
      %v3272 = vld [vmem:[%s1223 + $0x151] sm:$0xff]
      %v3273 = vld [vmem:[%s1223 + $0x159] sm:$0xff]
      %v3274 = vld [vmem:[%s1223 + $0x169] sm:$0xff]
      %v3275 = vld [vmem:[%s1223 + $0x171] sm:$0xff]
      %v3276 = vpack.c.bf16 %v3245, %v3244
      %v3277 = vpack.c.bf16 %v3247, %v3246
      %v3278 = vpack.c.bf16 %v3249, %v3248
      %v3279 = vpack.c.bf16 %v3251, %v3250
      %v3280 = vpack.c.bf16 %v3253, %v3252
      %v3281 = vpack.c.bf16 %v3255, %v3254
      %v3282 = vpack.c.bf16 %v3257, %v3256
      %v3283 = vpack.c.bf16 %v3259, %v3258
      %v3284 = vpack.c.bf16 %v3261, %v3260
      %v3285 = vpack.c.bf16 %v3263, %v3262
      %v3286 = vpack.c.bf16 %v3265, %v3264
      %v3287 = vpack.c.bf16 %v3267, %v3266
      %v3288 = vpack.c.bf16 %v3269, %v3268
      %v3289 = vpack.c.bf16 %v3271, %v3270
      %v3290 = vpack.c.bf16 %v3273, %v3272
      %v3291 = vpack.c.bf16 %v3275, %v3274
      %v3292 = vld [vmem:[%s3] sm:$0xf]
      %v3293 = vld [vmem:[%s3 + $0x4] sm:$0xf]
      %v3294 = vld [vmem:[%s3 + $0x8] sm:$0xf]
      %v3295 = vld [vmem:[%s3 + $0xc] sm:$0xf]
      %v3296 = vld [vmem:[%s3 + $0x10] sm:$0xf]
      %v3297 = vld [vmem:[%s3 + $0x14] sm:$0xf]
      %v3298 = vld [vmem:[%s3 + $0x18] sm:$0xf]
      %v3299 = vld [vmem:[%s3 + $0x1c] sm:$0xf]
      %v3300 = vld [vmem:[%s3 + $0x20] sm:$0xf]
      %v3301 = vld [vmem:[%s3 + $0x24] sm:$0xf]
      %v3302 = vld [vmem:[%s3 + $0x28] sm:$0xf]
      %v3303 = vld [vmem:[%s3 + $0x2c] sm:$0xf]
      %v3304 = vld [vmem:[%s3 + $0x30] sm:$0xf]
      %v3305 = vld [vmem:[%s3 + $0x34] sm:$0xf]
      %v3306 = vld [vmem:[%s3 + $0x38] sm:$0xf]
      %v3307 = vld [vmem:[%s3 + $0x3c] sm:$0xf]
      %v3308 = vld [vmem:[%s4] sm:$0x1]
      %v3310 = vlaneseq
      %v3311 = vshrl.u32 %v3310, 7
      %v3312 = vsub.s32 0, %v3311
      %v3313 = vrot.slane %v3308, %v3312
      %v3331 = vunpack.c.l.b16 %v3292
      %v3332 = vunpack.c.l.b16 %v3293
      %v3333 = vunpack.c.l.b16 %v3294
      %v3334 = vunpack.c.l.b16 %v3295
      %v3335 = vunpack.c.l.b16 %v3296
      %v3336 = vunpack.c.l.b16 %v3297
      %v3337 = vunpack.c.l.b16 %v3298
      %v3338 = vunpack.c.l.b16 %v3299
      %v3339 = vunpack.c.l.b16 %v3300
      %v3340 = vunpack.c.l.b16 %v3301
      %v3341 = vunpack.c.l.b16 %v3302
      %v3342 = vunpack.c.l.b16 %v3303
      %v3343 = vunpack.c.l.b16 %v3304
      %v3344 = vunpack.c.l.b16 %v3305
      %v3345 = vunpack.c.l.b16 %v3306
      %v3346 = vunpack.c.l.b16 %v3307
      %v3347 = vpack.c.b16 %v3332, %v3331
      %v3348 = vpack.c.b16 %v3334, %v3333
      %v3349 = vpack.c.b16 %v3336, %v3335
      %v3350 = vpack.c.b16 %v3338, %v3337
      %v3351 = vpack.c.b16 %v3340, %v3339
      %v3352 = vpack.c.b16 %v3342, %v3341
      %v3353 = vpack.c.b16 %v3344, %v3343
      %v3354 = vpack.c.b16 %v3346, %v3345
      %3363 = vmatprep.subr.bf16.mxu0 0
      %3364 = vmatpush1.bf16.msra.mxu0 %v3347
      %3365 = vmatprep.subr.bf16.mxu0 0
      %3366 = vmatpush1.bf16.msra.mxu0 %v3348
      %3367 = vmatprep.subr.bf16.mxu0 0
      %3368 = vmatpush1.bf16.msra.mxu0 %v3349
      %3369 = vmatprep.subr.bf16.mxu0 0
      %3370 = vmatpush1.bf16.msra.mxu0 %v3350
      %3371 = vmatprep.subr.bf16.mxu0 0
      %3372 = vmatpush1.bf16.msra.mxu0 %v3351
      %3373 = vmatprep.subr.bf16.mxu0 0
      %3374 = vmatpush1.bf16.msra.mxu0 %v3352
      %3375 = vmatprep.subr.bf16.mxu0 0
      %3376 = vmatpush1.bf16.msra.mxu0 %v3353
      %3377 = vmatprep.subr.bf16.mxu0 0
      %3378 = vmatpush1.bf16.msra.mxu0 %v3354
      %3379 = vmatprep.subr.bf16.mxu0 0
      %3380 = vmatpush1.bf16.msra.mxu0 0
      %3381 = vmatprep.subr.bf16.mxu0 0
      %3382 = vmatpush1.bf16.msra.mxu0 0
      %3383 = vmatprep.subr.bf16.mxu0 0
      %3384 = vmatpush1.bf16.msra.mxu0 0
      %3385 = vmatprep.subr.bf16.mxu0 0
      %3386 = vmatpush1.bf16.msra.mxu0 0
      %3387 = vmatprep.subr.bf16.mxu0 0
      %3388 = vmatpush1.bf16.msra.mxu0 0
      %3389 = vmatprep.subr.bf16.mxu0 0
      %3390 = vmatpush1.bf16.msra.mxu0 0
      %3391 = vmatprep.subr.bf16.mxu0 0
      %3392 = vmatpush1.bf16.msra.mxu0 0
      %3393 = vmatprep.subr.bf16.mxu0 0
      %3394 = vmatpush1.bf16.msra.mxu0 0
      %3395 = vmatprep.mubr.bf16.mxu0 0
      %3396 = vmatmul.mubr.bf16.gmra.mrb[0].mxu0 %v3276
      %v3397 = vpop.f32.mrb[0].mxu0
      %v3398 = vadd.f32 %v3313, %v3397
      %v3399 = vpop.f32.mrb[0].mxu0
      %v3400 = vpop.f32.mrb[0].mxu0
      %v3401 = vadd.f32 %v3313, %v3400
      %v3402 = vpop.f32.mrb[0].mxu0
      %3403 = vmatprep.mubr.bf16.mxu0 0
      %3404 = vmatmul.mubr.bf16.gmra.mrb[0].mxu0 %v3277
      %v3405 = vpop.f32.mrb[0].mxu0
      %v3406 = vadd.f32 %v3313, %v3405
      %v3407 = vpop.f32.mrb[0].mxu0
      %v3408 = vpop.f32.mrb[0].mxu0
      %v3409 = vadd.f32 %v3313, %v3408
      %v3410 = vpop.f32.mrb[0].mxu0
      %3411 = vmatprep.mubr.bf16.mxu0 0
      %3412 = vmatmul.mubr.bf16.gmra.mrb[0].mxu0 %v3278
      %v3413 = vpop.f32.mrb[0].mxu0
      %v3414 = vadd.f32 %v3313, %v3413
      %v3415 = vpop.f32.mrb[0].mxu0
      %v3416 = vpop.f32.mrb[0].mxu0
      %v3417 = vadd.f32 %v3313, %v3416
      %v3418 = vpop.f32.mrb[0].mxu0
      %3419 = vmatprep.mubr.bf16.mxu0 0
      %3420 = vmatmul.mubr.bf16.gmra.mrb[0].mxu0 %v3279
      %v3421 = vpop.f32.mrb[0].mxu0
      %v3422 = vadd.f32 %v3313, %v3421
      %v3423 = vpop.f32.mrb[0].mxu0
      %v3424 = vpop.f32.mrb[0].mxu0
      %v3425 = vadd.f32 %v3313, %v3424
      %v3426 = vpop.f32.mrb[0].mxu0
      %3427 = vmatprep.mubr.bf16.mxu0 0
      %3428 = vmatmul.mubr.bf16.gmra.mrb[0].mxu0 %v3280
      %v3429 = vpop.f32.mrb[0].mxu0
      %v3430 = vadd.f32 %v3313, %v3429
      %v3431 = vpop.f32.mrb[0].mxu0
      %v3432 = vpop.f32.mrb[0].mxu0
      %v3433 = vadd.f32 %v3313, %v3432
      %v3434 = vpop.f32.mrb[0].mxu0
      %3435 = vmatprep.mubr.bf16.mxu0 0
      %3436 = vmatmul.mubr.bf16.gmra.mrb[0].mxu0 %v3281
      %v3437 = vpop.f32.mrb[0].mxu0
      %v3438 = vadd.f32 %v3313, %v3437
      %v3439 = vpop.f32.mrb[0].mxu0
      %v3440 = vpop.f32.mrb[0].mxu0
      %v3441 = vadd.f32 %v3313, %v3440
      %v3442 = vpop.f32.mrb[0].mxu0
      %3443 = vmatprep.mubr.bf16.mxu0 0
      %3444 = vmatmul.mubr.bf16.gmra.mrb[0].mxu0 %v3282
      %v3445 = vpop.f32.mrb[0].mxu0
      %v3446 = vadd.f32 %v3313, %v3445
      %v3447 = vpop.f32.mrb[0].mxu0
      %v3448 = vpop.f32.mrb[0].mxu0
      %v3449 = vadd.f32 %v3313, %v3448
      %v3450 = vpop.f32.mrb[0].mxu0
      %3451 = vmatprep.mubr.bf16.mxu0 0
      %3452 = vmatmul.mubr.bf16.gmra.mrb[0].mxu0 %v3283
      %v3453 = vpop.f32.mrb[0].mxu0
      %v3454 = vadd.f32 %v3313, %v3453
      %v3455 = vpop.f32.mrb[0].mxu0
      %v3456 = vpop.f32.mrb[0].mxu0
      %v3457 = vadd.f32 %v3313, %v3456
      %v3458 = vpop.f32.mrb[0].mxu0
      %3459 = vmatprep.mubr.bf16.mxu0 0
      %3460 = vmatmul.mubr.bf16.gmra.mrb[0].mxu0 %v3284
      %v3461 = vpop.f32.mrb[0].mxu0
      %v3462 = vadd.f32 %v3313, %v3461
      %v3463 = vpop.f32.mrb[0].mxu0
      %v3464 = vpop.f32.mrb[0].mxu0
      %v3465 = vadd.f32 %v3313, %v3464
      %v3466 = vpop.f32.mrb[0].mxu0
      %3467 = vmatprep.mubr.bf16.mxu0 0
      %3468 = vmatmul.mubr.bf16.gmra.mrb[0].mxu0 %v3285
      %v3469 = vpop.f32.mrb[0].mxu0
      %v3470 = vadd.f32 %v3313, %v3469
      %v3471 = vpop.f32.mrb[0].mxu0
      %v3472 = vpop.f32.mrb[0].mxu0
      %v3473 = vadd.f32 %v3313, %v3472
      %v3474 = vpop.f32.mrb[0].mxu0
      %3475 = vmatprep.mubr.bf16.mxu0 0
      %3476 = vmatmul.mubr.bf16.gmra.mrb[0].mxu0 %v3286
      %v3477 = vpop.f32.mrb[0].mxu0
      %v3478 = vadd.f32 %v3313, %v3477
      %v3479 = vpop.f32.mrb[0].mxu0
      %v3480 = vpop.f32.mrb[0].mxu0
      %v3481 = vadd.f32 %v3313, %v3480
      %v3482 = vpop.f32.mrb[0].mxu0
      %3483 = vmatprep.mubr.bf16.mxu0 0
      %3484 = vmatmul.mubr.bf16.gmra.mrb[0].mxu0 %v3287
      %v3485 = vpop.f32.mrb[0].mxu0
      %v3486 = vadd.f32 %v3313, %v3485
      %v3487 = vpop.f32.mrb[0].mxu0
      %v3488 = vpop.f32.mrb[0].mxu0
      %v3489 = vadd.f32 %v3313, %v3488
      %v3490 = vpop.f32.mrb[0].mxu0
      %3491 = vmatprep.mubr.bf16.mxu0 0
      %3492 = vmatmul.mubr.bf16.gmra.mrb[0].mxu0 %v3288
      %v3493 = vpop.f32.mrb[0].mxu0
      %v3494 = vadd.f32 %v3313, %v3493
      %v3495 = vpop.f32.mrb[0].mxu0
      %v3496 = vpop.f32.mrb[0].mxu0
      %v3497 = vadd.f32 %v3313, %v3496
      %v3498 = vpop.f32.mrb[0].mxu0
      %3499 = vmatprep.mubr.bf16.mxu0 0
      %3500 = vmatmul.mubr.bf16.gmra.mrb[0].mxu0 %v3289
      %v3501 = vpop.f32.mrb[0].mxu0
      %v3502 = vadd.f32 %v3313, %v3501
      %v3503 = vpop.f32.mrb[0].mxu0
      %v3504 = vpop.f32.mrb[0].mxu0
      %v3505 = vadd.f32 %v3313, %v3504
      %v3506 = vpop.f32.mrb[0].mxu0
      %3507 = vmatprep.mubr.bf16.mxu0 0
      %3508 = vmatmul.mubr.bf16.gmra.mrb[0].mxu0 %v3290
      %v3509 = vpop.f32.mrb[0].mxu0
      %v3510 = vadd.f32 %v3313, %v3509
      %v3511 = vpop.f32.mrb[0].mxu0
      %v3512 = vpop.f32.mrb[0].mxu0
      %v3513 = vadd.f32 %v3313, %v3512
      %v3514 = vpop.f32.mrb[0].mxu0
      %3515 = vmatprep.mubr.bf16.mxu0 0
      %3516 = vmatmul.mubr.bf16.gmra.mrb[0].mxu0 %v3291
      %v3517 = vpop.f32.mrb[0].mxu0
      %v3518 = vadd.f32 %v3313, %v3517
      %v3519 = vpop.f32.mrb[0].mxu0
      %v3520 = vpop.f32.mrb[0].mxu0
      %v3521 = vadd.f32 %v3313, %v3520
      %v3522 = vpop.f32.mrb[0].mxu0
      %3523 = vdwg.mxu0
      %3524 = vst [vmem:[%s360] sm:$0xff] %v3398
      %3525 = vst [vmem:[%s360 + $0x8] sm:$0xff] %v3401
      %3526 = vst [vmem:[%s360 + $0x10] sm:$0xff] %v3406
      %3527 = vst [vmem:[%s360 + $0x18] sm:$0xff] %v3409
      %3528 = vst [vmem:[%s360 + $0x20] sm:$0xff] %v3414
      %3529 = vst [vmem:[%s360 + $0x28] sm:$0xff] %v3417
      %3530 = vst [vmem:[%s360 + $0x30] sm:$0xff] %v3422
      %3531 = vst [vmem:[%s360 + $0x38] sm:$0xff] %v3425
      %3532 = vst [vmem:[%s360 + $0x40] sm:$0xff] %v3430
      %3533 = vst [vmem:[%s360 + $0x48] sm:$0xff] %v3433
      %3534 = vst [vmem:[%s360 + $0x50] sm:$0xff] %v3438
      %3535 = vst [vmem:[%s360 + $0x58] sm:$0xff] %v3441
      %3536 = vst [vmem:[%s360 + $0x60] sm:$0xff] %v3446
      %3537 = vst [vmem:[%s360 + $0x68] sm:$0xff] %v3449
      %3538 = vst [vmem:[%s360 + $0x70] sm:$0xff] %v3454
      %3539 = vst [vmem:[%s360 + $0x78] sm:$0xff] %v3457
      %3540 = vst [vmem:[%s360 + $0x80] sm:$0xff] %v3462
      %3541 = vst [vmem:[%s360 + $0x88] sm:$0xff] %v3465
      %3542 = vst [vmem:[%s360 + $0x90] sm:$0xff] %v3470
      %3543 = vst [vmem:[%s360 + $0x98] sm:$0xff] %v3473
      %3544 = vst [vmem:[%s360 + $0xa0] sm:$0xff] %v3478
      %3545 = vst [vmem:[%s360 + $0xa8] sm:$0xff] %v3481
      %3546 = vst [vmem:[%s360 + $0xb0] sm:$0xff] %v3486
      %3547 = vst [vmem:[%s360 + $0xb8] sm:$0xff] %v3489
      %3548 = vst [vmem:[%s360 + $0xc0] sm:$0xff] %v3494
      %3549 = vst [vmem:[%s360 + $0xc8] sm:$0xff] %v3497
      %3550 = vst [vmem:[%s360 + $0xd0] sm:$0xff] %v3502
      %3551 = vst [vmem:[%s360 + $0xd8] sm:$0xff] %v3505
      %3552 = vst [vmem:[%s360 + $0xe0] sm:$0xff] %v3510
      %3553 = vst [vmem:[%s360 + $0xe8] sm:$0xff] %v3513
      %3554 = vst [vmem:[%s360 + $0xf0] sm:$0xff] %v3518
      %3555 = vst [vmem:[%s360 + $0xf8] sm:$0xff] %v3521
      %v3556 = vld [vmem:[%s9] sm:$0x1]
      %v3557 = vadd.f32 %v3398, %v3401
      %v3558 = vadd.f32 %v3557, %v3406
      %v3559 = vadd.f32 %v3558, %v3409
      %v3560 = vadd.f32 %v3559, %v3414
      %v3561 = vadd.f32 %v3560, %v3417
      %v3562 = vadd.f32 %v3561, %v3422
      %v3563 = vadd.f32 %v3562, %v3425
      %v3564 = vadd.f32 %v3563, %v3430
      %v3565 = vadd.f32 %v3564, %v3433
      %v3566 = vadd.f32 %v3565, %v3438
      %v3567 = vadd.f32 %v3566, %v3441
      %v3568 = vadd.f32 %v3567, %v3446
      %v3569 = vadd.f32 %v3568, %v3449
      %v3570 = vadd.f32 %v3569, %v3454
      %v3571 = vadd.f32 %v3570, %v3457
      %v3572 = vadd.f32 %v3571, %v3462
      %v3573 = vadd.f32 %v3572, %v3465
      %v3574 = vadd.f32 %v3573, %v3470
      %v3575 = vadd.f32 %v3574, %v3473
      %v3576 = vadd.f32 %v3575, %v3478
      %v3577 = vadd.f32 %v3576, %v3481
      %v3578 = vadd.f32 %v3577, %v3486
      %v3579 = vadd.f32 %v3578, %v3489
      %v3580 = vadd.f32 %v3579, %v3494
      %v3581 = vadd.f32 %v3580, %v3497
      %v3582 = vadd.f32 %v3581, %v3502
      %v3583 = vadd.f32 %v3582, %v3505
      %v3584 = vadd.f32 %v3583, %v3510
      %v3585 = vadd.f32 %v3584, %v3513
      %v3586 = vadd.f32 %v3585, %v3518
      %v3587 = vadd.f32 %v3586, %v3521
      %v3588 = vrot.slane %v3587, 4
      %v3589 = vadd.f32 %v3587, %v3588
      %v3590 = vrot.slane %v3589, 2
      %v3591 = vadd.f32 %v3589, %v3590
      %v3592 = vrot.slane %v3591, 1
      %v3593 = vadd.f32 %v3591, %v3592
      %v3594 = vadd.f32 %v3556, %v3593
      %3595 = vst [vmem:[%s9] sm:$0x1] %v3594
      %v3596 = vld [vmem:[%s10] sm:$0x1]
      %v3597 = vmul.f32 %v3398, %v3398
      %v3598 = vmul.f32 %v3401, %v3401
      %v3599 = vmul.f32 %v3406, %v3406
      %v3600 = vmul.f32 %v3409, %v3409
      %v3601 = vmul.f32 %v3414, %v3414
      %v3602 = vmul.f32 %v3417, %v3417
      %v3603 = vmul.f32 %v3422, %v3422
      %v3604 = vmul.f32 %v3425, %v3425
      %v3605 = vmul.f32 %v3430, %v3430
      %v3606 = vmul.f32 %v3433, %v3433
      %v3607 = vmul.f32 %v3438, %v3438
      %v3608 = vmul.f32 %v3441, %v3441
      %v3609 = vmul.f32 %v3446, %v3446
      %v3610 = vmul.f32 %v3449, %v3449
      %v3611 = vmul.f32 %v3454, %v3454
      %v3612 = vmul.f32 %v3457, %v3457
      %v3613 = vmul.f32 %v3462, %v3462
      %v3614 = vmul.f32 %v3465, %v3465
      %v3615 = vmul.f32 %v3470, %v3470
      %v3616 = vmul.f32 %v3473, %v3473
      %v3617 = vmul.f32 %v3478, %v3478
      %v3618 = vmul.f32 %v3481, %v3481
      %v3619 = vmul.f32 %v3486, %v3486
      %v3620 = vmul.f32 %v3489, %v3489
      %v3621 = vmul.f32 %v3494, %v3494
      %v3622 = vmul.f32 %v3497, %v3497
      %v3623 = vmul.f32 %v3502, %v3502
      %v3624 = vmul.f32 %v3505, %v3505
      %v3625 = vmul.f32 %v3510, %v3510
      %v3626 = vmul.f32 %v3513, %v3513
      %v3627 = vmul.f32 %v3518, %v3518
      %v3628 = vmul.f32 %v3521, %v3521
      %v3629 = vadd.f32 %v3597, %v3598
      %v3630 = vadd.f32 %v3629, %v3599
      %v3631 = vadd.f32 %v3630, %v3600
      %v3632 = vadd.f32 %v3631, %v3601
      %v3633 = vadd.f32 %v3632, %v3602
      %v3634 = vadd.f32 %v3633, %v3603
      %v3635 = vadd.f32 %v3634, %v3604
      %v3636 = vadd.f32 %v3635, %v3605
      %v3637 = vadd.f32 %v3636, %v3606
      %v3638 = vadd.f32 %v3637, %v3607
      %v3639 = vadd.f32 %v3638, %v3608
      %v3640 = vadd.f32 %v3639, %v3609
      %v3641 = vadd.f32 %v3640, %v3610
      %v3642 = vadd.f32 %v3641, %v3611
      %v3643 = vadd.f32 %v3642, %v3612
      %v3644 = vadd.f32 %v3643, %v3613
      %v3645 = vadd.f32 %v3644, %v3614
      %v3646 = vadd.f32 %v3645, %v3615
      %v3647 = vadd.f32 %v3646, %v3616
      %v3648 = vadd.f32 %v3647, %v3617
      %v3649 = vadd.f32 %v3648, %v3618
      %v3650 = vadd.f32 %v3649, %v3619
      %v3651 = vadd.f32 %v3650, %v3620
      %v3652 = vadd.f32 %v3651, %v3621
      %v3653 = vadd.f32 %v3652, %v3622
      %v3654 = vadd.f32 %v3653, %v3623
      %v3655 = vadd.f32 %v3654, %v3624
      %v3656 = vadd.f32 %v3655, %v3625
      %v3657 = vadd.f32 %v3656, %v3626
      %v3658 = vadd.f32 %v3657, %v3627
      %v3659 = vadd.f32 %v3658, %v3628
      %v3660 = vrot.slane %v3659, 4
      %v3661 = vadd.f32 %v3659, %v3660
      %v3662 = vrot.slane %v3661, 2
      %v3663 = vadd.f32 %v3661, %v3662
      %v3664 = vrot.slane %v3663, 1
      %v3665 = vadd.f32 %v3663, %v3664
      %v3666 = vadd.f32 %v3596, %v3665
      %3667 = vst [vmem:[%s10] sm:$0x1] %v3666
      %p3668 = scmp.lt.s32.totalorder %s22, 1
      %s3669 = scalar_select %p3668, %s22, 1
      %s3670 = smul.addr %s3669, 32
      %s3671 = smul.addr %s3670, 8
      %s3672 = scalar_lea.vmem %s5, %s3671
      %p3673 = scmp.lt.s32.totalorder %s22, 1
      %s3674 = scalar_select %p3673, %s22, 1
      %s3675 = smul.addr %s3674, 32
      %s3676 = smul.addr %s3675, 8
      %s3677 = scalar_lea.vmem %s6, %s3676
      // Predicated region
      $region45: #{res_block.3} parent=39 // pred_check
        %p3678 = pneg %p150
      $region46: #{res_block.3} parent=39 // pred_check_branch
        %3680 = sbr.rel (%p3678) target = $region48
      $region47: #{res_block.3} parent=39 // pred_region
        _
      $region48: #{res_block.3} parent=39 // pred_fallthru
        _
      // Predicated region
      $region49: #{res_block.3} parent=39 // pred_check
        %p3681 = pneg %p176
      $region50: #{res_block.3} parent=39 // pred_check_branch
        %3683 = sbr.rel (%p3681) target = $region52
      $region51: #{res_block.3} parent=39 // pred_region
        _
      $region52: #{res_block.3} parent=39 // pred_fallthru
        _
      // Predicated region
      $region53: #{res_block.3} parent=39 // pred_check
        %p3684 = pneg %p197
      $region54: #{res_block.3} parent=39 // pred_check_branch
        %3686 = sbr.rel (%p3684) target = $region56
      $region55: #{res_block.3} parent=39 // pred_region
        _
      $region56: #{res_block.3} parent=39 // pred_fallthru
        _
      // Predicated region
      $region57: #{res_block.3} parent=39 // pred_check
        %p3687 = pneg %p218
      $region58: #{res_block.3} parent=39 // pred_check_branch
        %3689 = sbr.rel (%p3687) target = $region60
      $region59: #{res_block.3} parent=39 // pred_region
        _
      $region60: #{res_block.3} parent=39 // pred_fallthru
        _
      // Predicated region
      $region61: #{res_block.3} parent=39 // pred_check
        %p3690 = pneg %p239
      $region62: #{res_block.3} parent=39 // pred_check_branch
        %3692 = sbr.rel (%p3690) target = $region64
      $region63: #{res_block.3} parent=39 // pred_region
        _
      $region64: #{res_block.3} parent=39 // pred_fallthru
        _
      // Predicated region
      $region65: #{res_block.3} parent=39 // pred_check
        %p3693 = pneg %p260
      $region66: #{res_block.3} parent=39 // pred_check_branch
        %3695 = sbr.rel (%p3693) target = $region68
      $region67: #{res_block.3} parent=39 // pred_region
        _
      $region68: #{res_block.3} parent=39 // pred_fallthru
        _
      // Predicated region
      $region69: #{res_block.3} parent=39 // pred_check
        %p3696 = pneg %p197
      $region70: #{res_block.3} parent=39 // pred_check_branch
        %3698 = sbr.rel (%p3696) target = $region72
      $region71: #{res_block.3} parent=39 // pred_region
        _
      $region72: #{res_block.3} parent=39 // pred_fallthru
        _
      // Predicated region
      $region73: #{res_block.3} parent=39 // pred_check
        %p3699 = pneg %p218
      $region74: #{res_block.3} parent=39 // pred_check_branch
        %3701 = sbr.rel (%p3699) target = $region76
      $region75: #{res_block.3} parent=39 // pred_region
        _
      $region76: #{res_block.3} parent=39 // pred_fallthru
        _
      // Predicated region
      $region77: #{res_block.3} parent=39 // pred_check
        %p3702 = pneg %p239
      $region78: #{res_block.3} parent=39 // pred_check_branch
        %3704 = sbr.rel (%p3702) target = $region80
      $region79: #{res_block.3} parent=39 // pred_region
        _
      $region80: #{res_block.3} parent=39 // pred_fallthru
        _
      // Predicated region
      $region81: #{res_block.3} parent=39 // pred_check
        %p3705 = pneg %p260
      $region82: #{res_block.3} parent=39 // pred_check_branch
        %3707 = sbr.rel (%p3705) target = $region84
      $region83: #{res_block.3} parent=39 // pred_region
        _
      $region84: #{res_block.3} parent=39 // pred_fallthru
        _
    $region40: #{res_block.3} parent=5 // pred_fallthru
      _
    %p3708 = scmp.le.s32.totalorder 2, %s17
    // Predicated region
    $region85: #{res_block.3} parent=5 // pred_check
      %p3709 = pneg %p3708
    $region86: #{res_block.3} parent=5 // pred_check_branch
      %3711 = sbr.rel (%p3709) target = $region88
    $region87: #{res_block.3} parent=5 // pred_region
      %s3712 = ssub.s32 %s17, 2
      // Predicated region
      $region89: #{res_block.3} parent=87 // pred_check
        %p3713 = pneg %p156
      $region90: #{res_block.3} parent=87 // pred_check_branch
        %3715 = sbr.rel (%p3713) target = $region92
      $region91: #{res_block.3} parent=87 // pred_region
        %p3716 = scmp.lt.s32.totalorder %s23, 1
        %s3717 = scalar_select %p3716, %s23, 1
        %s3718 = smul.addr %s3717, 32
        %s3719 = smul.addr %s3718, 8
        %s3720 = scalar_lea.vmem %s5, %s3719
      $region92: #{res_block.3} parent=87 // pred_fallthru
        _
      // Predicated region
      $region93: #{res_block.3} parent=87 // pred_check
        %p3721 = pneg %p182
      $region94: #{res_block.3} parent=87 // pred_check_branch
        %3723 = sbr.rel (%p3721) target = $region96
      $region95: #{res_block.3} parent=87 // pred_region
        %p3724 = scmp.lt.s32.totalorder %s23, 1
        %s3725 = scalar_select %p3724, %s23, 1
        %s3726 = smul.addr %s3725, 32
        %s3727 = smul.addr %s3726, 8
        %s3728 = scalar_lea.vmem %s6, %s3727
      $region96: #{res_block.3} parent=87 // pred_fallthru
        _
    $region88: #{res_block.3} parent=5 // pred_fallthru
      _
  $region6: #{res_block.3} parent=0 // loop_footer
    %s21 = sadd.s32 1, %s17
  $region7: #{res_block.3} parent=0 // loop_footer_branch
    %16 = sbr.rel target = $region3
  $region8: #{res_block.3} parent=0 // loop_exit
    _

</llo_original>
